<compile_context>
chip_gen: v7x
topology: tpu7x:2x2x1
jax: 0.10.0
libtpu: 0.0.40
codegen_flags: <defaults>
</compile_context>

<pallas_src>
import jax
import jax.numpy as jnp
from jax.experimental import pallas as pl
from jax.experimental.pallas import tpu as pltpu

_VMEM_LIMIT = 48 * 1024 * 1024  # safe on v7x (64 MiB physical) and v5e/v6e


# ---------------------------------------------------------------------------
# Kernel 1: fused conv1+pool1 + conv2+pool2 + conv3+pool3 (single im2col
# matmul per conv, bf16 MXU inputs, f32 accumulation, bf16 output).
# NOTE: to load real torch weights one would reshape conv weights
# (Cout,Cin,3,3) -> (3,3,Cin,Cout) -> (9*Cin,Cout) once at init (zero runtime
# cost); synthetic weights below are created directly in that layout.
# ---------------------------------------------------------------------------
def _conv_stack_kernel(col1_ref, w1_ref, b1_ref, w2_ref, b2_ref, w3_ref, b3_ref,
                       o_ref, p1_ref, p2_ref, xp2_ref, xp3_ref):
    bt = col1_ref.shape[0]
    bf16, f32 = jnp.bfloat16, jnp.float32

    # -------- layer 1: conv 1->32 (im2col pre-gathered in wrapper), relu, pool
    col1 = col1_ref[...].reshape(bt * 28 * 32, 9)                 # aligned merge
    a1 = jnp.dot(col1, w1_ref[...], preferred_element_type=f32)   # (bt*896, 32)
    a1 = jnp.maximum(a1 + b1_ref[...], 0.0).astype(bf16)
    a1 = a1.reshape(bt, 14, 2, 32, 32)                            # aligned split
    hm1 = jnp.maximum(a1[:, :, 0], a1[:, :, 1])                   # H-pool (bt,14,32,32)
    for j in range(14):                                           # W-pool
        p1_ref[:, :, j:j + 1, :] = jnp.maximum(hm1[:, :, 2 * j:2 * j + 1, :],
                                               hm1[:, :, 2 * j + 1:2 * j + 2, :])

    # -------- layer 2: conv 32->64, relu, pool
    # zero only the border of the padded activation, then copy the interior.
    xp2_ref[:, 0:1, :, :] = jnp.zeros((bt, 1, 18, 32), bf16)
    xp2_ref[:, 15:16, :, :] = jnp.zeros((bt, 1, 18, 32), bf16)
    xp2_ref[:, :, 0:1, :] = jnp.zeros((bt, 16, 1, 32), bf16)
    xp2_ref[:, :, 15:18, :] = jnp.zeros((bt, 16, 3, 32), bf16)
    xp2_ref[:, 1:15, 1:15, :] = p1_ref[...]
    col2 = jnp.concatenate(
        [xp2_ref[:, dy:dy + 14, dx:dx + 16, :] for dy in range(3) for dx in range(3)],
        axis=-1)                                                  # (bt,14,16,288)
    a2 = jnp.dot(col2.reshape(bt * 14 * 16, 288), w2_ref[...],
                 preferred_element_type=f32)                      # (bt*224, 64)
    a2 = jnp.maximum(a2 + b2_ref[...], 0.0).astype(bf16)
    a2 = a2.reshape(bt, 7, 2, 16, 64)
    hm2 = jnp.maximum(a2[:, :, 0], a2[:, :, 1])                   # (bt,7,16,64)
    for j in range(7):
        p2_ref[:, :, j:j + 1, :] = jnp.maximum(hm2[:, :, 2 * j:2 * j + 1, :],
                                               hm2[:, :, 2 * j + 1:2 * j + 2, :])

    # -------- layer 3: conv 64->128, relu, pool(2,2,padding=1)
    xp3_ref[:, 0:1, :, :] = jnp.zeros((bt, 1, 10, 64), bf16)
    xp3_ref[:, 8:9, :, :] = jnp.zeros((bt, 1, 10, 64), bf16)
    xp3_ref[:, :, 0:1, :] = jnp.zeros((bt, 9, 1, 64), bf16)
    xp3_ref[:, :, 8:10, :] = jnp.zeros((bt, 9, 2, 64), bf16)
    xp3_ref[:, 1:8, 1:8, :] = p2_ref[...]
    col3 = jnp.concatenate(
        [xp3_ref[:, dy:dy + 7, dx:dx + 8, :] for dy in range(3) for dx in range(3)],
        axis=-1)                                                  # (bt,7,8,576)
    a3 = jnp.dot(col3.reshape(bt * 7 * 8, 576), w3_ref[...],
                 preferred_element_type=f32)                      # (bt*56, 128)
    a3 = jnp.maximum(a3 + b3_ref[...], 0.0).astype(bf16)
    a3 = a3.reshape(bt, 7, 8, 128)
    # MaxPool2d(2,2,padding=1): the padded (-inf) tap is clamped onto the
    # in-bounds tap (max(a, a) == max(-inf, a)), which is exact.
    amid = a3[:, 1:7].reshape(bt, 3, 2, 8, 128)
    hm3 = jnp.concatenate([a3[:, 0:1], jnp.maximum(amid[:, :, 0], amid[:, :, 1])],
                          axis=1)                                 # (bt,4,8,128)
    for j, (c0, c1) in enumerate(((0, 0), (1, 2), (3, 4), (5, 6))):
        o_ref[:, :, j:j + 1, :] = jnp.maximum(hm3[:, :, c0:c0 + 1, :],
                                              hm3[:, :, c1:c1 + 1, :])


# ---------------------------------------------------------------------------
# Kernel 2: FC head  logits = (relu(x @ W1 + b1)) @ W2 + b2   (whole-K, bf16 MXU)
# ---------------------------------------------------------------------------
def _fc_head_kernel(x_ref, w1_ref, b1_ref, w2_ref, b2_ref, o_ref):
    h = jnp.dot(x_ref[...], w1_ref[...], preferred_element_type=jnp.float32)
    h = jnp.maximum(h + b1_ref[...], 0.0).astype(jnp.bfloat16)
    # TODO(synk): torch.nn.Dropout(p=0.5) is identity at inference; no RNG applied.
    o_ref[...] = jnp.dot(h, w2_ref[...], preferred_element_type=jnp.float32) + b2_ref[...]


def _pick_bt(B):
    # >=2 grid steps when possible (v7x shards "parallel" grid axes over 2 TCs)
    if B >= 16:
        return 8
    if B >= 2:
        return max(1, B // 2)
    return 1


# ---------------------------------------------------------------------------
# Forward pass (mirrors CNN.forward)
# ---------------------------------------------------------------------------
def cnn_forward(params, x_nchw):
    B = x_nchw.shape[0]
    x = x_nchw[:, 0].astype(jnp.float32)                          # (B,28,28), C=1 squeezed

    # conv1 9-tap gather (im2col) in XLA: tiny pure data movement; keeps the
    # C=1 minor dim out of the TPU kernel (kernel sees K=9 on lanes instead).
    xpad = jnp.pad(x, ((0, 0), (1, 1), (1, 1)))
    col1 = jnp.stack([xpad[:, dy:dy + 28, dx:dx + 28]
                      for dy in range(3) for dx in range(3)], axis=-1)  # (B,28,28,9)
    col1 = jnp.pad(col1, ((0, 0), (0, 0), (0, 4), (0, 0))).astype(jnp.bfloat16)  # W 28->32

    bt = _pick_bt(B)
    Bp = ((B + bt - 1) // bt) * bt
    if Bp != B:
        col1 = jnp.pad(col1, ((0, Bp - B), (0, 0), (0, 0), (0, 0)))
    nb = Bp // bt

    conv_flops = 2 * Bp * (28 * 28 * 9 * 32 + 14 * 14 * 288 * 64 + 7 * 7 * 576 * 128)
    conv_bytes = (Bp * 28 * 32 * 9 * 2
                  + (9 * 32 + 288 * 64 + 576 * 128) * 2 + (32 + 64 + 128) * 4
                  + Bp * 4 * 4 * 128 * 2)

    p3 = pl.pallas_call(
        _conv_stack_kernel,
        out_shape=jax.ShapeDtypeStruct((Bp, 4, 4, 128), jnp.bfloat16),
        grid=(nb,),
        in_specs=[
            pl.BlockSpec((bt, 28, 32, 9), lambda i: (i, 0, 0, 0)),
            pl.BlockSpec((9, 32), lambda i: (0, 0)),
            pl.BlockSpec((1, 32), lambda i: (0, 0)),
            pl.BlockSpec((288, 64), lambda i: (0, 0)),
            pl.BlockSpec((1, 64), lambda i: (0, 0)),
            pl.BlockSpec((576, 128), lambda i: (0, 0)),
            pl.BlockSpec((1, 128), lambda i: (0, 0)),
        ],
        out_specs=pl.BlockSpec((bt, 4, 4, 128), lambda i: (i, 0, 0, 0)),
        scratch_shapes=[
            pltpu.VMEM((bt, 14, 14, 32), jnp.bfloat16),   # pooled layer-1 output
            pltpu.VMEM((bt, 7, 7, 64), jnp.bfloat16),     # pooled layer-2 output
            pltpu.VMEM((bt, 16, 18, 32), jnp.bfloat16),   # zero-padded layer-2 input
            pltpu.VMEM((bt, 9, 10, 64), jnp.bfloat16),    # zero-padded layer-3 input
        ],
        compiler_params=pltpu.CompilerParams(
            dimension_semantics=("parallel",),
            vmem_limit_bytes=_VMEM_LIMIT),
        cost_estimate=pl.CostEstimate(flops=conv_flops, transcendentals=0,
                                      bytes_accessed=conv_bytes),
    )(col1, params["conv1_w"], params["conv1_b"], params["conv2_w"],
      params["conv2_b"], params["conv3_w"], params["conv3_b"])

    # NHWC flatten ((h, w, c) feature order); the permutation vs torch's NCHW
    # view is folded into the (synthetic) fc1 weight row order.
    flat = p3[:B].reshape(B, 4 * 4 * 128)

    tmf = 8 if B <= 128 else 128
    Bf = ((B + tmf - 1) // tmf) * tmf
    if Bf != B:
        flat = jnp.pad(flat, ((0, Bf - B), (0, 0)))

    fc_flops = 2 * Bf * (2048 * 640 + 640 * 128)
    fc_bytes = (Bf * 2048 * 2 + (2048 * 640 + 640 * 128) * 2
                + (640 + 128) * 4 + Bf * 128 * 4)

    logits = pl.pallas_call(
        _fc_head_kernel,
        out_shape=jax.ShapeDtypeStruct((Bf, 128), jnp.float32),
        grid=(Bf // tmf,),
        in_specs=[
            pl.BlockSpec((tmf, 2048), lambda i: (i, 0)),
            pl.BlockSpec((2048, 640), lambda i: (0, 0)),
            pl.BlockSpec((1, 640), lambda i: (0, 0)),
            pl.BlockSpec((640, 128), lambda i: (0, 0)),
            pl.BlockSpec((1, 128), lambda i: (0, 0)),
        ],
        out_specs=pl.BlockSpec((tmf, 128), lambda i: (i, 0)),
        compiler_params=pltpu.CompilerParams(
            dimension_semantics=("parallel",),
            vmem_limit_bytes=_VMEM_LIMIT),
        cost_estimate=pl.CostEstimate(flops=fc_flops, transcendentals=0,
                                      bytes_accessed=fc_bytes),
    )(flat, params["fc1_w"], params["fc1_b"], params["fc2_w"], params["fc2_b"])

    return logits[:B, :10]


# ---------------------------------------------------------------------------
# Parameters (deterministic, synthetic — shapes match the PyTorch module).
# Conv weights stored pre-reshaped for the im2col matmul ((9*cin, cout), row
# order (dy,dx,cin)); fc weights padded to lane-dense widths (625->640,
# 10->128) with zeros; MXU-side weights in bf16, biases in f32.
# NOTE: loading real torch weights requires (a) (Cout,Cin,3,3)->(9*Cin,Cout)
# conv reshape and (b) permuting fc1 rows from (c,h,w) to (h,w,c) order —
# both are one-time init-side transforms.
# ---------------------------------------------------------------------------
def init_params(key):
    ks = jax.random.split(key, 10)

    def xavier(k, shape, fan_in, fan_out):
        std = (2.0 / (fan_in + fan_out)) ** 0.5
        return std * jax.random.normal(k, shape, dtype=jnp.float32)

    w1 = xavier(ks[0], (3, 3, 1, 32), 9, 32).reshape(9, 32)
    w2 = xavier(ks[1], (3, 3, 32, 64), 288, 64).reshape(288, 64)
    w3 = xavier(ks[2], (3, 3, 64, 128), 576, 128).reshape(576, 128)
    fc1 = xavier(ks[3], (2048, 625), 2048, 625)
    fc2 = xavier(ks[4], (625, 10), 625, 10)

    return {
        "conv1_w": w1.astype(jnp.bfloat16),
        "conv1_b": 0.01 * jax.random.normal(ks[5], (1, 32), jnp.float32),
        "conv2_w": w2.astype(jnp.bfloat16),
        "conv2_b": 0.01 * jax.random.normal(ks[6], (1, 64), jnp.float32),
        "conv3_w": w3.astype(jnp.bfloat16),
        "conv3_b": 0.01 * jax.random.normal(ks[7], (1, 128), jnp.float32),
        "fc1_w": jnp.pad(fc1, ((0, 0), (0, 15))).astype(jnp.bfloat16),       # 625->640
        "fc1_b": jnp.pad(0.01 * jax.random.normal(ks[8], (1, 625), jnp.float32),
                         ((0, 0), (0, 15))),
        "fc2_w": jnp.pad(fc2, ((0, 15), (0, 118))).astype(jnp.bfloat16),     # ->(640,128)
        "fc2_b": jnp.pad(0.01 * jax.random.normal(ks[9], (1, 10), jnp.float32),
                         ((0, 0), (0, 118))),
    }


if __name__ == "__main__":
    key = jax.random.PRNGKey(0)
    pkey, xkey = jax.random.split(key)
    params = init_params(pkey)

    # Spatial size 28 is implied by fc1's 4*4*128 input features (28->14->7->4).
    x = jax.random.normal(xkey, (2, 1, 28, 28), dtype=jnp.float32)

    fwd = jax.jit(cnn_forward)
    logits = fwd(params, x)
    jax.block_until_ready(logits)
    assert logits.shape == (2, 10) and logits.dtype == jnp.float32
    print("KERNEL_OK")
</pallas_src>

<mosaic_0001>
module attributes {stable_mosaic.version = 11 : i64} {
  func.func @_conv_stack_kernel(%arg0: i32, %arg1: memref<1x28x32x9xbf16, #tpu.memory_space<vmem>>, %arg2: memref<9x32xbf16, #tpu.memory_space<vmem>>, %arg3: memref<1x32xf32, #tpu.memory_space<vmem>>, %arg4: memref<288x64xbf16, #tpu.memory_space<vmem>>, %arg5: memref<1x64xf32, #tpu.memory_space<vmem>>, %arg6: memref<576x128xbf16, #tpu.memory_space<vmem>>, %arg7: memref<1x128xf32, #tpu.memory_space<vmem>>, %arg8: memref<1x4x4x128xbf16, #tpu.memory_space<vmem>>, %arg9: memref<1x14x14x32xbf16, #tpu.memory_space<vmem>>, %arg10: memref<1x7x7x64xbf16, #tpu.memory_space<vmem>>, %arg11: memref<1x16x18x32xbf16, #tpu.memory_space<vmem>>, %arg12: memref<1x9x10x64xbf16, #tpu.memory_space<vmem>>) attributes {dimension_semantics = [#tpu.dimension_semantics<parallel>], iteration_bounds = array<i64: 2>, scalar_prefetch = 0 : i64, scratch_operands = 4 : i64, tpu.core_type = #tpu.core_type<tc>, window_params = [{transform_indices = @transform_0, window_bounds = array<i64: 1, 28, 32, 9>}, {pipeline_mode = #tpu.pipeline_mode<synchronous>, transform_indices = @transform_1, window_bounds = array<i64: 9, 32>}, {pipeline_mode = #tpu.pipeline_mode<synchronous>, transform_indices = @transform_2, window_bounds = array<i64: 1, 32>}, {pipeline_mode = #tpu.pipeline_mode<synchronous>, transform_indices = @transform_3, window_bounds = array<i64: 288, 64>}, {pipeline_mode = #tpu.pipeline_mode<synchronous>, transform_indices = @transform_4, window_bounds = array<i64: 1, 64>}, {pipeline_mode = #tpu.pipeline_mode<synchronous>, transform_indices = @transform_5, window_bounds = array<i64: 576, 128>}, {pipeline_mode = #tpu.pipeline_mode<synchronous>, transform_indices = @transform_6, window_bounds = array<i64: 1, 128>}, {transform_indices = @transform_7, window_bounds = array<i64: 1, 4, 4, 128>}]} {
    %c0 = arith.constant 0 : index
    %c0_0 = arith.constant 0 : index
    %c0_1 = arith.constant 0 : index
    %c0_2 = arith.constant 0 : index
    %0 = vector.load %arg1[%c0, %c0_0, %c0_1, %c0_2] : memref<1x28x32x9xbf16, #tpu.memory_space<vmem>>, vector<1x28x32x9xbf16>
    %1 = vector.shape_cast %0 : vector<1x28x32x9xbf16> to vector<896x9xbf16>
    %c0_3 = arith.constant 0 : index
    %c0_4 = arith.constant 0 : index
    %2 = vector.load %arg2[%c0_3, %c0_4] : memref<9x32xbf16, #tpu.memory_space<vmem>>, vector<9x32xbf16>
    %cst = arith.constant dense<0.000000e+00> : vector<896x32xf32>
    %3 = tpu.matmul %1, %2, %cst {dimension_numbers = #tpu.dot_dimension_numbers<[1], [0], [0], [1], [0, 0, 1, 1], [], []>} : vector<896x9xbf16>, vector<9x32xbf16>, vector<896x32xf32> -> vector<896x32xf32>
    %c0_5 = arith.constant 0 : index
    %c0_6 = arith.constant 0 : index
    %4 = vector.load %arg3[%c0_5, %c0_6] : memref<1x32xf32, #tpu.memory_space<vmem>>, vector<1x32xf32>
    %5 = vector.broadcast %4 : vector<1x32xf32> to vector<896x32xf32>
    %6 = arith.addf %3, %5 : vector<896x32xf32>
    %cst_7 = arith.constant 0.000000e+00 : f32
    %7 = vector.broadcast %cst_7 : f32 to vector<896x32xf32>
    %8 = arith.maximumf %6, %7 : vector<896x32xf32>
    %9 = arith.truncf %8 : vector<896x32xf32> to vector<896x32xbf16>
    %10 = vector.shape_cast %9 : vector<896x32xbf16> to vector<1x14x2x32x32xbf16>
    %11 = vector.extract_strided_slice %10 {offsets = [0, 0, 0, 0, 0], sizes = [1, 14, 1, 32, 32], strides = [1, 1, 1, 1, 1]} : vector<1x14x2x32x32xbf16> to vector<1x14x1x32x32xbf16>
    %12 = vector.shape_cast %11 : vector<1x14x1x32x32xbf16> to vector<1x14x32x32xbf16>
    %13 = vector.extract_strided_slice %10 {offsets = [0, 0, 1, 0, 0], sizes = [1, 14, 1, 32, 32], strides = [1, 1, 1, 1, 1]} : vector<1x14x2x32x32xbf16> to vector<1x14x1x32x32xbf16>
    %14 = vector.shape_cast %13 : vector<1x14x1x32x32xbf16> to vector<1x14x32x32xbf16>
    %15 = arith.maximumf %12, %14 : vector<1x14x32x32xbf16>
    %16 = vector.extract_strided_slice %15 {offsets = [0, 0, 0, 0], sizes = [1, 14, 1, 32], strides = [1, 1, 1, 1]} : vector<1x14x32x32xbf16> to vector<1x14x1x32xbf16>
    %17 = vector.extract_strided_slice %15 {offsets = [0, 0, 1, 0], sizes = [1, 14, 1, 32], strides = [1, 1, 1, 1]} : vector<1x14x32x32xbf16> to vector<1x14x1x32xbf16>
    %18 = arith.maximumf %16, %17 : vector<1x14x1x32xbf16>
    %c0_8 = arith.constant 0 : index
    %c0_9 = arith.constant 0 : index
    %c0_10 = arith.constant 0 : index
    %c0_11 = arith.constant 0 : index
    %19 = vector.load %arg9[%c0_8, %c0_9, %c0_10, %c0_11] : memref<1x14x14x32xbf16, #tpu.memory_space<vmem>>, vector<1x14x1x32xbf16>
    tpu.vector_store %arg9[%c0_8, %c0_9, %c0_10, %c0_11], %18 {strides = array<i32>} : memref<1x14x14x32xbf16, #tpu.memory_space<vmem>>, vector<1x14x1x32xbf16>,
    %20 = vector.extract_strided_slice %15 {offsets = [0, 0, 2, 0], sizes = [1, 14, 1, 32], strides = [1, 1, 1, 1]} : vector<1x14x32x32xbf16> to vector<1x14x1x32xbf16>
    %21 = vector.extract_strided_slice %15 {offsets = [0, 0, 3, 0], sizes = [1, 14, 1, 32], strides = [1, 1, 1, 1]} : vector<1x14x32x32xbf16> to vector<1x14x1x32xbf16>
    %22 = arith.maximumf %20, %21 : vector<1x14x1x32xbf16>
    %c0_12 = arith.constant 0 : index
    %c0_13 = arith.constant 0 : index
    %c1 = arith.constant 1 : index
    %c0_14 = arith.constant 0 : index
    %23 = vector.load %arg9[%c0_12, %c0_13, %c1, %c0_14] : memref<1x14x14x32xbf16, #tpu.memory_space<vmem>>, vector<1x14x1x32xbf16>
    tpu.vector_store %arg9[%c0_12, %c0_13, %c1, %c0_14], %22 {strides = array<i32>} : memref<1x14x14x32xbf16, #tpu.memory_space<vmem>>, vector<1x14x1x32xbf16>,
    %24 = vector.extract_strided_slice %15 {offsets = [0, 0, 4, 0], sizes = [1, 14, 1, 32], strides = [1, 1, 1, 1]} : vector<1x14x32x32xbf16> to vector<1x14x1x32xbf16>
    %25 = vector.extract_strided_slice %15 {offsets = [0, 0, 5, 0], sizes = [1, 14, 1, 32], strides = [1, 1, 1, 1]} : vector<1x14x32x32xbf16> to vector<1x14x1x32xbf16>
    %26 = arith.maximumf %24, %25 : vector<1x14x1x32xbf16>
    %c0_15 = arith.constant 0 : index
    %c0_16 = arith.constant 0 : index
    %c2 = arith.constant 2 : index
    %c0_17 = arith.constant 0 : index
    %27 = vector.load %arg9[%c0_15, %c0_16, %c2, %c0_17] : memref<1x14x14x32xbf16, #tpu.memory_space<vmem>>, vector<1x14x1x32xbf16>
    tpu.vector_store %arg9[%c0_15, %c0_16, %c2, %c0_17], %26 {strides = array<i32>} : memref<1x14x14x32xbf16, #tpu.memory_space<vmem>>, vector<1x14x1x32xbf16>,
    %28 = vector.extract_strided_slice %15 {offsets = [0, 0, 6, 0], sizes = [1, 14, 1, 32], strides = [1, 1, 1, 1]} : vector<1x14x32x32xbf16> to vector<1x14x1x32xbf16>
    %29 = vector.extract_strided_slice %15 {offsets = [0, 0, 7, 0], sizes = [1, 14, 1, 32], strides = [1, 1, 1, 1]} : vector<1x14x32x32xbf16> to vector<1x14x1x32xbf16>
    %30 = arith.maximumf %28, %29 : vector<1x14x1x32xbf16>
    %c0_18 = arith.constant 0 : index
    %c0_19 = arith.constant 0 : index
    %c3 = arith.constant 3 : index
    %c0_20 = arith.constant 0 : index
    %31 = vector.load %arg9[%c0_18, %c0_19, %c3, %c0_20] : memref<1x14x14x32xbf16, #tpu.memory_space<vmem>>, vector<1x14x1x32xbf16>
    tpu.vector_store %arg9[%c0_18, %c0_19, %c3, %c0_20], %30 {strides = array<i32>} : memref<1x14x14x32xbf16, #tpu.memory_space<vmem>>, vector<1x14x1x32xbf16>,
    %32 = vector.extract_strided_slice %15 {offsets = [0, 0, 8, 0], sizes = [1, 14, 1, 32], strides = [1, 1, 1, 1]} : vector<1x14x32x32xbf16> to vector<1x14x1x32xbf16>
    %33 = vector.extract_strided_slice %15 {offsets = [0, 0, 9, 0], sizes = [1, 14, 1, 32], strides = [1, 1, 1, 1]} : vector<1x14x32x32xbf16> to vector<1x14x1x32xbf16>
    %34 = arith.maximumf %32, %33 : vector<1x14x1x32xbf16>
    %c0_21 = arith.constant 0 : index
    %c0_22 = arith.constant 0 : index
    %c4 = arith.constant 4 : index
    %c0_23 = arith.constant 0 : index
    %35 = vector.load %arg9[%c0_21, %c0_22, %c4, %c0_23] : memref<1x14x14x32xbf16, #tpu.memory_space<vmem>>, vector<1x14x1x32xbf16>
    tpu.vector_store %arg9[%c0_21, %c0_22, %c4, %c0_23], %34 {strides = array<i32>} : memref<1x14x14x32xbf16, #tpu.memory_space<vmem>>, vector<1x14x1x32xbf16>,
    %36 = vector.extract_strided_slice %15 {offsets = [0, 0, 10, 0], sizes = [1, 14, 1, 32], strides = [1, 1, 1, 1]} : vector<1x14x32x32xbf16> to vector<1x14x1x32xbf16>
    %37 = vector.extract_strided_slice %15 {offsets = [0, 0, 11, 0], sizes = [1, 14, 1, 32], strides = [1, 1, 1, 1]} : vector<1x14x32x32xbf16> to vector<1x14x1x32xbf16>
    %38 = arith.maximumf %36, %37 : vector<1x14x1x32xbf16>
    %c0_24 = arith.constant 0 : index
    %c0_25 = arith.constant 0 : index
    %c5 = arith.constant 5 : index
    %c0_26 = arith.constant 0 : index
    %39 = vector.load %arg9[%c0_24, %c0_25, %c5, %c0_26] : memref<1x14x14x32xbf16, #tpu.memory_space<vmem>>, vector<1x14x1x32xbf16>
    tpu.vector_store %arg9[%c0_24, %c0_25, %c5, %c0_26], %38 {strides = array<i32>} : memref<1x14x14x32xbf16, #tpu.memory_space<vmem>>, vector<1x14x1x32xbf16>,
    %40 = vector.extract_strided_slice %15 {offsets = [0, 0, 12, 0], sizes = [1, 14, 1, 32], strides = [1, 1, 1, 1]} : vector<1x14x32x32xbf16> to vector<1x14x1x32xbf16>
    %41 = vector.extract_strided_slice %15 {offsets = [0, 0, 13, 0], sizes = [1, 14, 1, 32], strides = [1, 1, 1, 1]} : vector<1x14x32x32xbf16> to vector<1x14x1x32xbf16>
    %42 = arith.maximumf %40, %41 : vector<1x14x1x32xbf16>
    %c0_27 = arith.constant 0 : index
    %c0_28 = arith.constant 0 : index
    %c6 = arith.constant 6 : index
    %c0_29 = arith.constant 0 : index
    %43 = vector.load %arg9[%c0_27, %c0_28, %c6, %c0_29] : memref<1x14x14x32xbf16, #tpu.memory_space<vmem>>, vector<1x14x1x32xbf16>
    tpu.vector_store %arg9[%c0_27, %c0_28, %c6, %c0_29], %42 {strides = array<i32>} : memref<1x14x14x32xbf16, #tpu.memory_space<vmem>>, vector<1x14x1x32xbf16>,
    %44 = vector.extract_strided_slice %15 {offsets = [0, 0, 14, 0], sizes = [1, 14, 1, 32], strides = [1, 1, 1, 1]} : vector<1x14x32x32xbf16> to vector<1x14x1x32xbf16>
    %45 = vector.extract_strided_slice %15 {offsets = [0, 0, 15, 0], sizes = [1, 14, 1, 32], strides = [1, 1, 1, 1]} : vector<1x14x32x32xbf16> to vector<1x14x1x32xbf16>
    %46 = arith.maximumf %44, %45 : vector<1x14x1x32xbf16>
    %c0_30 = arith.constant 0 : index
    %c0_31 = arith.constant 0 : index
    %c7 = arith.constant 7 : index
    %c0_32 = arith.constant 0 : index
    %47 = vector.load %arg9[%c0_30, %c0_31, %c7, %c0_32] : memref<1x14x14x32xbf16, #tpu.memory_space<vmem>>, vector<1x14x1x32xbf16>
    tpu.vector_store %arg9[%c0_30, %c0_31, %c7, %c0_32], %46 {strides = array<i32>} : memref<1x14x14x32xbf16, #tpu.memory_space<vmem>>, vector<1x14x1x32xbf16>,
    %48 = vector.extract_strided_slice %15 {offsets = [0, 0, 16, 0], sizes = [1, 14, 1, 32], strides = [1, 1, 1, 1]} : vector<1x14x32x32xbf16> to vector<1x14x1x32xbf16>
    %49 = vector.extract_strided_slice %15 {offsets = [0, 0, 17, 0], sizes = [1, 14, 1, 32], strides = [1, 1, 1, 1]} : vector<1x14x32x32xbf16> to vector<1x14x1x32xbf16>
    %50 = arith.maximumf %48, %49 : vector<1x14x1x32xbf16>
    %c0_33 = arith.constant 0 : index
    %c0_34 = arith.constant 0 : index
    %c8 = arith.constant 8 : index
    %c0_35 = arith.constant 0 : index
    %51 = vector.load %arg9[%c0_33, %c0_34, %c8, %c0_35] : memref<1x14x14x32xbf16, #tpu.memory_space<vmem>>, vector<1x14x1x32xbf16>
    tpu.vector_store %arg9[%c0_33, %c0_34, %c8, %c0_35], %50 {strides = array<i32>} : memref<1x14x14x32xbf16, #tpu.memory_space<vmem>>, vector<1x14x1x32xbf16>,
    %52 = vector.extract_strided_slice %15 {offsets = [0, 0, 18, 0], sizes = [1, 14, 1, 32], strides = [1, 1, 1, 1]} : vector<1x14x32x32xbf16> to vector<1x14x1x32xbf16>
    %53 = vector.extract_strided_slice %15 {offsets = [0, 0, 19, 0], sizes = [1, 14, 1, 32], strides = [1, 1, 1, 1]} : vector<1x14x32x32xbf16> to vector<1x14x1x32xbf16>
    %54 = arith.maximumf %52, %53 : vector<1x14x1x32xbf16>
    %c0_36 = arith.constant 0 : index
    %c0_37 = arith.constant 0 : index
    %c9 = arith.constant 9 : index
    %c0_38 = arith.constant 0 : index
    %55 = vector.load %arg9[%c0_36, %c0_37, %c9, %c0_38] : memref<1x14x14x32xbf16, #tpu.memory_space<vmem>>, vector<1x14x1x32xbf16>
    tpu.vector_store %arg9[%c0_36, %c0_37, %c9, %c0_38], %54 {strides = array<i32>} : memref<1x14x14x32xbf16, #tpu.memory_space<vmem>>, vector<1x14x1x32xbf16>,
    %56 = vector.extract_strided_slice %15 {offsets = [0, 0, 20, 0], sizes = [1, 14, 1, 32], strides = [1, 1, 1, 1]} : vector<1x14x32x32xbf16> to vector<1x14x1x32xbf16>
    %57 = vector.extract_strided_slice %15 {offsets = [0, 0, 21, 0], sizes = [1, 14, 1, 32], strides = [1, 1, 1, 1]} : vector<1x14x32x32xbf16> to vector<1x14x1x32xbf16>
    %58 = arith.maximumf %56, %57 : vector<1x14x1x32xbf16>
    %c0_39 = arith.constant 0 : index
    %c0_40 = arith.constant 0 : index
    %c10 = arith.constant 10 : index
    %c0_41 = arith.constant 0 : index
    %59 = vector.load %arg9[%c0_39, %c0_40, %c10, %c0_41] : memref<1x14x14x32xbf16, #tpu.memory_space<vmem>>, vector<1x14x1x32xbf16>
    tpu.vector_store %arg9[%c0_39, %c0_40, %c10, %c0_41], %58 {strides = array<i32>} : memref<1x14x14x32xbf16, #tpu.memory_space<vmem>>, vector<1x14x1x32xbf16>,
    %60 = vector.extract_strided_slice %15 {offsets = [0, 0, 22, 0], sizes = [1, 14, 1, 32], strides = [1, 1, 1, 1]} : vector<1x14x32x32xbf16> to vector<1x14x1x32xbf16>
    %61 = vector.extract_strided_slice %15 {offsets = [0, 0, 23, 0], sizes = [1, 14, 1, 32], strides = [1, 1, 1, 1]} : vector<1x14x32x32xbf16> to vector<1x14x1x32xbf16>
    %62 = arith.maximumf %60, %61 : vector<1x14x1x32xbf16>
    %c0_42 = arith.constant 0 : index
    %c0_43 = arith.constant 0 : index
    %c11 = arith.constant 11 : index
    %c0_44 = arith.constant 0 : index
    %63 = vector.load %arg9[%c0_42, %c0_43, %c11, %c0_44] : memref<1x14x14x32xbf16, #tpu.memory_space<vmem>>, vector<1x14x1x32xbf16>
    tpu.vector_store %arg9[%c0_42, %c0_43, %c11, %c0_44], %62 {strides = array<i32>} : memref<1x14x14x32xbf16, #tpu.memory_space<vmem>>, vector<1x14x1x32xbf16>,
    %64 = vector.extract_strided_slice %15 {offsets = [0, 0, 24, 0], sizes = [1, 14, 1, 32], strides = [1, 1, 1, 1]} : vector<1x14x32x32xbf16> to vector<1x14x1x32xbf16>
    %65 = vector.extract_strided_slice %15 {offsets = [0, 0, 25, 0], sizes = [1, 14, 1, 32], strides = [1, 1, 1, 1]} : vector<1x14x32x32xbf16> to vector<1x14x1x32xbf16>
    %66 = arith.maximumf %64, %65 : vector<1x14x1x32xbf16>
    %c0_45 = arith.constant 0 : index
    %c0_46 = arith.constant 0 : index
    %c12 = arith.constant 12 : index
    %c0_47 = arith.constant 0 : index
    %67 = vector.load %arg9[%c0_45, %c0_46, %c12, %c0_47] : memref<1x14x14x32xbf16, #tpu.memory_space<vmem>>, vector<1x14x1x32xbf16>
    tpu.vector_store %arg9[%c0_45, %c0_46, %c12, %c0_47], %66 {strides = array<i32>} : memref<1x14x14x32xbf16, #tpu.memory_space<vmem>>, vector<1x14x1x32xbf16>,
    %68 = vector.extract_strided_slice %15 {offsets = [0, 0, 26, 0], sizes = [1, 14, 1, 32], strides = [1, 1, 1, 1]} : vector<1x14x32x32xbf16> to vector<1x14x1x32xbf16>
    %69 = vector.extract_strided_slice %15 {offsets = [0, 0, 27, 0], sizes = [1, 14, 1, 32], strides = [1, 1, 1, 1]} : vector<1x14x32x32xbf16> to vector<1x14x1x32xbf16>
    %70 = arith.maximumf %68, %69 : vector<1x14x1x32xbf16>
    %c0_48 = arith.constant 0 : index
    %c0_49 = arith.constant 0 : index
    %c13 = arith.constant 13 : index
    %c0_50 = arith.constant 0 : index
    %71 = vector.load %arg9[%c0_48, %c0_49, %c13, %c0_50] : memref<1x14x14x32xbf16, #tpu.memory_space<vmem>>, vector<1x14x1x32xbf16>
    tpu.vector_store %arg9[%c0_48, %c0_49, %c13, %c0_50], %70 {strides = array<i32>} : memref<1x14x14x32xbf16, #tpu.memory_space<vmem>>, vector<1x14x1x32xbf16>,
    %cst_51 = arith.constant 0.000000e+00 : bf16
    %72 = vector.broadcast %cst_51 : bf16 to vector<1x1x18x32xbf16>
    %c0_52 = arith.constant 0 : index
    %c0_53 = arith.constant 0 : index
    %c0_54 = arith.constant 0 : index
    %c0_55 = arith.constant 0 : index
    %73 = vector.load %arg11[%c0_52, %c0_53, %c0_54, %c0_55] : memref<1x16x18x32xbf16, #tpu.memory_space<vmem>>, vector<1x1x18x32xbf16>
    tpu.vector_store %arg11[%c0_52, %c0_53, %c0_54, %c0_55], %72 {strides = array<i32>} : memref<1x16x18x32xbf16, #tpu.memory_space<vmem>>, vector<1x1x18x32xbf16>,
    %cst_56 = arith.constant 0.000000e+00 : bf16
    %74 = vector.broadcast %cst_56 : bf16 to vector<1x1x18x32xbf16>
    %c0_57 = arith.constant 0 : index
    %c15 = arith.constant 15 : index
    %c0_58 = arith.constant 0 : index
    %c0_59 = arith.constant 0 : index
    %75 = vector.load %arg11[%c0_57, %c15, %c0_58, %c0_59] : memref<1x16x18x32xbf16, #tpu.memory_space<vmem>>, vector<1x1x18x32xbf16>
    tpu.vector_store %arg11[%c0_57, %c15, %c0_58, %c0_59], %74 {strides = array<i32>} : memref<1x16x18x32xbf16, #tpu.memory_space<vmem>>, vector<1x1x18x32xbf16>,
    %cst_60 = arith.constant 0.000000e+00 : bf16
    %76 = vector.broadcast %cst_60 : bf16 to vector<1x16x1x32xbf16>
    %c0_61 = arith.constant 0 : index
    %c0_62 = arith.constant 0 : index
    %c0_63 = arith.constant 0 : index
    %c0_64 = arith.constant 0 : index
    %77 = vector.load %arg11[%c0_61, %c0_62, %c0_63, %c0_64] : memref<1x16x18x32xbf16, #tpu.memory_space<vmem>>, vector<1x16x1x32xbf16>
    tpu.vector_store %arg11[%c0_61, %c0_62, %c0_63, %c0_64], %76 {strides = array<i32>} : memref<1x16x18x32xbf16, #tpu.memory_space<vmem>>, vector<1x16x1x32xbf16>,
    %cst_65 = arith.constant 0.000000e+00 : bf16
    %78 = vector.broadcast %cst_65 : bf16 to vector<1x16x3x32xbf16>
    %c0_66 = arith.constant 0 : index
    %c0_67 = arith.constant 0 : index
    %c15_68 = arith.constant 15 : index
    %c0_69 = arith.constant 0 : index
    %79 = vector.load %arg11[%c0_66, %c0_67, %c15_68, %c0_69] : memref<1x16x18x32xbf16, #tpu.memory_space<vmem>>, vector<1x16x3x32xbf16>
    tpu.vector_store %arg11[%c0_66, %c0_67, %c15_68, %c0_69], %78 {strides = array<i32>} : memref<1x16x18x32xbf16, #tpu.memory_space<vmem>>, vector<1x16x3x32xbf16>,
    %c0_70 = arith.constant 0 : index
    %c0_71 = arith.constant 0 : index
    %c0_72 = arith.constant 0 : index
    %c0_73 = arith.constant 0 : index
    %80 = vector.load %arg9[%c0_70, %c0_71, %c0_72, %c0_73] : memref<1x14x14x32xbf16, #tpu.memory_space<vmem>>, vector<1x14x14x32xbf16>
    %c0_74 = arith.constant 0 : index
    %c1_75 = arith.constant 1 : index
    %c1_76 = arith.constant 1 : index
    %c0_77 = arith.constant 0 : index
    %81 = vector.load %arg11[%c0_74, %c1_75, %c1_76, %c0_77] : memref<1x16x18x32xbf16, #tpu.memory_space<vmem>>, vector<1x14x14x32xbf16>
    tpu.vector_store %arg11[%c0_74, %c1_75, %c1_76, %c0_77], %80 {strides = array<i32>} : memref<1x16x18x32xbf16, #tpu.memory_space<vmem>>, vector<1x14x14x32xbf16>,
    %c0_78 = arith.constant 0 : index
    %c0_79 = arith.constant 0 : index
    %c0_80 = arith.constant 0 : index
    %c0_81 = arith.constant 0 : index
    %82 = vector.load %arg11[%c0_78, %c0_79, %c0_80, %c0_81] : memref<1x16x18x32xbf16, #tpu.memory_space<vmem>>, vector<1x14x16x32xbf16>
    %c0_82 = arith.constant 0 : index
    %c0_83 = arith.constant 0 : index
    %c1_84 = arith.constant 1 : index
    %c0_85 = arith.constant 0 : index
    %83 = vector.load %arg11[%c0_82, %c0_83, %c1_84, %c0_85] : memref<1x16x18x32xbf16, #tpu.memory_space<vmem>>, vector<1x14x16x32xbf16>
    %c0_86 = arith.constant 0 : index
    %c0_87 = arith.constant 0 : index
    %c2_88 = arith.constant 2 : index
    %c0_89 = arith.constant 0 : index
    %84 = vector.load %arg11[%c0_86, %c0_87, %c2_88, %c0_89] : memref<1x16x18x32xbf16, #tpu.memory_space<vmem>>, vector<1x14x16x32xbf16>
    %c0_90 = arith.constant 0 : index
    %c1_91 = arith.constant 1 : index
    %c0_92 = arith.constant 0 : index
    %c0_93 = arith.constant 0 : index
    %85 = vector.load %arg11[%c0_90, %c1_91, %c0_92, %c0_93] : memref<1x16x18x32xbf16, #tpu.memory_space<vmem>>, vector<1x14x16x32xbf16>
    %c0_94 = arith.constant 0 : index
    %c1_95 = arith.constant 1 : index
    %c1_96 = arith.constant 1 : index
    %c0_97 = arith.constant 0 : index
    %86 = vector.load %arg11[%c0_94, %c1_95, %c1_96, %c0_97] : memref<1x16x18x32xbf16, #tpu.memory_space<vmem>>, vector<1x14x16x32xbf16>
    %c0_98 = arith.constant 0 : index
    %c1_99 = arith.constant 1 : index
    %c2_100 = arith.constant 2 : index
    %c0_101 = arith.constant 0 : index
    %87 = vector.load %arg11[%c0_98, %c1_99, %c2_100, %c0_101] : memref<1x16x18x32xbf16, #tpu.memory_space<vmem>>, vector<1x14x16x32xbf16>
    %c0_102 = arith.constant 0 : index
    %c2_103 = arith.constant 2 : index
    %c0_104 = arith.constant 0 : index
    %c0_105 = arith.constant 0 : index
    %88 = vector.load %arg11[%c0_102, %c2_103, %c0_104, %c0_105] : memref<1x16x18x32xbf16, #tpu.memory_space<vmem>>, vector<1x14x16x32xbf16>
    %c0_106 = arith.constant 0 : index
    %c2_107 = arith.constant 2 : index
    %c1_108 = arith.constant 1 : index
    %c0_109 = arith.constant 0 : index
    %89 = vector.load %arg11[%c0_106, %c2_107, %c1_108, %c0_109] : memref<1x16x18x32xbf16, #tpu.memory_space<vmem>>, vector<1x14x16x32xbf16>
    %c0_110 = arith.constant 0 : index
    %c2_111 = arith.constant 2 : index
    %c2_112 = arith.constant 2 : index
    %c0_113 = arith.constant 0 : index
    %90 = vector.load %arg11[%c0_110, %c2_111, %c2_112, %c0_113] : memref<1x16x18x32xbf16, #tpu.memory_space<vmem>>, vector<1x14x16x32xbf16>
    %91 = tpu.concatenate %82, %83, %84, %85, %86, %87, %88, %89, %90 in 3 : vector<1x14x16x32xbf16>, vector<1x14x16x32xbf16>, vector<1x14x16x32xbf16>, vector<1x14x16x32xbf16>, vector<1x14x16x32xbf16>, vector<1x14x16x32xbf16>, vector<1x14x16x32xbf16>, vector<1x14x16x32xbf16>, vector<1x14x16x32xbf16> -> vector<1x14x16x288xbf16>
    %92 = vector.shape_cast %91 : vector<1x14x16x288xbf16> to vector<224x288xbf16>
    %c0_114 = arith.constant 0 : index
    %c0_115 = arith.constant 0 : index
    %93 = vector.load %arg4[%c0_114, %c0_115] : memref<288x64xbf16, #tpu.memory_space<vmem>>, vector<288x64xbf16>
    %cst_116 = arith.constant dense<0.000000e+00> : vector<224x64xf32>
    %94 = tpu.matmul %92, %93, %cst_116 {dimension_numbers = #tpu.dot_dimension_numbers<[1], [0], [0], [1], [0, 0, 1, 1], [], []>} : vector<224x288xbf16>, vector<288x64xbf16>, vector<224x64xf32> -> vector<224x64xf32>
    %c0_117 = arith.constant 0 : index
    %c0_118 = arith.constant 0 : index
    %95 = vector.load %arg5[%c0_117, %c0_118] : memref<1x64xf32, #tpu.memory_space<vmem>>, vector<1x64xf32>
    %96 = vector.broadcast %95 : vector<1x64xf32> to vector<224x64xf32>
    %97 = arith.addf %94, %96 : vector<224x64xf32>
    %cst_119 = arith.constant 0.000000e+00 : f32
    %98 = vector.broadcast %cst_119 : f32 to vector<224x64xf32>
    %99 = arith.maximumf %97, %98 : vector<224x64xf32>
    %100 = arith.truncf %99 : vector<224x64xf32> to vector<224x64xbf16>
    %101 = vector.shape_cast %100 : vector<224x64xbf16> to vector<1x7x2x16x64xbf16>
    %102 = vector.extract_strided_slice %101 {offsets = [0, 0, 0, 0, 0], sizes = [1, 7, 1, 16, 64], strides = [1, 1, 1, 1, 1]} : vector<1x7x2x16x64xbf16> to vector<1x7x1x16x64xbf16>
    %103 = vector.shape_cast %102 : vector<1x7x1x16x64xbf16> to vector<1x7x16x64xbf16>
    %104 = vector.extract_strided_slice %101 {offsets = [0, 0, 1, 0, 0], sizes = [1, 7, 1, 16, 64], strides = [1, 1, 1, 1, 1]} : vector<1x7x2x16x64xbf16> to vector<1x7x1x16x64xbf16>
    %105 = vector.shape_cast %104 : vector<1x7x1x16x64xbf16> to vector<1x7x16x64xbf16>
    %106 = arith.maximumf %103, %105 : vector<1x7x16x64xbf16>
    %107 = vector.extract_strided_slice %106 {offsets = [0, 0, 0, 0], sizes = [1, 7, 1, 64], strides = [1, 1, 1, 1]} : vector<1x7x16x64xbf16> to vector<1x7x1x64xbf16>
    %108 = vector.extract_strided_slice %106 {offsets = [0, 0, 1, 0], sizes = [1, 7, 1, 64], strides = [1, 1, 1, 1]} : vector<1x7x16x64xbf16> to vector<1x7x1x64xbf16>
    %109 = arith.maximumf %107, %108 : vector<1x7x1x64xbf16>
    %c0_120 = arith.constant 0 : index
    %c0_121 = arith.constant 0 : index
    %c0_122 = arith.constant 0 : index
    %c0_123 = arith.constant 0 : index
    %110 = vector.load %arg10[%c0_120, %c0_121, %c0_122, %c0_123] : memref<1x7x7x64xbf16, #tpu.memory_space<vmem>>, vector<1x7x1x64xbf16>
    tpu.vector_store %arg10[%c0_120, %c0_121, %c0_122, %c0_123], %109 {strides = array<i32>} : memref<1x7x7x64xbf16, #tpu.memory_space<vmem>>, vector<1x7x1x64xbf16>,
    %111 = vector.extract_strided_slice %106 {offsets = [0, 0, 2, 0], sizes = [1, 7, 1, 64], strides = [1, 1, 1, 1]} : vector<1x7x16x64xbf16> to vector<1x7x1x64xbf16>
    %112 = vector.extract_strided_slice %106 {offsets = [0, 0, 3, 0], sizes = [1, 7, 1, 64], strides = [1, 1, 1, 1]} : vector<1x7x16x64xbf16> to vector<1x7x1x64xbf16>
    %113 = arith.maximumf %111, %112 : vector<1x7x1x64xbf16>
    %c0_124 = arith.constant 0 : index
    %c0_125 = arith.constant 0 : index
    %c1_126 = arith.constant 1 : index
    %c0_127 = arith.constant 0 : index
    %114 = vector.load %arg10[%c0_124, %c0_125, %c1_126, %c0_127] : memref<1x7x7x64xbf16, #tpu.memory_space<vmem>>, vector<1x7x1x64xbf16>
    tpu.vector_store %arg10[%c0_124, %c0_125, %c1_126, %c0_127], %113 {strides = array<i32>} : memref<1x7x7x64xbf16, #tpu.memory_space<vmem>>, vector<1x7x1x64xbf16>,
    %115 = vector.extract_strided_slice %106 {offsets = [0, 0, 4, 0], sizes = [1, 7, 1, 64], strides = [1, 1, 1, 1]} : vector<1x7x16x64xbf16> to vector<1x7x1x64xbf16>
    %116 = vector.extract_strided_slice %106 {offsets = [0, 0, 5, 0], sizes = [1, 7, 1, 64], strides = [1, 1, 1, 1]} : vector<1x7x16x64xbf16> to vector<1x7x1x64xbf16>
    %117 = arith.maximumf %115, %116 : vector<1x7x1x64xbf16>
    %c0_128 = arith.constant 0 : index
    %c0_129 = arith.constant 0 : index
    %c2_130 = arith.constant 2 : index
    %c0_131 = arith.constant 0 : index
    %118 = vector.load %arg10[%c0_128, %c0_129, %c2_130, %c0_131] : memref<1x7x7x64xbf16, #tpu.memory_space<vmem>>, vector<1x7x1x64xbf16>
    tpu.vector_store %arg10[%c0_128, %c0_129, %c2_130, %c0_131], %117 {strides = array<i32>} : memref<1x7x7x64xbf16, #tpu.memory_space<vmem>>, vector<1x7x1x64xbf16>,
    %119 = vector.extract_strided_slice %106 {offsets = [0, 0, 6, 0], sizes = [1, 7, 1, 64], strides = [1, 1, 1, 1]} : vector<1x7x16x64xbf16> to vector<1x7x1x64xbf16>
    %120 = vector.extract_strided_slice %106 {offsets = [0, 0, 7, 0], sizes = [1, 7, 1, 64], strides = [1, 1, 1, 1]} : vector<1x7x16x64xbf16> to vector<1x7x1x64xbf16>
    %121 = arith.maximumf %119, %120 : vector<1x7x1x64xbf16>
    %c0_132 = arith.constant 0 : index
    %c0_133 = arith.constant 0 : index
    %c3_134 = arith.constant 3 : index
    %c0_135 = arith.constant 0 : index
    %122 = vector.load %arg10[%c0_132, %c0_133, %c3_134, %c0_135] : memref<1x7x7x64xbf16, #tpu.memory_space<vmem>>, vector<1x7x1x64xbf16>
    tpu.vector_store %arg10[%c0_132, %c0_133, %c3_134, %c0_135], %121 {strides = array<i32>} : memref<1x7x7x64xbf16, #tpu.memory_space<vmem>>, vector<1x7x1x64xbf16>,
    %123 = vector.extract_strided_slice %106 {offsets = [0, 0, 8, 0], sizes = [1, 7, 1, 64], strides = [1, 1, 1, 1]} : vector<1x7x16x64xbf16> to vector<1x7x1x64xbf16>
    %124 = vector.extract_strided_slice %106 {offsets = [0, 0, 9, 0], sizes = [1, 7, 1, 64], strides = [1, 1, 1, 1]} : vector<1x7x16x64xbf16> to vector<1x7x1x64xbf16>
    %125 = arith.maximumf %123, %124 : vector<1x7x1x64xbf16>
    %c0_136 = arith.constant 0 : index
    %c0_137 = arith.constant 0 : index
    %c4_138 = arith.constant 4 : index
    %c0_139 = arith.constant 0 : index
    %126 = vector.load %arg10[%c0_136, %c0_137, %c4_138, %c0_139] : memref<1x7x7x64xbf16, #tpu.memory_space<vmem>>, vector<1x7x1x64xbf16>
    tpu.vector_store %arg10[%c0_136, %c0_137, %c4_138, %c0_139], %125 {strides = array<i32>} : memref<1x7x7x64xbf16, #tpu.memory_space<vmem>>, vector<1x7x1x64xbf16>,
    %127 = vector.extract_strided_slice %106 {offsets = [0, 0, 10, 0], sizes = [1, 7, 1, 64], strides = [1, 1, 1, 1]} : vector<1x7x16x64xbf16> to vector<1x7x1x64xbf16>
    %128 = vector.extract_strided_slice %106 {offsets = [0, 0, 11, 0], sizes = [1, 7, 1, 64], strides = [1, 1, 1, 1]} : vector<1x7x16x64xbf16> to vector<1x7x1x64xbf16>
    %129 = arith.maximumf %127, %128 : vector<1x7x1x64xbf16>
    %c0_140 = arith.constant 0 : index
    %c0_141 = arith.constant 0 : index
    %c5_142 = arith.constant 5 : index
    %c0_143 = arith.constant 0 : index
    %130 = vector.load %arg10[%c0_140, %c0_141, %c5_142, %c0_143] : memref<1x7x7x64xbf16, #tpu.memory_space<vmem>>, vector<1x7x1x64xbf16>
    tpu.vector_store %arg10[%c0_140, %c0_141, %c5_142, %c0_143], %129 {strides = array<i32>} : memref<1x7x7x64xbf16, #tpu.memory_space<vmem>>, vector<1x7x1x64xbf16>,
    %131 = vector.extract_strided_slice %106 {offsets = [0, 0, 12, 0], sizes = [1, 7, 1, 64], strides = [1, 1, 1, 1]} : vector<1x7x16x64xbf16> to vector<1x7x1x64xbf16>
    %132 = vector.extract_strided_slice %106 {offsets = [0, 0, 13, 0], sizes = [1, 7, 1, 64], strides = [1, 1, 1, 1]} : vector<1x7x16x64xbf16> to vector<1x7x1x64xbf16>
    %133 = arith.maximumf %131, %132 : vector<1x7x1x64xbf16>
    %c0_144 = arith.constant 0 : index
    %c0_145 = arith.constant 0 : index
    %c6_146 = arith.constant 6 : index
    %c0_147 = arith.constant 0 : index
    %134 = vector.load %arg10[%c0_144, %c0_145, %c6_146, %c0_147] : memref<1x7x7x64xbf16, #tpu.memory_space<vmem>>, vector<1x7x1x64xbf16>
    tpu.vector_store %arg10[%c0_144, %c0_145, %c6_146, %c0_147], %133 {strides = array<i32>} : memref<1x7x7x64xbf16, #tpu.memory_space<vmem>>, vector<1x7x1x64xbf16>,
    %cst_148 = arith.constant 0.000000e+00 : bf16
    %135 = vector.broadcast %cst_148 : bf16 to vector<1x1x10x64xbf16>
    %c0_149 = arith.constant 0 : index
    %c0_150 = arith.constant 0 : index
    %c0_151 = arith.constant 0 : index
    %c0_152 = arith.constant 0 : index
    %136 = vector.load %arg12[%c0_149, %c0_150, %c0_151, %c0_152] : memref<1x9x10x64xbf16, #tpu.memory_space<vmem>>, vector<1x1x10x64xbf16>
    tpu.vector_store %arg12[%c0_149, %c0_150, %c0_151, %c0_152], %135 {strides = array<i32>} : memref<1x9x10x64xbf16, #tpu.memory_space<vmem>>, vector<1x1x10x64xbf16>,
    %cst_153 = arith.constant 0.000000e+00 : bf16
    %137 = vector.broadcast %cst_153 : bf16 to vector<1x1x10x64xbf16>
    %c0_154 = arith.constant 0 : index
    %c8_155 = arith.constant 8 : index
    %c0_156 = arith.constant 0 : index
    %c0_157 = arith.constant 0 : index
    %138 = vector.load %arg12[%c0_154, %c8_155, %c0_156, %c0_157] : memref<1x9x10x64xbf16, #tpu.memory_space<vmem>>, vector<1x1x10x64xbf16>
    tpu.vector_store %arg12[%c0_154, %c8_155, %c0_156, %c0_157], %137 {strides = array<i32>} : memref<1x9x10x64xbf16, #tpu.memory_space<vmem>>, vector<1x1x10x64xbf16>,
    %cst_158 = arith.constant 0.000000e+00 : bf16
    %139 = vector.broadcast %cst_158 : bf16 to vector<1x9x1x64xbf16>
    %c0_159 = arith.constant 0 : index
    %c0_160 = arith.constant 0 : index
    %c0_161 = arith.constant 0 : index
    %c0_162 = arith.constant 0 : index
    %140 = vector.load %arg12[%c0_159, %c0_160, %c0_161, %c0_162] : memref<1x9x10x64xbf16, #tpu.memory_space<vmem>>, vector<1x9x1x64xbf16>
    tpu.vector_store %arg12[%c0_159, %c0_160, %c0_161, %c0_162], %139 {strides = array<i32>} : memref<1x9x10x64xbf16, #tpu.memory_space<vmem>>, vector<1x9x1x64xbf16>,
    %cst_163 = arith.constant 0.000000e+00 : bf16
    %141 = vector.broadcast %cst_163 : bf16 to vector<1x9x2x64xbf16>
    %c0_164 = arith.constant 0 : index
    %c0_165 = arith.constant 0 : index
    %c8_166 = arith.constant 8 : index
    %c0_167 = arith.constant 0 : index
    %142 = vector.load %arg12[%c0_164, %c0_165, %c8_166, %c0_167] : memref<1x9x10x64xbf16, #tpu.memory_space<vmem>>, vector<1x9x2x64xbf16>
    tpu.vector_store %arg12[%c0_164, %c0_165, %c8_166, %c0_167], %141 {strides = array<i32>} : memref<1x9x10x64xbf16, #tpu.memory_space<vmem>>, vector<1x9x2x64xbf16>,
    %c0_168 = arith.constant 0 : index
    %c0_169 = arith.constant 0 : index
    %c0_170 = arith.constant 0 : index
    %c0_171 = arith.constant 0 : index
    %143 = vector.load %arg10[%c0_168, %c0_169, %c0_170, %c0_171] : memref<1x7x7x64xbf16, #tpu.memory_space<vmem>>, vector<1x7x7x64xbf16>
    %c0_172 = arith.constant 0 : index
    %c1_173 = arith.constant 1 : index
    %c1_174 = arith.constant 1 : index
    %c0_175 = arith.constant 0 : index
    %144 = vector.load %arg12[%c0_172, %c1_173, %c1_174, %c0_175] : memref<1x9x10x64xbf16, #tpu.memory_space<vmem>>, vector<1x7x7x64xbf16>
    tpu.vector_store %arg12[%c0_172, %c1_173, %c1_174, %c0_175], %143 {strides = array<i32>} : memref<1x9x10x64xbf16, #tpu.memory_space<vmem>>, vector<1x7x7x64xbf16>,
    %c0_176 = arith.constant 0 : index
    %c0_177 = arith.constant 0 : index
    %c0_178 = arith.constant 0 : index
    %c0_179 = arith.constant 0 : index
    %145 = vector.load %arg12[%c0_176, %c0_177, %c0_178, %c0_179] : memref<1x9x10x64xbf16, #tpu.memory_space<vmem>>, vector<1x7x8x64xbf16>
    %c0_180 = arith.constant 0 : index
    %c0_181 = arith.constant 0 : index
    %c1_182 = arith.constant 1 : index
    %c0_183 = arith.constant 0 : index
    %146 = vector.load %arg12[%c0_180, %c0_181, %c1_182, %c0_183] : memref<1x9x10x64xbf16, #tpu.memory_space<vmem>>, vector<1x7x8x64xbf16>
    %c0_184 = arith.constant 0 : index
    %c0_185 = arith.constant 0 : index
    %c2_186 = arith.constant 2 : index
    %c0_187 = arith.constant 0 : index
    %147 = vector.load %arg12[%c0_184, %c0_185, %c2_186, %c0_187] : memref<1x9x10x64xbf16, #tpu.memory_space<vmem>>, vector<1x7x8x64xbf16>
    %c0_188 = arith.constant 0 : index
    %c1_189 = arith.constant 1 : index
    %c0_190 = arith.constant 0 : index
    %c0_191 = arith.constant 0 : index
    %148 = vector.load %arg12[%c0_188, %c1_189, %c0_190, %c0_191] : memref<1x9x10x64xbf16, #tpu.memory_space<vmem>>, vector<1x7x8x64xbf16>
    %c0_192 = arith.constant 0 : index
    %c1_193 = arith.constant 1 : index
    %c1_194 = arith.constant 1 : index
    %c0_195 = arith.constant 0 : index
    %149 = vector.load %arg12[%c0_192, %c1_193, %c1_194, %c0_195] : memref<1x9x10x64xbf16, #tpu.memory_space<vmem>>, vector<1x7x8x64xbf16>
    %c0_196 = arith.constant 0 : index
    %c1_197 = arith.constant 1 : index
    %c2_198 = arith.constant 2 : index
    %c0_199 = arith.constant 0 : index
    %150 = vector.load %arg12[%c0_196, %c1_197, %c2_198, %c0_199] : memref<1x9x10x64xbf16, #tpu.memory_space<vmem>>, vector<1x7x8x64xbf16>
    %c0_200 = arith.constant 0 : index
    %c2_201 = arith.constant 2 : index
    %c0_202 = arith.constant 0 : index
    %c0_203 = arith.constant 0 : index
    %151 = vector.load %arg12[%c0_200, %c2_201, %c0_202, %c0_203] : memref<1x9x10x64xbf16, #tpu.memory_space<vmem>>, vector<1x7x8x64xbf16>
    %c0_204 = arith.constant 0 : index
    %c2_205 = arith.constant 2 : index
    %c1_206 = arith.constant 1 : index
    %c0_207 = arith.constant 0 : index
    %152 = vector.load %arg12[%c0_204, %c2_205, %c1_206, %c0_207] : memref<1x9x10x64xbf16, #tpu.memory_space<vmem>>, vector<1x7x8x64xbf16>
    %c0_208 = arith.constant 0 : index
    %c2_209 = arith.constant 2 : index
    %c2_210 = arith.constant 2 : index
    %c0_211 = arith.constant 0 : index
    %153 = vector.load %arg12[%c0_208, %c2_209, %c2_210, %c0_211] : memref<1x9x10x64xbf16, #tpu.memory_space<vmem>>, vector<1x7x8x64xbf16>
    %154 = tpu.concatenate %145, %146, %147, %148, %149, %150, %151, %152, %153 in 3 : vector<1x7x8x64xbf16>, vector<1x7x8x64xbf16>, vector<1x7x8x64xbf16>, vector<1x7x8x64xbf16>, vector<1x7x8x64xbf16>, vector<1x7x8x64xbf16>, vector<1x7x8x64xbf16>, vector<1x7x8x64xbf16>, vector<1x7x8x64xbf16> -> vector<1x7x8x576xbf16>
    %155 = vector.shape_cast %154 : vector<1x7x8x576xbf16> to vector<56x576xbf16>
    %c0_212 = arith.constant 0 : index
    %c0_213 = arith.constant 0 : index
    %156 = vector.load %arg6[%c0_212, %c0_213] : memref<576x128xbf16, #tpu.memory_space<vmem>>, vector<576x128xbf16>
    %cst_214 = arith.constant dense<0.000000e+00> : vector<56x128xf32>
    %157 = tpu.matmul %155, %156, %cst_214 {dimension_numbers = #tpu.dot_dimension_numbers<[1], [0], [0], [1], [0, 0, 1, 1], [], []>} : vector<56x576xbf16>, vector<576x128xbf16>, vector<56x128xf32> -> vector<56x128xf32>
    %c0_215 = arith.constant 0 : index
    %c0_216 = arith.constant 0 : index
    %158 = vector.load %arg7[%c0_215, %c0_216] : memref<1x128xf32, #tpu.memory_space<vmem>>, vector<1x128xf32>
    %159 = vector.broadcast %158 : vector<1x128xf32> to vector<56x128xf32>
    %160 = arith.addf %157, %159 : vector<56x128xf32>
    %cst_217 = arith.constant 0.000000e+00 : f32
    %161 = vector.broadcast %cst_217 : f32 to vector<56x128xf32>
    %162 = arith.maximumf %160, %161 : vector<56x128xf32>
    %163 = arith.truncf %162 : vector<56x128xf32> to vector<56x128xbf16>
    %164 = vector.shape_cast %163 : vector<56x128xbf16> to vector<1x7x8x128xbf16>
    %165 = vector.extract_strided_slice %164 {offsets = [0, 1, 0, 0], sizes = [1, 6, 8, 128], strides = [1, 1, 1, 1]} : vector<1x7x8x128xbf16> to vector<1x6x8x128xbf16>
    %166 = vector.shape_cast %165 : vector<1x6x8x128xbf16> to vector<1x3x2x8x128xbf16>
    %167 = vector.extract_strided_slice %164 {offsets = [0, 0, 0, 0], sizes = [1, 1, 8, 128], strides = [1, 1, 1, 1]} : vector<1x7x8x128xbf16> to vector<1x1x8x128xbf16>
    %168 = vector.extract_strided_slice %166 {offsets = [0, 0, 0, 0, 0], sizes = [1, 3, 1, 8, 128], strides = [1, 1, 1, 1, 1]} : vector<1x3x2x8x128xbf16> to vector<1x3x1x8x128xbf16>
    %169 = vector.shape_cast %168 : vector<1x3x1x8x128xbf16> to vector<1x3x8x128xbf16>
    %170 = vector.extract_strided_slice %166 {offsets = [0, 0, 1, 0, 0], sizes = [1, 3, 1, 8, 128], strides = [1, 1, 1, 1, 1]} : vector<1x3x2x8x128xbf16> to vector<1x3x1x8x128xbf16>
    %171 = vector.shape_cast %170 : vector<1x3x1x8x128xbf16> to vector<1x3x8x128xbf16>
    %172 = arith.maximumf %169, %171 : vector<1x3x8x128xbf16>
    %173 = tpu.concatenate %167, %172 in 1 : vector<1x1x8x128xbf16>, vector<1x3x8x128xbf16> -> vector<1x4x8x128xbf16>
    %174 = vector.extract_strided_slice %173 {offsets = [0, 0, 0, 0], sizes = [1, 4, 1, 128], strides = [1, 1, 1, 1]} : vector<1x4x8x128xbf16> to vector<1x4x1x128xbf16>
    %175 = vector.extract_strided_slice %173 {offsets = [0, 0, 0, 0], sizes = [1, 4, 1, 128], strides = [1, 1, 1, 1]} : vector<1x4x8x128xbf16> to vector<1x4x1x128xbf16>
    %176 = arith.maximumf %174, %175 : vector<1x4x1x128xbf16>
    %c0_218 = arith.constant 0 : index
    %c0_219 = arith.constant 0 : index
    %c0_220 = arith.constant 0 : index
    %c0_221 = arith.constant 0 : index
    %177 = vector.load %arg8[%c0_218, %c0_219, %c0_220, %c0_221] : memref<1x4x4x128xbf16, #tpu.memory_space<vmem>>, vector<1x4x1x128xbf16>
    tpu.vector_store %arg8[%c0_218, %c0_219, %c0_220, %c0_221], %176 {strides = array<i32>} : memref<1x4x4x128xbf16, #tpu.memory_space<vmem>>, vector<1x4x1x128xbf16>,
    %178 = vector.extract_strided_slice %173 {offsets = [0, 0, 1, 0], sizes = [1, 4, 1, 128], strides = [1, 1, 1, 1]} : vector<1x4x8x128xbf16> to vector<1x4x1x128xbf16>
    %179 = vector.extract_strided_slice %173 {offsets = [0, 0, 2, 0], sizes = [1, 4, 1, 128], strides = [1, 1, 1, 1]} : vector<1x4x8x128xbf16> to vector<1x4x1x128xbf16>
    %180 = arith.maximumf %178, %179 : vector<1x4x1x128xbf16>
    %c0_222 = arith.constant 0 : index
    %c0_223 = arith.constant 0 : index
    %c1_224 = arith.constant 1 : index
    %c0_225 = arith.constant 0 : index
    %181 = vector.load %arg8[%c0_222, %c0_223, %c1_224, %c0_225] : memref<1x4x4x128xbf16, #tpu.memory_space<vmem>>, vector<1x4x1x128xbf16>
    tpu.vector_store %arg8[%c0_222, %c0_223, %c1_224, %c0_225], %180 {strides = array<i32>} : memref<1x4x4x128xbf16, #tpu.memory_space<vmem>>, vector<1x4x1x128xbf16>,
    %182 = vector.extract_strided_slice %173 {offsets = [0, 0, 3, 0], sizes = [1, 4, 1, 128], strides = [1, 1, 1, 1]} : vector<1x4x8x128xbf16> to vector<1x4x1x128xbf16>
    %183 = vector.extract_strided_slice %173 {offsets = [0, 0, 4, 0], sizes = [1, 4, 1, 128], strides = [1, 1, 1, 1]} : vector<1x4x8x128xbf16> to vector<1x4x1x128xbf16>
    %184 = arith.maximumf %182, %183 : vector<1x4x1x128xbf16>
    %c0_226 = arith.constant 0 : index
    %c0_227 = arith.constant 0 : index
    %c2_228 = arith.constant 2 : index
    %c0_229 = arith.constant 0 : index
    %185 = vector.load %arg8[%c0_226, %c0_227, %c2_228, %c0_229] : memref<1x4x4x128xbf16, #tpu.memory_space<vmem>>, vector<1x4x1x128xbf16>
    tpu.vector_store %arg8[%c0_226, %c0_227, %c2_228, %c0_229], %184 {strides = array<i32>} : memref<1x4x4x128xbf16, #tpu.memory_space<vmem>>, vector<1x4x1x128xbf16>,
    %186 = vector.extract_strided_slice %173 {offsets = [0, 0, 5, 0], sizes = [1, 4, 1, 128], strides = [1, 1, 1, 1]} : vector<1x4x8x128xbf16> to vector<1x4x1x128xbf16>
    %187 = vector.extract_strided_slice %173 {offsets = [0, 0, 6, 0], sizes = [1, 4, 1, 128], strides = [1, 1, 1, 1]} : vector<1x4x8x128xbf16> to vector<1x4x1x128xbf16>
    %188 = arith.maximumf %186, %187 : vector<1x4x1x128xbf16>
    %c0_230 = arith.constant 0 : index
    %c0_231 = arith.constant 0 : index
    %c3_232 = arith.constant 3 : index
    %c0_233 = arith.constant 0 : index
    %189 = vector.load %arg8[%c0_230, %c0_231, %c3_232, %c0_233] : memref<1x4x4x128xbf16, #tpu.memory_space<vmem>>, vector<1x4x1x128xbf16>
    tpu.vector_store %arg8[%c0_230, %c0_231, %c3_232, %c0_233], %188 {strides = array<i32>} : memref<1x4x4x128xbf16, #tpu.memory_space<vmem>>, vector<1x4x1x128xbf16>,
    return
  }
  func.func @transform_0(%arg0: i32) -> (i32, i32, i32, i32) {
    %c0_i32 = arith.constant 0 : i32
    %c0_i32_0 = arith.constant 0 : i32
    %c0_i32_1 = arith.constant 0 : i32
    %c0_i32_2 = arith.constant 0 : i32
    return %arg0, %c0_i32, %c0_i32_0, %c0_i32_1 : i32, i32, i32, i32
  }
  func.func @transform_1(%arg0: i32) -> (i32, i32) {
    %c0_i32 = arith.constant 0 : i32
    %c0_i32_0 = arith.constant 0 : i32
    %c0_i32_1 = arith.constant 0 : i32
    return %c0_i32, %c0_i32_0 : i32, i32
  }
  func.func @transform_2(%arg0: i32) -> (i32, i32) {
    %c0_i32 = arith.constant 0 : i32
    %c0_i32_0 = arith.constant 0 : i32
    %c0_i32_1 = arith.constant 0 : i32
    return %c0_i32, %c0_i32_0 : i32, i32
  }
  func.func @transform_3(%arg0: i32) -> (i32, i32) {
    %c0_i32 = arith.constant 0 : i32
    %c0_i32_0 = arith.constant 0 : i32
    %c0_i32_1 = arith.constant 0 : i32
    return %c0_i32, %c0_i32_0 : i32, i32
  }
  func.func @transform_4(%arg0: i32) -> (i32, i32) {
    %c0_i32 = arith.constant 0 : i32
    %c0_i32_0 = arith.constant 0 : i32
    %c0_i32_1 = arith.constant 0 : i32
    return %c0_i32, %c0_i32_0 : i32, i32
  }
  func.func @transform_5(%arg0: i32) -> (i32, i32) {
    %c0_i32 = arith.constant 0 : i32
    %c0_i32_0 = arith.constant 0 : i32
    %c0_i32_1 = arith.constant 0 : i32
    return %c0_i32, %c0_i32_0 : i32, i32
  }
  func.func @transform_6(%arg0: i32) -> (i32, i32) {
    %c0_i32 = arith.constant 0 : i32
    %c0_i32_0 = arith.constant 0 : i32
    %c0_i32_1 = arith.constant 0 : i32
    return %c0_i32, %c0_i32_0 : i32, i32
  }
  func.func @transform_7(%arg0: i32) -> (i32, i32, i32, i32) {
    %c0_i32 = arith.constant 0 : i32
    %c0_i32_0 = arith.constant 0 : i32
    %c0_i32_1 = arith.constant 0 : i32
    %c0_i32_2 = arith.constant 0 : i32
    return %arg0, %c0_i32, %c0_i32_0, %c0_i32_1 : i32, i32, i32, i32
  }
}

module attributes {stable_mosaic.version = 11 : i64} {
  func.func @_fc_head_kernel(%arg0: i32, %arg1: memref<8x2048xbf16, #tpu.memory_space<vmem>>, %arg2: memref<2048x640xbf16, #tpu.memory_space<vmem>>, %arg3: memref<1x640xf32, #tpu.memory_space<vmem>>, %arg4: memref<640x128xbf16, #tpu.memory_space<vmem>>, %arg5: memref<1x128xf32, #tpu.memory_space<vmem>>, %arg6: memref<8x128xf32, #tpu.memory_space<vmem>>) attributes {dimension_semantics = [#tpu.dimension_semantics<parallel>], iteration_bounds = array<i64: 1>, scalar_prefetch = 0 : i64, scratch_operands = 0 : i64, tpu.core_type = #tpu.core_type<tc>, window_params = [{transform_indices = @transform_0, window_bounds = array<i64: 8, 2048>}, {pipeline_mode = #tpu.pipeline_mode<synchronous>, transform_indices = @transform_1, window_bounds = array<i64: 2048, 640>}, {pipeline_mode = #tpu.pipeline_mode<synchronous>, transform_indices = @transform_2, window_bounds = array<i64: 1, 640>}, {pipeline_mode = #tpu.pipeline_mode<synchronous>, transform_indices = @transform_3, window_bounds = array<i64: 640, 128>}, {pipeline_mode = #tpu.pipeline_mode<synchronous>, transform_indices = @transform_4, window_bounds = array<i64: 1, 128>}, {transform_indices = @transform_5, window_bounds = array<i64: 8, 128>}]} {
    %c0 = arith.constant 0 : index
    %c0_0 = arith.constant 0 : index
    %0 = vector.load %arg1[%c0, %c0_0] : memref<8x2048xbf16, #tpu.memory_space<vmem>>, vector<8x2048xbf16>
    %c0_1 = arith.constant 0 : index
    %c0_2 = arith.constant 0 : index
    %1 = vector.load %arg2[%c0_1, %c0_2] : memref<2048x640xbf16, #tpu.memory_space<vmem>>, vector<2048x640xbf16>
    %cst = arith.constant dense<0.000000e+00> : vector<8x640xf32>
    %2 = tpu.matmul %0, %1, %cst {dimension_numbers = #tpu.dot_dimension_numbers<[1], [0], [0], [1], [0, 0, 1, 1], [], []>} : vector<8x2048xbf16>, vector<2048x640xbf16>, vector<8x640xf32> -> vector<8x640xf32>
    %c0_3 = arith.constant 0 : index
    %c0_4 = arith.constant 0 : index
    %3 = vector.load %arg3[%c0_3, %c0_4] : memref<1x640xf32, #tpu.memory_space<vmem>>, vector<1x640xf32>
    %4 = vector.broadcast %3 : vector<1x640xf32> to vector<8x640xf32>
    %5 = arith.addf %2, %4 : vector<8x640xf32>
    %cst_5 = arith.constant 0.000000e+00 : f32
    %6 = vector.broadcast %cst_5 : f32 to vector<8x640xf32>
    %7 = arith.maximumf %5, %6 : vector<8x640xf32>
    %8 = arith.truncf %7 : vector<8x640xf32> to vector<8x640xbf16>
    %c0_6 = arith.constant 0 : index
    %c0_7 = arith.constant 0 : index
    %9 = vector.load %arg4[%c0_6, %c0_7] : memref<640x128xbf16, #tpu.memory_space<vmem>>, vector<640x128xbf16>
    %cst_8 = arith.constant dense<0.000000e+00> : vector<8x128xf32>
    %10 = tpu.matmul %8, %9, %cst_8 {dimension_numbers = #tpu.dot_dimension_numbers<[1], [0], [0], [1], [0, 0, 1, 1], [], []>} : vector<8x640xbf16>, vector<640x128xbf16>, vector<8x128xf32> -> vector<8x128xf32>
    %c0_9 = arith.constant 0 : index
    %c0_10 = arith.constant 0 : index
    %11 = vector.load %arg5[%c0_9, %c0_10] : memref<1x128xf32, #tpu.memory_space<vmem>>, vector<1x128xf32>
    %12 = vector.broadcast %11 : vector<1x128xf32> to vector<8x128xf32>
    %13 = arith.addf %10, %12 : vector<8x128xf32>
    %c0_11 = arith.constant 0 : index
    %c0_12 = arith.constant 0 : index
    %14 = vector.load %arg6[%c0_11, %c0_12] : memref<8x128xf32, #tpu.memory_space<vmem>>, vector<8x128xf32>
    tpu.vector_store %arg6[%c0_11, %c0_12], %13 {strides = array<i32>} : memref<8x128xf32, #tpu.memory_space<vmem>>, vector<8x128xf32>,
    return
  }
  func.func @transform_0(%arg0: i32) -> (i32, i32) {
    %c0_i32 = arith.constant 0 : i32
    %c0_i32_0 = arith.constant 0 : i32
    return %arg0, %c0_i32 : i32, i32
  }
  func.func @transform_1(%arg0: i32) -> (i32, i32) {
    %c0_i32 = arith.constant 0 : i32
    %c0_i32_0 = arith.constant 0 : i32
    %c0_i32_1 = arith.constant 0 : i32
    return %c0_i32, %c0_i32_0 : i32, i32
  }
  func.func @transform_2(%arg0: i32) -> (i32, i32) {
    %c0_i32 = arith.constant 0 : i32
    %c0_i32_0 = arith.constant 0 : i32
    %c0_i32_1 = arith.constant 0 : i32
    return %c0_i32, %c0_i32_0 : i32, i32
  }
  func.func @transform_3(%arg0: i32) -> (i32, i32) {
    %c0_i32 = arith.constant 0 : i32
    %c0_i32_0 = arith.constant 0 : i32
    %c0_i32_1 = arith.constant 0 : i32
    return %c0_i32, %c0_i32_0 : i32, i32
  }
  func.func @transform_4(%arg0: i32) -> (i32, i32) {
    %c0_i32 = arith.constant 0 : i32
    %c0_i32_0 = arith.constant 0 : i32
    %c0_i32_1 = arith.constant 0 : i32
    return %c0_i32, %c0_i32_0 : i32, i32
  }
  func.func @transform_5(%arg0: i32) -> (i32, i32) {
    %c0_i32 = arith.constant 0 : i32
    %c0_i32_0 = arith.constant 0 : i32
    return %arg0, %c0_i32 : i32, i32
  }
}

</mosaic_0001>

<llo_original>
// kernel: cnn_forward.3
$region0: #{cnn_forward.3}
  #allocation0 [shape = 'u32[]', space=smem, size = 0x4, offset = 0x4, fixed_abs, tag = 'smem constant byte address 0x4 - core index']
  #allocation1 [shape = 'u32[144,128]{1,0:T(1,128)}', space=vmem, size = 0x12000, scoped, tag = 'internal scratch']
  %s0 = inlined_call_operand.vmem [shape: bf16[8,2048], index: 0, kind: input, shape index: {}]
  %s1 = inlined_call_operand.vmem [shape: bf16[2048,640], index: 1, kind: input, shape index: {}]
  %s2 = inlined_call_operand.vmem [shape: f32[1,640], index: 2, kind: input, shape index: {}]
  %s3 = inlined_call_operand.vmem [shape: bf16[640,128], index: 3, kind: input, shape index: {}]
  %s4 = inlined_call_operand.vmem [shape: f32[1,128], index: 4, kind: input, shape index: {}]
  %s5 = inlined_call_operand.vmem [shape: f32[8,128], index: 5, kind: output, shape index: {}]
  %s6 = sld [smem:[#allocation0]]
  $region30: #{cnn_forward.3} parent=0
    _
  %s8 = ssub.s32 1, %s6
  %s9 = scalar_select 0, %s8, %s6
  // Predicated region
  $region2: #{cnn_forward.3} parent=0 // pred_check
    _
  $region3: #{cnn_forward.3} parent=0 // pred_check_branch
    %11 = sbr.rel (0) target = $region5
  $region4: #{cnn_forward.3} parent=0 // pred_region
    _
  $region5: #{cnn_forward.3} parent=0 // pred_fallthru
    _
  // Predicated region
  $region6: #{cnn_forward.3} parent=0 // pred_check
    _
  $region7: #{cnn_forward.3} parent=0 // pred_check_branch
    %13 = sbr.rel (0) target = $region9
  $region8: #{cnn_forward.3} parent=0 // pred_region
    _
  $region9: #{cnn_forward.3} parent=0 // pred_fallthru
    _
  // Predicated region
  $region10: #{cnn_forward.3} parent=0 // pred_check
    _
  $region11: #{cnn_forward.3} parent=0 // pred_check_branch
    %15 = sbr.rel (0) target = $region13
  $region12: #{cnn_forward.3} parent=0 // pred_region
    _
  $region13: #{cnn_forward.3} parent=0 // pred_fallthru
    _
  // Predicated region
  $region14: #{cnn_forward.3} parent=0 // pred_check
    _
  $region15: #{cnn_forward.3} parent=0 // pred_check_branch
    %17 = sbr.rel (0) target = $region17
  $region16: #{cnn_forward.3} parent=0 // pred_region
    _
  $region17: #{cnn_forward.3} parent=0 // pred_fallthru
    _
  // Predicated region
  $region18: #{cnn_forward.3} parent=0 // pred_check
    _
  $region19: #{cnn_forward.3} parent=0 // pred_check_branch
    %19 = sbr.rel (0) target = $region21
  $region20: #{cnn_forward.3} parent=0 // pred_region
    _
  $region21: #{cnn_forward.3} parent=0 // pred_fallthru
    _
  %v21 = vld [vmem:[%s0] sm:$0xff]
  %v22 = vld [vmem:[%s0 + $0x8] sm:$0xff]
  %v23 = vld [vmem:[%s0 + $0x10] sm:$0xff]
  %v24 = vld [vmem:[%s0 + $0x18] sm:$0xff]
  %v25 = vld [vmem:[%s0 + $0x20] sm:$0xff]
  %v26 = vld [vmem:[%s0 + $0x28] sm:$0xff]
  %v27 = vld [vmem:[%s0 + $0x30] sm:$0xff]
  %v28 = vld [vmem:[%s0 + $0x38] sm:$0xff]
  %v29 = vld [vmem:[%s1] sm:$0xff]
  %v30 = vld [vmem:[%s1 + $0x8] sm:$0xff]
  %v31 = vld [vmem:[%s1 + $0x10] sm:$0xf]
  %v32 = vld [vmem:[%s1 + $0x14] sm:$0xff]
  %v33 = vld [vmem:[%s1 + $0x1c] sm:$0xff]
  %v34 = vld [vmem:[%s1 + $0x24] sm:$0xf]
  %v35 = vld [vmem:[%s1 + $0x28] sm:$0xff]
  %v36 = vld [vmem:[%s1 + $0x30] sm:$0xff]
  %v37 = vld [vmem:[%s1 + $0x38] sm:$0xf]
  %v38 = vld [vmem:[%s1 + $0x3c] sm:$0xff]
  %v39 = vld [vmem:[%s1 + $0x44] sm:$0xff]
  %v40 = vld [vmem:[%s1 + $0x4c] sm:$0xf]
  %v41 = vld [vmem:[%s1 + $0x50] sm:$0xff]
  %v42 = vld [vmem:[%s1 + $0x58] sm:$0xff]
  %v43 = vld [vmem:[%s1 + $0x60] sm:$0xf]
  %v44 = vld [vmem:[%s1 + $0x64] sm:$0xff]
  %v45 = vld [vmem:[%s1 + $0x6c] sm:$0xff]
  %v46 = vld [vmem:[%s1 + $0x74] sm:$0xf]
  %v47 = vld [vmem:[%s1 + $0x78] sm:$0xff]
  %v48 = vld [vmem:[%s1 + $0x80] sm:$0xff]
  %v49 = vld [vmem:[%s1 + $0x88] sm:$0xf]
  %v50 = vld [vmem:[%s1 + $0x8c] sm:$0xff]
  %v51 = vld [vmem:[%s1 + $0x94] sm:$0xff]
  %v52 = vld [vmem:[%s1 + $0x9c] sm:$0xf]
  %v53 = vld [vmem:[%s1 + $0xa0] sm:$0xff]
  %v54 = vld [vmem:[%s1 + $0xa8] sm:$0xff]
  %v55 = vld [vmem:[%s1 + $0xb0] sm:$0xf]
  %v56 = vld [vmem:[%s1 + $0xb4] sm:$0xff]
  %v57 = vld [vmem:[%s1 + $0xbc] sm:$0xff]
  %v58 = vld [vmem:[%s1 + $0xc4] sm:$0xf]
  %v59 = vld [vmem:[%s1 + $0xc8] sm:$0xff]
  %v60 = vld [vmem:[%s1 + $0xd0] sm:$0xff]
  %v61 = vld [vmem:[%s1 + $0xd8] sm:$0xf]
  %v62 = vld [vmem:[%s1 + $0xdc] sm:$0xff]
  %v63 = vld [vmem:[%s1 + $0xe4] sm:$0xff]
  %v64 = vld [vmem:[%s1 + $0xec] sm:$0xf]
  %v65 = vld [vmem:[%s1 + $0xf0] sm:$0xff]
  %v66 = vld [vmem:[%s1 + $0xf8] sm:$0xff]
  %v67 = vld [vmem:[%s1 + $0x100] sm:$0xf]
  %v68 = vld [vmem:[%s1 + $0x104] sm:$0xff]
  %v69 = vld [vmem:[%s1 + $0x10c] sm:$0xff]
  %v70 = vld [vmem:[%s1 + $0x114] sm:$0xf]
  %v71 = vld [vmem:[%s1 + $0x118] sm:$0xff]
  %v72 = vld [vmem:[%s1 + $0x120] sm:$0xff]
  %v73 = vld [vmem:[%s1 + $0x128] sm:$0xf]
  %v74 = vld [vmem:[%s1 + $0x12c] sm:$0xff]
  %v75 = vld [vmem:[%s1 + $0x134] sm:$0xff]
  %v76 = vld [vmem:[%s1 + $0x13c] sm:$0xf]
  %v77 = vld [vmem:[%s1 + $0x140] sm:$0xff]
  %v78 = vld [vmem:[%s1 + $0x148] sm:$0xff]
  %v79 = vld [vmem:[%s1 + $0x150] sm:$0xf]
  %v80 = vld [vmem:[%s1 + $0x154] sm:$0xff]
  %v81 = vld [vmem:[%s1 + $0x15c] sm:$0xff]
  %v82 = vld [vmem:[%s1 + $0x164] sm:$0xf]
  %v83 = vld [vmem:[%s1 + $0x168] sm:$0xff]
  %v84 = vld [vmem:[%s1 + $0x170] sm:$0xff]
  %v85 = vld [vmem:[%s1 + $0x178] sm:$0xf]
  %v86 = vld [vmem:[%s1 + $0x17c] sm:$0xff]
  %v87 = vld [vmem:[%s1 + $0x184] sm:$0xff]
  %v88 = vld [vmem:[%s1 + $0x18c] sm:$0xf]
  %v89 = vld [vmem:[%s1 + $0x190] sm:$0xff]
  %v90 = vld [vmem:[%s1 + $0x198] sm:$0xff]
  %v91 = vld [vmem:[%s1 + $0x1a0] sm:$0xf]
  %v92 = vld [vmem:[%s1 + $0x1a4] sm:$0xff]
  %v93 = vld [vmem:[%s1 + $0x1ac] sm:$0xff]
  %v94 = vld [vmem:[%s1 + $0x1b4] sm:$0xf]
  %v95 = vld [vmem:[%s1 + $0x1b8] sm:$0xff]
  %v96 = vld [vmem:[%s1 + $0x1c0] sm:$0xff]
  %v97 = vld [vmem:[%s1 + $0x1c8] sm:$0xf]
  %v98 = vld [vmem:[%s1 + $0x1cc] sm:$0xff]
  %v99 = vld [vmem:[%s1 + $0x1d4] sm:$0xff]
  %v100 = vld [vmem:[%s1 + $0x1dc] sm:$0xf]
  %v101 = vld [vmem:[%s1 + $0x1e0] sm:$0xff]
  %v102 = vld [vmem:[%s1 + $0x1e8] sm:$0xff]
  %v103 = vld [vmem:[%s1 + $0x1f0] sm:$0xf]
  %v104 = vld [vmem:[%s1 + $0x1f4] sm:$0xff]
  %v105 = vld [vmem:[%s1 + $0x1fc] sm:$0xff]
  %v106 = vld [vmem:[%s1 + $0x204] sm:$0xf]
  %v107 = vld [vmem:[%s1 + $0x208] sm:$0xff]
  %v108 = vld [vmem:[%s1 + $0x210] sm:$0xff]
  %v109 = vld [vmem:[%s1 + $0x218] sm:$0xf]
  %v110 = vld [vmem:[%s1 + $0x21c] sm:$0xff]
  %v111 = vld [vmem:[%s1 + $0x224] sm:$0xff]
  %v112 = vld [vmem:[%s1 + $0x22c] sm:$0xf]
  %v113 = vld [vmem:[%s1 + $0x230] sm:$0xff]
  %v114 = vld [vmem:[%s1 + $0x238] sm:$0xff]
  %v115 = vld [vmem:[%s1 + $0x240] sm:$0xf]
  %v116 = vld [vmem:[%s1 + $0x244] sm:$0xff]
  %v117 = vld [vmem:[%s1 + $0x24c] sm:$0xff]
  %v118 = vld [vmem:[%s1 + $0x254] sm:$0xf]
  %v119 = vld [vmem:[%s1 + $0x258] sm:$0xff]
  %v120 = vld [vmem:[%s1 + $0x260] sm:$0xff]
  %v121 = vld [vmem:[%s1 + $0x268] sm:$0xf]
  %v122 = vld [vmem:[%s1 + $0x26c] sm:$0xff]
  %v123 = vld [vmem:[%s1 + $0x274] sm:$0xff]
  %v124 = vld [vmem:[%s1 + $0x27c] sm:$0xf]
  %v125 = vld [vmem:[%s1 + $0x280] sm:$0xff]
  %v126 = vld [vmem:[%s1 + $0x288] sm:$0xff]
  %v127 = vld [vmem:[%s1 + $0x290] sm:$0xf]
  %v128 = vld [vmem:[%s1 + $0x294] sm:$0xff]
  %v129 = vld [vmem:[%s1 + $0x29c] sm:$0xff]
  %v130 = vld [vmem:[%s1 + $0x2a4] sm:$0xf]
  %v131 = vld [vmem:[%s1 + $0x2a8] sm:$0xff]
  %v132 = vld [vmem:[%s1 + $0x2b0] sm:$0xff]
  %v133 = vld [vmem:[%s1 + $0x2b8] sm:$0xf]
  %v134 = vld [vmem:[%s1 + $0x2bc] sm:$0xff]
  %v135 = vld [vmem:[%s1 + $0x2c4] sm:$0xff]
  %v136 = vld [vmem:[%s1 + $0x2cc] sm:$0xf]
  %v137 = vld [vmem:[%s1 + $0x2d0] sm:$0xff]
  %v138 = vld [vmem:[%s1 + $0x2d8] sm:$0xff]
  %v139 = vld [vmem:[%s1 + $0x2e0] sm:$0xf]
  %v140 = vld [vmem:[%s1 + $0x2e4] sm:$0xff]
  %v141 = vld [vmem:[%s1 + $0x2ec] sm:$0xff]
  %v142 = vld [vmem:[%s1 + $0x2f4] sm:$0xf]
  %v143 = vld [vmem:[%s1 + $0x2f8] sm:$0xff]
  %v144 = vld [vmem:[%s1 + $0x300] sm:$0xff]
  %v145 = vld [vmem:[%s1 + $0x308] sm:$0xf]
  %v146 = vld [vmem:[%s1 + $0x30c] sm:$0xff]
  %v147 = vld [vmem:[%s1 + $0x314] sm:$0xff]
  %v148 = vld [vmem:[%s1 + $0x31c] sm:$0xf]
  %v149 = vld [vmem:[%s1 + $0x320] sm:$0xff]
  %v150 = vld [vmem:[%s1 + $0x328] sm:$0xff]
  %v151 = vld [vmem:[%s1 + $0x330] sm:$0xf]
  %v152 = vld [vmem:[%s1 + $0x334] sm:$0xff]
  %v153 = vld [vmem:[%s1 + $0x33c] sm:$0xff]
  %v154 = vld [vmem:[%s1 + $0x344] sm:$0xf]
  %v155 = vld [vmem:[%s1 + $0x348] sm:$0xff]
  %v156 = vld [vmem:[%s1 + $0x350] sm:$0xff]
  %v157 = vld [vmem:[%s1 + $0x358] sm:$0xf]
  %v158 = vld [vmem:[%s1 + $0x35c] sm:$0xff]
  %v159 = vld [vmem:[%s1 + $0x364] sm:$0xff]
  %v160 = vld [vmem:[%s1 + $0x36c] sm:$0xf]
  %v161 = vld [vmem:[%s1 + $0x370] sm:$0xff]
  %v162 = vld [vmem:[%s1 + $0x378] sm:$0xff]
  %v163 = vld [vmem:[%s1 + $0x380] sm:$0xf]
  %v164 = vld [vmem:[%s1 + $0x384] sm:$0xff]
  %v165 = vld [vmem:[%s1 + $0x38c] sm:$0xff]
  %v166 = vld [vmem:[%s1 + $0x394] sm:$0xf]
  %v167 = vld [vmem:[%s1 + $0x398] sm:$0xff]
  %v168 = vld [vmem:[%s1 + $0x3a0] sm:$0xff]
  %v169 = vld [vmem:[%s1 + $0x3a8] sm:$0xf]
  %v170 = vld [vmem:[%s1 + $0x3ac] sm:$0xff]
  %v171 = vld [vmem:[%s1 + $0x3b4] sm:$0xff]
  %v172 = vld [vmem:[%s1 + $0x3bc] sm:$0xf]
  %v173 = vld [vmem:[%s1 + $0x3c0] sm:$0xff]
  %v174 = vld [vmem:[%s1 + $0x3c8] sm:$0xff]
  %v175 = vld [vmem:[%s1 + $0x3d0] sm:$0xf]
  %v176 = vld [vmem:[%s1 + $0x3d4] sm:$0xff]
  %v177 = vld [vmem:[%s1 + $0x3dc] sm:$0xff]
  %v178 = vld [vmem:[%s1 + $0x3e4] sm:$0xf]
  %v179 = vld [vmem:[%s1 + $0x3e8] sm:$0xff]
  %v180 = vld [vmem:[%s1 + $0x3f0] sm:$0xff]
  %v181 = vld [vmem:[%s1 + $0x3f8] sm:$0xf]
  %v182 = vld [vmem:[%s1 + $0x3fc] sm:$0xff]
  %v183 = vld [vmem:[%s1 + $0x404] sm:$0xff]
  %v184 = vld [vmem:[%s1 + $0x40c] sm:$0xf]
  %v185 = vld [vmem:[%s1 + $0x410] sm:$0xff]
  %v186 = vld [vmem:[%s1 + $0x418] sm:$0xff]
  %v187 = vld [vmem:[%s1 + $0x420] sm:$0xf]
  %v188 = vld [vmem:[%s1 + $0x424] sm:$0xff]
  %v189 = vld [vmem:[%s1 + $0x42c] sm:$0xff]
  %v190 = vld [vmem:[%s1 + $0x434] sm:$0xf]
  %v191 = vld [vmem:[%s1 + $0x438] sm:$0xff]
  %v192 = vld [vmem:[%s1 + $0x440] sm:$0xff]
  %v193 = vld [vmem:[%s1 + $0x448] sm:$0xf]
  %v194 = vld [vmem:[%s1 + $0x44c] sm:$0xff]
  %v195 = vld [vmem:[%s1 + $0x454] sm:$0xff]
  %v196 = vld [vmem:[%s1 + $0x45c] sm:$0xf]
  %v197 = vld [vmem:[%s1 + $0x460] sm:$0xff]
  %v198 = vld [vmem:[%s1 + $0x468] sm:$0xff]
  %v199 = vld [vmem:[%s1 + $0x470] sm:$0xf]
  %v200 = vld [vmem:[%s1 + $0x474] sm:$0xff]
  %v201 = vld [vmem:[%s1 + $0x47c] sm:$0xff]
  %v202 = vld [vmem:[%s1 + $0x484] sm:$0xf]
  %v203 = vld [vmem:[%s1 + $0x488] sm:$0xff]
  %v204 = vld [vmem:[%s1 + $0x490] sm:$0xff]
  %v205 = vld [vmem:[%s1 + $0x498] sm:$0xf]
  %v206 = vld [vmem:[%s1 + $0x49c] sm:$0xff]
  %v207 = vld [vmem:[%s1 + $0x4a4] sm:$0xff]
  %v208 = vld [vmem:[%s1 + $0x4ac] sm:$0xf]
  %v209 = vld [vmem:[%s1 + $0x4b0] sm:$0xff]
  %v210 = vld [vmem:[%s1 + $0x4b8] sm:$0xff]
  %v211 = vld [vmem:[%s1 + $0x4c0] sm:$0xf]
  %v212 = vld [vmem:[%s1 + $0x4c4] sm:$0xff]
  %v213 = vld [vmem:[%s1 + $0x4cc] sm:$0xff]
  %v214 = vld [vmem:[%s1 + $0x4d4] sm:$0xf]
  %v215 = vld [vmem:[%s1 + $0x4d8] sm:$0xff]
  %v216 = vld [vmem:[%s1 + $0x4e0] sm:$0xff]
  %v217 = vld [vmem:[%s1 + $0x4e8] sm:$0xf]
  %v218 = vld [vmem:[%s1 + $0x4ec] sm:$0xff]
  %v219 = vld [vmem:[%s1 + $0x4f4] sm:$0xff]
  %v220 = vld [vmem:[%s1 + $0x4fc] sm:$0xf]
  %v221 = vld [vmem:[%s1 + $0x500] sm:$0xff]
  %v222 = vld [vmem:[%s1 + $0x508] sm:$0xff]
  %v223 = vld [vmem:[%s1 + $0x510] sm:$0xf]
  %v224 = vld [vmem:[%s1 + $0x514] sm:$0xff]
  %v225 = vld [vmem:[%s1 + $0x51c] sm:$0xff]
  %v226 = vld [vmem:[%s1 + $0x524] sm:$0xf]
  %v227 = vld [vmem:[%s1 + $0x528] sm:$0xff]
  %v228 = vld [vmem:[%s1 + $0x530] sm:$0xff]
  %v229 = vld [vmem:[%s1 + $0x538] sm:$0xf]
  %v230 = vld [vmem:[%s1 + $0x53c] sm:$0xff]
  %v231 = vld [vmem:[%s1 + $0x544] sm:$0xff]
  %v232 = vld [vmem:[%s1 + $0x54c] sm:$0xf]
  %v233 = vld [vmem:[%s1 + $0x550] sm:$0xff]
  %v234 = vld [vmem:[%s1 + $0x558] sm:$0xff]
  %v235 = vld [vmem:[%s1 + $0x560] sm:$0xf]
  %v236 = vld [vmem:[%s1 + $0x564] sm:$0xff]
  %v237 = vld [vmem:[%s1 + $0x56c] sm:$0xff]
  %v238 = vld [vmem:[%s1 + $0x574] sm:$0xf]
  %v239 = vld [vmem:[%s1 + $0x578] sm:$0xff]
  %v240 = vld [vmem:[%s1 + $0x580] sm:$0xff]
  %v241 = vld [vmem:[%s1 + $0x588] sm:$0xf]
  %v242 = vld [vmem:[%s1 + $0x58c] sm:$0xff]
  %v243 = vld [vmem:[%s1 + $0x594] sm:$0xff]
  %v244 = vld [vmem:[%s1 + $0x59c] sm:$0xf]
  %v245 = vld [vmem:[%s1 + $0x5a0] sm:$0xff]
  %v246 = vld [vmem:[%s1 + $0x5a8] sm:$0xff]
  %v247 = vld [vmem:[%s1 + $0x5b0] sm:$0xf]
  %v248 = vld [vmem:[%s1 + $0x5b4] sm:$0xff]
  %v249 = vld [vmem:[%s1 + $0x5bc] sm:$0xff]
  %v250 = vld [vmem:[%s1 + $0x5c4] sm:$0xf]
  %v251 = vld [vmem:[%s1 + $0x5c8] sm:$0xff]
  %v252 = vld [vmem:[%s1 + $0x5d0] sm:$0xff]
  %v253 = vld [vmem:[%s1 + $0x5d8] sm:$0xf]
  %v254 = vld [vmem:[%s1 + $0x5dc] sm:$0xff]
  %v255 = vld [vmem:[%s1 + $0x5e4] sm:$0xff]
  %v256 = vld [vmem:[%s1 + $0x5ec] sm:$0xf]
  %v257 = vld [vmem:[%s1 + $0x5f0] sm:$0xff]
  %v258 = vld [vmem:[%s1 + $0x5f8] sm:$0xff]
  %v259 = vld [vmem:[%s1 + $0x600] sm:$0xf]
  %v260 = vld [vmem:[%s1 + $0x604] sm:$0xff]
  %v261 = vld [vmem:[%s1 + $0x60c] sm:$0xff]
  %v262 = vld [vmem:[%s1 + $0x614] sm:$0xf]
  %v263 = vld [vmem:[%s1 + $0x618] sm:$0xff]
  %v264 = vld [vmem:[%s1 + $0x620] sm:$0xff]
  %v265 = vld [vmem:[%s1 + $0x628] sm:$0xf]
  %v266 = vld [vmem:[%s1 + $0x62c] sm:$0xff]
  %v267 = vld [vmem:[%s1 + $0x634] sm:$0xff]
  %v268 = vld [vmem:[%s1 + $0x63c] sm:$0xf]
  %v269 = vld [vmem:[%s1 + $0x640] sm:$0xff]
  %v270 = vld [vmem:[%s1 + $0x648] sm:$0xff]
  %v271 = vld [vmem:[%s1 + $0x650] sm:$0xf]
  %v272 = vld [vmem:[%s1 + $0x654] sm:$0xff]
  %v273 = vld [vmem:[%s1 + $0x65c] sm:$0xff]
  %v274 = vld [vmem:[%s1 + $0x664] sm:$0xf]
  %v275 = vld [vmem:[%s1 + $0x668] sm:$0xff]
  %v276 = vld [vmem:[%s1 + $0x670] sm:$0xff]
  %v277 = vld [vmem:[%s1 + $0x678] sm:$0xf]
  %v278 = vld [vmem:[%s1 + $0x67c] sm:$0xff]
  %v279 = vld [vmem:[%s1 + $0x684] sm:$0xff]
  %v280 = vld [vmem:[%s1 + $0x68c] sm:$0xf]
  %v281 = vld [vmem:[%s1 + $0x690] sm:$0xff]
  %v282 = vld [vmem:[%s1 + $0x698] sm:$0xff]
  %v283 = vld [vmem:[%s1 + $0x6a0] sm:$0xf]
  %v284 = vld [vmem:[%s1 + $0x6a4] sm:$0xff]
  %v285 = vld [vmem:[%s1 + $0x6ac] sm:$0xff]
  %v286 = vld [vmem:[%s1 + $0x6b4] sm:$0xf]
  %v287 = vld [vmem:[%s1 + $0x6b8] sm:$0xff]
  %v288 = vld [vmem:[%s1 + $0x6c0] sm:$0xff]
  %v289 = vld [vmem:[%s1 + $0x6c8] sm:$0xf]
  %v290 = vld [vmem:[%s1 + $0x6cc] sm:$0xff]
  %v291 = vld [vmem:[%s1 + $0x6d4] sm:$0xff]
  %v292 = vld [vmem:[%s1 + $0x6dc] sm:$0xf]
  %v293 = vld [vmem:[%s1 + $0x6e0] sm:$0xff]
  %v294 = vld [vmem:[%s1 + $0x6e8] sm:$0xff]
  %v295 = vld [vmem:[%s1 + $0x6f0] sm:$0xf]
  %v296 = vld [vmem:[%s1 + $0x6f4] sm:$0xff]
  %v297 = vld [vmem:[%s1 + $0x6fc] sm:$0xff]
  %v298 = vld [vmem:[%s1 + $0x704] sm:$0xf]
  %v299 = vld [vmem:[%s1 + $0x708] sm:$0xff]
  %v300 = vld [vmem:[%s1 + $0x710] sm:$0xff]
  %v301 = vld [vmem:[%s1 + $0x718] sm:$0xf]
  %v302 = vld [vmem:[%s1 + $0x71c] sm:$0xff]
  %v303 = vld [vmem:[%s1 + $0x724] sm:$0xff]
  %v304 = vld [vmem:[%s1 + $0x72c] sm:$0xf]
  %v305 = vld [vmem:[%s1 + $0x730] sm:$0xff]
  %v306 = vld [vmem:[%s1 + $0x738] sm:$0xff]
  %v307 = vld [vmem:[%s1 + $0x740] sm:$0xf]
  %v308 = vld [vmem:[%s1 + $0x744] sm:$0xff]
  %v309 = vld [vmem:[%s1 + $0x74c] sm:$0xff]
  %v310 = vld [vmem:[%s1 + $0x754] sm:$0xf]
  %v311 = vld [vmem:[%s1 + $0x758] sm:$0xff]
  %v312 = vld [vmem:[%s1 + $0x760] sm:$0xff]
  %v313 = vld [vmem:[%s1 + $0x768] sm:$0xf]
  %v314 = vld [vmem:[%s1 + $0x76c] sm:$0xff]
  %v315 = vld [vmem:[%s1 + $0x774] sm:$0xff]
  %v316 = vld [vmem:[%s1 + $0x77c] sm:$0xf]
  %v317 = vld [vmem:[%s1 + $0x780] sm:$0xff]
  %v318 = vld [vmem:[%s1 + $0x788] sm:$0xff]
  %v319 = vld [vmem:[%s1 + $0x790] sm:$0xf]
  %v320 = vld [vmem:[%s1 + $0x794] sm:$0xff]
  %v321 = vld [vmem:[%s1 + $0x79c] sm:$0xff]
  %v322 = vld [vmem:[%s1 + $0x7a4] sm:$0xf]
  %v323 = vld [vmem:[%s1 + $0x7a8] sm:$0xff]
  %v324 = vld [vmem:[%s1 + $0x7b0] sm:$0xff]
  %v325 = vld [vmem:[%s1 + $0x7b8] sm:$0xf]
  %v326 = vld [vmem:[%s1 + $0x7bc] sm:$0xff]
  %v327 = vld [vmem:[%s1 + $0x7c4] sm:$0xff]
  %v328 = vld [vmem:[%s1 + $0x7cc] sm:$0xf]
  %v329 = vld [vmem:[%s1 + $0x7d0] sm:$0xff]
  %v330 = vld [vmem:[%s1 + $0x7d8] sm:$0xff]
  %v331 = vld [vmem:[%s1 + $0x7e0] sm:$0xf]
  %v332 = vld [vmem:[%s1 + $0x7e4] sm:$0xff]
  %v333 = vld [vmem:[%s1 + $0x7ec] sm:$0xff]
  %v334 = vld [vmem:[%s1 + $0x7f4] sm:$0xf]
  %v335 = vld [vmem:[%s1 + $0x7f8] sm:$0xff]
  %v336 = vld [vmem:[%s1 + $0x800] sm:$0xff]
  %v337 = vld [vmem:[%s1 + $0x808] sm:$0xf]
  %v338 = vld [vmem:[%s1 + $0x80c] sm:$0xff]
  %v339 = vld [vmem:[%s1 + $0x814] sm:$0xff]
  %v340 = vld [vmem:[%s1 + $0x81c] sm:$0xf]
  %v341 = vld [vmem:[%s1 + $0x820] sm:$0xff]
  %v342 = vld [vmem:[%s1 + $0x828] sm:$0xff]
  %v343 = vld [vmem:[%s1 + $0x830] sm:$0xf]
  %v344 = vld [vmem:[%s1 + $0x834] sm:$0xff]
  %v345 = vld [vmem:[%s1 + $0x83c] sm:$0xff]
  %v346 = vld [vmem:[%s1 + $0x844] sm:$0xf]
  %v347 = vld [vmem:[%s1 + $0x848] sm:$0xff]
  %v348 = vld [vmem:[%s1 + $0x850] sm:$0xff]
  %v349 = vld [vmem:[%s1 + $0x858] sm:$0xf]
  %v350 = vld [vmem:[%s1 + $0x85c] sm:$0xff]
  %v351 = vld [vmem:[%s1 + $0x864] sm:$0xff]
  %v352 = vld [vmem:[%s1 + $0x86c] sm:$0xf]
  %v353 = vld [vmem:[%s1 + $0x870] sm:$0xff]
  %v354 = vld [vmem:[%s1 + $0x878] sm:$0xff]
  %v355 = vld [vmem:[%s1 + $0x880] sm:$0xf]
  %v356 = vld [vmem:[%s1 + $0x884] sm:$0xff]
  %v357 = vld [vmem:[%s1 + $0x88c] sm:$0xff]
  %v358 = vld [vmem:[%s1 + $0x894] sm:$0xf]
  %v359 = vld [vmem:[%s1 + $0x898] sm:$0xff]
  %v360 = vld [vmem:[%s1 + $0x8a0] sm:$0xff]
  %v361 = vld [vmem:[%s1 + $0x8a8] sm:$0xf]
  %v362 = vld [vmem:[%s1 + $0x8ac] sm:$0xff]
  %v363 = vld [vmem:[%s1 + $0x8b4] sm:$0xff]
  %v364 = vld [vmem:[%s1 + $0x8bc] sm:$0xf]
  %v365 = vld [vmem:[%s1 + $0x8c0] sm:$0xff]
  %v366 = vld [vmem:[%s1 + $0x8c8] sm:$0xff]
  %v367 = vld [vmem:[%s1 + $0x8d0] sm:$0xf]
  %v368 = vld [vmem:[%s1 + $0x8d4] sm:$0xff]
  %v369 = vld [vmem:[%s1 + $0x8dc] sm:$0xff]
  %v370 = vld [vmem:[%s1 + $0x8e4] sm:$0xf]
  %v371 = vld [vmem:[%s1 + $0x8e8] sm:$0xff]
  %v372 = vld [vmem:[%s1 + $0x8f0] sm:$0xff]
  %v373 = vld [vmem:[%s1 + $0x8f8] sm:$0xf]
  %v374 = vld [vmem:[%s1 + $0x8fc] sm:$0xff]
  %v375 = vld [vmem:[%s1 + $0x904] sm:$0xff]
  %v376 = vld [vmem:[%s1 + $0x90c] sm:$0xf]
  %v377 = vld [vmem:[%s1 + $0x910] sm:$0xff]
  %v378 = vld [vmem:[%s1 + $0x918] sm:$0xff]
  %v379 = vld [vmem:[%s1 + $0x920] sm:$0xf]
  %v380 = vld [vmem:[%s1 + $0x924] sm:$0xff]
  %v381 = vld [vmem:[%s1 + $0x92c] sm:$0xff]
  %v382 = vld [vmem:[%s1 + $0x934] sm:$0xf]
  %v383 = vld [vmem:[%s1 + $0x938] sm:$0xff]
  %v384 = vld [vmem:[%s1 + $0x940] sm:$0xff]
  %v385 = vld [vmem:[%s1 + $0x948] sm:$0xf]
  %v386 = vld [vmem:[%s1 + $0x94c] sm:$0xff]
  %v387 = vld [vmem:[%s1 + $0x954] sm:$0xff]
  %v388 = vld [vmem:[%s1 + $0x95c] sm:$0xf]
  %v389 = vld [vmem:[%s1 + $0x960] sm:$0xff]
  %v390 = vld [vmem:[%s1 + $0x968] sm:$0xff]
  %v391 = vld [vmem:[%s1 + $0x970] sm:$0xf]
  %v392 = vld [vmem:[%s1 + $0x974] sm:$0xff]
  %v393 = vld [vmem:[%s1 + $0x97c] sm:$0xff]
  %v394 = vld [vmem:[%s1 + $0x984] sm:$0xf]
  %v395 = vld [vmem:[%s1 + $0x988] sm:$0xff]
  %v396 = vld [vmem:[%s1 + $0x990] sm:$0xff]
  %v397 = vld [vmem:[%s1 + $0x998] sm:$0xf]
  %v398 = vld [vmem:[%s1 + $0x99c] sm:$0xff]
  %v399 = vld [vmem:[%s1 + $0x9a4] sm:$0xff]
  %v400 = vld [vmem:[%s1 + $0x9ac] sm:$0xf]
  %v401 = vld [vmem:[%s1 + $0x9b0] sm:$0xff]
  %v402 = vld [vmem:[%s1 + $0x9b8] sm:$0xff]
  %v403 = vld [vmem:[%s1 + $0x9c0] sm:$0xf]
  %v404 = vld [vmem:[%s1 + $0x9c4] sm:$0xff]
  %v405 = vld [vmem:[%s1 + $0x9cc] sm:$0xff]
  %v406 = vld [vmem:[%s1 + $0x9d4] sm:$0xf]
  %v407 = vld [vmem:[%s1 + $0x9d8] sm:$0xff]
  %v408 = vld [vmem:[%s1 + $0x9e0] sm:$0xff]
  %v409 = vld [vmem:[%s1 + $0x9e8] sm:$0xf]
  %v410 = vld [vmem:[%s1 + $0x9ec] sm:$0xff]
  %v411 = vld [vmem:[%s1 + $0x9f4] sm:$0xff]
  %v412 = vld [vmem:[%s1 + $0x9fc] sm:$0xf]
  %v413 = vld [vmem:[%s1 + $0xa00] sm:$0xff]
  %v414 = vld [vmem:[%s1 + $0xa08] sm:$0xff]
  %v415 = vld [vmem:[%s1 + $0xa10] sm:$0xf]
  %v416 = vld [vmem:[%s1 + $0xa14] sm:$0xff]
  %v417 = vld [vmem:[%s1 + $0xa1c] sm:$0xff]
  %v418 = vld [vmem:[%s1 + $0xa24] sm:$0xf]
  %v419 = vld [vmem:[%s1 + $0xa28] sm:$0xff]
  %v420 = vld [vmem:[%s1 + $0xa30] sm:$0xff]
  %v421 = vld [vmem:[%s1 + $0xa38] sm:$0xf]
  %v422 = vld [vmem:[%s1 + $0xa3c] sm:$0xff]
  %v423 = vld [vmem:[%s1 + $0xa44] sm:$0xff]
  %v424 = vld [vmem:[%s1 + $0xa4c] sm:$0xf]
  %v425 = vld [vmem:[%s1 + $0xa50] sm:$0xff]
  %v426 = vld [vmem:[%s1 + $0xa58] sm:$0xff]
  %v427 = vld [vmem:[%s1 + $0xa60] sm:$0xf]
  %v428 = vld [vmem:[%s1 + $0xa64] sm:$0xff]
  %v429 = vld [vmem:[%s1 + $0xa6c] sm:$0xff]
  %v430 = vld [vmem:[%s1 + $0xa74] sm:$0xf]
  %v431 = vld [vmem:[%s1 + $0xa78] sm:$0xff]
  %v432 = vld [vmem:[%s1 + $0xa80] sm:$0xff]
  %v433 = vld [vmem:[%s1 + $0xa88] sm:$0xf]
  %v434 = vld [vmem:[%s1 + $0xa8c] sm:$0xff]
  %v435 = vld [vmem:[%s1 + $0xa94] sm:$0xff]
  %v436 = vld [vmem:[%s1 + $0xa9c] sm:$0xf]
  %v437 = vld [vmem:[%s1 + $0xaa0] sm:$0xff]
  %v438 = vld [vmem:[%s1 + $0xaa8] sm:$0xff]
  %v439 = vld [vmem:[%s1 + $0xab0] sm:$0xf]
  %v440 = vld [vmem:[%s1 + $0xab4] sm:$0xff]
  %v441 = vld [vmem:[%s1 + $0xabc] sm:$0xff]
  %v442 = vld [vmem:[%s1 + $0xac4] sm:$0xf]
  %v443 = vld [vmem:[%s1 + $0xac8] sm:$0xff]
  %v444 = vld [vmem:[%s1 + $0xad0] sm:$0xff]
  %v445 = vld [vmem:[%s1 + $0xad8] sm:$0xf]
  %v446 = vld [vmem:[%s1 + $0xadc] sm:$0xff]
  %v447 = vld [vmem:[%s1 + $0xae4] sm:$0xff]
  %v448 = vld [vmem:[%s1 + $0xaec] sm:$0xf]
  %v449 = vld [vmem:[%s1 + $0xaf0] sm:$0xff]
  %v450 = vld [vmem:[%s1 + $0xaf8] sm:$0xff]
  %v451 = vld [vmem:[%s1 + $0xb00] sm:$0xf]
  %v452 = vld [vmem:[%s1 + $0xb04] sm:$0xff]
  %v453 = vld [vmem:[%s1 + $0xb0c] sm:$0xff]
  %v454 = vld [vmem:[%s1 + $0xb14] sm:$0xf]
  %v455 = vld [vmem:[%s1 + $0xb18] sm:$0xff]
  %v456 = vld [vmem:[%s1 + $0xb20] sm:$0xff]
  %v457 = vld [vmem:[%s1 + $0xb28] sm:$0xf]
  %v458 = vld [vmem:[%s1 + $0xb2c] sm:$0xff]
  %v459 = vld [vmem:[%s1 + $0xb34] sm:$0xff]
  %v460 = vld [vmem:[%s1 + $0xb3c] sm:$0xf]
  %v461 = vld [vmem:[%s1 + $0xb40] sm:$0xff]
  %v462 = vld [vmem:[%s1 + $0xb48] sm:$0xff]
  %v463 = vld [vmem:[%s1 + $0xb50] sm:$0xf]
  %v464 = vld [vmem:[%s1 + $0xb54] sm:$0xff]
  %v465 = vld [vmem:[%s1 + $0xb5c] sm:$0xff]
  %v466 = vld [vmem:[%s1 + $0xb64] sm:$0xf]
  %v467 = vld [vmem:[%s1 + $0xb68] sm:$0xff]
  %v468 = vld [vmem:[%s1 + $0xb70] sm:$0xff]
  %v469 = vld [vmem:[%s1 + $0xb78] sm:$0xf]
  %v470 = vld [vmem:[%s1 + $0xb7c] sm:$0xff]
  %v471 = vld [vmem:[%s1 + $0xb84] sm:$0xff]
  %v472 = vld [vmem:[%s1 + $0xb8c] sm:$0xf]
  %v473 = vld [vmem:[%s1 + $0xb90] sm:$0xff]
  %v474 = vld [vmem:[%s1 + $0xb98] sm:$0xff]
  %v475 = vld [vmem:[%s1 + $0xba0] sm:$0xf]
  %v476 = vld [vmem:[%s1 + $0xba4] sm:$0xff]
  %v477 = vld [vmem:[%s1 + $0xbac] sm:$0xff]
  %v478 = vld [vmem:[%s1 + $0xbb4] sm:$0xf]
  %v479 = vld [vmem:[%s1 + $0xbb8] sm:$0xff]
  %v480 = vld [vmem:[%s1 + $0xbc0] sm:$0xff]
  %v481 = vld [vmem:[%s1 + $0xbc8] sm:$0xf]
  %v482 = vld [vmem:[%s1 + $0xbcc] sm:$0xff]
  %v483 = vld [vmem:[%s1 + $0xbd4] sm:$0xff]
  %v484 = vld [vmem:[%s1 + $0xbdc] sm:$0xf]
  %v485 = vld [vmem:[%s1 + $0xbe0] sm:$0xff]
  %v486 = vld [vmem:[%s1 + $0xbe8] sm:$0xff]
  %v487 = vld [vmem:[%s1 + $0xbf0] sm:$0xf]
  %v488 = vld [vmem:[%s1 + $0xbf4] sm:$0xff]
  %v489 = vld [vmem:[%s1 + $0xbfc] sm:$0xff]
  %v490 = vld [vmem:[%s1 + $0xc04] sm:$0xf]
  %v491 = vld [vmem:[%s1 + $0xc08] sm:$0xff]
  %v492 = vld [vmem:[%s1 + $0xc10] sm:$0xff]
  %v493 = vld [vmem:[%s1 + $0xc18] sm:$0xf]
  %v494 = vld [vmem:[%s1 + $0xc1c] sm:$0xff]
  %v495 = vld [vmem:[%s1 + $0xc24] sm:$0xff]
  %v496 = vld [vmem:[%s1 + $0xc2c] sm:$0xf]
  %v497 = vld [vmem:[%s1 + $0xc30] sm:$0xff]
  %v498 = vld [vmem:[%s1 + $0xc38] sm:$0xff]
  %v499 = vld [vmem:[%s1 + $0xc40] sm:$0xf]
  %v500 = vld [vmem:[%s1 + $0xc44] sm:$0xff]
  %v501 = vld [vmem:[%s1 + $0xc4c] sm:$0xff]
  %v502 = vld [vmem:[%s1 + $0xc54] sm:$0xf]
  %v503 = vld [vmem:[%s1 + $0xc58] sm:$0xff]
  %v504 = vld [vmem:[%s1 + $0xc60] sm:$0xff]
  %v505 = vld [vmem:[%s1 + $0xc68] sm:$0xf]
  %v506 = vld [vmem:[%s1 + $0xc6c] sm:$0xff]
  %v507 = vld [vmem:[%s1 + $0xc74] sm:$0xff]
  %v508 = vld [vmem:[%s1 + $0xc7c] sm:$0xf]
  %v509 = vld [vmem:[%s1 + $0xc80] sm:$0xff]
  %v510 = vld [vmem:[%s1 + $0xc88] sm:$0xff]
  %v511 = vld [vmem:[%s1 + $0xc90] sm:$0xf]
  %v512 = vld [vmem:[%s1 + $0xc94] sm:$0xff]
  %v513 = vld [vmem:[%s1 + $0xc9c] sm:$0xff]
  %v514 = vld [vmem:[%s1 + $0xca4] sm:$0xf]
  %v515 = vld [vmem:[%s1 + $0xca8] sm:$0xff]
  %v516 = vld [vmem:[%s1 + $0xcb0] sm:$0xff]
  %v517 = vld [vmem:[%s1 + $0xcb8] sm:$0xf]
  %v518 = vld [vmem:[%s1 + $0xcbc] sm:$0xff]
  %v519 = vld [vmem:[%s1 + $0xcc4] sm:$0xff]
  %v520 = vld [vmem:[%s1 + $0xccc] sm:$0xf]
  %v521 = vld [vmem:[%s1 + $0xcd0] sm:$0xff]
  %v522 = vld [vmem:[%s1 + $0xcd8] sm:$0xff]
  %v523 = vld [vmem:[%s1 + $0xce0] sm:$0xf]
  %v524 = vld [vmem:[%s1 + $0xce4] sm:$0xff]
  %v525 = vld [vmem:[%s1 + $0xcec] sm:$0xff]
  %v526 = vld [vmem:[%s1 + $0xcf4] sm:$0xf]
  %v527 = vld [vmem:[%s1 + $0xcf8] sm:$0xff]
  %v528 = vld [vmem:[%s1 + $0xd00] sm:$0xff]
  %v529 = vld [vmem:[%s1 + $0xd08] sm:$0xf]
  %v530 = vld [vmem:[%s1 + $0xd0c] sm:$0xff]
  %v531 = vld [vmem:[%s1 + $0xd14] sm:$0xff]
  %v532 = vld [vmem:[%s1 + $0xd1c] sm:$0xf]
  %v533 = vld [vmem:[%s1 + $0xd20] sm:$0xff]
  %v534 = vld [vmem:[%s1 + $0xd28] sm:$0xff]
  %v535 = vld [vmem:[%s1 + $0xd30] sm:$0xf]
  %v536 = vld [vmem:[%s1 + $0xd34] sm:$0xff]
  %v537 = vld [vmem:[%s1 + $0xd3c] sm:$0xff]
  %v538 = vld [vmem:[%s1 + $0xd44] sm:$0xf]
  %v539 = vld [vmem:[%s1 + $0xd48] sm:$0xff]
  %v540 = vld [vmem:[%s1 + $0xd50] sm:$0xff]
  %v541 = vld [vmem:[%s1 + $0xd58] sm:$0xf]
  %v542 = vld [vmem:[%s1 + $0xd5c] sm:$0xff]
  %v543 = vld [vmem:[%s1 + $0xd64] sm:$0xff]
  %v544 = vld [vmem:[%s1 + $0xd6c] sm:$0xf]
  %v545 = vld [vmem:[%s1 + $0xd70] sm:$0xff]
  %v546 = vld [vmem:[%s1 + $0xd78] sm:$0xff]
  %v547 = vld [vmem:[%s1 + $0xd80] sm:$0xf]
  %v548 = vld [vmem:[%s1 + $0xd84] sm:$0xff]
  %v549 = vld [vmem:[%s1 + $0xd8c] sm:$0xff]
  %v550 = vld [vmem:[%s1 + $0xd94] sm:$0xf]
  %v551 = vld [vmem:[%s1 + $0xd98] sm:$0xff]
  %v552 = vld [vmem:[%s1 + $0xda0] sm:$0xff]
  %v553 = vld [vmem:[%s1 + $0xda8] sm:$0xf]
  %v554 = vld [vmem:[%s1 + $0xdac] sm:$0xff]
  %v555 = vld [vmem:[%s1 + $0xdb4] sm:$0xff]
  %v556 = vld [vmem:[%s1 + $0xdbc] sm:$0xf]
  %v557 = vld [vmem:[%s1 + $0xdc0] sm:$0xff]
  %v558 = vld [vmem:[%s1 + $0xdc8] sm:$0xff]
  %v559 = vld [vmem:[%s1 + $0xdd0] sm:$0xf]
  %v560 = vld [vmem:[%s1 + $0xdd4] sm:$0xff]
  %v561 = vld [vmem:[%s1 + $0xddc] sm:$0xff]
  %v562 = vld [vmem:[%s1 + $0xde4] sm:$0xf]
  %v563 = vld [vmem:[%s1 + $0xde8] sm:$0xff]
  %v564 = vld [vmem:[%s1 + $0xdf0] sm:$0xff]
  %v565 = vld [vmem:[%s1 + $0xdf8] sm:$0xf]
  %v566 = vld [vmem:[%s1 + $0xdfc] sm:$0xff]
  %v567 = vld [vmem:[%s1 + $0xe04] sm:$0xff]
  %v568 = vld [vmem:[%s1 + $0xe0c] sm:$0xf]
  %v569 = vld [vmem:[%s1 + $0xe10] sm:$0xff]
  %v570 = vld [vmem:[%s1 + $0xe18] sm:$0xff]
  %v571 = vld [vmem:[%s1 + $0xe20] sm:$0xf]
  %v572 = vld [vmem:[%s1 + $0xe24] sm:$0xff]
  %v573 = vld [vmem:[%s1 + $0xe2c] sm:$0xff]
  %v574 = vld [vmem:[%s1 + $0xe34] sm:$0xf]
  %v575 = vld [vmem:[%s1 + $0xe38] sm:$0xff]
  %v576 = vld [vmem:[%s1 + $0xe40] sm:$0xff]
  %v577 = vld [vmem:[%s1 + $0xe48] sm:$0xf]
  %v578 = vld [vmem:[%s1 + $0xe4c] sm:$0xff]
  %v579 = vld [vmem:[%s1 + $0xe54] sm:$0xff]
  %v580 = vld [vmem:[%s1 + $0xe5c] sm:$0xf]
  %v581 = vld [vmem:[%s1 + $0xe60] sm:$0xff]
  %v582 = vld [vmem:[%s1 + $0xe68] sm:$0xff]
  %v583 = vld [vmem:[%s1 + $0xe70] sm:$0xf]
  %v584 = vld [vmem:[%s1 + $0xe74] sm:$0xff]
  %v585 = vld [vmem:[%s1 + $0xe7c] sm:$0xff]
  %v586 = vld [vmem:[%s1 + $0xe84] sm:$0xf]
  %v587 = vld [vmem:[%s1 + $0xe88] sm:$0xff]
  %v588 = vld [vmem:[%s1 + $0xe90] sm:$0xff]
  %v589 = vld [vmem:[%s1 + $0xe98] sm:$0xf]
  %v590 = vld [vmem:[%s1 + $0xe9c] sm:$0xff]
  %v591 = vld [vmem:[%s1 + $0xea4] sm:$0xff]
  %v592 = vld [vmem:[%s1 + $0xeac] sm:$0xf]
  %v593 = vld [vmem:[%s1 + $0xeb0] sm:$0xff]
  %v594 = vld [vmem:[%s1 + $0xeb8] sm:$0xff]
  %v595 = vld [vmem:[%s1 + $0xec0] sm:$0xf]
  %v596 = vld [vmem:[%s1 + $0xec4] sm:$0xff]
  %v597 = vld [vmem:[%s1 + $0xecc] sm:$0xff]
  %v598 = vld [vmem:[%s1 + $0xed4] sm:$0xf]
  %v599 = vld [vmem:[%s1 + $0xed8] sm:$0xff]
  %v600 = vld [vmem:[%s1 + $0xee0] sm:$0xff]
  %v601 = vld [vmem:[%s1 + $0xee8] sm:$0xf]
  %v602 = vld [vmem:[%s1 + $0xeec] sm:$0xff]
  %v603 = vld [vmem:[%s1 + $0xef4] sm:$0xff]
  %v604 = vld [vmem:[%s1 + $0xefc] sm:$0xf]
  %v605 = vld [vmem:[%s1 + $0xf00] sm:$0xff]
  %v606 = vld [vmem:[%s1 + $0xf08] sm:$0xff]
  %v607 = vld [vmem:[%s1 + $0xf10] sm:$0xf]
  %v608 = vld [vmem:[%s1 + $0xf14] sm:$0xff]
  %v609 = vld [vmem:[%s1 + $0xf1c] sm:$0xff]
  %v610 = vld [vmem:[%s1 + $0xf24] sm:$0xf]
  %v611 = vld [vmem:[%s1 + $0xf28] sm:$0xff]
  %v612 = vld [vmem:[%s1 + $0xf30] sm:$0xff]
  %v613 = vld [vmem:[%s1 + $0xf38] sm:$0xf]
  %v614 = vld [vmem:[%s1 + $0xf3c] sm:$0xff]
  %v615 = vld [vmem:[%s1 + $0xf44] sm:$0xff]
  %v616 = vld [vmem:[%s1 + $0xf4c] sm:$0xf]
  %v617 = vld [vmem:[%s1 + $0xf50] sm:$0xff]
  %v618 = vld [vmem:[%s1 + $0xf58] sm:$0xff]
  %v619 = vld [vmem:[%s1 + $0xf60] sm:$0xf]
  %v620 = vld [vmem:[%s1 + $0xf64] sm:$0xff]
  %v621 = vld [vmem:[%s1 + $0xf6c] sm:$0xff]
  %v622 = vld [vmem:[%s1 + $0xf74] sm:$0xf]
  %v623 = vld [vmem:[%s1 + $0xf78] sm:$0xff]
  %v624 = vld [vmem:[%s1 + $0xf80] sm:$0xff]
  %v625 = vld [vmem:[%s1 + $0xf88] sm:$0xf]
  %v626 = vld [vmem:[%s1 + $0xf8c] sm:$0xff]
  %v627 = vld [vmem:[%s1 + $0xf94] sm:$0xff]
  %v628 = vld [vmem:[%s1 + $0xf9c] sm:$0xf]
  %v629 = vld [vmem:[%s1 + $0xfa0] sm:$0xff]
  %v630 = vld [vmem:[%s1 + $0xfa8] sm:$0xff]
  %v631 = vld [vmem:[%s1 + $0xfb0] sm:$0xf]
  %v632 = vld [vmem:[%s1 + $0xfb4] sm:$0xff]
  %v633 = vld [vmem:[%s1 + $0xfbc] sm:$0xff]
  %v634 = vld [vmem:[%s1 + $0xfc4] sm:$0xf]
  %v635 = vld [vmem:[%s1 + $0xfc8] sm:$0xff]
  %v636 = vld [vmem:[%s1 + $0xfd0] sm:$0xff]
  %v637 = vld [vmem:[%s1 + $0xfd8] sm:$0xf]
  %v638 = vld [vmem:[%s1 + $0xfdc] sm:$0xff]
  %v639 = vld [vmem:[%s1 + $0xfe4] sm:$0xff]
  %v640 = vld [vmem:[%s1 + $0xfec] sm:$0xf]
  %v641 = vld [vmem:[%s1 + $0xff0] sm:$0xff]
  %v642 = vld [vmem:[%s1 + $0xff8] sm:$0xff]
  %v643 = vld [vmem:[%s1 + $0x1000] sm:$0xf]
  %v644 = vld [vmem:[%s1 + $0x1004] sm:$0xff]
  %v645 = vld [vmem:[%s1 + $0x100c] sm:$0xff]
  %v646 = vld [vmem:[%s1 + $0x1014] sm:$0xf]
  %v647 = vld [vmem:[%s1 + $0x1018] sm:$0xff]
  %v648 = vld [vmem:[%s1 + $0x1020] sm:$0xff]
  %v649 = vld [vmem:[%s1 + $0x1028] sm:$0xf]
  %v650 = vld [vmem:[%s1 + $0x102c] sm:$0xff]
  %v651 = vld [vmem:[%s1 + $0x1034] sm:$0xff]
  %v652 = vld [vmem:[%s1 + $0x103c] sm:$0xf]
  %v653 = vld [vmem:[%s1 + $0x1040] sm:$0xff]
  %v654 = vld [vmem:[%s1 + $0x1048] sm:$0xff]
  %v655 = vld [vmem:[%s1 + $0x1050] sm:$0xf]
  %v656 = vld [vmem:[%s1 + $0x1054] sm:$0xff]
  %v657 = vld [vmem:[%s1 + $0x105c] sm:$0xff]
  %v658 = vld [vmem:[%s1 + $0x1064] sm:$0xf]
  %v659 = vld [vmem:[%s1 + $0x1068] sm:$0xff]
  %v660 = vld [vmem:[%s1 + $0x1070] sm:$0xff]
  %v661 = vld [vmem:[%s1 + $0x1078] sm:$0xf]
  %v662 = vld [vmem:[%s1 + $0x107c] sm:$0xff]
  %v663 = vld [vmem:[%s1 + $0x1084] sm:$0xff]
  %v664 = vld [vmem:[%s1 + $0x108c] sm:$0xf]
  %v665 = vld [vmem:[%s1 + $0x1090] sm:$0xff]
  %v666 = vld [vmem:[%s1 + $0x1098] sm:$0xff]
  %v667 = vld [vmem:[%s1 + $0x10a0] sm:$0xf]
  %v668 = vld [vmem:[%s1 + $0x10a4] sm:$0xff]
  %v669 = vld [vmem:[%s1 + $0x10ac] sm:$0xff]
  %v670 = vld [vmem:[%s1 + $0x10b4] sm:$0xf]
  %v671 = vld [vmem:[%s1 + $0x10b8] sm:$0xff]
  %v672 = vld [vmem:[%s1 + $0x10c0] sm:$0xff]
  %v673 = vld [vmem:[%s1 + $0x10c8] sm:$0xf]
  %v674 = vld [vmem:[%s1 + $0x10cc] sm:$0xff]
  %v675 = vld [vmem:[%s1 + $0x10d4] sm:$0xff]
  %v676 = vld [vmem:[%s1 + $0x10dc] sm:$0xf]
  %v677 = vld [vmem:[%s1 + $0x10e0] sm:$0xff]
  %v678 = vld [vmem:[%s1 + $0x10e8] sm:$0xff]
  %v679 = vld [vmem:[%s1 + $0x10f0] sm:$0xf]
  %v680 = vld [vmem:[%s1 + $0x10f4] sm:$0xff]
  %v681 = vld [vmem:[%s1 + $0x10fc] sm:$0xff]
  %v682 = vld [vmem:[%s1 + $0x1104] sm:$0xf]
  %v683 = vld [vmem:[%s1 + $0x1108] sm:$0xff]
  %v684 = vld [vmem:[%s1 + $0x1110] sm:$0xff]
  %v685 = vld [vmem:[%s1 + $0x1118] sm:$0xf]
  %v686 = vld [vmem:[%s1 + $0x111c] sm:$0xff]
  %v687 = vld [vmem:[%s1 + $0x1124] sm:$0xff]
  %v688 = vld [vmem:[%s1 + $0x112c] sm:$0xf]
  %v689 = vld [vmem:[%s1 + $0x1130] sm:$0xff]
  %v690 = vld [vmem:[%s1 + $0x1138] sm:$0xff]
  %v691 = vld [vmem:[%s1 + $0x1140] sm:$0xf]
  %v692 = vld [vmem:[%s1 + $0x1144] sm:$0xff]
  %v693 = vld [vmem:[%s1 + $0x114c] sm:$0xff]
  %v694 = vld [vmem:[%s1 + $0x1154] sm:$0xf]
  %v695 = vld [vmem:[%s1 + $0x1158] sm:$0xff]
  %v696 = vld [vmem:[%s1 + $0x1160] sm:$0xff]
  %v697 = vld [vmem:[%s1 + $0x1168] sm:$0xf]
  %v698 = vld [vmem:[%s1 + $0x116c] sm:$0xff]
  %v699 = vld [vmem:[%s1 + $0x1174] sm:$0xff]
  %v700 = vld [vmem:[%s1 + $0x117c] sm:$0xf]
  %v701 = vld [vmem:[%s1 + $0x1180] sm:$0xff]
  %v702 = vld [vmem:[%s1 + $0x1188] sm:$0xff]
  %v703 = vld [vmem:[%s1 + $0x1190] sm:$0xf]
  %v704 = vld [vmem:[%s1 + $0x1194] sm:$0xff]
  %v705 = vld [vmem:[%s1 + $0x119c] sm:$0xff]
  %v706 = vld [vmem:[%s1 + $0x11a4] sm:$0xf]
  %v707 = vld [vmem:[%s1 + $0x11a8] sm:$0xff]
  %v708 = vld [vmem:[%s1 + $0x11b0] sm:$0xff]
  %v709 = vld [vmem:[%s1 + $0x11b8] sm:$0xf]
  %v710 = vld [vmem:[%s1 + $0x11bc] sm:$0xff]
  %v711 = vld [vmem:[%s1 + $0x11c4] sm:$0xff]
  %v712 = vld [vmem:[%s1 + $0x11cc] sm:$0xf]
  %v713 = vld [vmem:[%s1 + $0x11d0] sm:$0xff]
  %v714 = vld [vmem:[%s1 + $0x11d8] sm:$0xff]
  %v715 = vld [vmem:[%s1 + $0x11e0] sm:$0xf]
  %v716 = vld [vmem:[%s1 + $0x11e4] sm:$0xff]
  %v717 = vld [vmem:[%s1 + $0x11ec] sm:$0xff]
  %v718 = vld [vmem:[%s1 + $0x11f4] sm:$0xf]
  %v719 = vld [vmem:[%s1 + $0x11f8] sm:$0xff]
  %v720 = vld [vmem:[%s1 + $0x1200] sm:$0xff]
  %v721 = vld [vmem:[%s1 + $0x1208] sm:$0xf]
  %v722 = vld [vmem:[%s1 + $0x120c] sm:$0xff]
  %v723 = vld [vmem:[%s1 + $0x1214] sm:$0xff]
  %v724 = vld [vmem:[%s1 + $0x121c] sm:$0xf]
  %v725 = vld [vmem:[%s1 + $0x1220] sm:$0xff]
  %v726 = vld [vmem:[%s1 + $0x1228] sm:$0xff]
  %v727 = vld [vmem:[%s1 + $0x1230] sm:$0xf]
  %v728 = vld [vmem:[%s1 + $0x1234] sm:$0xff]
  %v729 = vld [vmem:[%s1 + $0x123c] sm:$0xff]
  %v730 = vld [vmem:[%s1 + $0x1244] sm:$0xf]
  %v731 = vld [vmem:[%s1 + $0x1248] sm:$0xff]
  %v732 = vld [vmem:[%s1 + $0x1250] sm:$0xff]
  %v733 = vld [vmem:[%s1 + $0x1258] sm:$0xf]
  %v734 = vld [vmem:[%s1 + $0x125c] sm:$0xff]
  %v735 = vld [vmem:[%s1 + $0x1264] sm:$0xff]
  %v736 = vld [vmem:[%s1 + $0x126c] sm:$0xf]
  %v737 = vld [vmem:[%s1 + $0x1270] sm:$0xff]
  %v738 = vld [vmem:[%s1 + $0x1278] sm:$0xff]
  %v739 = vld [vmem:[%s1 + $0x1280] sm:$0xf]
  %v740 = vld [vmem:[%s1 + $0x1284] sm:$0xff]
  %v741 = vld [vmem:[%s1 + $0x128c] sm:$0xff]
  %v742 = vld [vmem:[%s1 + $0x1294] sm:$0xf]
  %v743 = vld [vmem:[%s1 + $0x1298] sm:$0xff]
  %v744 = vld [vmem:[%s1 + $0x12a0] sm:$0xff]
  %v745 = vld [vmem:[%s1 + $0x12a8] sm:$0xf]
  %v746 = vld [vmem:[%s1 + $0x12ac] sm:$0xff]
  %v747 = vld [vmem:[%s1 + $0x12b4] sm:$0xff]
  %v748 = vld [vmem:[%s1 + $0x12bc] sm:$0xf]
  %v749 = vld [vmem:[%s1 + $0x12c0] sm:$0xff]
  %v750 = vld [vmem:[%s1 + $0x12c8] sm:$0xff]
  %v751 = vld [vmem:[%s1 + $0x12d0] sm:$0xf]
  %v752 = vld [vmem:[%s1 + $0x12d4] sm:$0xff]
  %v753 = vld [vmem:[%s1 + $0x12dc] sm:$0xff]
  %v754 = vld [vmem:[%s1 + $0x12e4] sm:$0xf]
  %v755 = vld [vmem:[%s1 + $0x12e8] sm:$0xff]
  %v756 = vld [vmem:[%s1 + $0x12f0] sm:$0xff]
  %v757 = vld [vmem:[%s1 + $0x12f8] sm:$0xf]
  %v758 = vld [vmem:[%s1 + $0x12fc] sm:$0xff]
  %v759 = vld [vmem:[%s1 + $0x1304] sm:$0xff]
  %v760 = vld [vmem:[%s1 + $0x130c] sm:$0xf]
  %v761 = vld [vmem:[%s1 + $0x1310] sm:$0xff]
  %v762 = vld [vmem:[%s1 + $0x1318] sm:$0xff]
  %v763 = vld [vmem:[%s1 + $0x1320] sm:$0xf]
  %v764 = vld [vmem:[%s1 + $0x1324] sm:$0xff]
  %v765 = vld [vmem:[%s1 + $0x132c] sm:$0xff]
  %v766 = vld [vmem:[%s1 + $0x1334] sm:$0xf]
  %v767 = vld [vmem:[%s1 + $0x1338] sm:$0xff]
  %v768 = vld [vmem:[%s1 + $0x1340] sm:$0xff]
  %v769 = vld [vmem:[%s1 + $0x1348] sm:$0xf]
  %v770 = vld [vmem:[%s1 + $0x134c] sm:$0xff]
  %v771 = vld [vmem:[%s1 + $0x1354] sm:$0xff]
  %v772 = vld [vmem:[%s1 + $0x135c] sm:$0xf]
  %v773 = vld [vmem:[%s1 + $0x1360] sm:$0xff]
  %v774 = vld [vmem:[%s1 + $0x1368] sm:$0xff]
  %v775 = vld [vmem:[%s1 + $0x1370] sm:$0xf]
  %v776 = vld [vmem:[%s1 + $0x1374] sm:$0xff]
  %v777 = vld [vmem:[%s1 + $0x137c] sm:$0xff]
  %v778 = vld [vmem:[%s1 + $0x1384] sm:$0xf]
  %v779 = vld [vmem:[%s1 + $0x1388] sm:$0xff]
  %v780 = vld [vmem:[%s1 + $0x1390] sm:$0xff]
  %v781 = vld [vmem:[%s1 + $0x1398] sm:$0xf]
  %v782 = vld [vmem:[%s1 + $0x139c] sm:$0xff]
  %v783 = vld [vmem:[%s1 + $0x13a4] sm:$0xff]
  %v784 = vld [vmem:[%s1 + $0x13ac] sm:$0xf]
  %v785 = vld [vmem:[%s1 + $0x13b0] sm:$0xff]
  %v786 = vld [vmem:[%s1 + $0x13b8] sm:$0xff]
  %v787 = vld [vmem:[%s1 + $0x13c0] sm:$0xf]
  %v788 = vld [vmem:[%s1 + $0x13c4] sm:$0xff]
  %v789 = vld [vmem:[%s1 + $0x13cc] sm:$0xff]
  %v790 = vld [vmem:[%s1 + $0x13d4] sm:$0xf]
  %v791 = vld [vmem:[%s1 + $0x13d8] sm:$0xff]
  %v792 = vld [vmem:[%s1 + $0x13e0] sm:$0xff]
  %v793 = vld [vmem:[%s1 + $0x13e8] sm:$0xf]
  %v794 = vld [vmem:[%s1 + $0x13ec] sm:$0xff]
  %v795 = vld [vmem:[%s1 + $0x13f4] sm:$0xff]
  %v796 = vld [vmem:[%s1 + $0x13fc] sm:$0xf]
  %v797 = vld [vmem:[%s2] sm:$0x1f]
  %v799 = vlaneseq
  %v800 = vshrl.u32 %v799, 7
  %v801 = vsub.s32 0, %v800
  %v802 = vrot.slane %v797, %v801
  %v803 = vlaneseq
  %v804 = vshrl.u32 %v803, 7
  %v805 = vsub.s32 1, %v804
  %v806 = vrot.slane %v797, %v805
  %v807 = vlaneseq
  %v808 = vshrl.u32 %v807, 7
  %v809 = vsub.s32 2, %v808
  %v810 = vrot.slane %v797, %v809
  %v811 = vlaneseq
  %v812 = vshrl.u32 %v811, 7
  %v813 = vsub.s32 3, %v812
  %v814 = vrot.slane %v797, %v813
  %v815 = vlaneseq
  %v816 = vshrl.u32 %v815, 7
  %v817 = vsub.s32 4, %v816
  %v818 = vrot.slane %v797, %v817
  %v832 = vunpack.c.l.b16 %v21
  %v833 = vunpack.c.h.b16 %v21
  %v834 = vunpack.c.l.b16 %v22
  %v835 = vunpack.c.h.b16 %v22
  %v836 = vunpack.c.l.b16 %v23
  %v837 = vunpack.c.h.b16 %v23
  %v838 = vunpack.c.l.b16 %v24
  %v839 = vunpack.c.h.b16 %v24
  %v840 = vunpack.c.l.b16 %v25
  %v841 = vunpack.c.h.b16 %v25
  %v842 = vunpack.c.l.b16 %v26
  %v843 = vunpack.c.h.b16 %v26
  %v844 = vunpack.c.l.b16 %v27
  %v845 = vunpack.c.h.b16 %v27
  %v846 = vunpack.c.l.b16 %v28
  %v847 = vunpack.c.h.b16 %v28
  %v848 = vpack.c.b16 %v832, %v832
  %v849 = vpack.c.b16 %v833, %v833
  %v850 = vpack.c.b16 %v834, %v834
  %v851 = vpack.c.b16 %v835, %v835
  %v852 = vpack.c.b16 %v836, %v836
  %v853 = vpack.c.b16 %v837, %v837
  %v854 = vpack.c.b16 %v838, %v838
  %v855 = vpack.c.b16 %v839, %v839
  %v856 = vpack.c.b16 %v840, %v840
  %v857 = vpack.c.b16 %v841, %v841
  %v858 = vpack.c.b16 %v842, %v842
  %v859 = vpack.c.b16 %v843, %v843
  %v860 = vpack.c.b16 %v844, %v844
  %v861 = vpack.c.b16 %v845, %v845
  %v862 = vpack.c.b16 %v846, %v846
  %v863 = vpack.c.b16 %v847, %v847
  %v1648 = vunpack.c.l.b16 %v29
  %v1649 = vunpack.c.h.b16 %v29
  %v1650 = vunpack.c.l.b16 %v30
  %v1651 = vunpack.c.h.b16 %v30
  %v1652 = vunpack.c.l.b16 %v31
  %v1653 = vunpack.c.l.b16 %v32
  %v1654 = vunpack.c.h.b16 %v32
  %v1655 = vunpack.c.l.b16 %v33
  %v1656 = vunpack.c.h.b16 %v33
  %v1657 = vunpack.c.l.b16 %v34
  %v1658 = vunpack.c.l.b16 %v35
  %v1659 = vunpack.c.h.b16 %v35
  %v1660 = vunpack.c.l.b16 %v36
  %v1661 = vunpack.c.h.b16 %v36
  %v1662 = vunpack.c.l.b16 %v37
  %v1663 = vunpack.c.l.b16 %v38
  %v1664 = vunpack.c.h.b16 %v38
  %v1665 = vunpack.c.l.b16 %v39
  %v1666 = vunpack.c.h.b16 %v39
  %v1667 = vunpack.c.l.b16 %v40
  %v1668 = vunpack.c.l.b16 %v41
  %v1669 = vunpack.c.h.b16 %v41
  %v1670 = vunpack.c.l.b16 %v42
  %v1671 = vunpack.c.h.b16 %v42
  %v1672 = vunpack.c.l.b16 %v43
  %v1673 = vunpack.c.l.b16 %v44
  %v1674 = vunpack.c.h.b16 %v44
  %v1675 = vunpack.c.l.b16 %v45
  %v1676 = vunpack.c.h.b16 %v45
  %v1677 = vunpack.c.l.b16 %v46
  %v1678 = vunpack.c.l.b16 %v47
  %v1679 = vunpack.c.h.b16 %v47
  %v1680 = vunpack.c.l.b16 %v48
  %v1681 = vunpack.c.h.b16 %v48
  %v1682 = vunpack.c.l.b16 %v49
  %v1683 = vunpack.c.l.b16 %v50
  %v1684 = vunpack.c.h.b16 %v50
  %v1685 = vunpack.c.l.b16 %v51
  %v1686 = vunpack.c.h.b16 %v51
  %v1687 = vunpack.c.l.b16 %v52
  %v1688 = vunpack.c.l.b16 %v53
  %v1689 = vunpack.c.h.b16 %v53
  %v1690 = vunpack.c.l.b16 %v54
  %v1691 = vunpack.c.h.b16 %v54
  %v1692 = vunpack.c.l.b16 %v55
  %v1693 = vunpack.c.l.b16 %v56
  %v1694 = vunpack.c.h.b16 %v56
  %v1695 = vunpack.c.l.b16 %v57
  %v1696 = vunpack.c.h.b16 %v57
  %v1697 = vunpack.c.l.b16 %v58
  %v1698 = vunpack.c.l.b16 %v59
  %v1699 = vunpack.c.h.b16 %v59
  %v1700 = vunpack.c.l.b16 %v60
  %v1701 = vunpack.c.h.b16 %v60
  %v1702 = vunpack.c.l.b16 %v61
  %v1703 = vunpack.c.l.b16 %v62
  %v1704 = vunpack.c.h.b16 %v62
  %v1705 = vunpack.c.l.b16 %v63
  %v1706 = vunpack.c.h.b16 %v63
  %v1707 = vunpack.c.l.b16 %v64
  %v1708 = vunpack.c.l.b16 %v65
  %v1709 = vunpack.c.h.b16 %v65
  %v1710 = vunpack.c.l.b16 %v66
  %v1711 = vunpack.c.h.b16 %v66
  %v1712 = vunpack.c.l.b16 %v67
  %v1713 = vunpack.c.l.b16 %v68
  %v1714 = vunpack.c.h.b16 %v68
  %v1715 = vunpack.c.l.b16 %v69
  %v1716 = vunpack.c.h.b16 %v69
  %v1717 = vunpack.c.l.b16 %v70
  %v1718 = vunpack.c.l.b16 %v71
  %v1719 = vunpack.c.h.b16 %v71
  %v1720 = vunpack.c.l.b16 %v72
  %v1721 = vunpack.c.h.b16 %v72
  %v1722 = vunpack.c.l.b16 %v73
  %v1723 = vunpack.c.l.b16 %v74
  %v1724 = vunpack.c.h.b16 %v74
  %v1725 = vunpack.c.l.b16 %v75
  %v1726 = vunpack.c.h.b16 %v75
  %v1727 = vunpack.c.l.b16 %v76
  %v1728 = vunpack.c.l.b16 %v77
  %v1729 = vunpack.c.h.b16 %v77
  %v1730 = vunpack.c.l.b16 %v78
  %v1731 = vunpack.c.h.b16 %v78
  %v1732 = vunpack.c.l.b16 %v79
  %v1733 = vunpack.c.l.b16 %v80
  %v1734 = vunpack.c.h.b16 %v80
  %v1735 = vunpack.c.l.b16 %v81
  %v1736 = vunpack.c.h.b16 %v81
  %v1737 = vunpack.c.l.b16 %v82
  %v1738 = vunpack.c.l.b16 %v83
  %v1739 = vunpack.c.h.b16 %v83
  %v1740 = vunpack.c.l.b16 %v84
  %v1741 = vunpack.c.h.b16 %v84
  %v1742 = vunpack.c.l.b16 %v85
  %v1743 = vunpack.c.l.b16 %v86
  %v1744 = vunpack.c.h.b16 %v86
  %v1745 = vunpack.c.l.b16 %v87
  %v1746 = vunpack.c.h.b16 %v87
  %v1747 = vunpack.c.l.b16 %v88
  %v1748 = vunpack.c.l.b16 %v89
  %v1749 = vunpack.c.h.b16 %v89
  %v1750 = vunpack.c.l.b16 %v90
  %v1751 = vunpack.c.h.b16 %v90
  %v1752 = vunpack.c.l.b16 %v91
  %v1753 = vunpack.c.l.b16 %v92
  %v1754 = vunpack.c.h.b16 %v92
  %v1755 = vunpack.c.l.b16 %v93
  %v1756 = vunpack.c.h.b16 %v93
  %v1757 = vunpack.c.l.b16 %v94
  %v1758 = vunpack.c.l.b16 %v95
  %v1759 = vunpack.c.h.b16 %v95
  %v1760 = vunpack.c.l.b16 %v96
  %v1761 = vunpack.c.h.b16 %v96
  %v1762 = vunpack.c.l.b16 %v97
  %v1763 = vunpack.c.l.b16 %v98
  %v1764 = vunpack.c.h.b16 %v98
  %v1765 = vunpack.c.l.b16 %v99
  %v1766 = vunpack.c.h.b16 %v99
  %v1767 = vunpack.c.l.b16 %v100
  %v1768 = vunpack.c.l.b16 %v101
  %v1769 = vunpack.c.h.b16 %v101
  %v1770 = vunpack.c.l.b16 %v102
  %v1771 = vunpack.c.h.b16 %v102
  %v1772 = vunpack.c.l.b16 %v103
  %v1773 = vunpack.c.l.b16 %v104
  %v1774 = vunpack.c.h.b16 %v104
  %v1775 = vunpack.c.l.b16 %v105
  %v1776 = vunpack.c.h.b16 %v105
  %v1777 = vunpack.c.l.b16 %v106
  %v1778 = vunpack.c.l.b16 %v107
  %v1779 = vunpack.c.h.b16 %v107
  %v1780 = vunpack.c.l.b16 %v108
  %v1781 = vunpack.c.h.b16 %v108
  %v1782 = vunpack.c.l.b16 %v109
  %v1783 = vunpack.c.l.b16 %v110
  %v1784 = vunpack.c.h.b16 %v110
  %v1785 = vunpack.c.l.b16 %v111
  %v1786 = vunpack.c.h.b16 %v111
  %v1787 = vunpack.c.l.b16 %v112
  %v1788 = vunpack.c.l.b16 %v113
  %v1789 = vunpack.c.h.b16 %v113
  %v1790 = vunpack.c.l.b16 %v114
  %v1791 = vunpack.c.h.b16 %v114
  %v1792 = vunpack.c.l.b16 %v115
  %v1793 = vunpack.c.l.b16 %v116
  %v1794 = vunpack.c.h.b16 %v116
  %v1795 = vunpack.c.l.b16 %v117
  %v1796 = vunpack.c.h.b16 %v117
  %v1797 = vunpack.c.l.b16 %v118
  %v1798 = vunpack.c.l.b16 %v119
  %v1799 = vunpack.c.h.b16 %v119
  %v1800 = vunpack.c.l.b16 %v120
  %v1801 = vunpack.c.h.b16 %v120
  %v1802 = vunpack.c.l.b16 %v121
  %v1803 = vunpack.c.l.b16 %v122
  %v1804 = vunpack.c.h.b16 %v122
  %v1805 = vunpack.c.l.b16 %v123
  %v1806 = vunpack.c.h.b16 %v123
  %v1807 = vunpack.c.l.b16 %v124
  %v1808 = vunpack.c.l.b16 %v125
  %v1809 = vunpack.c.h.b16 %v125
  %v1810 = vunpack.c.l.b16 %v126
  %v1811 = vunpack.c.h.b16 %v126
  %v1812 = vunpack.c.l.b16 %v127
  %v1813 = vunpack.c.l.b16 %v128
  %v1814 = vunpack.c.h.b16 %v128
  %v1815 = vunpack.c.l.b16 %v129
  %v1816 = vunpack.c.h.b16 %v129
  %v1817 = vunpack.c.l.b16 %v130
  %v1818 = vunpack.c.l.b16 %v131
  %v1819 = vunpack.c.h.b16 %v131
  %v1820 = vunpack.c.l.b16 %v132
  %v1821 = vunpack.c.h.b16 %v132
  %v1822 = vunpack.c.l.b16 %v133
  %v1823 = vunpack.c.l.b16 %v134
  %v1824 = vunpack.c.h.b16 %v134
  %v1825 = vunpack.c.l.b16 %v135
  %v1826 = vunpack.c.h.b16 %v135
  %v1827 = vunpack.c.l.b16 %v136
  %v1828 = vunpack.c.l.b16 %v137
  %v1829 = vunpack.c.h.b16 %v137
  %v1830 = vunpack.c.l.b16 %v138
  %v1831 = vunpack.c.h.b16 %v138
  %v1832 = vunpack.c.l.b16 %v139
  %v1833 = vunpack.c.l.b16 %v140
  %v1834 = vunpack.c.h.b16 %v140
  %v1835 = vunpack.c.l.b16 %v141
  %v1836 = vunpack.c.h.b16 %v141
  %v1837 = vunpack.c.l.b16 %v142
  %v1838 = vunpack.c.l.b16 %v143
  %v1839 = vunpack.c.h.b16 %v143
  %v1840 = vunpack.c.l.b16 %v144
  %v1841 = vunpack.c.h.b16 %v144
  %v1842 = vunpack.c.l.b16 %v145
  %v1843 = vunpack.c.l.b16 %v146
  %v1844 = vunpack.c.h.b16 %v146
  %v1845 = vunpack.c.l.b16 %v147
  %v1846 = vunpack.c.h.b16 %v147
  %v1847 = vunpack.c.l.b16 %v148
  %v1848 = vunpack.c.l.b16 %v149
  %v1849 = vunpack.c.h.b16 %v149
  %v1850 = vunpack.c.l.b16 %v150
  %v1851 = vunpack.c.h.b16 %v150
  %v1852 = vunpack.c.l.b16 %v151
  %v1853 = vunpack.c.l.b16 %v152
  %v1854 = vunpack.c.h.b16 %v152
  %v1855 = vunpack.c.l.b16 %v153
  %v1856 = vunpack.c.h.b16 %v153
  %v1857 = vunpack.c.l.b16 %v154
  %v1858 = vunpack.c.l.b16 %v155
  %v1859 = vunpack.c.h.b16 %v155
  %v1860 = vunpack.c.l.b16 %v156
  %v1861 = vunpack.c.h.b16 %v156
  %v1862 = vunpack.c.l.b16 %v157
  %v1863 = vunpack.c.l.b16 %v158
  %v1864 = vunpack.c.h.b16 %v158
  %v1865 = vunpack.c.l.b16 %v159
  %v1866 = vunpack.c.h.b16 %v159
  %v1867 = vunpack.c.l.b16 %v160
  %v1868 = vunpack.c.l.b16 %v161
  %v1869 = vunpack.c.h.b16 %v161
  %v1870 = vunpack.c.l.b16 %v162
  %v1871 = vunpack.c.h.b16 %v162
  %v1872 = vunpack.c.l.b16 %v163
  %v1873 = vunpack.c.l.b16 %v164
  %v1874 = vunpack.c.h.b16 %v164
  %v1875 = vunpack.c.l.b16 %v165
  %v1876 = vunpack.c.h.b16 %v165
  %v1877 = vunpack.c.l.b16 %v166
  %v1878 = vunpack.c.l.b16 %v167
  %v1879 = vunpack.c.h.b16 %v167
  %v1880 = vunpack.c.l.b16 %v168
  %v1881 = vunpack.c.h.b16 %v168
  %v1882 = vunpack.c.l.b16 %v169
  %v1883 = vunpack.c.l.b16 %v170
  %v1884 = vunpack.c.h.b16 %v170
  %v1885 = vunpack.c.l.b16 %v171
  %v1886 = vunpack.c.h.b16 %v171
  %v1887 = vunpack.c.l.b16 %v172
  %v1888 = vunpack.c.l.b16 %v173
  %v1889 = vunpack.c.h.b16 %v173
  %v1890 = vunpack.c.l.b16 %v174
  %v1891 = vunpack.c.h.b16 %v174
  %v1892 = vunpack.c.l.b16 %v175
  %v1893 = vunpack.c.l.b16 %v176
  %v1894 = vunpack.c.h.b16 %v176
  %v1895 = vunpack.c.l.b16 %v177
  %v1896 = vunpack.c.h.b16 %v177
  %v1897 = vunpack.c.l.b16 %v178
  %v1898 = vunpack.c.l.b16 %v179
  %v1899 = vunpack.c.h.b16 %v179
  %v1900 = vunpack.c.l.b16 %v180
  %v1901 = vunpack.c.h.b16 %v180
  %v1902 = vunpack.c.l.b16 %v181
  %v1903 = vunpack.c.l.b16 %v182
  %v1904 = vunpack.c.h.b16 %v182
  %v1905 = vunpack.c.l.b16 %v183
  %v1906 = vunpack.c.h.b16 %v183
  %v1907 = vunpack.c.l.b16 %v184
  %v1908 = vunpack.c.l.b16 %v185
  %v1909 = vunpack.c.h.b16 %v185
  %v1910 = vunpack.c.l.b16 %v186
  %v1911 = vunpack.c.h.b16 %v186
  %v1912 = vunpack.c.l.b16 %v187
  %v1913 = vunpack.c.l.b16 %v188
  %v1914 = vunpack.c.h.b16 %v188
  %v1915 = vunpack.c.l.b16 %v189
  %v1916 = vunpack.c.h.b16 %v189
  %v1917 = vunpack.c.l.b16 %v190
  %v1918 = vunpack.c.l.b16 %v191
  %v1919 = vunpack.c.h.b16 %v191
  %v1920 = vunpack.c.l.b16 %v192
  %v1921 = vunpack.c.h.b16 %v192
  %v1922 = vunpack.c.l.b16 %v193
  %v1923 = vunpack.c.l.b16 %v194
  %v1924 = vunpack.c.h.b16 %v194
  %v1925 = vunpack.c.l.b16 %v195
  %v1926 = vunpack.c.h.b16 %v195
  %v1927 = vunpack.c.l.b16 %v196
  %v1928 = vunpack.c.l.b16 %v197
  %v1929 = vunpack.c.h.b16 %v197
  %v1930 = vunpack.c.l.b16 %v198
  %v1931 = vunpack.c.h.b16 %v198
  %v1932 = vunpack.c.l.b16 %v199
  %v1933 = vunpack.c.l.b16 %v200
  %v1934 = vunpack.c.h.b16 %v200
  %v1935 = vunpack.c.l.b16 %v201
  %v1936 = vunpack.c.h.b16 %v201
  %v1937 = vunpack.c.l.b16 %v202
  %v1938 = vunpack.c.l.b16 %v203
  %v1939 = vunpack.c.h.b16 %v203
  %v1940 = vunpack.c.l.b16 %v204
  %v1941 = vunpack.c.h.b16 %v204
  %v1942 = vunpack.c.l.b16 %v205
  %v1943 = vunpack.c.l.b16 %v206
  %v1944 = vunpack.c.h.b16 %v206
  %v1945 = vunpack.c.l.b16 %v207
  %v1946 = vunpack.c.h.b16 %v207
  %v1947 = vunpack.c.l.b16 %v208
  %v1948 = vunpack.c.l.b16 %v209
  %v1949 = vunpack.c.h.b16 %v209
  %v1950 = vunpack.c.l.b16 %v210
  %v1951 = vunpack.c.h.b16 %v210
  %v1952 = vunpack.c.l.b16 %v211
  %v1953 = vunpack.c.l.b16 %v212
  %v1954 = vunpack.c.h.b16 %v212
  %v1955 = vunpack.c.l.b16 %v213
  %v1956 = vunpack.c.h.b16 %v213
  %v1957 = vunpack.c.l.b16 %v214
  %v1958 = vunpack.c.l.b16 %v215
  %v1959 = vunpack.c.h.b16 %v215
  %v1960 = vunpack.c.l.b16 %v216
  %v1961 = vunpack.c.h.b16 %v216
  %v1962 = vunpack.c.l.b16 %v217
  %v1963 = vunpack.c.l.b16 %v218
  %v1964 = vunpack.c.h.b16 %v218
  %v1965 = vunpack.c.l.b16 %v219
  %v1966 = vunpack.c.h.b16 %v219
  %v1967 = vunpack.c.l.b16 %v220
  %v1968 = vunpack.c.l.b16 %v221
  %v1969 = vunpack.c.h.b16 %v221
  %v1970 = vunpack.c.l.b16 %v222
  %v1971 = vunpack.c.h.b16 %v222
  %v1972 = vunpack.c.l.b16 %v223
  %v1973 = vunpack.c.l.b16 %v224
  %v1974 = vunpack.c.h.b16 %v224
  %v1975 = vunpack.c.l.b16 %v225
  %v1976 = vunpack.c.h.b16 %v225
  %v1977 = vunpack.c.l.b16 %v226
  %v1978 = vunpack.c.l.b16 %v227
  %v1979 = vunpack.c.h.b16 %v227
  %v1980 = vunpack.c.l.b16 %v228
  %v1981 = vunpack.c.h.b16 %v228
  %v1982 = vunpack.c.l.b16 %v229
  %v1983 = vunpack.c.l.b16 %v230
  %v1984 = vunpack.c.h.b16 %v230
  %v1985 = vunpack.c.l.b16 %v231
  %v1986 = vunpack.c.h.b16 %v231
  %v1987 = vunpack.c.l.b16 %v232
  %v1988 = vunpack.c.l.b16 %v233
  %v1989 = vunpack.c.h.b16 %v233
  %v1990 = vunpack.c.l.b16 %v234
  %v1991 = vunpack.c.h.b16 %v234
  %v1992 = vunpack.c.l.b16 %v235
  %v1993 = vunpack.c.l.b16 %v236
  %v1994 = vunpack.c.h.b16 %v236
  %v1995 = vunpack.c.l.b16 %v237
  %v1996 = vunpack.c.h.b16 %v237
  %v1997 = vunpack.c.l.b16 %v238
  %v1998 = vunpack.c.l.b16 %v239
  %v1999 = vunpack.c.h.b16 %v239
  %v2000 = vunpack.c.l.b16 %v240
  %v2001 = vunpack.c.h.b16 %v240
  %v2002 = vunpack.c.l.b16 %v241
  %v2003 = vunpack.c.l.b16 %v242
  %v2004 = vunpack.c.h.b16 %v242
  %v2005 = vunpack.c.l.b16 %v243
  %v2006 = vunpack.c.h.b16 %v243
  %v2007 = vunpack.c.l.b16 %v244
  %v2008 = vunpack.c.l.b16 %v245
  %v2009 = vunpack.c.h.b16 %v245
  %v2010 = vunpack.c.l.b16 %v246
  %v2011 = vunpack.c.h.b16 %v246
  %v2012 = vunpack.c.l.b16 %v247
  %v2013 = vunpack.c.l.b16 %v248
  %v2014 = vunpack.c.h.b16 %v248
  %v2015 = vunpack.c.l.b16 %v249
  %v2016 = vunpack.c.h.b16 %v249
  %v2017 = vunpack.c.l.b16 %v250
  %v2018 = vunpack.c.l.b16 %v251
  %v2019 = vunpack.c.h.b16 %v251
  %v2020 = vunpack.c.l.b16 %v252
  %v2021 = vunpack.c.h.b16 %v252
  %v2022 = vunpack.c.l.b16 %v253
  %v2023 = vunpack.c.l.b16 %v254
  %v2024 = vunpack.c.h.b16 %v254
  %v2025 = vunpack.c.l.b16 %v255
  %v2026 = vunpack.c.h.b16 %v255
  %v2027 = vunpack.c.l.b16 %v256
  %v2028 = vunpack.c.l.b16 %v257
  %v2029 = vunpack.c.h.b16 %v257
  %v2030 = vunpack.c.l.b16 %v258
  %v2031 = vunpack.c.h.b16 %v258
  %v2032 = vunpack.c.l.b16 %v259
  %v2033 = vunpack.c.l.b16 %v260
  %v2034 = vunpack.c.h.b16 %v260
  %v2035 = vunpack.c.l.b16 %v261
  %v2036 = vunpack.c.h.b16 %v261
  %v2037 = vunpack.c.l.b16 %v262
  %v2038 = vunpack.c.l.b16 %v263
  %v2039 = vunpack.c.h.b16 %v263
  %v2040 = vunpack.c.l.b16 %v264
  %v2041 = vunpack.c.h.b16 %v264
  %v2042 = vunpack.c.l.b16 %v265
  %v2043 = vunpack.c.l.b16 %v266
  %v2044 = vunpack.c.h.b16 %v266
  %v2045 = vunpack.c.l.b16 %v267
  %v2046 = vunpack.c.h.b16 %v267
  %v2047 = vunpack.c.l.b16 %v268
  %v2048 = vunpack.c.l.b16 %v269
  %v2049 = vunpack.c.h.b16 %v269
  %v2050 = vunpack.c.l.b16 %v270
  %v2051 = vunpack.c.h.b16 %v270
  %v2052 = vunpack.c.l.b16 %v271
  %v2053 = vunpack.c.l.b16 %v272
  %v2054 = vunpack.c.h.b16 %v272
  %v2055 = vunpack.c.l.b16 %v273
  %v2056 = vunpack.c.h.b16 %v273
  %v2057 = vunpack.c.l.b16 %v274
  %v2058 = vunpack.c.l.b16 %v275
  %v2059 = vunpack.c.h.b16 %v275
  %v2060 = vunpack.c.l.b16 %v276
  %v2061 = vunpack.c.h.b16 %v276
  %v2062 = vunpack.c.l.b16 %v277
  %v2063 = vunpack.c.l.b16 %v278
  %v2064 = vunpack.c.h.b16 %v278
  %v2065 = vunpack.c.l.b16 %v279
  %v2066 = vunpack.c.h.b16 %v279
  %v2067 = vunpack.c.l.b16 %v280
  %v2068 = vunpack.c.l.b16 %v281
  %v2069 = vunpack.c.h.b16 %v281
  %v2070 = vunpack.c.l.b16 %v282
  %v2071 = vunpack.c.h.b16 %v282
  %v2072 = vunpack.c.l.b16 %v283
  %v2073 = vunpack.c.l.b16 %v284
  %v2074 = vunpack.c.h.b16 %v284
  %v2075 = vunpack.c.l.b16 %v285
  %v2076 = vunpack.c.h.b16 %v285
  %v2077 = vunpack.c.l.b16 %v286
  %v2078 = vunpack.c.l.b16 %v287
  %v2079 = vunpack.c.h.b16 %v287
  %v2080 = vunpack.c.l.b16 %v288
  %v2081 = vunpack.c.h.b16 %v288
  %v2082 = vunpack.c.l.b16 %v289
  %v2083 = vunpack.c.l.b16 %v290
  %v2084 = vunpack.c.h.b16 %v290
  %v2085 = vunpack.c.l.b16 %v291
  %v2086 = vunpack.c.h.b16 %v291
  %v2087 = vunpack.c.l.b16 %v292
  %v2088 = vunpack.c.l.b16 %v293
  %v2089 = vunpack.c.h.b16 %v293
  %v2090 = vunpack.c.l.b16 %v294
  %v2091 = vunpack.c.h.b16 %v294
  %v2092 = vunpack.c.l.b16 %v295
  %v2093 = vunpack.c.l.b16 %v296
  %v2094 = vunpack.c.h.b16 %v296
  %v2095 = vunpack.c.l.b16 %v297
  %v2096 = vunpack.c.h.b16 %v297
  %v2097 = vunpack.c.l.b16 %v298
  %v2098 = vunpack.c.l.b16 %v299
  %v2099 = vunpack.c.h.b16 %v299
  %v2100 = vunpack.c.l.b16 %v300
  %v2101 = vunpack.c.h.b16 %v300
  %v2102 = vunpack.c.l.b16 %v301
  %v2103 = vunpack.c.l.b16 %v302
  %v2104 = vunpack.c.h.b16 %v302
  %v2105 = vunpack.c.l.b16 %v303
  %v2106 = vunpack.c.h.b16 %v303
  %v2107 = vunpack.c.l.b16 %v304
  %v2108 = vunpack.c.l.b16 %v305
  %v2109 = vunpack.c.h.b16 %v305
  %v2110 = vunpack.c.l.b16 %v306
  %v2111 = vunpack.c.h.b16 %v306
  %v2112 = vunpack.c.l.b16 %v307
  %v2113 = vunpack.c.l.b16 %v308
  %v2114 = vunpack.c.h.b16 %v308
  %v2115 = vunpack.c.l.b16 %v309
  %v2116 = vunpack.c.h.b16 %v309
  %v2117 = vunpack.c.l.b16 %v310
  %v2118 = vunpack.c.l.b16 %v311
  %v2119 = vunpack.c.h.b16 %v311
  %v2120 = vunpack.c.l.b16 %v312
  %v2121 = vunpack.c.h.b16 %v312
  %v2122 = vunpack.c.l.b16 %v313
  %v2123 = vunpack.c.l.b16 %v314
  %v2124 = vunpack.c.h.b16 %v314
  %v2125 = vunpack.c.l.b16 %v315
  %v2126 = vunpack.c.h.b16 %v315
  %v2127 = vunpack.c.l.b16 %v316
  %v2128 = vunpack.c.l.b16 %v317
  %v2129 = vunpack.c.h.b16 %v317
  %v2130 = vunpack.c.l.b16 %v318
  %v2131 = vunpack.c.h.b16 %v318
  %v2132 = vunpack.c.l.b16 %v319
  %v2133 = vunpack.c.l.b16 %v320
  %v2134 = vunpack.c.h.b16 %v320
  %v2135 = vunpack.c.l.b16 %v321
  %v2136 = vunpack.c.h.b16 %v321
  %v2137 = vunpack.c.l.b16 %v322
  %v2138 = vunpack.c.l.b16 %v323
  %v2139 = vunpack.c.h.b16 %v323
  %v2140 = vunpack.c.l.b16 %v324
  %v2141 = vunpack.c.h.b16 %v324
  %v2142 = vunpack.c.l.b16 %v325
  %v2143 = vunpack.c.l.b16 %v326
  %v2144 = vunpack.c.h.b16 %v326
  %v2145 = vunpack.c.l.b16 %v327
  %v2146 = vunpack.c.h.b16 %v327
  %v2147 = vunpack.c.l.b16 %v328
  %v2148 = vunpack.c.l.b16 %v329
  %v2149 = vunpack.c.h.b16 %v329
  %v2150 = vunpack.c.l.b16 %v330
  %v2151 = vunpack.c.h.b16 %v330
  %v2152 = vunpack.c.l.b16 %v331
  %v2153 = vunpack.c.l.b16 %v332
  %v2154 = vunpack.c.h.b16 %v332
  %v2155 = vunpack.c.l.b16 %v333
  %v2156 = vunpack.c.h.b16 %v333
  %v2157 = vunpack.c.l.b16 %v334
  %v2158 = vunpack.c.l.b16 %v335
  %v2159 = vunpack.c.h.b16 %v335
  %v2160 = vunpack.c.l.b16 %v336
  %v2161 = vunpack.c.h.b16 %v336
  %v2162 = vunpack.c.l.b16 %v337
  %v2163 = vunpack.c.l.b16 %v338
  %v2164 = vunpack.c.h.b16 %v338
  %v2165 = vunpack.c.l.b16 %v339
  %v2166 = vunpack.c.h.b16 %v339
  %v2167 = vunpack.c.l.b16 %v340
  %v2168 = vunpack.c.l.b16 %v341
  %v2169 = vunpack.c.h.b16 %v341
  %v2170 = vunpack.c.l.b16 %v342
  %v2171 = vunpack.c.h.b16 %v342
  %v2172 = vunpack.c.l.b16 %v343
  %v2173 = vunpack.c.l.b16 %v344
  %v2174 = vunpack.c.h.b16 %v344
  %v2175 = vunpack.c.l.b16 %v345
  %v2176 = vunpack.c.h.b16 %v345
  %v2177 = vunpack.c.l.b16 %v346
  %v2178 = vunpack.c.l.b16 %v347
  %v2179 = vunpack.c.h.b16 %v347
  %v2180 = vunpack.c.l.b16 %v348
  %v2181 = vunpack.c.h.b16 %v348
  %v2182 = vunpack.c.l.b16 %v349
  %v2183 = vunpack.c.l.b16 %v350
  %v2184 = vunpack.c.h.b16 %v350
  %v2185 = vunpack.c.l.b16 %v351
  %v2186 = vunpack.c.h.b16 %v351
  %v2187 = vunpack.c.l.b16 %v352
  %v2188 = vunpack.c.l.b16 %v353
  %v2189 = vunpack.c.h.b16 %v353
  %v2190 = vunpack.c.l.b16 %v354
  %v2191 = vunpack.c.h.b16 %v354
  %v2192 = vunpack.c.l.b16 %v355
  %v2193 = vunpack.c.l.b16 %v356
  %v2194 = vunpack.c.h.b16 %v356
  %v2195 = vunpack.c.l.b16 %v357
  %v2196 = vunpack.c.h.b16 %v357
  %v2197 = vunpack.c.l.b16 %v358
  %v2198 = vunpack.c.l.b16 %v359
  %v2199 = vunpack.c.h.b16 %v359
  %v2200 = vunpack.c.l.b16 %v360
  %v2201 = vunpack.c.h.b16 %v360
  %v2202 = vunpack.c.l.b16 %v361
  %v2203 = vunpack.c.l.b16 %v362
  %v2204 = vunpack.c.h.b16 %v362
  %v2205 = vunpack.c.l.b16 %v363
  %v2206 = vunpack.c.h.b16 %v363
  %v2207 = vunpack.c.l.b16 %v364
  %v2208 = vunpack.c.l.b16 %v365
  %v2209 = vunpack.c.h.b16 %v365
  %v2210 = vunpack.c.l.b16 %v366
  %v2211 = vunpack.c.h.b16 %v366
  %v2212 = vunpack.c.l.b16 %v367
  %v2213 = vunpack.c.l.b16 %v368
  %v2214 = vunpack.c.h.b16 %v368
  %v2215 = vunpack.c.l.b16 %v369
  %v2216 = vunpack.c.h.b16 %v369
  %v2217 = vunpack.c.l.b16 %v370
  %v2218 = vunpack.c.l.b16 %v371
  %v2219 = vunpack.c.h.b16 %v371
  %v2220 = vunpack.c.l.b16 %v372
  %v2221 = vunpack.c.h.b16 %v372
  %v2222 = vunpack.c.l.b16 %v373
  %v2223 = vunpack.c.l.b16 %v374
  %v2224 = vunpack.c.h.b16 %v374
  %v2225 = vunpack.c.l.b16 %v375
  %v2226 = vunpack.c.h.b16 %v375
  %v2227 = vunpack.c.l.b16 %v376
  %v2228 = vunpack.c.l.b16 %v377
  %v2229 = vunpack.c.h.b16 %v377
  %v2230 = vunpack.c.l.b16 %v378
  %v2231 = vunpack.c.h.b16 %v378
  %v2232 = vunpack.c.l.b16 %v379
  %v2233 = vunpack.c.l.b16 %v380
  %v2234 = vunpack.c.h.b16 %v380
  %v2235 = vunpack.c.l.b16 %v381
  %v2236 = vunpack.c.h.b16 %v381
  %v2237 = vunpack.c.l.b16 %v382
  %v2238 = vunpack.c.l.b16 %v383
  %v2239 = vunpack.c.h.b16 %v383
  %v2240 = vunpack.c.l.b16 %v384
  %v2241 = vunpack.c.h.b16 %v384
  %v2242 = vunpack.c.l.b16 %v385
  %v2243 = vunpack.c.l.b16 %v386
  %v2244 = vunpack.c.h.b16 %v386
  %v2245 = vunpack.c.l.b16 %v387
  %v2246 = vunpack.c.h.b16 %v387
  %v2247 = vunpack.c.l.b16 %v388
  %v2248 = vunpack.c.l.b16 %v389
  %v2249 = vunpack.c.h.b16 %v389
  %v2250 = vunpack.c.l.b16 %v390
  %v2251 = vunpack.c.h.b16 %v390
  %v2252 = vunpack.c.l.b16 %v391
  %v2253 = vunpack.c.l.b16 %v392
  %v2254 = vunpack.c.h.b16 %v392
  %v2255 = vunpack.c.l.b16 %v393
  %v2256 = vunpack.c.h.b16 %v393
  %v2257 = vunpack.c.l.b16 %v394
  %v2258 = vunpack.c.l.b16 %v395
  %v2259 = vunpack.c.h.b16 %v395
  %v2260 = vunpack.c.l.b16 %v396
  %v2261 = vunpack.c.h.b16 %v396
  %v2262 = vunpack.c.l.b16 %v397
  %v2263 = vunpack.c.l.b16 %v398
  %v2264 = vunpack.c.h.b16 %v398
  %v2265 = vunpack.c.l.b16 %v399
  %v2266 = vunpack.c.h.b16 %v399
  %v2267 = vunpack.c.l.b16 %v400
  %v2268 = vunpack.c.l.b16 %v401
  %v2269 = vunpack.c.h.b16 %v401
  %v2270 = vunpack.c.l.b16 %v402
  %v2271 = vunpack.c.h.b16 %v402
  %v2272 = vunpack.c.l.b16 %v403
  %v2273 = vunpack.c.l.b16 %v404
  %v2274 = vunpack.c.h.b16 %v404
  %v2275 = vunpack.c.l.b16 %v405
  %v2276 = vunpack.c.h.b16 %v405
  %v2277 = vunpack.c.l.b16 %v406
  %v2278 = vunpack.c.l.b16 %v407
  %v2279 = vunpack.c.h.b16 %v407
  %v2280 = vunpack.c.l.b16 %v408
  %v2281 = vunpack.c.h.b16 %v408
  %v2282 = vunpack.c.l.b16 %v409
  %v2283 = vunpack.c.l.b16 %v410
  %v2284 = vunpack.c.h.b16 %v410
  %v2285 = vunpack.c.l.b16 %v411
  %v2286 = vunpack.c.h.b16 %v411
  %v2287 = vunpack.c.l.b16 %v412
  %v2288 = vunpack.c.l.b16 %v413
  %v2289 = vunpack.c.h.b16 %v413
  %v2290 = vunpack.c.l.b16 %v414
  %v2291 = vunpack.c.h.b16 %v414
  %v2292 = vunpack.c.l.b16 %v415
  %v2293 = vunpack.c.l.b16 %v416
  %v2294 = vunpack.c.h.b16 %v416
  %v2295 = vunpack.c.l.b16 %v417
  %v2296 = vunpack.c.h.b16 %v417
  %v2297 = vunpack.c.l.b16 %v418
  %v2298 = vunpack.c.l.b16 %v419
  %v2299 = vunpack.c.h.b16 %v419
  %v2300 = vunpack.c.l.b16 %v420
  %v2301 = vunpack.c.h.b16 %v420
  %v2302 = vunpack.c.l.b16 %v421
  %v2303 = vunpack.c.l.b16 %v422
  %v2304 = vunpack.c.h.b16 %v422
  %v2305 = vunpack.c.l.b16 %v423
  %v2306 = vunpack.c.h.b16 %v423
  %v2307 = vunpack.c.l.b16 %v424
  %v2308 = vunpack.c.l.b16 %v425
  %v2309 = vunpack.c.h.b16 %v425
  %v2310 = vunpack.c.l.b16 %v426
  %v2311 = vunpack.c.h.b16 %v426
  %v2312 = vunpack.c.l.b16 %v427
  %v2313 = vunpack.c.l.b16 %v428
  %v2314 = vunpack.c.h.b16 %v428
  %v2315 = vunpack.c.l.b16 %v429
  %v2316 = vunpack.c.h.b16 %v429
  %v2317 = vunpack.c.l.b16 %v430
  %v2318 = vunpack.c.l.b16 %v431
  %v2319 = vunpack.c.h.b16 %v431
  %v2320 = vunpack.c.l.b16 %v432
  %v2321 = vunpack.c.h.b16 %v432
  %v2322 = vunpack.c.l.b16 %v433
  %v2323 = vunpack.c.l.b16 %v434
  %v2324 = vunpack.c.h.b16 %v434
  %v2325 = vunpack.c.l.b16 %v435
  %v2326 = vunpack.c.h.b16 %v435
  %v2327 = vunpack.c.l.b16 %v436
  %v2328 = vunpack.c.l.b16 %v437
  %v2329 = vunpack.c.h.b16 %v437
  %v2330 = vunpack.c.l.b16 %v438
  %v2331 = vunpack.c.h.b16 %v438
  %v2332 = vunpack.c.l.b16 %v439
  %v2333 = vunpack.c.l.b16 %v440
  %v2334 = vunpack.c.h.b16 %v440
  %v2335 = vunpack.c.l.b16 %v441
  %v2336 = vunpack.c.h.b16 %v441
  %v2337 = vunpack.c.l.b16 %v442
  %v2338 = vunpack.c.l.b16 %v443
  %v2339 = vunpack.c.h.b16 %v443
  %v2340 = vunpack.c.l.b16 %v444
  %v2341 = vunpack.c.h.b16 %v444
  %v2342 = vunpack.c.l.b16 %v445
  %v2343 = vunpack.c.l.b16 %v446
  %v2344 = vunpack.c.h.b16 %v446
  %v2345 = vunpack.c.l.b16 %v447
  %v2346 = vunpack.c.h.b16 %v447
  %v2347 = vunpack.c.l.b16 %v448
  %v2348 = vunpack.c.l.b16 %v449
  %v2349 = vunpack.c.h.b16 %v449
  %v2350 = vunpack.c.l.b16 %v450
  %v2351 = vunpack.c.h.b16 %v450
  %v2352 = vunpack.c.l.b16 %v451
  %v2353 = vunpack.c.l.b16 %v452
  %v2354 = vunpack.c.h.b16 %v452
  %v2355 = vunpack.c.l.b16 %v453
  %v2356 = vunpack.c.h.b16 %v453
  %v2357 = vunpack.c.l.b16 %v454
  %v2358 = vunpack.c.l.b16 %v455
  %v2359 = vunpack.c.h.b16 %v455
  %v2360 = vunpack.c.l.b16 %v456
  %v2361 = vunpack.c.h.b16 %v456
  %v2362 = vunpack.c.l.b16 %v457
  %v2363 = vunpack.c.l.b16 %v458
  %v2364 = vunpack.c.h.b16 %v458
  %v2365 = vunpack.c.l.b16 %v459
  %v2366 = vunpack.c.h.b16 %v459
  %v2367 = vunpack.c.l.b16 %v460
  %v2368 = vunpack.c.l.b16 %v461
  %v2369 = vunpack.c.h.b16 %v461
  %v2370 = vunpack.c.l.b16 %v462
  %v2371 = vunpack.c.h.b16 %v462
  %v2372 = vunpack.c.l.b16 %v463
  %v2373 = vunpack.c.l.b16 %v464
  %v2374 = vunpack.c.h.b16 %v464
  %v2375 = vunpack.c.l.b16 %v465
  %v2376 = vunpack.c.h.b16 %v465
  %v2377 = vunpack.c.l.b16 %v466
  %v2378 = vunpack.c.l.b16 %v467
  %v2379 = vunpack.c.h.b16 %v467
  %v2380 = vunpack.c.l.b16 %v468
  %v2381 = vunpack.c.h.b16 %v468
  %v2382 = vunpack.c.l.b16 %v469
  %v2383 = vunpack.c.l.b16 %v470
  %v2384 = vunpack.c.h.b16 %v470
  %v2385 = vunpack.c.l.b16 %v471
  %v2386 = vunpack.c.h.b16 %v471
  %v2387 = vunpack.c.l.b16 %v472
  %v2388 = vunpack.c.l.b16 %v473
  %v2389 = vunpack.c.h.b16 %v473
  %v2390 = vunpack.c.l.b16 %v474
  %v2391 = vunpack.c.h.b16 %v474
  %v2392 = vunpack.c.l.b16 %v475
  %v2393 = vunpack.c.l.b16 %v476
  %v2394 = vunpack.c.h.b16 %v476
  %v2395 = vunpack.c.l.b16 %v477
  %v2396 = vunpack.c.h.b16 %v477
  %v2397 = vunpack.c.l.b16 %v478
  %v2398 = vunpack.c.l.b16 %v479
  %v2399 = vunpack.c.h.b16 %v479
  %v2400 = vunpack.c.l.b16 %v480
  %v2401 = vunpack.c.h.b16 %v480
  %v2402 = vunpack.c.l.b16 %v481
  %v2403 = vunpack.c.l.b16 %v482
  %v2404 = vunpack.c.h.b16 %v482
  %v2405 = vunpack.c.l.b16 %v483
  %v2406 = vunpack.c.h.b16 %v483
  %v2407 = vunpack.c.l.b16 %v484
  %v2408 = vunpack.c.l.b16 %v485
  %v2409 = vunpack.c.h.b16 %v485
  %v2410 = vunpack.c.l.b16 %v486
  %v2411 = vunpack.c.h.b16 %v486
  %v2412 = vunpack.c.l.b16 %v487
  %v2413 = vunpack.c.l.b16 %v488
  %v2414 = vunpack.c.h.b16 %v488
  %v2415 = vunpack.c.l.b16 %v489
  %v2416 = vunpack.c.h.b16 %v489
  %v2417 = vunpack.c.l.b16 %v490
  %v2418 = vunpack.c.l.b16 %v491
  %v2419 = vunpack.c.h.b16 %v491
  %v2420 = vunpack.c.l.b16 %v492
  %v2421 = vunpack.c.h.b16 %v492
  %v2422 = vunpack.c.l.b16 %v493
  %v2423 = vunpack.c.l.b16 %v494
  %v2424 = vunpack.c.h.b16 %v494
  %v2425 = vunpack.c.l.b16 %v495
  %v2426 = vunpack.c.h.b16 %v495
  %v2427 = vunpack.c.l.b16 %v496
  %v2428 = vunpack.c.l.b16 %v497
  %v2429 = vunpack.c.h.b16 %v497
  %v2430 = vunpack.c.l.b16 %v498
  %v2431 = vunpack.c.h.b16 %v498
  %v2432 = vunpack.c.l.b16 %v499
  %v2433 = vunpack.c.l.b16 %v500
  %v2434 = vunpack.c.h.b16 %v500
  %v2435 = vunpack.c.l.b16 %v501
  %v2436 = vunpack.c.h.b16 %v501
  %v2437 = vunpack.c.l.b16 %v502
  %v2438 = vunpack.c.l.b16 %v503
  %v2439 = vunpack.c.h.b16 %v503
  %v2440 = vunpack.c.l.b16 %v504
  %v2441 = vunpack.c.h.b16 %v504
  %v2442 = vunpack.c.l.b16 %v505
  %v2443 = vunpack.c.l.b16 %v506
  %v2444 = vunpack.c.h.b16 %v506
  %v2445 = vunpack.c.l.b16 %v507
  %v2446 = vunpack.c.h.b16 %v507
  %v2447 = vunpack.c.l.b16 %v508
  %v2448 = vunpack.c.l.b16 %v509
  %v2449 = vunpack.c.h.b16 %v509
  %v2450 = vunpack.c.l.b16 %v510
  %v2451 = vunpack.c.h.b16 %v510
  %v2452 = vunpack.c.l.b16 %v511
  %v2453 = vunpack.c.l.b16 %v512
  %v2454 = vunpack.c.h.b16 %v512
  %v2455 = vunpack.c.l.b16 %v513
  %v2456 = vunpack.c.h.b16 %v513
  %v2457 = vunpack.c.l.b16 %v514
  %v2458 = vunpack.c.l.b16 %v515
  %v2459 = vunpack.c.h.b16 %v515
  %v2460 = vunpack.c.l.b16 %v516
  %v2461 = vunpack.c.h.b16 %v516
  %v2462 = vunpack.c.l.b16 %v517
  %v2463 = vunpack.c.l.b16 %v518
  %v2464 = vunpack.c.h.b16 %v518
  %v2465 = vunpack.c.l.b16 %v519
  %v2466 = vunpack.c.h.b16 %v519
  %v2467 = vunpack.c.l.b16 %v520
  %v2468 = vunpack.c.l.b16 %v521
  %v2469 = vunpack.c.h.b16 %v521
  %v2470 = vunpack.c.l.b16 %v522
  %v2471 = vunpack.c.h.b16 %v522
  %v2472 = vunpack.c.l.b16 %v523
  %v2473 = vunpack.c.l.b16 %v524
  %v2474 = vunpack.c.h.b16 %v524
  %v2475 = vunpack.c.l.b16 %v525
  %v2476 = vunpack.c.h.b16 %v525
  %v2477 = vunpack.c.l.b16 %v526
  %v2478 = vunpack.c.l.b16 %v527
  %v2479 = vunpack.c.h.b16 %v527
  %v2480 = vunpack.c.l.b16 %v528
  %v2481 = vunpack.c.h.b16 %v528
  %v2482 = vunpack.c.l.b16 %v529
  %v2483 = vunpack.c.l.b16 %v530
  %v2484 = vunpack.c.h.b16 %v530
  %v2485 = vunpack.c.l.b16 %v531
  %v2486 = vunpack.c.h.b16 %v531
  %v2487 = vunpack.c.l.b16 %v532
  %v2488 = vunpack.c.l.b16 %v533
  %v2489 = vunpack.c.h.b16 %v533
  %v2490 = vunpack.c.l.b16 %v534
  %v2491 = vunpack.c.h.b16 %v534
  %v2492 = vunpack.c.l.b16 %v535
  %v2493 = vunpack.c.l.b16 %v536
  %v2494 = vunpack.c.h.b16 %v536
  %v2495 = vunpack.c.l.b16 %v537
  %v2496 = vunpack.c.h.b16 %v537
  %v2497 = vunpack.c.l.b16 %v538
  %v2498 = vunpack.c.l.b16 %v539
  %v2499 = vunpack.c.h.b16 %v539
  %v2500 = vunpack.c.l.b16 %v540
  %v2501 = vunpack.c.h.b16 %v540
  %v2502 = vunpack.c.l.b16 %v541
  %v2503 = vunpack.c.l.b16 %v542
  %v2504 = vunpack.c.h.b16 %v542
  %v2505 = vunpack.c.l.b16 %v543
  %v2506 = vunpack.c.h.b16 %v543
  %v2507 = vunpack.c.l.b16 %v544
  %v2508 = vunpack.c.l.b16 %v545
  %v2509 = vunpack.c.h.b16 %v545
  %v2510 = vunpack.c.l.b16 %v546
  %v2511 = vunpack.c.h.b16 %v546
  %v2512 = vunpack.c.l.b16 %v547
  %v2513 = vunpack.c.l.b16 %v548
  %v2514 = vunpack.c.h.b16 %v548
  %v2515 = vunpack.c.l.b16 %v549
  %v2516 = vunpack.c.h.b16 %v549
  %v2517 = vunpack.c.l.b16 %v550
  %v2518 = vunpack.c.l.b16 %v551
  %v2519 = vunpack.c.h.b16 %v551
  %v2520 = vunpack.c.l.b16 %v552
  %v2521 = vunpack.c.h.b16 %v552
  %v2522 = vunpack.c.l.b16 %v553
  %v2523 = vunpack.c.l.b16 %v554
  %v2524 = vunpack.c.h.b16 %v554
  %v2525 = vunpack.c.l.b16 %v555
  %v2526 = vunpack.c.h.b16 %v555
  %v2527 = vunpack.c.l.b16 %v556
  %v2528 = vunpack.c.l.b16 %v557
  %v2529 = vunpack.c.h.b16 %v557
  %v2530 = vunpack.c.l.b16 %v558
  %v2531 = vunpack.c.h.b16 %v558
  %v2532 = vunpack.c.l.b16 %v559
  %v2533 = vunpack.c.l.b16 %v560
  %v2534 = vunpack.c.h.b16 %v560
  %v2535 = vunpack.c.l.b16 %v561
  %v2536 = vunpack.c.h.b16 %v561
  %v2537 = vunpack.c.l.b16 %v562
  %v2538 = vunpack.c.l.b16 %v563
  %v2539 = vunpack.c.h.b16 %v563
  %v2540 = vunpack.c.l.b16 %v564
  %v2541 = vunpack.c.h.b16 %v564
  %v2542 = vunpack.c.l.b16 %v565
  %v2543 = vunpack.c.l.b16 %v566
  %v2544 = vunpack.c.h.b16 %v566
  %v2545 = vunpack.c.l.b16 %v567
  %v2546 = vunpack.c.h.b16 %v567
  %v2547 = vunpack.c.l.b16 %v568
  %v2548 = vunpack.c.l.b16 %v569
  %v2549 = vunpack.c.h.b16 %v569
  %v2550 = vunpack.c.l.b16 %v570
  %v2551 = vunpack.c.h.b16 %v570
  %v2552 = vunpack.c.l.b16 %v571
  %v2553 = vunpack.c.l.b16 %v572
  %v2554 = vunpack.c.h.b16 %v572
  %v2555 = vunpack.c.l.b16 %v573
  %v2556 = vunpack.c.h.b16 %v573
  %v2557 = vunpack.c.l.b16 %v574
  %v2558 = vunpack.c.l.b16 %v575
  %v2559 = vunpack.c.h.b16 %v575
  %v2560 = vunpack.c.l.b16 %v576
  %v2561 = vunpack.c.h.b16 %v576
  %v2562 = vunpack.c.l.b16 %v577
  %v2563 = vunpack.c.l.b16 %v578
  %v2564 = vunpack.c.h.b16 %v578
  %v2565 = vunpack.c.l.b16 %v579
  %v2566 = vunpack.c.h.b16 %v579
  %v2567 = vunpack.c.l.b16 %v580
  %v2568 = vunpack.c.l.b16 %v581
  %v2569 = vunpack.c.h.b16 %v581
  %v2570 = vunpack.c.l.b16 %v582
  %v2571 = vunpack.c.h.b16 %v582
  %v2572 = vunpack.c.l.b16 %v583
  %v2573 = vunpack.c.l.b16 %v584
  %v2574 = vunpack.c.h.b16 %v584
  %v2575 = vunpack.c.l.b16 %v585
  %v2576 = vunpack.c.h.b16 %v585
  %v2577 = vunpack.c.l.b16 %v586
  %v2578 = vunpack.c.l.b16 %v587
  %v2579 = vunpack.c.h.b16 %v587
  %v2580 = vunpack.c.l.b16 %v588
  %v2581 = vunpack.c.h.b16 %v588
  %v2582 = vunpack.c.l.b16 %v589
  %v2583 = vunpack.c.l.b16 %v590
  %v2584 = vunpack.c.h.b16 %v590
  %v2585 = vunpack.c.l.b16 %v591
  %v2586 = vunpack.c.h.b16 %v591
  %v2587 = vunpack.c.l.b16 %v592
  %v2588 = vunpack.c.l.b16 %v593
  %v2589 = vunpack.c.h.b16 %v593
  %v2590 = vunpack.c.l.b16 %v594
  %v2591 = vunpack.c.h.b16 %v594
  %v2592 = vunpack.c.l.b16 %v595
  %v2593 = vunpack.c.l.b16 %v596
  %v2594 = vunpack.c.h.b16 %v596
  %v2595 = vunpack.c.l.b16 %v597
  %v2596 = vunpack.c.h.b16 %v597
  %v2597 = vunpack.c.l.b16 %v598
  %v2598 = vunpack.c.l.b16 %v599
  %v2599 = vunpack.c.h.b16 %v599
  %v2600 = vunpack.c.l.b16 %v600
  %v2601 = vunpack.c.h.b16 %v600
  %v2602 = vunpack.c.l.b16 %v601
  %v2603 = vunpack.c.l.b16 %v602
  %v2604 = vunpack.c.h.b16 %v602
  %v2605 = vunpack.c.l.b16 %v603
  %v2606 = vunpack.c.h.b16 %v603
  %v2607 = vunpack.c.l.b16 %v604
  %v2608 = vunpack.c.l.b16 %v605
  %v2609 = vunpack.c.h.b16 %v605
  %v2610 = vunpack.c.l.b16 %v606
  %v2611 = vunpack.c.h.b16 %v606
  %v2612 = vunpack.c.l.b16 %v607
  %v2613 = vunpack.c.l.b16 %v608
  %v2614 = vunpack.c.h.b16 %v608
  %v2615 = vunpack.c.l.b16 %v609
  %v2616 = vunpack.c.h.b16 %v609
  %v2617 = vunpack.c.l.b16 %v610
  %v2618 = vunpack.c.l.b16 %v611
  %v2619 = vunpack.c.h.b16 %v611
  %v2620 = vunpack.c.l.b16 %v612
  %v2621 = vunpack.c.h.b16 %v612
  %v2622 = vunpack.c.l.b16 %v613
  %v2623 = vunpack.c.l.b16 %v614
  %v2624 = vunpack.c.h.b16 %v614
  %v2625 = vunpack.c.l.b16 %v615
  %v2626 = vunpack.c.h.b16 %v615
  %v2627 = vunpack.c.l.b16 %v616
  %v2628 = vunpack.c.l.b16 %v617
  %v2629 = vunpack.c.h.b16 %v617
  %v2630 = vunpack.c.l.b16 %v618
  %v2631 = vunpack.c.h.b16 %v618
  %v2632 = vunpack.c.l.b16 %v619
  %v2633 = vunpack.c.l.b16 %v620
  %v2634 = vunpack.c.h.b16 %v620
  %v2635 = vunpack.c.l.b16 %v621
  %v2636 = vunpack.c.h.b16 %v621
  %v2637 = vunpack.c.l.b16 %v622
  %v2638 = vunpack.c.l.b16 %v623
  %v2639 = vunpack.c.h.b16 %v623
  %v2640 = vunpack.c.l.b16 %v624
  %v2641 = vunpack.c.h.b16 %v624
  %v2642 = vunpack.c.l.b16 %v625
  %v2643 = vunpack.c.l.b16 %v626
  %v2644 = vunpack.c.h.b16 %v626
  %v2645 = vunpack.c.l.b16 %v627
  %v2646 = vunpack.c.h.b16 %v627
  %v2647 = vunpack.c.l.b16 %v628
  %v2648 = vunpack.c.l.b16 %v629
  %v2649 = vunpack.c.h.b16 %v629
  %v2650 = vunpack.c.l.b16 %v630
  %v2651 = vunpack.c.h.b16 %v630
  %v2652 = vunpack.c.l.b16 %v631
  %v2653 = vunpack.c.l.b16 %v632
  %v2654 = vunpack.c.h.b16 %v632
  %v2655 = vunpack.c.l.b16 %v633
  %v2656 = vunpack.c.h.b16 %v633
  %v2657 = vunpack.c.l.b16 %v634
  %v2658 = vunpack.c.l.b16 %v635
  %v2659 = vunpack.c.h.b16 %v635
  %v2660 = vunpack.c.l.b16 %v636
  %v2661 = vunpack.c.h.b16 %v636
  %v2662 = vunpack.c.l.b16 %v637
  %v2663 = vunpack.c.l.b16 %v638
  %v2664 = vunpack.c.h.b16 %v638
  %v2665 = vunpack.c.l.b16 %v639
  %v2666 = vunpack.c.h.b16 %v639
  %v2667 = vunpack.c.l.b16 %v640
  %v2668 = vunpack.c.l.b16 %v641
  %v2669 = vunpack.c.h.b16 %v641
  %v2670 = vunpack.c.l.b16 %v642
  %v2671 = vunpack.c.h.b16 %v642
  %v2672 = vunpack.c.l.b16 %v643
  %v2673 = vunpack.c.l.b16 %v644
  %v2674 = vunpack.c.h.b16 %v644
  %v2675 = vunpack.c.l.b16 %v645
  %v2676 = vunpack.c.h.b16 %v645
  %v2677 = vunpack.c.l.b16 %v646
  %v2678 = vunpack.c.l.b16 %v647
  %v2679 = vunpack.c.h.b16 %v647
  %v2680 = vunpack.c.l.b16 %v648
  %v2681 = vunpack.c.h.b16 %v648
  %v2682 = vunpack.c.l.b16 %v649
  %v2683 = vunpack.c.l.b16 %v650
  %v2684 = vunpack.c.h.b16 %v650
  %v2685 = vunpack.c.l.b16 %v651
  %v2686 = vunpack.c.h.b16 %v651
  %v2687 = vunpack.c.l.b16 %v652
  %v2688 = vunpack.c.l.b16 %v653
  %v2689 = vunpack.c.h.b16 %v653
  %v2690 = vunpack.c.l.b16 %v654
  %v2691 = vunpack.c.h.b16 %v654
  %v2692 = vunpack.c.l.b16 %v655
  %v2693 = vunpack.c.l.b16 %v656
  %v2694 = vunpack.c.h.b16 %v656
  %v2695 = vunpack.c.l.b16 %v657
  %v2696 = vunpack.c.h.b16 %v657
  %v2697 = vunpack.c.l.b16 %v658
  %v2698 = vunpack.c.l.b16 %v659
  %v2699 = vunpack.c.h.b16 %v659
  %v2700 = vunpack.c.l.b16 %v660
  %v2701 = vunpack.c.h.b16 %v660
  %v2702 = vunpack.c.l.b16 %v661
  %v2703 = vunpack.c.l.b16 %v662
  %v2704 = vunpack.c.h.b16 %v662
  %v2705 = vunpack.c.l.b16 %v663
  %v2706 = vunpack.c.h.b16 %v663
  %v2707 = vunpack.c.l.b16 %v664
  %v2708 = vunpack.c.l.b16 %v665
  %v2709 = vunpack.c.h.b16 %v665
  %v2710 = vunpack.c.l.b16 %v666
  %v2711 = vunpack.c.h.b16 %v666
  %v2712 = vunpack.c.l.b16 %v667
  %v2713 = vunpack.c.l.b16 %v668
  %v2714 = vunpack.c.h.b16 %v668
  %v2715 = vunpack.c.l.b16 %v669
  %v2716 = vunpack.c.h.b16 %v669
  %v2717 = vunpack.c.l.b16 %v670
  %v2718 = vunpack.c.l.b16 %v671
  %v2719 = vunpack.c.h.b16 %v671
  %v2720 = vunpack.c.l.b16 %v672
  %v2721 = vunpack.c.h.b16 %v672
  %v2722 = vunpack.c.l.b16 %v673
  %v2723 = vunpack.c.l.b16 %v674
  %v2724 = vunpack.c.h.b16 %v674
  %v2725 = vunpack.c.l.b16 %v675
  %v2726 = vunpack.c.h.b16 %v675
  %v2727 = vunpack.c.l.b16 %v676
  %v2728 = vunpack.c.l.b16 %v677
  %v2729 = vunpack.c.h.b16 %v677
  %v2730 = vunpack.c.l.b16 %v678
  %v2731 = vunpack.c.h.b16 %v678
  %v2732 = vunpack.c.l.b16 %v679
  %v2733 = vunpack.c.l.b16 %v680
  %v2734 = vunpack.c.h.b16 %v680
  %v2735 = vunpack.c.l.b16 %v681
  %v2736 = vunpack.c.h.b16 %v681
  %v2737 = vunpack.c.l.b16 %v682
  %v2738 = vunpack.c.l.b16 %v683
  %v2739 = vunpack.c.h.b16 %v683
  %v2740 = vunpack.c.l.b16 %v684
  %v2741 = vunpack.c.h.b16 %v684
  %v2742 = vunpack.c.l.b16 %v685
  %v2743 = vunpack.c.l.b16 %v686
  %v2744 = vunpack.c.h.b16 %v686
  %v2745 = vunpack.c.l.b16 %v687
  %v2746 = vunpack.c.h.b16 %v687
  %v2747 = vunpack.c.l.b16 %v688
  %v2748 = vunpack.c.l.b16 %v689
  %v2749 = vunpack.c.h.b16 %v689
  %v2750 = vunpack.c.l.b16 %v690
  %v2751 = vunpack.c.h.b16 %v690
  %v2752 = vunpack.c.l.b16 %v691
  %v2753 = vunpack.c.l.b16 %v692
  %v2754 = vunpack.c.h.b16 %v692
  %v2755 = vunpack.c.l.b16 %v693
  %v2756 = vunpack.c.h.b16 %v693
  %v2757 = vunpack.c.l.b16 %v694
  %v2758 = vunpack.c.l.b16 %v695
  %v2759 = vunpack.c.h.b16 %v695
  %v2760 = vunpack.c.l.b16 %v696
  %v2761 = vunpack.c.h.b16 %v696
  %v2762 = vunpack.c.l.b16 %v697
  %v2763 = vunpack.c.l.b16 %v698
  %v2764 = vunpack.c.h.b16 %v698
  %v2765 = vunpack.c.l.b16 %v699
  %v2766 = vunpack.c.h.b16 %v699
  %v2767 = vunpack.c.l.b16 %v700
  %v2768 = vunpack.c.l.b16 %v701
  %v2769 = vunpack.c.h.b16 %v701
  %v2770 = vunpack.c.l.b16 %v702
  %v2771 = vunpack.c.h.b16 %v702
  %v2772 = vunpack.c.l.b16 %v703
  %v2773 = vunpack.c.l.b16 %v704
  %v2774 = vunpack.c.h.b16 %v704
  %v2775 = vunpack.c.l.b16 %v705
  %v2776 = vunpack.c.h.b16 %v705
  %v2777 = vunpack.c.l.b16 %v706
  %v2778 = vunpack.c.l.b16 %v707
  %v2779 = vunpack.c.h.b16 %v707
  %v2780 = vunpack.c.l.b16 %v708
  %v2781 = vunpack.c.h.b16 %v708
  %v2782 = vunpack.c.l.b16 %v709
  %v2783 = vunpack.c.l.b16 %v710
  %v2784 = vunpack.c.h.b16 %v710
  %v2785 = vunpack.c.l.b16 %v711
  %v2786 = vunpack.c.h.b16 %v711
  %v2787 = vunpack.c.l.b16 %v712
  %v2788 = vunpack.c.l.b16 %v713
  %v2789 = vunpack.c.h.b16 %v713
  %v2790 = vunpack.c.l.b16 %v714
  %v2791 = vunpack.c.h.b16 %v714
  %v2792 = vunpack.c.l.b16 %v715
  %v2793 = vunpack.c.l.b16 %v716
  %v2794 = vunpack.c.h.b16 %v716
  %v2795 = vunpack.c.l.b16 %v717
  %v2796 = vunpack.c.h.b16 %v717
  %v2797 = vunpack.c.l.b16 %v718
  %v2798 = vunpack.c.l.b16 %v719
  %v2799 = vunpack.c.h.b16 %v719
  %v2800 = vunpack.c.l.b16 %v720
  %v2801 = vunpack.c.h.b16 %v720
  %v2802 = vunpack.c.l.b16 %v721
  %v2803 = vunpack.c.l.b16 %v722
  %v2804 = vunpack.c.h.b16 %v722
  %v2805 = vunpack.c.l.b16 %v723
  %v2806 = vunpack.c.h.b16 %v723
  %v2807 = vunpack.c.l.b16 %v724
  %v2808 = vunpack.c.l.b16 %v725
  %v2809 = vunpack.c.h.b16 %v725
  %v2810 = vunpack.c.l.b16 %v726
  %v2811 = vunpack.c.h.b16 %v726
  %v2812 = vunpack.c.l.b16 %v727
  %v2813 = vunpack.c.l.b16 %v728
  %v2814 = vunpack.c.h.b16 %v728
  %v2815 = vunpack.c.l.b16 %v729
  %v2816 = vunpack.c.h.b16 %v729
  %v2817 = vunpack.c.l.b16 %v730
  %v2818 = vunpack.c.l.b16 %v731
  %v2819 = vunpack.c.h.b16 %v731
  %v2820 = vunpack.c.l.b16 %v732
  %v2821 = vunpack.c.h.b16 %v732
  %v2822 = vunpack.c.l.b16 %v733
  %v2823 = vunpack.c.l.b16 %v734
  %v2824 = vunpack.c.h.b16 %v734
  %v2825 = vunpack.c.l.b16 %v735
  %v2826 = vunpack.c.h.b16 %v735
  %v2827 = vunpack.c.l.b16 %v736
  %v2828 = vunpack.c.l.b16 %v737
  %v2829 = vunpack.c.h.b16 %v737
  %v2830 = vunpack.c.l.b16 %v738
  %v2831 = vunpack.c.h.b16 %v738
  %v2832 = vunpack.c.l.b16 %v739
  %v2833 = vunpack.c.l.b16 %v740
  %v2834 = vunpack.c.h.b16 %v740
  %v2835 = vunpack.c.l.b16 %v741
  %v2836 = vunpack.c.h.b16 %v741
  %v2837 = vunpack.c.l.b16 %v742
  %v2838 = vunpack.c.l.b16 %v743
  %v2839 = vunpack.c.h.b16 %v743
  %v2840 = vunpack.c.l.b16 %v744
  %v2841 = vunpack.c.h.b16 %v744
  %v2842 = vunpack.c.l.b16 %v745
  %v2843 = vunpack.c.l.b16 %v746
  %v2844 = vunpack.c.h.b16 %v746
  %v2845 = vunpack.c.l.b16 %v747
  %v2846 = vunpack.c.h.b16 %v747
  %v2847 = vunpack.c.l.b16 %v748
  %v2848 = vunpack.c.l.b16 %v749
  %v2849 = vunpack.c.h.b16 %v749
  %v2850 = vunpack.c.l.b16 %v750
  %v2851 = vunpack.c.h.b16 %v750
  %v2852 = vunpack.c.l.b16 %v751
  %v2853 = vunpack.c.l.b16 %v752
  %v2854 = vunpack.c.h.b16 %v752
  %v2855 = vunpack.c.l.b16 %v753
  %v2856 = vunpack.c.h.b16 %v753
  %v2857 = vunpack.c.l.b16 %v754
  %v2858 = vunpack.c.l.b16 %v755
  %v2859 = vunpack.c.h.b16 %v755
  %v2860 = vunpack.c.l.b16 %v756
  %v2861 = vunpack.c.h.b16 %v756
  %v2862 = vunpack.c.l.b16 %v757
  %v2863 = vunpack.c.l.b16 %v758
  %v2864 = vunpack.c.h.b16 %v758
  %v2865 = vunpack.c.l.b16 %v759
  %v2866 = vunpack.c.h.b16 %v759
  %v2867 = vunpack.c.l.b16 %v760
  %v2868 = vunpack.c.l.b16 %v761
  %v2869 = vunpack.c.h.b16 %v761
  %v2870 = vunpack.c.l.b16 %v762
  %v2871 = vunpack.c.h.b16 %v762
  %v2872 = vunpack.c.l.b16 %v763
  %v2873 = vunpack.c.l.b16 %v764
  %v2874 = vunpack.c.h.b16 %v764
  %v2875 = vunpack.c.l.b16 %v765
  %v2876 = vunpack.c.h.b16 %v765
  %v2877 = vunpack.c.l.b16 %v766
  %v2878 = vunpack.c.l.b16 %v767
  %v2879 = vunpack.c.h.b16 %v767
  %v2880 = vunpack.c.l.b16 %v768
  %v2881 = vunpack.c.h.b16 %v768
  %v2882 = vunpack.c.l.b16 %v769
  %v2883 = vunpack.c.l.b16 %v770
  %v2884 = vunpack.c.h.b16 %v770
  %v2885 = vunpack.c.l.b16 %v771
  %v2886 = vunpack.c.h.b16 %v771
  %v2887 = vunpack.c.l.b16 %v772
  %v2888 = vunpack.c.l.b16 %v773
  %v2889 = vunpack.c.h.b16 %v773
  %v2890 = vunpack.c.l.b16 %v774
  %v2891 = vunpack.c.h.b16 %v774
  %v2892 = vunpack.c.l.b16 %v775
  %v2893 = vunpack.c.l.b16 %v776
  %v2894 = vunpack.c.h.b16 %v776
  %v2895 = vunpack.c.l.b16 %v777
  %v2896 = vunpack.c.h.b16 %v777
  %v2897 = vunpack.c.l.b16 %v778
  %v2898 = vunpack.c.l.b16 %v779
  %v2899 = vunpack.c.h.b16 %v779
  %v2900 = vunpack.c.l.b16 %v780
  %v2901 = vunpack.c.h.b16 %v780
  %v2902 = vunpack.c.l.b16 %v781
  %v2903 = vunpack.c.l.b16 %v782
  %v2904 = vunpack.c.h.b16 %v782
  %v2905 = vunpack.c.l.b16 %v783
  %v2906 = vunpack.c.h.b16 %v783
  %v2907 = vunpack.c.l.b16 %v784
  %v2908 = vunpack.c.l.b16 %v785
  %v2909 = vunpack.c.h.b16 %v785
  %v2910 = vunpack.c.l.b16 %v786
  %v2911 = vunpack.c.h.b16 %v786
  %v2912 = vunpack.c.l.b16 %v787
  %v2913 = vunpack.c.l.b16 %v788
  %v2914 = vunpack.c.h.b16 %v788
  %v2915 = vunpack.c.l.b16 %v789
  %v2916 = vunpack.c.h.b16 %v789
  %v2917 = vunpack.c.l.b16 %v790
  %v2918 = vunpack.c.l.b16 %v791
  %v2919 = vunpack.c.h.b16 %v791
  %v2920 = vunpack.c.l.b16 %v792
  %v2921 = vunpack.c.h.b16 %v792
  %v2922 = vunpack.c.l.b16 %v793
  %v2923 = vunpack.c.l.b16 %v794
  %v2924 = vunpack.c.h.b16 %v794
  %v2925 = vunpack.c.l.b16 %v795
  %v2926 = vunpack.c.h.b16 %v795
  %v2927 = vunpack.c.l.b16 %v796
  %v2928 = vpack.c.b16 %v1653, %v1648
  %v2929 = vpack.c.b16 %v1654, %v1649
  %v2930 = vpack.c.b16 %v1655, %v1650
  %v2931 = vpack.c.b16 %v1656, %v1651
  %v2932 = vpack.c.b16 %v1657, %v1652
  %v2933 = vpack.c.b16 %v1663, %v1658
  %v2934 = vpack.c.b16 %v1664, %v1659
  %v2935 = vpack.c.b16 %v1665, %v1660
  %v2936 = vpack.c.b16 %v1666, %v1661
  %v2937 = vpack.c.b16 %v1667, %v1662
  %v2938 = vpack.c.b16 %v1673, %v1668
  %v2939 = vpack.c.b16 %v1674, %v1669
  %v2940 = vpack.c.b16 %v1675, %v1670
  %v2941 = vpack.c.b16 %v1676, %v1671
  %v2942 = vpack.c.b16 %v1677, %v1672
  %v2943 = vpack.c.b16 %v1683, %v1678
  %v2944 = vpack.c.b16 %v1684, %v1679
  %v2945 = vpack.c.b16 %v1685, %v1680
  %v2946 = vpack.c.b16 %v1686, %v1681
  %v2947 = vpack.c.b16 %v1687, %v1682
  %v2948 = vpack.c.b16 %v1693, %v1688
  %v2949 = vpack.c.b16 %v1694, %v1689
  %v2950 = vpack.c.b16 %v1695, %v1690
  %v2951 = vpack.c.b16 %v1696, %v1691
  %v2952 = vpack.c.b16 %v1697, %v1692
  %v2953 = vpack.c.b16 %v1703, %v1698
  %v2954 = vpack.c.b16 %v1704, %v1699
  %v2955 = vpack.c.b16 %v1705, %v1700
  %v2956 = vpack.c.b16 %v1706, %v1701
  %v2957 = vpack.c.b16 %v1707, %v1702
  %v2958 = vpack.c.b16 %v1713, %v1708
  %v2959 = vpack.c.b16 %v1714, %v1709
  %v2960 = vpack.c.b16 %v1715, %v1710
  %v2961 = vpack.c.b16 %v1716, %v1711
  %v2962 = vpack.c.b16 %v1717, %v1712
  %v2963 = vpack.c.b16 %v1723, %v1718
  %v2964 = vpack.c.b16 %v1724, %v1719
  %v2965 = vpack.c.b16 %v1725, %v1720
  %v2966 = vpack.c.b16 %v1726, %v1721
  %v2967 = vpack.c.b16 %v1727, %v1722
  %v2968 = vpack.c.b16 %v1733, %v1728
  %v2969 = vpack.c.b16 %v1734, %v1729
  %v2970 = vpack.c.b16 %v1735, %v1730
  %v2971 = vpack.c.b16 %v1736, %v1731
  %v2972 = vpack.c.b16 %v1737, %v1732
  %v2973 = vpack.c.b16 %v1743, %v1738
  %v2974 = vpack.c.b16 %v1744, %v1739
  %v2975 = vpack.c.b16 %v1745, %v1740
  %v2976 = vpack.c.b16 %v1746, %v1741
  %v2977 = vpack.c.b16 %v1747, %v1742
  %v2978 = vpack.c.b16 %v1753, %v1748
  %v2979 = vpack.c.b16 %v1754, %v1749
  %v2980 = vpack.c.b16 %v1755, %v1750
  %v2981 = vpack.c.b16 %v1756, %v1751
  %v2982 = vpack.c.b16 %v1757, %v1752
  %v2983 = vpack.c.b16 %v1763, %v1758
  %v2984 = vpack.c.b16 %v1764, %v1759
  %v2985 = vpack.c.b16 %v1765, %v1760
  %v2986 = vpack.c.b16 %v1766, %v1761
  %v2987 = vpack.c.b16 %v1767, %v1762
  %v2988 = vpack.c.b16 %v1773, %v1768
  %v2989 = vpack.c.b16 %v1774, %v1769
  %v2990 = vpack.c.b16 %v1775, %v1770
  %v2991 = vpack.c.b16 %v1776, %v1771
  %v2992 = vpack.c.b16 %v1777, %v1772
  %v2993 = vpack.c.b16 %v1783, %v1778
  %v2994 = vpack.c.b16 %v1784, %v1779
  %v2995 = vpack.c.b16 %v1785, %v1780
  %v2996 = vpack.c.b16 %v1786, %v1781
  %v2997 = vpack.c.b16 %v1787, %v1782
  %v2998 = vpack.c.b16 %v1793, %v1788
  %v2999 = vpack.c.b16 %v1794, %v1789
  %v3000 = vpack.c.b16 %v1795, %v1790
  %v3001 = vpack.c.b16 %v1796, %v1791
  %v3002 = vpack.c.b16 %v1797, %v1792
  %v3003 = vpack.c.b16 %v1803, %v1798
  %v3004 = vpack.c.b16 %v1804, %v1799
  %v3005 = vpack.c.b16 %v1805, %v1800
  %v3006 = vpack.c.b16 %v1806, %v1801
  %v3007 = vpack.c.b16 %v1807, %v1802
  %v3008 = vpack.c.b16 %v1813, %v1808
  %v3009 = vpack.c.b16 %v1814, %v1809
  %v3010 = vpack.c.b16 %v1815, %v1810
  %v3011 = vpack.c.b16 %v1816, %v1811
  %v3012 = vpack.c.b16 %v1817, %v1812
  %v3013 = vpack.c.b16 %v1823, %v1818
  %v3014 = vpack.c.b16 %v1824, %v1819
  %v3015 = vpack.c.b16 %v1825, %v1820
  %v3016 = vpack.c.b16 %v1826, %v1821
  %v3017 = vpack.c.b16 %v1827, %v1822
  %v3018 = vpack.c.b16 %v1833, %v1828
  %v3019 = vpack.c.b16 %v1834, %v1829
  %v3020 = vpack.c.b16 %v1835, %v1830
  %v3021 = vpack.c.b16 %v1836, %v1831
  %v3022 = vpack.c.b16 %v1837, %v1832
  %v3023 = vpack.c.b16 %v1843, %v1838
  %v3024 = vpack.c.b16 %v1844, %v1839
  %v3025 = vpack.c.b16 %v1845, %v1840
  %v3026 = vpack.c.b16 %v1846, %v1841
  %v3027 = vpack.c.b16 %v1847, %v1842
  %v3028 = vpack.c.b16 %v1853, %v1848
  %v3029 = vpack.c.b16 %v1854, %v1849
  %v3030 = vpack.c.b16 %v1855, %v1850
  %v3031 = vpack.c.b16 %v1856, %v1851
  %v3032 = vpack.c.b16 %v1857, %v1852
  %v3033 = vpack.c.b16 %v1863, %v1858
  %v3034 = vpack.c.b16 %v1864, %v1859
  %v3035 = vpack.c.b16 %v1865, %v1860
  %v3036 = vpack.c.b16 %v1866, %v1861
  %v3037 = vpack.c.b16 %v1867, %v1862
  %v3038 = vpack.c.b16 %v1873, %v1868
  %v3039 = vpack.c.b16 %v1874, %v1869
  %v3040 = vpack.c.b16 %v1875, %v1870
  %v3041 = vpack.c.b16 %v1876, %v1871
  %v3042 = vpack.c.b16 %v1877, %v1872
  %v3043 = vpack.c.b16 %v1883, %v1878
  %v3044 = vpack.c.b16 %v1884, %v1879
  %v3045 = vpack.c.b16 %v1885, %v1880
  %v3046 = vpack.c.b16 %v1886, %v1881
  %v3047 = vpack.c.b16 %v1887, %v1882
  %v3048 = vpack.c.b16 %v1893, %v1888
  %v3049 = vpack.c.b16 %v1894, %v1889
  %v3050 = vpack.c.b16 %v1895, %v1890
  %v3051 = vpack.c.b16 %v1896, %v1891
  %v3052 = vpack.c.b16 %v1897, %v1892
  %v3053 = vpack.c.b16 %v1903, %v1898
  %v3054 = vpack.c.b16 %v1904, %v1899
  %v3055 = vpack.c.b16 %v1905, %v1900
  %v3056 = vpack.c.b16 %v1906, %v1901
  %v3057 = vpack.c.b16 %v1907, %v1902
  %v3058 = vpack.c.b16 %v1913, %v1908
  %v3059 = vpack.c.b16 %v1914, %v1909
  %v3060 = vpack.c.b16 %v1915, %v1910
  %v3061 = vpack.c.b16 %v1916, %v1911
  %v3062 = vpack.c.b16 %v1917, %v1912
  %v3063 = vpack.c.b16 %v1923, %v1918
  %v3064 = vpack.c.b16 %v1924, %v1919
  %v3065 = vpack.c.b16 %v1925, %v1920
  %v3066 = vpack.c.b16 %v1926, %v1921
  %v3067 = vpack.c.b16 %v1927, %v1922
  %v3068 = vpack.c.b16 %v1933, %v1928
  %v3069 = vpack.c.b16 %v1934, %v1929
  %v3070 = vpack.c.b16 %v1935, %v1930
  %v3071 = vpack.c.b16 %v1936, %v1931
  %v3072 = vpack.c.b16 %v1937, %v1932
  %v3073 = vpack.c.b16 %v1943, %v1938
  %v3074 = vpack.c.b16 %v1944, %v1939
  %v3075 = vpack.c.b16 %v1945, %v1940
  %v3076 = vpack.c.b16 %v1946, %v1941
  %v3077 = vpack.c.b16 %v1947, %v1942
  %v3078 = vpack.c.b16 %v1953, %v1948
  %v3079 = vpack.c.b16 %v1954, %v1949
  %v3080 = vpack.c.b16 %v1955, %v1950
  %v3081 = vpack.c.b16 %v1956, %v1951
  %v3082 = vpack.c.b16 %v1957, %v1952
  %v3083 = vpack.c.b16 %v1963, %v1958
  %v3084 = vpack.c.b16 %v1964, %v1959
  %v3085 = vpack.c.b16 %v1965, %v1960
  %v3086 = vpack.c.b16 %v1966, %v1961
  %v3087 = vpack.c.b16 %v1967, %v1962
  %v3088 = vpack.c.b16 %v1973, %v1968
  %v3089 = vpack.c.b16 %v1974, %v1969
  %v3090 = vpack.c.b16 %v1975, %v1970
  %v3091 = vpack.c.b16 %v1976, %v1971
  %v3092 = vpack.c.b16 %v1977, %v1972
  %v3093 = vpack.c.b16 %v1983, %v1978
  %v3094 = vpack.c.b16 %v1984, %v1979
  %v3095 = vpack.c.b16 %v1985, %v1980
  %v3096 = vpack.c.b16 %v1986, %v1981
  %v3097 = vpack.c.b16 %v1987, %v1982
  %v3098 = vpack.c.b16 %v1993, %v1988
  %v3099 = vpack.c.b16 %v1994, %v1989
  %v3100 = vpack.c.b16 %v1995, %v1990
  %v3101 = vpack.c.b16 %v1996, %v1991
  %v3102 = vpack.c.b16 %v1997, %v1992
  %v3103 = vpack.c.b16 %v2003, %v1998
  %v3104 = vpack.c.b16 %v2004, %v1999
  %v3105 = vpack.c.b16 %v2005, %v2000
  %v3106 = vpack.c.b16 %v2006, %v2001
  %v3107 = vpack.c.b16 %v2007, %v2002
  %v3108 = vpack.c.b16 %v2013, %v2008
  %v3109 = vpack.c.b16 %v2014, %v2009
  %v3110 = vpack.c.b16 %v2015, %v2010
  %v3111 = vpack.c.b16 %v2016, %v2011
  %v3112 = vpack.c.b16 %v2017, %v2012
  %v3113 = vpack.c.b16 %v2023, %v2018
  %v3114 = vpack.c.b16 %v2024, %v2019
  %v3115 = vpack.c.b16 %v2025, %v2020
  %v3116 = vpack.c.b16 %v2026, %v2021
  %v3117 = vpack.c.b16 %v2027, %v2022
  %v3118 = vpack.c.b16 %v2033, %v2028
  %v3119 = vpack.c.b16 %v2034, %v2029
  %v3120 = vpack.c.b16 %v2035, %v2030
  %v3121 = vpack.c.b16 %v2036, %v2031
  %v3122 = vpack.c.b16 %v2037, %v2032
  %v3123 = vpack.c.b16 %v2043, %v2038
  %v3124 = vpack.c.b16 %v2044, %v2039
  %v3125 = vpack.c.b16 %v2045, %v2040
  %v3126 = vpack.c.b16 %v2046, %v2041
  %v3127 = vpack.c.b16 %v2047, %v2042
  %v3128 = vpack.c.b16 %v2053, %v2048
  %v3129 = vpack.c.b16 %v2054, %v2049
  %v3130 = vpack.c.b16 %v2055, %v2050
  %v3131 = vpack.c.b16 %v2056, %v2051
  %v3132 = vpack.c.b16 %v2057, %v2052
  %v3133 = vpack.c.b16 %v2063, %v2058
  %v3134 = vpack.c.b16 %v2064, %v2059
  %v3135 = vpack.c.b16 %v2065, %v2060
  %v3136 = vpack.c.b16 %v2066, %v2061
  %v3137 = vpack.c.b16 %v2067, %v2062
  %v3138 = vpack.c.b16 %v2073, %v2068
  %v3139 = vpack.c.b16 %v2074, %v2069
  %v3140 = vpack.c.b16 %v2075, %v2070
  %v3141 = vpack.c.b16 %v2076, %v2071
  %v3142 = vpack.c.b16 %v2077, %v2072
  %v3143 = vpack.c.b16 %v2083, %v2078
  %v3144 = vpack.c.b16 %v2084, %v2079
  %v3145 = vpack.c.b16 %v2085, %v2080
  %v3146 = vpack.c.b16 %v2086, %v2081
  %v3147 = vpack.c.b16 %v2087, %v2082
  %v3148 = vpack.c.b16 %v2093, %v2088
  %v3149 = vpack.c.b16 %v2094, %v2089
  %v3150 = vpack.c.b16 %v2095, %v2090
  %v3151 = vpack.c.b16 %v2096, %v2091
  %v3152 = vpack.c.b16 %v2097, %v2092
  %v3153 = vpack.c.b16 %v2103, %v2098
  %v3154 = vpack.c.b16 %v2104, %v2099
  %v3155 = vpack.c.b16 %v2105, %v2100
  %v3156 = vpack.c.b16 %v2106, %v2101
  %v3157 = vpack.c.b16 %v2107, %v2102
  %v3158 = vpack.c.b16 %v2113, %v2108
  %v3159 = vpack.c.b16 %v2114, %v2109
  %v3160 = vpack.c.b16 %v2115, %v2110
  %v3161 = vpack.c.b16 %v2116, %v2111
  %v3162 = vpack.c.b16 %v2117, %v2112
  %v3163 = vpack.c.b16 %v2123, %v2118
  %v3164 = vpack.c.b16 %v2124, %v2119
  %v3165 = vpack.c.b16 %v2125, %v2120
  %v3166 = vpack.c.b16 %v2126, %v2121
  %v3167 = vpack.c.b16 %v2127, %v2122
  %v3168 = vpack.c.b16 %v2133, %v2128
  %v3169 = vpack.c.b16 %v2134, %v2129
  %v3170 = vpack.c.b16 %v2135, %v2130
  %v3171 = vpack.c.b16 %v2136, %v2131
  %v3172 = vpack.c.b16 %v2137, %v2132
  %v3173 = vpack.c.b16 %v2143, %v2138
  %v3174 = vpack.c.b16 %v2144, %v2139
  %v3175 = vpack.c.b16 %v2145, %v2140
  %v3176 = vpack.c.b16 %v2146, %v2141
  %v3177 = vpack.c.b16 %v2147, %v2142
  %v3178 = vpack.c.b16 %v2153, %v2148
  %v3179 = vpack.c.b16 %v2154, %v2149
  %v3180 = vpack.c.b16 %v2155, %v2150
  %v3181 = vpack.c.b16 %v2156, %v2151
  %v3182 = vpack.c.b16 %v2157, %v2152
  %v3183 = vpack.c.b16 %v2163, %v2158
  %v3184 = vpack.c.b16 %v2164, %v2159
  %v3185 = vpack.c.b16 %v2165, %v2160
  %v3186 = vpack.c.b16 %v2166, %v2161
  %v3187 = vpack.c.b16 %v2167, %v2162
  %v3188 = vpack.c.b16 %v2173, %v2168
  %v3189 = vpack.c.b16 %v2174, %v2169
  %v3190 = vpack.c.b16 %v2175, %v2170
  %v3191 = vpack.c.b16 %v2176, %v2171
  %v3192 = vpack.c.b16 %v2177, %v2172
  %v3193 = vpack.c.b16 %v2183, %v2178
  %v3194 = vpack.c.b16 %v2184, %v2179
  %v3195 = vpack.c.b16 %v2185, %v2180
  %v3196 = vpack.c.b16 %v2186, %v2181
  %v3197 = vpack.c.b16 %v2187, %v2182
  %v3198 = vpack.c.b16 %v2193, %v2188
  %v3199 = vpack.c.b16 %v2194, %v2189
  %v3200 = vpack.c.b16 %v2195, %v2190
  %v3201 = vpack.c.b16 %v2196, %v2191
  %v3202 = vpack.c.b16 %v2197, %v2192
  %v3203 = vpack.c.b16 %v2203, %v2198
  %v3204 = vpack.c.b16 %v2204, %v2199
  %v3205 = vpack.c.b16 %v2205, %v2200
  %v3206 = vpack.c.b16 %v2206, %v2201
  %v3207 = vpack.c.b16 %v2207, %v2202
  %v3208 = vpack.c.b16 %v2213, %v2208
  %v3209 = vpack.c.b16 %v2214, %v2209
  %v3210 = vpack.c.b16 %v2215, %v2210
  %v3211 = vpack.c.b16 %v2216, %v2211
  %v3212 = vpack.c.b16 %v2217, %v2212
  %v3213 = vpack.c.b16 %v2223, %v2218
  %v3214 = vpack.c.b16 %v2224, %v2219
  %v3215 = vpack.c.b16 %v2225, %v2220
  %v3216 = vpack.c.b16 %v2226, %v2221
  %v3217 = vpack.c.b16 %v2227, %v2222
  %v3218 = vpack.c.b16 %v2233, %v2228
  %v3219 = vpack.c.b16 %v2234, %v2229
  %v3220 = vpack.c.b16 %v2235, %v2230
  %v3221 = vpack.c.b16 %v2236, %v2231
  %v3222 = vpack.c.b16 %v2237, %v2232
  %v3223 = vpack.c.b16 %v2243, %v2238
  %v3224 = vpack.c.b16 %v2244, %v2239
  %v3225 = vpack.c.b16 %v2245, %v2240
  %v3226 = vpack.c.b16 %v2246, %v2241
  %v3227 = vpack.c.b16 %v2247, %v2242
  %v3228 = vpack.c.b16 %v2253, %v2248
  %v3229 = vpack.c.b16 %v2254, %v2249
  %v3230 = vpack.c.b16 %v2255, %v2250
  %v3231 = vpack.c.b16 %v2256, %v2251
  %v3232 = vpack.c.b16 %v2257, %v2252
  %v3233 = vpack.c.b16 %v2263, %v2258
  %v3234 = vpack.c.b16 %v2264, %v2259
  %v3235 = vpack.c.b16 %v2265, %v2260
  %v3236 = vpack.c.b16 %v2266, %v2261
  %v3237 = vpack.c.b16 %v2267, %v2262
  %v3238 = vpack.c.b16 %v2273, %v2268
  %v3239 = vpack.c.b16 %v2274, %v2269
  %v3240 = vpack.c.b16 %v2275, %v2270
  %v3241 = vpack.c.b16 %v2276, %v2271
  %v3242 = vpack.c.b16 %v2277, %v2272
  %v3243 = vpack.c.b16 %v2283, %v2278
  %v3244 = vpack.c.b16 %v2284, %v2279
  %v3245 = vpack.c.b16 %v2285, %v2280
  %v3246 = vpack.c.b16 %v2286, %v2281
  %v3247 = vpack.c.b16 %v2287, %v2282
  %v3248 = vpack.c.b16 %v2293, %v2288
  %v3249 = vpack.c.b16 %v2294, %v2289
  %v3250 = vpack.c.b16 %v2295, %v2290
  %v3251 = vpack.c.b16 %v2296, %v2291
  %v3252 = vpack.c.b16 %v2297, %v2292
  %v3253 = vpack.c.b16 %v2303, %v2298
  %v3254 = vpack.c.b16 %v2304, %v2299
  %v3255 = vpack.c.b16 %v2305, %v2300
  %v3256 = vpack.c.b16 %v2306, %v2301
  %v3257 = vpack.c.b16 %v2307, %v2302
  %v3258 = vpack.c.b16 %v2313, %v2308
  %v3259 = vpack.c.b16 %v2314, %v2309
  %v3260 = vpack.c.b16 %v2315, %v2310
  %v3261 = vpack.c.b16 %v2316, %v2311
  %v3262 = vpack.c.b16 %v2317, %v2312
  %v3263 = vpack.c.b16 %v2323, %v2318
  %v3264 = vpack.c.b16 %v2324, %v2319
  %v3265 = vpack.c.b16 %v2325, %v2320
  %v3266 = vpack.c.b16 %v2326, %v2321
  %v3267 = vpack.c.b16 %v2327, %v2322
  %v3268 = vpack.c.b16 %v2333, %v2328
  %v3269 = vpack.c.b16 %v2334, %v2329
  %v3270 = vpack.c.b16 %v2335, %v2330
  %v3271 = vpack.c.b16 %v2336, %v2331
  %v3272 = vpack.c.b16 %v2337, %v2332
  %v3273 = vpack.c.b16 %v2343, %v2338
  %v3274 = vpack.c.b16 %v2344, %v2339
  %v3275 = vpack.c.b16 %v2345, %v2340
  %v3276 = vpack.c.b16 %v2346, %v2341
  %v3277 = vpack.c.b16 %v2347, %v2342
  %v3278 = vpack.c.b16 %v2353, %v2348
  %v3279 = vpack.c.b16 %v2354, %v2349
  %v3280 = vpack.c.b16 %v2355, %v2350
  %v3281 = vpack.c.b16 %v2356, %v2351
  %v3282 = vpack.c.b16 %v2357, %v2352
  %v3283 = vpack.c.b16 %v2363, %v2358
  %v3284 = vpack.c.b16 %v2364, %v2359
  %v3285 = vpack.c.b16 %v2365, %v2360
  %v3286 = vpack.c.b16 %v2366, %v2361
  %v3287 = vpack.c.b16 %v2367, %v2362
  %v3288 = vpack.c.b16 %v2373, %v2368
  %v3289 = vpack.c.b16 %v2374, %v2369
  %v3290 = vpack.c.b16 %v2375, %v2370
  %v3291 = vpack.c.b16 %v2376, %v2371
  %v3292 = vpack.c.b16 %v2377, %v2372
  %v3293 = vpack.c.b16 %v2383, %v2378
  %v3294 = vpack.c.b16 %v2384, %v2379
  %v3295 = vpack.c.b16 %v2385, %v2380
  %v3296 = vpack.c.b16 %v2386, %v2381
  %v3297 = vpack.c.b16 %v2387, %v2382
  %v3298 = vpack.c.b16 %v2393, %v2388
  %v3299 = vpack.c.b16 %v2394, %v2389
  %v3300 = vpack.c.b16 %v2395, %v2390
  %v3301 = vpack.c.b16 %v2396, %v2391
  %v3302 = vpack.c.b16 %v2397, %v2392
  %v3303 = vpack.c.b16 %v2403, %v2398
  %v3304 = vpack.c.b16 %v2404, %v2399
  %v3305 = vpack.c.b16 %v2405, %v2400
  %v3306 = vpack.c.b16 %v2406, %v2401
  %v3307 = vpack.c.b16 %v2407, %v2402
  %v3308 = vpack.c.b16 %v2413, %v2408
  %v3309 = vpack.c.b16 %v2414, %v2409
  %v3310 = vpack.c.b16 %v2415, %v2410
  %v3311 = vpack.c.b16 %v2416, %v2411
  %v3312 = vpack.c.b16 %v2417, %v2412
  %v3313 = vpack.c.b16 %v2423, %v2418
  %v3314 = vpack.c.b16 %v2424, %v2419
  %v3315 = vpack.c.b16 %v2425, %v2420
  %v3316 = vpack.c.b16 %v2426, %v2421
  %v3317 = vpack.c.b16 %v2427, %v2422
  %v3318 = vpack.c.b16 %v2433, %v2428
  %v3319 = vpack.c.b16 %v2434, %v2429
  %v3320 = vpack.c.b16 %v2435, %v2430
  %v3321 = vpack.c.b16 %v2436, %v2431
  %v3322 = vpack.c.b16 %v2437, %v2432
  %v3323 = vpack.c.b16 %v2443, %v2438
  %v3324 = vpack.c.b16 %v2444, %v2439
  %v3325 = vpack.c.b16 %v2445, %v2440
  %v3326 = vpack.c.b16 %v2446, %v2441
  %v3327 = vpack.c.b16 %v2447, %v2442
  %v3328 = vpack.c.b16 %v2453, %v2448
  %v3329 = vpack.c.b16 %v2454, %v2449
  %v3330 = vpack.c.b16 %v2455, %v2450
  %v3331 = vpack.c.b16 %v2456, %v2451
  %v3332 = vpack.c.b16 %v2457, %v2452
  %v3333 = vpack.c.b16 %v2463, %v2458
  %v3334 = vpack.c.b16 %v2464, %v2459
  %v3335 = vpack.c.b16 %v2465, %v2460
  %v3336 = vpack.c.b16 %v2466, %v2461
  %v3337 = vpack.c.b16 %v2467, %v2462
  %v3338 = vpack.c.b16 %v2473, %v2468
  %v3339 = vpack.c.b16 %v2474, %v2469
  %v3340 = vpack.c.b16 %v2475, %v2470
  %v3341 = vpack.c.b16 %v2476, %v2471
  %v3342 = vpack.c.b16 %v2477, %v2472
  %v3343 = vpack.c.b16 %v2483, %v2478
  %v3344 = vpack.c.b16 %v2484, %v2479
  %v3345 = vpack.c.b16 %v2485, %v2480
  %v3346 = vpack.c.b16 %v2486, %v2481
  %v3347 = vpack.c.b16 %v2487, %v2482
  %v3348 = vpack.c.b16 %v2493, %v2488
  %v3349 = vpack.c.b16 %v2494, %v2489
  %v3350 = vpack.c.b16 %v2495, %v2490
  %v3351 = vpack.c.b16 %v2496, %v2491
  %v3352 = vpack.c.b16 %v2497, %v2492
  %v3353 = vpack.c.b16 %v2503, %v2498
  %v3354 = vpack.c.b16 %v2504, %v2499
  %v3355 = vpack.c.b16 %v2505, %v2500
  %v3356 = vpack.c.b16 %v2506, %v2501
  %v3357 = vpack.c.b16 %v2507, %v2502
  %v3358 = vpack.c.b16 %v2513, %v2508
  %v3359 = vpack.c.b16 %v2514, %v2509
  %v3360 = vpack.c.b16 %v2515, %v2510
  %v3361 = vpack.c.b16 %v2516, %v2511
  %v3362 = vpack.c.b16 %v2517, %v2512
  %v3363 = vpack.c.b16 %v2523, %v2518
  %v3364 = vpack.c.b16 %v2524, %v2519
  %v3365 = vpack.c.b16 %v2525, %v2520
  %v3366 = vpack.c.b16 %v2526, %v2521
  %v3367 = vpack.c.b16 %v2527, %v2522
  %v3368 = vpack.c.b16 %v2533, %v2528
  %v3369 = vpack.c.b16 %v2534, %v2529
  %v3370 = vpack.c.b16 %v2535, %v2530
  %v3371 = vpack.c.b16 %v2536, %v2531
  %v3372 = vpack.c.b16 %v2537, %v2532
  %v3373 = vpack.c.b16 %v2543, %v2538
  %v3374 = vpack.c.b16 %v2544, %v2539
  %v3375 = vpack.c.b16 %v2545, %v2540
  %v3376 = vpack.c.b16 %v2546, %v2541
  %v3377 = vpack.c.b16 %v2547, %v2542
  %v3378 = vpack.c.b16 %v2553, %v2548
  %v3379 = vpack.c.b16 %v2554, %v2549
  %v3380 = vpack.c.b16 %v2555, %v2550
  %v3381 = vpack.c.b16 %v2556, %v2551
  %v3382 = vpack.c.b16 %v2557, %v2552
  %v3383 = vpack.c.b16 %v2563, %v2558
  %v3384 = vpack.c.b16 %v2564, %v2559
  %v3385 = vpack.c.b16 %v2565, %v2560
  %v3386 = vpack.c.b16 %v2566, %v2561
  %v3387 = vpack.c.b16 %v2567, %v2562
  %v3388 = vpack.c.b16 %v2573, %v2568
  %v3389 = vpack.c.b16 %v2574, %v2569
  %v3390 = vpack.c.b16 %v2575, %v2570
  %v3391 = vpack.c.b16 %v2576, %v2571
  %v3392 = vpack.c.b16 %v2577, %v2572
  %v3393 = vpack.c.b16 %v2583, %v2578
  %v3394 = vpack.c.b16 %v2584, %v2579
  %v3395 = vpack.c.b16 %v2585, %v2580
  %v3396 = vpack.c.b16 %v2586, %v2581
  %v3397 = vpack.c.b16 %v2587, %v2582
  %v3398 = vpack.c.b16 %v2593, %v2588
  %v3399 = vpack.c.b16 %v2594, %v2589
  %v3400 = vpack.c.b16 %v2595, %v2590
  %v3401 = vpack.c.b16 %v2596, %v2591
  %v3402 = vpack.c.b16 %v2597, %v2592
  %v3403 = vpack.c.b16 %v2603, %v2598
  %v3404 = vpack.c.b16 %v2604, %v2599
  %v3405 = vpack.c.b16 %v2605, %v2600
  %v3406 = vpack.c.b16 %v2606, %v2601
  %v3407 = vpack.c.b16 %v2607, %v2602
  %v3408 = vpack.c.b16 %v2613, %v2608
  %v3409 = vpack.c.b16 %v2614, %v2609
  %v3410 = vpack.c.b16 %v2615, %v2610
  %v3411 = vpack.c.b16 %v2616, %v2611
  %v3412 = vpack.c.b16 %v2617, %v2612
  %v3413 = vpack.c.b16 %v2623, %v2618
  %v3414 = vpack.c.b16 %v2624, %v2619
  %v3415 = vpack.c.b16 %v2625, %v2620
  %v3416 = vpack.c.b16 %v2626, %v2621
  %v3417 = vpack.c.b16 %v2627, %v2622
  %v3418 = vpack.c.b16 %v2633, %v2628
  %v3419 = vpack.c.b16 %v2634, %v2629
  %v3420 = vpack.c.b16 %v2635, %v2630
  %v3421 = vpack.c.b16 %v2636, %v2631
  %v3422 = vpack.c.b16 %v2637, %v2632
  %v3423 = vpack.c.b16 %v2643, %v2638
  %v3424 = vpack.c.b16 %v2644, %v2639
  %v3425 = vpack.c.b16 %v2645, %v2640
  %v3426 = vpack.c.b16 %v2646, %v2641
  %v3427 = vpack.c.b16 %v2647, %v2642
  %v3428 = vpack.c.b16 %v2653, %v2648
  %v3429 = vpack.c.b16 %v2654, %v2649
  %v3430 = vpack.c.b16 %v2655, %v2650
  %v3431 = vpack.c.b16 %v2656, %v2651
  %v3432 = vpack.c.b16 %v2657, %v2652
  %v3433 = vpack.c.b16 %v2663, %v2658
  %v3434 = vpack.c.b16 %v2664, %v2659
  %v3435 = vpack.c.b16 %v2665, %v2660
  %v3436 = vpack.c.b16 %v2666, %v2661
  %v3437 = vpack.c.b16 %v2667, %v2662
  %v3438 = vpack.c.b16 %v2673, %v2668
  %v3439 = vpack.c.b16 %v2674, %v2669
  %v3440 = vpack.c.b16 %v2675, %v2670
  %v3441 = vpack.c.b16 %v2676, %v2671
  %v3442 = vpack.c.b16 %v2677, %v2672
  %v3443 = vpack.c.b16 %v2683, %v2678
  %v3444 = vpack.c.b16 %v2684, %v2679
  %v3445 = vpack.c.b16 %v2685, %v2680
  %v3446 = vpack.c.b16 %v2686, %v2681
  %v3447 = vpack.c.b16 %v2687, %v2682
  %v3448 = vpack.c.b16 %v2693, %v2688
  %v3449 = vpack.c.b16 %v2694, %v2689
  %v3450 = vpack.c.b16 %v2695, %v2690
  %v3451 = vpack.c.b16 %v2696, %v2691
  %v3452 = vpack.c.b16 %v2697, %v2692
  %v3453 = vpack.c.b16 %v2703, %v2698
  %v3454 = vpack.c.b16 %v2704, %v2699
  %v3455 = vpack.c.b16 %v2705, %v2700
  %v3456 = vpack.c.b16 %v2706, %v2701
  %v3457 = vpack.c.b16 %v2707, %v2702
  %v3458 = vpack.c.b16 %v2713, %v2708
  %v3459 = vpack.c.b16 %v2714, %v2709
  %v3460 = vpack.c.b16 %v2715, %v2710
  %v3461 = vpack.c.b16 %v2716, %v2711
  %v3462 = vpack.c.b16 %v2717, %v2712
  %v3463 = vpack.c.b16 %v2723, %v2718
  %v3464 = vpack.c.b16 %v2724, %v2719
  %v3465 = vpack.c.b16 %v2725, %v2720
  %v3466 = vpack.c.b16 %v2726, %v2721
  %v3467 = vpack.c.b16 %v2727, %v2722
  %v3468 = vpack.c.b16 %v2733, %v2728
  %v3469 = vpack.c.b16 %v2734, %v2729
  %v3470 = vpack.c.b16 %v2735, %v2730
  %v3471 = vpack.c.b16 %v2736, %v2731
  %v3472 = vpack.c.b16 %v2737, %v2732
  %v3473 = vpack.c.b16 %v2743, %v2738
  %v3474 = vpack.c.b16 %v2744, %v2739
  %v3475 = vpack.c.b16 %v2745, %v2740
  %v3476 = vpack.c.b16 %v2746, %v2741
  %v3477 = vpack.c.b16 %v2747, %v2742
  %v3478 = vpack.c.b16 %v2753, %v2748
  %v3479 = vpack.c.b16 %v2754, %v2749
  %v3480 = vpack.c.b16 %v2755, %v2750
  %v3481 = vpack.c.b16 %v2756, %v2751
  %v3482 = vpack.c.b16 %v2757, %v2752
  %v3483 = vpack.c.b16 %v2763, %v2758
  %v3484 = vpack.c.b16 %v2764, %v2759
  %v3485 = vpack.c.b16 %v2765, %v2760
  %v3486 = vpack.c.b16 %v2766, %v2761
  %v3487 = vpack.c.b16 %v2767, %v2762
  %v3488 = vpack.c.b16 %v2773, %v2768
  %v3489 = vpack.c.b16 %v2774, %v2769
  %v3490 = vpack.c.b16 %v2775, %v2770
  %v3491 = vpack.c.b16 %v2776, %v2771
  %v3492 = vpack.c.b16 %v2777, %v2772
  %v3493 = vpack.c.b16 %v2783, %v2778
  %v3494 = vpack.c.b16 %v2784, %v2779
  %v3495 = vpack.c.b16 %v2785, %v2780
  %v3496 = vpack.c.b16 %v2786, %v2781
  %v3497 = vpack.c.b16 %v2787, %v2782
  %v3498 = vpack.c.b16 %v2793, %v2788
  %v3499 = vpack.c.b16 %v2794, %v2789
  %v3500 = vpack.c.b16 %v2795, %v2790
  %v3501 = vpack.c.b16 %v2796, %v2791
  %v3502 = vpack.c.b16 %v2797, %v2792
  %v3503 = vpack.c.b16 %v2803, %v2798
  %v3504 = vpack.c.b16 %v2804, %v2799
  %v3505 = vpack.c.b16 %v2805, %v2800
  %v3506 = vpack.c.b16 %v2806, %v2801
  %v3507 = vpack.c.b16 %v2807, %v2802
  %v3508 = vpack.c.b16 %v2813, %v2808
  %v3509 = vpack.c.b16 %v2814, %v2809
  %v3510 = vpack.c.b16 %v2815, %v2810
  %v3511 = vpack.c.b16 %v2816, %v2811
  %v3512 = vpack.c.b16 %v2817, %v2812
  %v3513 = vpack.c.b16 %v2823, %v2818
  %v3514 = vpack.c.b16 %v2824, %v2819
  %v3515 = vpack.c.b16 %v2825, %v2820
  %v3516 = vpack.c.b16 %v2826, %v2821
  %v3517 = vpack.c.b16 %v2827, %v2822
  %v3518 = vpack.c.b16 %v2833, %v2828
  %v3519 = vpack.c.b16 %v2834, %v2829
  %v3520 = vpack.c.b16 %v2835, %v2830
  %v3521 = vpack.c.b16 %v2836, %v2831
  %v3522 = vpack.c.b16 %v2837, %v2832
  %v3523 = vpack.c.b16 %v2843, %v2838
  %v3524 = vpack.c.b16 %v2844, %v2839
  %v3525 = vpack.c.b16 %v2845, %v2840
  %v3526 = vpack.c.b16 %v2846, %v2841
  %v3527 = vpack.c.b16 %v2847, %v2842
  %v3528 = vpack.c.b16 %v2853, %v2848
  %v3529 = vpack.c.b16 %v2854, %v2849
  %v3530 = vpack.c.b16 %v2855, %v2850
  %v3531 = vpack.c.b16 %v2856, %v2851
  %v3532 = vpack.c.b16 %v2857, %v2852
  %v3533 = vpack.c.b16 %v2863, %v2858
  %v3534 = vpack.c.b16 %v2864, %v2859
  %v3535 = vpack.c.b16 %v2865, %v2860
  %v3536 = vpack.c.b16 %v2866, %v2861
  %v3537 = vpack.c.b16 %v2867, %v2862
  %v3538 = vpack.c.b16 %v2873, %v2868
  %v3539 = vpack.c.b16 %v2874, %v2869
  %v3540 = vpack.c.b16 %v2875, %v2870
  %v3541 = vpack.c.b16 %v2876, %v2871
  %v3542 = vpack.c.b16 %v2877, %v2872
  %v3543 = vpack.c.b16 %v2883, %v2878
  %v3544 = vpack.c.b16 %v2884, %v2879
  %v3545 = vpack.c.b16 %v2885, %v2880
  %v3546 = vpack.c.b16 %v2886, %v2881
  %v3547 = vpack.c.b16 %v2887, %v2882
  %v3548 = vpack.c.b16 %v2893, %v2888
  %v3549 = vpack.c.b16 %v2894, %v2889
  %v3550 = vpack.c.b16 %v2895, %v2890
  %v3551 = vpack.c.b16 %v2896, %v2891
  %v3552 = vpack.c.b16 %v2897, %v2892
  %v3553 = vpack.c.b16 %v2903, %v2898
  %v3554 = vpack.c.b16 %v2904, %v2899
  %v3555 = vpack.c.b16 %v2905, %v2900
  %v3556 = vpack.c.b16 %v2906, %v2901
  %v3557 = vpack.c.b16 %v2907, %v2902
  %v3558 = vpack.c.b16 %v2913, %v2908
  %v3559 = vpack.c.b16 %v2914, %v2909
  %v3560 = vpack.c.b16 %v2915, %v2910
  %v3561 = vpack.c.b16 %v2916, %v2911
  %v3562 = vpack.c.b16 %v2917, %v2912
  %v3563 = vpack.c.b16 %v2923, %v2918
  %v3564 = vpack.c.b16 %v2924, %v2919
  %v3565 = vpack.c.b16 %v2925, %v2920
  %v3566 = vpack.c.b16 %v2926, %v2921
  %v3567 = vpack.c.b16 %v2927, %v2922
  %4208 = vmatprep.subr.bf16.mxu0 %v2929
  %4209 = vmatpush1.bf16.msra.mxu0 %v2928
  %4210 = vmatprep.subr.bf16.mxu0 %v2934
  %4211 = vmatpush1.bf16.msra.mxu0 %v2933
  %4212 = vmatprep.subr.bf16.mxu0 %v2939
  %4213 = vmatpush1.bf16.msra.mxu0 %v2938
  %4214 = vmatprep.subr.bf16.mxu0 %v2944
  %4215 = vmatpush1.bf16.msra.mxu0 %v2943
  %4216 = vmatprep.subr.bf16.mxu0 %v2949
  %4217 = vmatpush1.bf16.msra.mxu0 %v2948
  %4218 = vmatprep.subr.bf16.mxu0 %v2954
  %4219 = vmatpush1.bf16.msra.mxu0 %v2953
  %4220 = vmatprep.subr.bf16.mxu0 %v2959
  %4221 = vmatpush1.bf16.msra.mxu0 %v2958
  %4222 = vmatprep.subr.bf16.mxu0 %v2964
  %4223 = vmatpush1.bf16.msra.mxu0 %v2963
  %4224 = vmatprep.subr.bf16.mxu0 %v2969
  %4225 = vmatpush1.bf16.msra.mxu0 %v2968
  %4226 = vmatprep.subr.bf16.mxu0 %v2974
  %4227 = vmatpush1.bf16.msra.mxu0 %v2973
  %4228 = vmatprep.subr.bf16.mxu0 %v2979
  %4229 = vmatpush1.bf16.msra.mxu0 %v2978
  %4230 = vmatprep.subr.bf16.mxu0 %v2984
  %4231 = vmatpush1.bf16.msra.mxu0 %v2983
  %4232 = vmatprep.subr.bf16.mxu0 %v2989
  %4233 = vmatpush1.bf16.msra.mxu0 %v2988
  %4234 = vmatprep.subr.bf16.mxu0 %v2994
  %4235 = vmatpush1.bf16.msra.mxu0 %v2993
  %4236 = vmatprep.subr.bf16.mxu0 %v2999
  %4237 = vmatpush1.bf16.msra.mxu0 %v2998
  %4238 = vmatprep.subr.bf16.mxu0 %v3004
  %4239 = vmatpush1.bf16.msra.mxu0 %v3003
  %4240 = vmatprep.mubr.bf16.mxu0 %v849
  %4241 = vmatmul.mubr.bf16.gmra.mrb[0].mxu0 %v848
  %v4242 = vpop.f32.mrb[0].mxu0
  %v4243 = vadd.f32 %v802, %v4242
  %v4244 = vpop.f32.mrb[0].mxu0
  %v4245 = vadd.f32 %v806, %v4244
  %v4246 = vpop.f32.mrb[0].mxu0
  %v4247 = vpop.f32.mrb[0].mxu0
  %4248 = vdwg.mxu0
  %4249 = vmatprep.subr.bf16.mxu0 %v3009
  %4250 = vmatpush1.bf16.msra.mxu0 %v3008
  %4251 = vmatprep.subr.bf16.mxu0 %v3014
  %4252 = vmatpush1.bf16.msra.mxu0 %v3013
  %4253 = vmatprep.subr.bf16.mxu0 %v3019
  %4254 = vmatpush1.bf16.msra.mxu0 %v3018
  %4255 = vmatprep.subr.bf16.mxu0 %v3024
  %4256 = vmatpush1.bf16.msra.mxu0 %v3023
  %4257 = vmatprep.subr.bf16.mxu0 %v3029
  %4258 = vmatpush1.bf16.msra.mxu0 %v3028
  %4259 = vmatprep.subr.bf16.mxu0 %v3034
  %4260 = vmatpush1.bf16.msra.mxu0 %v3033
  %4261 = vmatprep.subr.bf16.mxu0 %v3039
  %4262 = vmatpush1.bf16.msra.mxu0 %v3038
  %4263 = vmatprep.subr.bf16.mxu0 %v3044
  %4264 = vmatpush1.bf16.msra.mxu0 %v3043
  %4265 = vmatprep.subr.bf16.mxu0 %v3049
  %4266 = vmatpush1.bf16.msra.mxu0 %v3048
  %4267 = vmatprep.subr.bf16.mxu0 %v3054
  %4268 = vmatpush1.bf16.msra.mxu0 %v3053
  %4269 = vmatprep.subr.bf16.mxu0 %v3059
  %4270 = vmatpush1.bf16.msra.mxu0 %v3058
  %4271 = vmatprep.subr.bf16.mxu0 %v3064
  %4272 = vmatpush1.bf16.msra.mxu0 %v3063
  %4273 = vmatprep.subr.bf16.mxu0 %v3069
  %4274 = vmatpush1.bf16.msra.mxu0 %v3068
  %4275 = vmatprep.subr.bf16.mxu0 %v3074
  %4276 = vmatpush1.bf16.msra.mxu0 %v3073
  %4277 = vmatprep.subr.bf16.mxu0 %v3079
  %4278 = vmatpush1.bf16.msra.mxu0 %v3078
  %4279 = vmatprep.subr.bf16.mxu0 %v3084
  %4280 = vmatpush1.bf16.msra.mxu0 %v3083
  %4281 = vmatprep.mubr.bf16.mxu0 %v851
  %4282 = vmatmul.mubr.bf16.gmra.mrb[0].mxu0 %v850
  %v4283 = vpop.f32.mrb[0].mxu0
  %v4284 = vadd.f32 %v4243, %v4283
  %v4285 = vpop.f32.mrb[0].mxu0
  %v4286 = vadd.f32 %v4245, %v4285
  %v4287 = vpop.f32.mrb[0].mxu0
  %v4288 = vpop.f32.mrb[0].mxu0
  %4289 = vdwg.mxu0
  %4290 = vmatprep.subr.bf16.mxu0 %v3089
  %4291 = vmatpush1.bf16.msra.mxu0 %v3088
  %4292 = vmatprep.subr.bf16.mxu0 %v3094
  %4293 = vmatpush1.bf16.msra.mxu0 %v3093
  %4294 = vmatprep.subr.bf16.mxu0 %v3099
  %4295 = vmatpush1.bf16.msra.mxu0 %v3098
  %4296 = vmatprep.subr.bf16.mxu0 %v3104
  %4297 = vmatpush1.bf16.msra.mxu0 %v3103
  %4298 = vmatprep.subr.bf16.mxu0 %v3109
  %4299 = vmatpush1.bf16.msra.mxu0 %v3108
  %4300 = vmatprep.subr.bf16.mxu0 %v3114
  %4301 = vmatpush1.bf16.msra.mxu0 %v3113
  %4302 = vmatprep.subr.bf16.mxu0 %v3119
  %4303 = vmatpush1.bf16.msra.mxu0 %v3118
  %4304 = vmatprep.subr.bf16.mxu0 %v3124
  %4305 = vmatpush1.bf16.msra.mxu0 %v3123
  %4306 = vmatprep.subr.bf16.mxu0 %v3129
  %4307 = vmatpush1.bf16.msra.mxu0 %v3128
  %4308 = vmatprep.subr.bf16.mxu0 %v3134
  %4309 = vmatpush1.bf16.msra.mxu0 %v3133
  %4310 = vmatprep.subr.bf16.mxu0 %v3139
  %4311 = vmatpush1.bf16.msra.mxu0 %v3138
  %4312 = vmatprep.subr.bf16.mxu0 %v3144
  %4313 = vmatpush1.bf16.msra.mxu0 %v3143
  %4314 = vmatprep.subr.bf16.mxu0 %v3149
  %4315 = vmatpush1.bf16.msra.mxu0 %v3148
  %4316 = vmatprep.subr.bf16.mxu0 %v3154
  %4317 = vmatpush1.bf16.msra.mxu0 %v3153
  %4318 = vmatprep.subr.bf16.mxu0 %v3159
  %4319 = vmatpush1.bf16.msra.mxu0 %v3158
  %4320 = vmatprep.subr.bf16.mxu0 %v3164
  %4321 = vmatpush1.bf16.msra.mxu0 %v3163
  %4322 = vmatprep.mubr.bf16.mxu0 %v853
  %4323 = vmatmul.mubr.bf16.gmra.mrb[0].mxu0 %v852
  %v4324 = vpop.f32.mrb[0].mxu0
  %v4325 = vadd.f32 %v4284, %v4324
  %v4326 = vpop.f32.mrb[0].mxu0
  %v4327 = vadd.f32 %v4286, %v4326
  %v4328 = vpop.f32.mrb[0].mxu0
  %v4329 = vpop.f32.mrb[0].mxu0
  %4330 = vdwg.mxu0
  %4331 = vmatprep.subr.bf16.mxu0 %v3169
  %4332 = vmatpush1.bf16.msra.mxu0 %v3168
  %4333 = vmatprep.subr.bf16.mxu0 %v3174
  %4334 = vmatpush1.bf16.msra.mxu0 %v3173
  %4335 = vmatprep.subr.bf16.mxu0 %v3179
  %4336 = vmatpush1.bf16.msra.mxu0 %v3178
  %4337 = vmatprep.subr.bf16.mxu0 %v3184
  %4338 = vmatpush1.bf16.msra.mxu0 %v3183
  %4339 = vmatprep.subr.bf16.mxu0 %v3189
  %4340 = vmatpush1.bf16.msra.mxu0 %v3188
  %4341 = vmatprep.subr.bf16.mxu0 %v3194
  %4342 = vmatpush1.bf16.msra.mxu0 %v3193
  %4343 = vmatprep.subr.bf16.mxu0 %v3199
  %4344 = vmatpush1.bf16.msra.mxu0 %v3198
  %4345 = vmatprep.subr.bf16.mxu0 %v3204
  %4346 = vmatpush1.bf16.msra.mxu0 %v3203
  %4347 = vmatprep.subr.bf16.mxu0 %v3209
  %4348 = vmatpush1.bf16.msra.mxu0 %v3208
  %4349 = vmatprep.subr.bf16.mxu0 %v3214
  %4350 = vmatpush1.bf16.msra.mxu0 %v3213
  %4351 = vmatprep.subr.bf16.mxu0 %v3219
  %4352 = vmatpush1.bf16.msra.mxu0 %v3218
  %4353 = vmatprep.subr.bf16.mxu0 %v3224
  %4354 = vmatpush1.bf16.msra.mxu0 %v3223
  %4355 = vmatprep.subr.bf16.mxu0 %v3229
  %4356 = vmatpush1.bf16.msra.mxu0 %v3228
  %4357 = vmatprep.subr.bf16.mxu0 %v3234
  %4358 = vmatpush1.bf16.msra.mxu0 %v3233
  %4359 = vmatprep.subr.bf16.mxu0 %v3239
  %4360 = vmatpush1.bf16.msra.mxu0 %v3238
  %4361 = vmatprep.subr.bf16.mxu0 %v3244
  %4362 = vmatpush1.bf16.msra.mxu0 %v3243
  %4363 = vmatprep.mubr.bf16.mxu0 %v855
  %4364 = vmatmul.mubr.bf16.gmra.mrb[0].mxu0 %v854
  %v4365 = vpop.f32.mrb[0].mxu0
  %v4366 = vadd.f32 %v4325, %v4365
  %v4367 = vpop.f32.mrb[0].mxu0
  %v4368 = vadd.f32 %v4327, %v4367
  %v4369 = vpop.f32.mrb[0].mxu0
  %v4370 = vpop.f32.mrb[0].mxu0
  %4371 = vdwg.mxu0
  %4372 = vmatprep.subr.bf16.mxu0 %v3249
  %4373 = vmatpush1.bf16.msra.mxu0 %v3248
  %4374 = vmatprep.subr.bf16.mxu0 %v3254
  %4375 = vmatpush1.bf16.msra.mxu0 %v3253
  %4376 = vmatprep.subr.bf16.mxu0 %v3259
  %4377 = vmatpush1.bf16.msra.mxu0 %v3258
  %4378 = vmatprep.subr.bf16.mxu0 %v3264
  %4379 = vmatpush1.bf16.msra.mxu0 %v3263
  %4380 = vmatprep.subr.bf16.mxu0 %v3269
  %4381 = vmatpush1.bf16.msra.mxu0 %v3268
  %4382 = vmatprep.subr.bf16.mxu0 %v3274
  %4383 = vmatpush1.bf16.msra.mxu0 %v3273
  %4384 = vmatprep.subr.bf16.mxu0 %v3279
  %4385 = vmatpush1.bf16.msra.mxu0 %v3278
  %4386 = vmatprep.subr.bf16.mxu0 %v3284
  %4387 = vmatpush1.bf16.msra.mxu0 %v3283
  %4388 = vmatprep.subr.bf16.mxu0 %v3289
  %4389 = vmatpush1.bf16.msra.mxu0 %v3288
  %4390 = vmatprep.subr.bf16.mxu0 %v3294
  %4391 = vmatpush1.bf16.msra.mxu0 %v3293
  %4392 = vmatprep.subr.bf16.mxu0 %v3299
  %4393 = vmatpush1.bf16.msra.mxu0 %v3298
  %4394 = vmatprep.subr.bf16.mxu0 %v3304
  %4395 = vmatpush1.bf16.msra.mxu0 %v3303
  %4396 = vmatprep.subr.bf16.mxu0 %v3309
  %4397 = vmatpush1.bf16.msra.mxu0 %v3308
  %4398 = vmatprep.subr.bf16.mxu0 %v3314
  %4399 = vmatpush1.bf16.msra.mxu0 %v3313
  %4400 = vmatprep.subr.bf16.mxu0 %v3319
  %4401 = vmatpush1.bf16.msra.mxu0 %v3318
  %4402 = vmatprep.subr.bf16.mxu0 %v3324
  %4403 = vmatpush1.bf16.msra.mxu0 %v3323
  %4404 = vmatprep.mubr.bf16.mxu0 %v857
  %4405 = vmatmul.mubr.bf16.gmra.mrb[0].mxu0 %v856
  %v4406 = vpop.f32.mrb[0].mxu0
  %v4407 = vadd.f32 %v4366, %v4406
  %v4408 = vpop.f32.mrb[0].mxu0
  %v4409 = vadd.f32 %v4368, %v4408
  %v4410 = vpop.f32.mrb[0].mxu0
  %v4411 = vpop.f32.mrb[0].mxu0
  %4412 = vdwg.mxu0
  %4413 = vmatprep.subr.bf16.mxu0 %v3329
  %4414 = vmatpush1.bf16.msra.mxu0 %v3328
  %4415 = vmatprep.subr.bf16.mxu0 %v3334
  %4416 = vmatpush1.bf16.msra.mxu0 %v3333
  %4417 = vmatprep.subr.bf16.mxu0 %v3339
  %4418 = vmatpush1.bf16.msra.mxu0 %v3338
  %4419 = vmatprep.subr.bf16.mxu0 %v3344
  %4420 = vmatpush1.bf16.msra.mxu0 %v3343
  %4421 = vmatprep.subr.bf16.mxu0 %v3349
  %4422 = vmatpush1.bf16.msra.mxu0 %v3348
  %4423 = vmatprep.subr.bf16.mxu0 %v3354
  %4424 = vmatpush1.bf16.msra.mxu0 %v3353
  %4425 = vmatprep.subr.bf16.mxu0 %v3359
  %4426 = vmatpush1.bf16.msra.mxu0 %v3358
  %4427 = vmatprep.subr.bf16.mxu0 %v3364
  %4428 = vmatpush1.bf16.msra.mxu0 %v3363
  %4429 = vmatprep.subr.bf16.mxu0 %v3369
  %4430 = vmatpush1.bf16.msra.mxu0 %v3368
  %4431 = vmatprep.subr.bf16.mxu0 %v3374
  %4432 = vmatpush1.bf16.msra.mxu0 %v3373
  %4433 = vmatprep.subr.bf16.mxu0 %v3379
  %4434 = vmatpush1.bf16.msra.mxu0 %v3378
  %4435 = vmatprep.subr.bf16.mxu0 %v3384
  %4436 = vmatpush1.bf16.msra.mxu0 %v3383
  %4437 = vmatprep.subr.bf16.mxu0 %v3389
  %4438 = vmatpush1.bf16.msra.mxu0 %v3388
  %4439 = vmatprep.subr.bf16.mxu0 %v3394
  %4440 = vmatpush1.bf16.msra.mxu0 %v3393
  %4441 = vmatprep.subr.bf16.mxu0 %v3399
  %4442 = vmatpush1.bf16.msra.mxu0 %v3398
  %4443 = vmatprep.subr.bf16.mxu0 %v3404
  %4444 = vmatpush1.bf16.msra.mxu0 %v3403
  %4445 = vmatprep.mubr.bf16.mxu0 %v859
  %4446 = vmatmul.mubr.bf16.gmra.mrb[0].mxu0 %v858
  %v4447 = vpop.f32.mrb[0].mxu0
  %v4448 = vadd.f32 %v4407, %v4447
  %v4449 = vpop.f32.mrb[0].mxu0
  %v4450 = vadd.f32 %v4409, %v4449
  %v4451 = vpop.f32.mrb[0].mxu0
  %v4452 = vpop.f32.mrb[0].mxu0
  %4453 = vdwg.mxu0
  %4454 = vmatprep.subr.bf16.mxu0 %v3409
  %4455 = vmatpush1.bf16.msra.mxu0 %v3408
  %4456 = vmatprep.subr.bf16.mxu0 %v3414
  %4457 = vmatpush1.bf16.msra.mxu0 %v3413
  %4458 = vmatprep.subr.bf16.mxu0 %v3419
  %4459 = vmatpush1.bf16.msra.mxu0 %v3418
  %4460 = vmatprep.subr.bf16.mxu0 %v3424
  %4461 = vmatpush1.bf16.msra.mxu0 %v3423
  %4462 = vmatprep.subr.bf16.mxu0 %v3429
  %4463 = vmatpush1.bf16.msra.mxu0 %v3428
  %4464 = vmatprep.subr.bf16.mxu0 %v3434
  %4465 = vmatpush1.bf16.msra.mxu0 %v3433
  %4466 = vmatprep.subr.bf16.mxu0 %v3439
  %4467 = vmatpush1.bf16.msra.mxu0 %v3438
  %4468 = vmatprep.subr.bf16.mxu0 %v3444
  %4469 = vmatpush1.bf16.msra.mxu0 %v3443
  %4470 = vmatprep.subr.bf16.mxu0 %v3449
  %4471 = vmatpush1.bf16.msra.mxu0 %v3448
  %4472 = vmatprep.subr.bf16.mxu0 %v3454
  %4473 = vmatpush1.bf16.msra.mxu0 %v3453
  %4474 = vmatprep.subr.bf16.mxu0 %v3459
  %4475 = vmatpush1.bf16.msra.mxu0 %v3458
  %4476 = vmatprep.subr.bf16.mxu0 %v3464
  %4477 = vmatpush1.bf16.msra.mxu0 %v3463
  %4478 = vmatprep.subr.bf16.mxu0 %v3469
  %4479 = vmatpush1.bf16.msra.mxu0 %v3468
  %4480 = vmatprep.subr.bf16.mxu0 %v3474
  %4481 = vmatpush1.bf16.msra.mxu0 %v3473
  %4482 = vmatprep.subr.bf16.mxu0 %v3479
  %4483 = vmatpush1.bf16.msra.mxu0 %v3478
  %4484 = vmatprep.subr.bf16.mxu0 %v3484
  %4485 = vmatpush1.bf16.msra.mxu0 %v3483
  %4486 = vmatprep.mubr.bf16.mxu0 %v861
  %4487 = vmatmul.mubr.bf16.gmra.mrb[0].mxu0 %v860
  %v4488 = vpop.f32.mrb[0].mxu0
  %v4489 = vadd.f32 %v4448, %v4488
  %v4490 = vpop.f32.mrb[0].mxu0
  %v4491 = vadd.f32 %v4450, %v4490
  %v4492 = vpop.f32.mrb[0].mxu0
  %v4493 = vpop.f32.mrb[0].mxu0
  %4494 = vdwg.mxu0
  %4495 = vmatprep.subr.bf16.mxu0 %v3489
  %4496 = vmatpush1.bf16.msra.mxu0 %v3488
  %4497 = vmatprep.subr.bf16.mxu0 %v3494
  %4498 = vmatpush1.bf16.msra.mxu0 %v3493
  %4499 = vmatprep.subr.bf16.mxu0 %v3499
  %4500 = vmatpush1.bf16.msra.mxu0 %v3498
  %4501 = vmatprep.subr.bf16.mxu0 %v3504
  %4502 = vmatpush1.bf16.msra.mxu0 %v3503
  %4503 = vmatprep.subr.bf16.mxu0 %v3509
  %4504 = vmatpush1.bf16.msra.mxu0 %v3508
  %4505 = vmatprep.subr.bf16.mxu0 %v3514
  %4506 = vmatpush1.bf16.msra.mxu0 %v3513
  %4507 = vmatprep.subr.bf16.mxu0 %v3519
  %4508 = vmatpush1.bf16.msra.mxu0 %v3518
  %4509 = vmatprep.subr.bf16.mxu0 %v3524
  %4510 = vmatpush1.bf16.msra.mxu0 %v3523
  %4511 = vmatprep.subr.bf16.mxu0 %v3529
  %4512 = vmatpush1.bf16.msra.mxu0 %v3528
  %4513 = vmatprep.subr.bf16.mxu0 %v3534
  %4514 = vmatpush1.bf16.msra.mxu0 %v3533
  %4515 = vmatprep.subr.bf16.mxu0 %v3539
  %4516 = vmatpush1.bf16.msra.mxu0 %v3538
  %4517 = vmatprep.subr.bf16.mxu0 %v3544
  %4518 = vmatpush1.bf16.msra.mxu0 %v3543
  %4519 = vmatprep.subr.bf16.mxu0 %v3549
  %4520 = vmatpush1.bf16.msra.mxu0 %v3548
  %4521 = vmatprep.subr.bf16.mxu0 %v3554
  %4522 = vmatpush1.bf16.msra.mxu0 %v3553
  %4523 = vmatprep.subr.bf16.mxu0 %v3559
  %4524 = vmatpush1.bf16.msra.mxu0 %v3558
  %4525 = vmatprep.subr.bf16.mxu0 %v3564
  %4526 = vmatpush1.bf16.msra.mxu0 %v3563
  %4527 = vmatprep.mubr.bf16.mxu0 %v863
  %4528 = vmatmul.mubr.bf16.gmra.mrb[0].mxu0 %v862
  %v4529 = vpop.f32.mrb[0].mxu0
  %v4530 = vadd.f32 %v4489, %v4529
  %v4531 = vpop.f32.mrb[0].mxu0
  %v4532 = vadd.f32 %v4491, %v4531
  %v4533 = vpop.f32.mrb[0].mxu0
  %v4534 = vpop.f32.mrb[0].mxu0
  %4535 = vdwg.mxu0
  %4536 = vmatprep.subr.bf16.mxu0 %v2931
  %4537 = vmatpush1.bf16.msra.mxu0 %v2930
  %4538 = vmatprep.subr.bf16.mxu0 %v2936
  %4539 = vmatpush1.bf16.msra.mxu0 %v2935
  %4540 = vmatprep.subr.bf16.mxu0 %v2941
  %4541 = vmatpush1.bf16.msra.mxu0 %v2940
  %4542 = vmatprep.subr.bf16.mxu0 %v2946
  %4543 = vmatpush1.bf16.msra.mxu0 %v2945
  %4544 = vmatprep.subr.bf16.mxu0 %v2951
  %4545 = vmatpush1.bf16.msra.mxu0 %v2950
  %4546 = vmatprep.subr.bf16.mxu0 %v2956
  %4547 = vmatpush1.bf16.msra.mxu0 %v2955
  %4548 = vmatprep.subr.bf16.mxu0 %v2961
  %4549 = vmatpush1.bf16.msra.mxu0 %v2960
  %4550 = vmatprep.subr.bf16.mxu0 %v2966
  %4551 = vmatpush1.bf16.msra.mxu0 %v2965
  %4552 = vmatprep.subr.bf16.mxu0 %v2971
  %4553 = vmatpush1.bf16.msra.mxu0 %v2970
  %4554 = vmatprep.subr.bf16.mxu0 %v2976
  %4555 = vmatpush1.bf16.msra.mxu0 %v2975
  %4556 = vmatprep.subr.bf16.mxu0 %v2981
  %4557 = vmatpush1.bf16.msra.mxu0 %v2980
  %4558 = vmatprep.subr.bf16.mxu0 %v2986
  %4559 = vmatpush1.bf16.msra.mxu0 %v2985
  %4560 = vmatprep.subr.bf16.mxu0 %v2991
  %4561 = vmatpush1.bf16.msra.mxu0 %v2990
  %4562 = vmatprep.subr.bf16.mxu0 %v2996
  %4563 = vmatpush1.bf16.msra.mxu0 %v2995
  %4564 = vmatprep.subr.bf16.mxu0 %v3001
  %4565 = vmatpush1.bf16.msra.mxu0 %v3000
  %4566 = vmatprep.subr.bf16.mxu0 %v3006
  %4567 = vmatpush1.bf16.msra.mxu0 %v3005
  %4568 = vmatprep.mubr.bf16.mxu0 %v849
  %4569 = vmatmul.mubr.bf16.gmra.mrb[0].mxu0 %v848
  %v4570 = vpop.f32.mrb[0].mxu0
  %v4571 = vadd.f32 %v810, %v4570
  %v4572 = vpop.f32.mrb[0].mxu0
  %v4573 = vadd.f32 %v814, %v4572
  %v4574 = vpop.f32.mrb[0].mxu0
  %v4575 = vpop.f32.mrb[0].mxu0
  %4576 = vdwg.mxu0
  %4577 = vmatprep.subr.bf16.mxu0 %v3011
  %4578 = vmatpush1.bf16.msra.mxu0 %v3010
  %4579 = vmatprep.subr.bf16.mxu0 %v3016
  %4580 = vmatpush1.bf16.msra.mxu0 %v3015
  %4581 = vmatprep.subr.bf16.mxu0 %v3021
  %4582 = vmatpush1.bf16.msra.mxu0 %v3020
  %4583 = vmatprep.subr.bf16.mxu0 %v3026
  %4584 = vmatpush1.bf16.msra.mxu0 %v3025
  %4585 = vmatprep.subr.bf16.mxu0 %v3031
  %4586 = vmatpush1.bf16.msra.mxu0 %v3030
  %4587 = vmatprep.subr.bf16.mxu0 %v3036
  %4588 = vmatpush1.bf16.msra.mxu0 %v3035
  %4589 = vmatprep.subr.bf16.mxu0 %v3041
  %4590 = vmatpush1.bf16.msra.mxu0 %v3040
  %4591 = vmatprep.subr.bf16.mxu0 %v3046
  %4592 = vmatpush1.bf16.msra.mxu0 %v3045
  %4593 = vmatprep.subr.bf16.mxu0 %v3051
  %4594 = vmatpush1.bf16.msra.mxu0 %v3050
  %4595 = vmatprep.subr.bf16.mxu0 %v3056
  %4596 = vmatpush1.bf16.msra.mxu0 %v3055
  %4597 = vmatprep.subr.bf16.mxu0 %v3061
  %4598 = vmatpush1.bf16.msra.mxu0 %v3060
  %4599 = vmatprep.subr.bf16.mxu0 %v3066
  %4600 = vmatpush1.bf16.msra.mxu0 %v3065
  %4601 = vmatprep.subr.bf16.mxu0 %v3071
  %4602 = vmatpush1.bf16.msra.mxu0 %v3070
  %4603 = vmatprep.subr.bf16.mxu0 %v3076
  %4604 = vmatpush1.bf16.msra.mxu0 %v3075
  %4605 = vmatprep.subr.bf16.mxu0 %v3081
  %4606 = vmatpush1.bf16.msra.mxu0 %v3080
  %4607 = vmatprep.subr.bf16.mxu0 %v3086
  %4608 = vmatpush1.bf16.msra.mxu0 %v3085
  %4609 = vmatprep.mubr.bf16.mxu0 %v851
  %4610 = vmatmul.mubr.bf16.gmra.mrb[0].mxu0 %v850
  %v4611 = vpop.f32.mrb[0].mxu0
  %v4612 = vadd.f32 %v4571, %v4611
  %v4613 = vpop.f32.mrb[0].mxu0
  %v4614 = vadd.f32 %v4573, %v4613
  %v4615 = vpop.f32.mrb[0].mxu0
  %v4616 = vpop.f32.mrb[0].mxu0
  %4617 = vdwg.mxu0
  %4618 = vmatprep.subr.bf16.mxu0 %v3091
  %4619 = vmatpush1.bf16.msra.mxu0 %v3090
  %4620 = vmatprep.subr.bf16.mxu0 %v3096
  %4621 = vmatpush1.bf16.msra.mxu0 %v3095
  %4622 = vmatprep.subr.bf16.mxu0 %v3101
  %4623 = vmatpush1.bf16.msra.mxu0 %v3100
  %4624 = vmatprep.subr.bf16.mxu0 %v3106
  %4625 = vmatpush1.bf16.msra.mxu0 %v3105
  %4626 = vmatprep.subr.bf16.mxu0 %v3111
  %4627 = vmatpush1.bf16.msra.mxu0 %v3110
  %4628 = vmatprep.subr.bf16.mxu0 %v3116
  %4629 = vmatpush1.bf16.msra.mxu0 %v3115
  %4630 = vmatprep.subr.bf16.mxu0 %v3121
  %4631 = vmatpush1.bf16.msra.mxu0 %v3120
  %4632 = vmatprep.subr.bf16.mxu0 %v3126
  %4633 = vmatpush1.bf16.msra.mxu0 %v3125
  %4634 = vmatprep.subr.bf16.mxu0 %v3131
  %4635 = vmatpush1.bf16.msra.mxu0 %v3130
  %4636 = vmatprep.subr.bf16.mxu0 %v3136
  %4637 = vmatpush1.bf16.msra.mxu0 %v3135
  %4638 = vmatprep.subr.bf16.mxu0 %v3141
  %4639 = vmatpush1.bf16.msra.mxu0 %v3140
  %4640 = vmatprep.subr.bf16.mxu0 %v3146
  %4641 = vmatpush1.bf16.msra.mxu0 %v3145
  %4642 = vmatprep.subr.bf16.mxu0 %v3151
  %4643 = vmatpush1.bf16.msra.mxu0 %v3150
  %4644 = vmatprep.subr.bf16.mxu0 %v3156
  %4645 = vmatpush1.bf16.msra.mxu0 %v3155
  %4646 = vmatprep.subr.bf16.mxu0 %v3161
  %4647 = vmatpush1.bf16.msra.mxu0 %v3160
  %4648 = vmatprep.subr.bf16.mxu0 %v3166
  %4649 = vmatpush1.bf16.msra.mxu0 %v3165
  %4650 = vmatprep.mubr.bf16.mxu0 %v853
  %4651 = vmatmul.mubr.bf16.gmra.mrb[0].mxu0 %v852
  %v4652 = vpop.f32.mrb[0].mxu0
  %v4653 = vadd.f32 %v4612, %v4652
  %v4654 = vpop.f32.mrb[0].mxu0
  %v4655 = vadd.f32 %v4614, %v4654
  %v4656 = vpop.f32.mrb[0].mxu0
  %v4657 = vpop.f32.mrb[0].mxu0
  %4658 = vdwg.mxu0
  %4659 = vmatprep.subr.bf16.mxu0 %v3171
  %4660 = vmatpush1.bf16.msra.mxu0 %v3170
  %4661 = vmatprep.subr.bf16.mxu0 %v3176
  %4662 = vmatpush1.bf16.msra.mxu0 %v3175
  %4663 = vmatprep.subr.bf16.mxu0 %v3181
  %4664 = vmatpush1.bf16.msra.mxu0 %v3180
  %4665 = vmatprep.subr.bf16.mxu0 %v3186
  %4666 = vmatpush1.bf16.msra.mxu0 %v3185
  %4667 = vmatprep.subr.bf16.mxu0 %v3191
  %4668 = vmatpush1.bf16.msra.mxu0 %v3190
  %4669 = vmatprep.subr.bf16.mxu0 %v3196
  %4670 = vmatpush1.bf16.msra.mxu0 %v3195
  %4671 = vmatprep.subr.bf16.mxu0 %v3201
  %4672 = vmatpush1.bf16.msra.mxu0 %v3200
  %4673 = vmatprep.subr.bf16.mxu0 %v3206
  %4674 = vmatpush1.bf16.msra.mxu0 %v3205
  %4675 = vmatprep.subr.bf16.mxu0 %v3211
  %4676 = vmatpush1.bf16.msra.mxu0 %v3210
  %4677 = vmatprep.subr.bf16.mxu0 %v3216
  %4678 = vmatpush1.bf16.msra.mxu0 %v3215
  %4679 = vmatprep.subr.bf16.mxu0 %v3221
  %4680 = vmatpush1.bf16.msra.mxu0 %v3220
  %4681 = vmatprep.subr.bf16.mxu0 %v3226
  %4682 = vmatpush1.bf16.msra.mxu0 %v3225
  %4683 = vmatprep.subr.bf16.mxu0 %v3231
  %4684 = vmatpush1.bf16.msra.mxu0 %v3230
  %4685 = vmatprep.subr.bf16.mxu0 %v3236
  %4686 = vmatpush1.bf16.msra.mxu0 %v3235
  %4687 = vmatprep.subr.bf16.mxu0 %v3241
  %4688 = vmatpush1.bf16.msra.mxu0 %v3240
  %4689 = vmatprep.subr.bf16.mxu0 %v3246
  %4690 = vmatpush1.bf16.msra.mxu0 %v3245
  %4691 = vmatprep.mubr.bf16.mxu0 %v855
  %4692 = vmatmul.mubr.bf16.gmra.mrb[0].mxu0 %v854
  %v4693 = vpop.f32.mrb[0].mxu0
  %v4694 = vadd.f32 %v4653, %v4693
  %v4695 = vpop.f32.mrb[0].mxu0
  %v4696 = vadd.f32 %v4655, %v4695
  %v4697 = vpop.f32.mrb[0].mxu0
  %v4698 = vpop.f32.mrb[0].mxu0
  %4699 = vdwg.mxu0
  %4700 = vmatprep.subr.bf16.mxu0 %v3251
  %4701 = vmatpush1.bf16.msra.mxu0 %v3250
  %4702 = vmatprep.subr.bf16.mxu0 %v3256
  %4703 = vmatpush1.bf16.msra.mxu0 %v3255
  %4704 = vmatprep.subr.bf16.mxu0 %v3261
  %4705 = vmatpush1.bf16.msra.mxu0 %v3260
  %4706 = vmatprep.subr.bf16.mxu0 %v3266
  %4707 = vmatpush1.bf16.msra.mxu0 %v3265
  %4708 = vmatprep.subr.bf16.mxu0 %v3271
  %4709 = vmatpush1.bf16.msra.mxu0 %v3270
  %4710 = vmatprep.subr.bf16.mxu0 %v3276
  %4711 = vmatpush1.bf16.msra.mxu0 %v3275
  %4712 = vmatprep.subr.bf16.mxu0 %v3281
  %4713 = vmatpush1.bf16.msra.mxu0 %v3280
  %4714 = vmatprep.subr.bf16.mxu0 %v3286
  %4715 = vmatpush1.bf16.msra.mxu0 %v3285
  %4716 = vmatprep.subr.bf16.mxu0 %v3291
  %4717 = vmatpush1.bf16.msra.mxu0 %v3290
  %4718 = vmatprep.subr.bf16.mxu0 %v3296
  %4719 = vmatpush1.bf16.msra.mxu0 %v3295
  %4720 = vmatprep.subr.bf16.mxu0 %v3301
  %4721 = vmatpush1.bf16.msra.mxu0 %v3300
  %4722 = vmatprep.subr.bf16.mxu0 %v3306
  %4723 = vmatpush1.bf16.msra.mxu0 %v3305
  %4724 = vmatprep.subr.bf16.mxu0 %v3311
  %4725 = vmatpush1.bf16.msra.mxu0 %v3310
  %4726 = vmatprep.subr.bf16.mxu0 %v3316
  %4727 = vmatpush1.bf16.msra.mxu0 %v3315
  %4728 = vmatprep.subr.bf16.mxu0 %v3321
  %4729 = vmatpush1.bf16.msra.mxu0 %v3320
  %4730 = vmatprep.subr.bf16.mxu0 %v3326
  %4731 = vmatpush1.bf16.msra.mxu0 %v3325
  %4732 = vmatprep.mubr.bf16.mxu0 %v857
  %4733 = vmatmul.mubr.bf16.gmra.mrb[0].mxu0 %v856
  %v4734 = vpop.f32.mrb[0].mxu0
  %v4735 = vadd.f32 %v4694, %v4734
  %v4736 = vpop.f32.mrb[0].mxu0
  %v4737 = vadd.f32 %v4696, %v4736
  %v4738 = vpop.f32.mrb[0].mxu0
  %v4739 = vpop.f32.mrb[0].mxu0
  %4740 = vdwg.mxu0
  %4741 = vmatprep.subr.bf16.mxu0 %v3331
  %4742 = vmatpush1.bf16.msra.mxu0 %v3330
  %4743 = vmatprep.subr.bf16.mxu0 %v3336
  %4744 = vmatpush1.bf16.msra.mxu0 %v3335
  %4745 = vmatprep.subr.bf16.mxu0 %v3341
  %4746 = vmatpush1.bf16.msra.mxu0 %v3340
  %4747 = vmatprep.subr.bf16.mxu0 %v3346
  %4748 = vmatpush1.bf16.msra.mxu0 %v3345
  %4749 = vmatprep.subr.bf16.mxu0 %v3351
  %4750 = vmatpush1.bf16.msra.mxu0 %v3350
  %4751 = vmatprep.subr.bf16.mxu0 %v3356
  %4752 = vmatpush1.bf16.msra.mxu0 %v3355
  %4753 = vmatprep.subr.bf16.mxu0 %v3361
  %4754 = vmatpush1.bf16.msra.mxu0 %v3360
  %4755 = vmatprep.subr.bf16.mxu0 %v3366
  %4756 = vmatpush1.bf16.msra.mxu0 %v3365
  %4757 = vmatprep.subr.bf16.mxu0 %v3371
  %4758 = vmatpush1.bf16.msra.mxu0 %v3370
  %4759 = vmatprep.subr.bf16.mxu0 %v3376
  %4760 = vmatpush1.bf16.msra.mxu0 %v3375
  %4761 = vmatprep.subr.bf16.mxu0 %v3381
  %4762 = vmatpush1.bf16.msra.mxu0 %v3380
  %4763 = vmatprep.subr.bf16.mxu0 %v3386
  %4764 = vmatpush1.bf16.msra.mxu0 %v3385
  %4765 = vmatprep.subr.bf16.mxu0 %v3391
  %4766 = vmatpush1.bf16.msra.mxu0 %v3390
  %4767 = vmatprep.subr.bf16.mxu0 %v3396
  %4768 = vmatpush1.bf16.msra.mxu0 %v3395
  %4769 = vmatprep.subr.bf16.mxu0 %v3401
  %4770 = vmatpush1.bf16.msra.mxu0 %v3400
  %4771 = vmatprep.subr.bf16.mxu0 %v3406
  %4772 = vmatpush1.bf16.msra.mxu0 %v3405
  %4773 = vmatprep.mubr.bf16.mxu0 %v859
  %4774 = vmatmul.mubr.bf16.gmra.mrb[0].mxu0 %v858
  %v4775 = vpop.f32.mrb[0].mxu0
  %v4776 = vadd.f32 %v4735, %v4775
  %v4777 = vpop.f32.mrb[0].mxu0
  %v4778 = vadd.f32 %v4737, %v4777
  %v4779 = vpop.f32.mrb[0].mxu0
  %v4780 = vpop.f32.mrb[0].mxu0
  %4781 = vdwg.mxu0
  %4782 = vmatprep.subr.bf16.mxu0 %v3411
  %4783 = vmatpush1.bf16.msra.mxu0 %v3410
  %4784 = vmatprep.subr.bf16.mxu0 %v3416
  %4785 = vmatpush1.bf16.msra.mxu0 %v3415
  %4786 = vmatprep.subr.bf16.mxu0 %v3421
  %4787 = vmatpush1.bf16.msra.mxu0 %v3420
  %4788 = vmatprep.subr.bf16.mxu0 %v3426
  %4789 = vmatpush1.bf16.msra.mxu0 %v3425
  %4790 = vmatprep.subr.bf16.mxu0 %v3431
  %4791 = vmatpush1.bf16.msra.mxu0 %v3430
  %4792 = vmatprep.subr.bf16.mxu0 %v3436
  %4793 = vmatpush1.bf16.msra.mxu0 %v3435
  %4794 = vmatprep.subr.bf16.mxu0 %v3441
  %4795 = vmatpush1.bf16.msra.mxu0 %v3440
  %4796 = vmatprep.subr.bf16.mxu0 %v3446
  %4797 = vmatpush1.bf16.msra.mxu0 %v3445
  %4798 = vmatprep.subr.bf16.mxu0 %v3451
  %4799 = vmatpush1.bf16.msra.mxu0 %v3450
  %4800 = vmatprep.subr.bf16.mxu0 %v3456
  %4801 = vmatpush1.bf16.msra.mxu0 %v3455
  %4802 = vmatprep.subr.bf16.mxu0 %v3461
  %4803 = vmatpush1.bf16.msra.mxu0 %v3460
  %4804 = vmatprep.subr.bf16.mxu0 %v3466
  %4805 = vmatpush1.bf16.msra.mxu0 %v3465
  %4806 = vmatprep.subr.bf16.mxu0 %v3471
  %4807 = vmatpush1.bf16.msra.mxu0 %v3470
  %4808 = vmatprep.subr.bf16.mxu0 %v3476
  %4809 = vmatpush1.bf16.msra.mxu0 %v3475
  %4810 = vmatprep.subr.bf16.mxu0 %v3481
  %4811 = vmatpush1.bf16.msra.mxu0 %v3480
  %4812 = vmatprep.subr.bf16.mxu0 %v3486
  %4813 = vmatpush1.bf16.msra.mxu0 %v3485
  %4814 = vmatprep.mubr.bf16.mxu0 %v861
  %4815 = vmatmul.mubr.bf16.gmra.mrb[0].mxu0 %v860
  %v4816 = vpop.f32.mrb[0].mxu0
  %v4817 = vadd.f32 %v4776, %v4816
  %v4818 = vpop.f32.mrb[0].mxu0
  %v4819 = vadd.f32 %v4778, %v4818
  %v4820 = vpop.f32.mrb[0].mxu0
  %v4821 = vpop.f32.mrb[0].mxu0
  %4822 = vdwg.mxu0
  %4823 = vmatprep.subr.bf16.mxu0 %v3491
  %4824 = vmatpush1.bf16.msra.mxu0 %v3490
  %4825 = vmatprep.subr.bf16.mxu0 %v3496
  %4826 = vmatpush1.bf16.msra.mxu0 %v3495
  %4827 = vmatprep.subr.bf16.mxu0 %v3501
  %4828 = vmatpush1.bf16.msra.mxu0 %v3500
  %4829 = vmatprep.subr.bf16.mxu0 %v3506
  %4830 = vmatpush1.bf16.msra.mxu0 %v3505
  %4831 = vmatprep.subr.bf16.mxu0 %v3511
  %4832 = vmatpush1.bf16.msra.mxu0 %v3510
  %4833 = vmatprep.subr.bf16.mxu0 %v3516
  %4834 = vmatpush1.bf16.msra.mxu0 %v3515
  %4835 = vmatprep.subr.bf16.mxu0 %v3521
  %4836 = vmatpush1.bf16.msra.mxu0 %v3520
  %4837 = vmatprep.subr.bf16.mxu0 %v3526
  %4838 = vmatpush1.bf16.msra.mxu0 %v3525
  %4839 = vmatprep.subr.bf16.mxu0 %v3531
  %4840 = vmatpush1.bf16.msra.mxu0 %v3530
  %4841 = vmatprep.subr.bf16.mxu0 %v3536
  %4842 = vmatpush1.bf16.msra.mxu0 %v3535
  %4843 = vmatprep.subr.bf16.mxu0 %v3541
  %4844 = vmatpush1.bf16.msra.mxu0 %v3540
  %4845 = vmatprep.subr.bf16.mxu0 %v3546
  %4846 = vmatpush1.bf16.msra.mxu0 %v3545
  %4847 = vmatprep.subr.bf16.mxu0 %v3551
  %4848 = vmatpush1.bf16.msra.mxu0 %v3550
  %4849 = vmatprep.subr.bf16.mxu0 %v3556
  %4850 = vmatpush1.bf16.msra.mxu0 %v3555
  %4851 = vmatprep.subr.bf16.mxu0 %v3561
  %4852 = vmatpush1.bf16.msra.mxu0 %v3560
  %4853 = vmatprep.subr.bf16.mxu0 %v3566
  %4854 = vmatpush1.bf16.msra.mxu0 %v3565
  %4855 = vmatprep.mubr.bf16.mxu0 %v863
  %4856 = vmatmul.mubr.bf16.gmra.mrb[0].mxu0 %v862
  %v4857 = vpop.f32.mrb[0].mxu0
  %v4858 = vadd.f32 %v4817, %v4857
  %v4859 = vpop.f32.mrb[0].mxu0
  %v4860 = vadd.f32 %v4819, %v4859
  %v4861 = vpop.f32.mrb[0].mxu0
  %v4862 = vpop.f32.mrb[0].mxu0
  %4863 = vdwg.mxu0
  %4864 = vmatprep.subr.bf16.mxu0 0
  %4865 = vmatpush1.bf16.msra.mxu0 %v2932
  %4866 = vmatprep.subr.bf16.mxu0 0
  %4867 = vmatpush1.bf16.msra.mxu0 %v2937
  %4868 = vmatprep.subr.bf16.mxu0 0
  %4869 = vmatpush1.bf16.msra.mxu0 %v2942
  %4870 = vmatprep.subr.bf16.mxu0 0
  %4871 = vmatpush1.bf16.msra.mxu0 %v2947
  %4872 = vmatprep.subr.bf16.mxu0 0
  %4873 = vmatpush1.bf16.msra.mxu0 %v2952
  %4874 = vmatprep.subr.bf16.mxu0 0
  %4875 = vmatpush1.bf16.msra.mxu0 %v2957
  %4876 = vmatprep.subr.bf16.mxu0 0
  %4877 = vmatpush1.bf16.msra.mxu0 %v2962
  %4878 = vmatprep.subr.bf16.mxu0 0
  %4879 = vmatpush1.bf16.msra.mxu0 %v2967
  %4880 = vmatprep.subr.bf16.mxu0 0
  %4881 = vmatpush1.bf16.msra.mxu0 %v2972
  %4882 = vmatprep.subr.bf16.mxu0 0
  %4883 = vmatpush1.bf16.msra.mxu0 %v2977
  %4884 = vmatprep.subr.bf16.mxu0 0
  %4885 = vmatpush1.bf16.msra.mxu0 %v2982
  %4886 = vmatprep.subr.bf16.mxu0 0
  %4887 = vmatpush1.bf16.msra.mxu0 %v2987
  %4888 = vmatprep.subr.bf16.mxu0 0
  %4889 = vmatpush1.bf16.msra.mxu0 %v2992
  %4890 = vmatprep.subr.bf16.mxu0 0
  %4891 = vmatpush1.bf16.msra.mxu0 %v2997
  %4892 = vmatprep.subr.bf16.mxu0 0
  %4893 = vmatpush1.bf16.msra.mxu0 %v3002
  %4894 = vmatprep.subr.bf16.mxu0 0
  %4895 = vmatpush1.bf16.msra.mxu0 %v3007
  %4896 = vmatprep.mubr.bf16.mxu0 %v849
  %4897 = vmatmul.mubr.bf16.gmra.mrb[0].mxu0 %v848
  %v4898 = vpop.f32.mrb[0].mxu0
  %v4899 = vadd.f32 %v818, %v4898
  %v4900 = vpop.f32.mrb[0].mxu0
  %v4901 = vpop.f32.mrb[0].mxu0
  %v4902 = vpop.f32.mrb[0].mxu0
  %4903 = vdwg.mxu0
  %4904 = vmatprep.subr.bf16.mxu0 0
  %4905 = vmatpush1.bf16.msra.mxu0 %v3012
  %4906 = vmatprep.subr.bf16.mxu0 0
  %4907 = vmatpush1.bf16.msra.mxu0 %v3017
  %4908 = vmatprep.subr.bf16.mxu0 0
  %4909 = vmatpush1.bf16.msra.mxu0 %v3022
  %4910 = vmatprep.subr.bf16.mxu0 0
  %4911 = vmatpush1.bf16.msra.mxu0 %v3027
  %4912 = vmatprep.subr.bf16.mxu0 0
  %4913 = vmatpush1.bf16.msra.mxu0 %v3032
  %4914 = vmatprep.subr.bf16.mxu0 0
  %4915 = vmatpush1.bf16.msra.mxu0 %v3037
  %4916 = vmatprep.subr.bf16.mxu0 0
  %4917 = vmatpush1.bf16.msra.mxu0 %v3042
  %4918 = vmatprep.subr.bf16.mxu0 0
  %4919 = vmatpush1.bf16.msra.mxu0 %v3047
  %4920 = vmatprep.subr.bf16.mxu0 0
  %4921 = vmatpush1.bf16.msra.mxu0 %v3052
  %4922 = vmatprep.subr.bf16.mxu0 0
  %4923 = vmatpush1.bf16.msra.mxu0 %v3057
  %4924 = vmatprep.subr.bf16.mxu0 0
  %4925 = vmatpush1.bf16.msra.mxu0 %v3062
  %4926 = vmatprep.subr.bf16.mxu0 0
  %4927 = vmatpush1.bf16.msra.mxu0 %v3067
  %4928 = vmatprep.subr.bf16.mxu0 0
  %4929 = vmatpush1.bf16.msra.mxu0 %v3072
  %4930 = vmatprep.subr.bf16.mxu0 0
  %4931 = vmatpush1.bf16.msra.mxu0 %v3077
  %4932 = vmatprep.subr.bf16.mxu0 0
  %4933 = vmatpush1.bf16.msra.mxu0 %v3082
  %4934 = vmatprep.subr.bf16.mxu0 0
  %4935 = vmatpush1.bf16.msra.mxu0 %v3087
  %4936 = vmatprep.mubr.bf16.mxu0 %v851
  %4937 = vmatmul.mubr.bf16.gmra.mrb[0].mxu0 %v850
  %v4938 = vpop.f32.mrb[0].mxu0
  %v4939 = vadd.f32 %v4899, %v4938
  %v4940 = vpop.f32.mrb[0].mxu0
  %v4941 = vpop.f32.mrb[0].mxu0
  %v4942 = vpop.f32.mrb[0].mxu0
  %4943 = vdwg.mxu0
  %4944 = vmatprep.subr.bf16.mxu0 0
  %4945 = vmatpush1.bf16.msra.mxu0 %v3092
  %4946 = vmatprep.subr.bf16.mxu0 0
  %4947 = vmatpush1.bf16.msra.mxu0 %v3097
  %4948 = vmatprep.subr.bf16.mxu0 0
  %4949 = vmatpush1.bf16.msra.mxu0 %v3102
  %4950 = vmatprep.subr.bf16.mxu0 0
  %4951 = vmatpush1.bf16.msra.mxu0 %v3107
  %4952 = vmatprep.subr.bf16.mxu0 0
  %4953 = vmatpush1.bf16.msra.mxu0 %v3112
  %4954 = vmatprep.subr.bf16.mxu0 0
  %4955 = vmatpush1.bf16.msra.mxu0 %v3117
  %4956 = vmatprep.subr.bf16.mxu0 0
  %4957 = vmatpush1.bf16.msra.mxu0 %v3122
  %4958 = vmatprep.subr.bf16.mxu0 0
  %4959 = vmatpush1.bf16.msra.mxu0 %v3127
  %4960 = vmatprep.subr.bf16.mxu0 0
  %4961 = vmatpush1.bf16.msra.mxu0 %v3132
  %4962 = vmatprep.subr.bf16.mxu0 0
  %4963 = vmatpush1.bf16.msra.mxu0 %v3137
  %4964 = vmatprep.subr.bf16.mxu0 0
  %4965 = vmatpush1.bf16.msra.mxu0 %v3142
  %4966 = vmatprep.subr.bf16.mxu0 0
  %4967 = vmatpush1.bf16.msra.mxu0 %v3147
  %4968 = vmatprep.subr.bf16.mxu0 0
  %4969 = vmatpush1.bf16.msra.mxu0 %v3152
  %4970 = vmatprep.subr.bf16.mxu0 0
  %4971 = vmatpush1.bf16.msra.mxu0 %v3157
  %4972 = vmatprep.subr.bf16.mxu0 0
  %4973 = vmatpush1.bf16.msra.mxu0 %v3162
  %4974 = vmatprep.subr.bf16.mxu0 0
  %4975 = vmatpush1.bf16.msra.mxu0 %v3167
  %4976 = vmatprep.mubr.bf16.mxu0 %v853
  %4977 = vmatmul.mubr.bf16.gmra.mrb[0].mxu0 %v852
  %v4978 = vpop.f32.mrb[0].mxu0
  %v4979 = vadd.f32 %v4939, %v4978
  %v4980 = vpop.f32.mrb[0].mxu0
  %v4981 = vpop.f32.mrb[0].mxu0
  %v4982 = vpop.f32.mrb[0].mxu0
  %4983 = vdwg.mxu0
  %4984 = vmatprep.subr.bf16.mxu0 0
  %4985 = vmatpush1.bf16.msra.mxu0 %v3172
  %4986 = vmatprep.subr.bf16.mxu0 0
  %4987 = vmatpush1.bf16.msra.mxu0 %v3177
  %4988 = vmatprep.subr.bf16.mxu0 0
  %4989 = vmatpush1.bf16.msra.mxu0 %v3182
  %4990 = vmatprep.subr.bf16.mxu0 0
  %4991 = vmatpush1.bf16.msra.mxu0 %v3187
  %4992 = vmatprep.subr.bf16.mxu0 0
  %4993 = vmatpush1.bf16.msra.mxu0 %v3192
  %4994 = vmatprep.subr.bf16.mxu0 0
  %4995 = vmatpush1.bf16.msra.mxu0 %v3197
  %4996 = vmatprep.subr.bf16.mxu0 0
  %4997 = vmatpush1.bf16.msra.mxu0 %v3202
  %4998 = vmatprep.subr.bf16.mxu0 0
  %4999 = vmatpush1.bf16.msra.mxu0 %v3207
  %5000 = vmatprep.subr.bf16.mxu0 0
  %5001 = vmatpush1.bf16.msra.mxu0 %v3212
  %5002 = vmatprep.subr.bf16.mxu0 0
  %5003 = vmatpush1.bf16.msra.mxu0 %v3217
  %5004 = vmatprep.subr.bf16.mxu0 0
  %5005 = vmatpush1.bf16.msra.mxu0 %v3222
  %5006 = vmatprep.subr.bf16.mxu0 0
  %5007 = vmatpush1.bf16.msra.mxu0 %v3227
  %5008 = vmatprep.subr.bf16.mxu0 0
  %5009 = vmatpush1.bf16.msra.mxu0 %v3232
  %5010 = vmatprep.subr.bf16.mxu0 0
  %5011 = vmatpush1.bf16.msra.mxu0 %v3237
  %5012 = vmatprep.subr.bf16.mxu0 0
  %5013 = vmatpush1.bf16.msra.mxu0 %v3242
  %5014 = vmatprep.subr.bf16.mxu0 0
  %5015 = vmatpush1.bf16.msra.mxu0 %v3247
  %5016 = vmatprep.mubr.bf16.mxu0 %v855
  %5017 = vmatmul.mubr.bf16.gmra.mrb[0].mxu0 %v854
  %v5018 = vpop.f32.mrb[0].mxu0
  %v5019 = vadd.f32 %v4979, %v5018
  %v5020 = vpop.f32.mrb[0].mxu0
  %v5021 = vpop.f32.mrb[0].mxu0
  %v5022 = vpop.f32.mrb[0].mxu0
  %5023 = vdwg.mxu0
  %5024 = vmatprep.subr.bf16.mxu0 0
  %5025 = vmatpush1.bf16.msra.mxu0 %v3252
  %5026 = vmatprep.subr.bf16.mxu0 0
  %5027 = vmatpush1.bf16.msra.mxu0 %v3257
  %5028 = vmatprep.subr.bf16.mxu0 0
  %5029 = vmatpush1.bf16.msra.mxu0 %v3262
  %5030 = vmatprep.subr.bf16.mxu0 0
  %5031 = vmatpush1.bf16.msra.mxu0 %v3267
  %5032 = vmatprep.subr.bf16.mxu0 0
  %5033 = vmatpush1.bf16.msra.mxu0 %v3272
  %5034 = vmatprep.subr.bf16.mxu0 0
  %5035 = vmatpush1.bf16.msra.mxu0 %v3277
  %5036 = vmatprep.subr.bf16.mxu0 0
  %5037 = vmatpush1.bf16.msra.mxu0 %v3282
  %5038 = vmatprep.subr.bf16.mxu0 0
  %5039 = vmatpush1.bf16.msra.mxu0 %v3287
  %5040 = vmatprep.subr.bf16.mxu0 0
  %5041 = vmatpush1.bf16.msra.mxu0 %v3292
  %5042 = vmatprep.subr.bf16.mxu0 0
  %5043 = vmatpush1.bf16.msra.mxu0 %v3297
  %5044 = vmatprep.subr.bf16.mxu0 0
  %5045 = vmatpush1.bf16.msra.mxu0 %v3302
  %5046 = vmatprep.subr.bf16.mxu0 0
  %5047 = vmatpush1.bf16.msra.mxu0 %v3307
  %5048 = vmatprep.subr.bf16.mxu0 0
  %5049 = vmatpush1.bf16.msra.mxu0 %v3312
  %5050 = vmatprep.subr.bf16.mxu0 0
  %5051 = vmatpush1.bf16.msra.mxu0 %v3317
  %5052 = vmatprep.subr.bf16.mxu0 0
  %5053 = vmatpush1.bf16.msra.mxu0 %v3322
  %5054 = vmatprep.subr.bf16.mxu0 0
  %5055 = vmatpush1.bf16.msra.mxu0 %v3327
  %5056 = vmatprep.mubr.bf16.mxu0 %v857
  %5057 = vmatmul.mubr.bf16.gmra.mrb[0].mxu0 %v856
  %v5058 = vpop.f32.mrb[0].mxu0
  %v5059 = vadd.f32 %v5019, %v5058
  %v5060 = vpop.f32.mrb[0].mxu0
  %v5061 = vpop.f32.mrb[0].mxu0
  %v5062 = vpop.f32.mrb[0].mxu0
  %5063 = vdwg.mxu0
  %5064 = vmatprep.subr.bf16.mxu0 0
  %5065 = vmatpush1.bf16.msra.mxu0 %v3332
  %5066 = vmatprep.subr.bf16.mxu0 0
  %5067 = vmatpush1.bf16.msra.mxu0 %v3337
  %5068 = vmatprep.subr.bf16.mxu0 0
  %5069 = vmatpush1.bf16.msra.mxu0 %v3342
  %5070 = vmatprep.subr.bf16.mxu0 0
  %5071 = vmatpush1.bf16.msra.mxu0 %v3347
  %5072 = vmatprep.subr.bf16.mxu0 0
  %5073 = vmatpush1.bf16.msra.mxu0 %v3352
  %5074 = vmatprep.subr.bf16.mxu0 0
  %5075 = vmatpush1.bf16.msra.mxu0 %v3357
  %5076 = vmatprep.subr.bf16.mxu0 0
  %5077 = vmatpush1.bf16.msra.mxu0 %v3362
  %5078 = vmatprep.subr.bf16.mxu0 0
  %5079 = vmatpush1.bf16.msra.mxu0 %v3367
  %5080 = vmatprep.subr.bf16.mxu0 0
  %5081 = vmatpush1.bf16.msra.mxu0 %v3372
  %5082 = vmatprep.subr.bf16.mxu0 0
  %5083 = vmatpush1.bf16.msra.mxu0 %v3377
  %5084 = vmatprep.subr.bf16.mxu0 0
  %5085 = vmatpush1.bf16.msra.mxu0 %v3382
  %5086 = vmatprep.subr.bf16.mxu0 0
  %5087 = vmatpush1.bf16.msra.mxu0 %v3387
  %5088 = vmatprep.subr.bf16.mxu0 0
  %5089 = vmatpush1.bf16.msra.mxu0 %v3392
  %5090 = vmatprep.subr.bf16.mxu0 0
  %5091 = vmatpush1.bf16.msra.mxu0 %v3397
  %5092 = vmatprep.subr.bf16.mxu0 0
  %5093 = vmatpush1.bf16.msra.mxu0 %v3402
  %5094 = vmatprep.subr.bf16.mxu0 0
  %5095 = vmatpush1.bf16.msra.mxu0 %v3407
  %5096 = vmatprep.mubr.bf16.mxu0 %v859
  %5097 = vmatmul.mubr.bf16.gmra.mrb[0].mxu0 %v858
  %v5098 = vpop.f32.mrb[0].mxu0
  %v5099 = vadd.f32 %v5059, %v5098
  %v5100 = vpop.f32.mrb[0].mxu0
  %v5101 = vpop.f32.mrb[0].mxu0
  %v5102 = vpop.f32.mrb[0].mxu0
  %5103 = vdwg.mxu0
  %5104 = vmatprep.subr.bf16.mxu0 0
  %5105 = vmatpush1.bf16.msra.mxu0 %v3412
  %5106 = vmatprep.subr.bf16.mxu0 0
  %5107 = vmatpush1.bf16.msra.mxu0 %v3417
  %5108 = vmatprep.subr.bf16.mxu0 0
  %5109 = vmatpush1.bf16.msra.mxu0 %v3422
  %5110 = vmatprep.subr.bf16.mxu0 0
  %5111 = vmatpush1.bf16.msra.mxu0 %v3427
  %5112 = vmatprep.subr.bf16.mxu0 0
  %5113 = vmatpush1.bf16.msra.mxu0 %v3432
  %5114 = vmatprep.subr.bf16.mxu0 0
  %5115 = vmatpush1.bf16.msra.mxu0 %v3437
  %5116 = vmatprep.subr.bf16.mxu0 0
  %5117 = vmatpush1.bf16.msra.mxu0 %v3442
  %5118 = vmatprep.subr.bf16.mxu0 0
  %5119 = vmatpush1.bf16.msra.mxu0 %v3447
  %5120 = vmatprep.subr.bf16.mxu0 0
  %5121 = vmatpush1.bf16.msra.mxu0 %v3452
  %5122 = vmatprep.subr.bf16.mxu0 0
  %5123 = vmatpush1.bf16.msra.mxu0 %v3457
  %5124 = vmatprep.subr.bf16.mxu0 0
  %5125 = vmatpush1.bf16.msra.mxu0 %v3462
  %5126 = vmatprep.subr.bf16.mxu0 0
  %5127 = vmatpush1.bf16.msra.mxu0 %v3467
  %5128 = vmatprep.subr.bf16.mxu0 0
  %5129 = vmatpush1.bf16.msra.mxu0 %v3472
  %5130 = vmatprep.subr.bf16.mxu0 0
  %5131 = vmatpush1.bf16.msra.mxu0 %v3477
  %5132 = vmatprep.subr.bf16.mxu0 0
  %5133 = vmatpush1.bf16.msra.mxu0 %v3482
  %5134 = vmatprep.subr.bf16.mxu0 0
  %5135 = vmatpush1.bf16.msra.mxu0 %v3487
  %5136 = vmatprep.mubr.bf16.mxu0 %v861
  %5137 = vmatmul.mubr.bf16.gmra.mrb[0].mxu0 %v860
  %v5138 = vpop.f32.mrb[0].mxu0
  %v5139 = vadd.f32 %v5099, %v5138
  %v5140 = vpop.f32.mrb[0].mxu0
  %v5141 = vpop.f32.mrb[0].mxu0
  %v5142 = vpop.f32.mrb[0].mxu0
  %5143 = vdwg.mxu0
  %5144 = vmatprep.subr.bf16.mxu0 0
  %5145 = vmatpush1.bf16.msra.mxu0 %v3492
  %5146 = vmatprep.subr.bf16.mxu0 0
  %5147 = vmatpush1.bf16.msra.mxu0 %v3497
  %5148 = vmatprep.subr.bf16.mxu0 0
  %5149 = vmatpush1.bf16.msra.mxu0 %v3502
  %5150 = vmatprep.subr.bf16.mxu0 0
  %5151 = vmatpush1.bf16.msra.mxu0 %v3507
  %5152 = vmatprep.subr.bf16.mxu0 0
  %5153 = vmatpush1.bf16.msra.mxu0 %v3512
  %5154 = vmatprep.subr.bf16.mxu0 0
  %5155 = vmatpush1.bf16.msra.mxu0 %v3517
  %5156 = vmatprep.subr.bf16.mxu0 0
  %5157 = vmatpush1.bf16.msra.mxu0 %v3522
  %5158 = vmatprep.subr.bf16.mxu0 0
  %5159 = vmatpush1.bf16.msra.mxu0 %v3527
  %5160 = vmatprep.subr.bf16.mxu0 0
  %5161 = vmatpush1.bf16.msra.mxu0 %v3532
  %5162 = vmatprep.subr.bf16.mxu0 0
  %5163 = vmatpush1.bf16.msra.mxu0 %v3537
  %5164 = vmatprep.subr.bf16.mxu0 0
  %5165 = vmatpush1.bf16.msra.mxu0 %v3542
  %5166 = vmatprep.subr.bf16.mxu0 0
  %5167 = vmatpush1.bf16.msra.mxu0 %v3547
  %5168 = vmatprep.subr.bf16.mxu0 0
  %5169 = vmatpush1.bf16.msra.mxu0 %v3552
  %5170 = vmatprep.subr.bf16.mxu0 0
  %5171 = vmatpush1.bf16.msra.mxu0 %v3557
  %5172 = vmatprep.subr.bf16.mxu0 0
  %5173 = vmatpush1.bf16.msra.mxu0 %v3562
  %5174 = vmatprep.subr.bf16.mxu0 0
  %5175 = vmatpush1.bf16.msra.mxu0 %v3567
  %5176 = vmatprep.mubr.bf16.mxu0 %v863
  %5177 = vmatmul.mubr.bf16.gmra.mrb[0].mxu0 %v862
  %v5178 = vpop.f32.mrb[0].mxu0
  %v5179 = vadd.f32 %v5139, %v5178
  %v5180 = vpop.f32.mrb[0].mxu0
  %v5181 = vpop.f32.mrb[0].mxu0
  %v5182 = vpop.f32.mrb[0].mxu0
  %5183 = vdwg.mxu0
  %v5184 = vmax.f32 %v4530, 0.0
  %v5185 = vmax.f32 %v4532, 0.0
  %v5186 = vmax.f32 %v4858, 0.0
  %v5187 = vmax.f32 %v4860, 0.0
  %v5188 = vmax.f32 %v5179, 0.0
  %v5189 = vpack.c.bf16 %v5184, %v5184
  %v5190 = vpack.c.bf16 %v5185, %v5185
  %v5191 = vpack.c.bf16 %v5186, %v5186
  %v5192 = vpack.c.bf16 %v5187, %v5187
  %v5193 = vpack.c.bf16 %v5188, %v5188
  %v5194 = vld [vmem:[%s3] sm:$0xf]
  %v5195 = vld [vmem:[%s3 + $0x4] sm:$0xf]
  %v5196 = vld [vmem:[%s3 + $0x8] sm:$0xf]
  %v5197 = vld [vmem:[%s3 + $0xc] sm:$0xf]
  %v5198 = vld [vmem:[%s3 + $0x10] sm:$0xf]
  %v5199 = vld [vmem:[%s3 + $0x14] sm:$0xf]
  %v5200 = vld [vmem:[%s3 + $0x18] sm:$0xf]
  %v5201 = vld [vmem:[%s3 + $0x1c] sm:$0xf]
  %v5202 = vld [vmem:[%s3 + $0x20] sm:$0xf]
  %v5203 = vld [vmem:[%s3 + $0x24] sm:$0xf]
  %v5204 = vld [vmem:[%s3 + $0x28] sm:$0xf]
  %v5205 = vld [vmem:[%s3 + $0x2c] sm:$0xf]
  %v5206 = vld [vmem:[%s3 + $0x30] sm:$0xf]
  %v5207 = vld [vmem:[%s3 + $0x34] sm:$0xf]
  %v5208 = vld [vmem:[%s3 + $0x38] sm:$0xf]
  %v5209 = vld [vmem:[%s3 + $0x3c] sm:$0xf]
  %v5210 = vld [vmem:[%s3 + $0x40] sm:$0xf]
  %v5211 = vld [vmem:[%s3 + $0x44] sm:$0xf]
  %v5212 = vld [vmem:[%s3 + $0x48] sm:$0xf]
  %v5213 = vld [vmem:[%s3 + $0x4c] sm:$0xf]
  %v5214 = vld [vmem:[%s3 + $0x50] sm:$0xf]
  %v5215 = vld [vmem:[%s3 + $0x54] sm:$0xf]
  %v5216 = vld [vmem:[%s3 + $0x58] sm:$0xf]
  %v5217 = vld [vmem:[%s3 + $0x5c] sm:$0xf]
  %v5218 = vld [vmem:[%s3 + $0x60] sm:$0xf]
  %v5219 = vld [vmem:[%s3 + $0x64] sm:$0xf]
  %v5220 = vld [vmem:[%s3 + $0x68] sm:$0xf]
  %v5221 = vld [vmem:[%s3 + $0x6c] sm:$0xf]
  %v5222 = vld [vmem:[%s3 + $0x70] sm:$0xf]
  %v5223 = vld [vmem:[%s3 + $0x74] sm:$0xf]
  %v5224 = vld [vmem:[%s3 + $0x78] sm:$0xf]
  %v5225 = vld [vmem:[%s3 + $0x7c] sm:$0xf]
  %v5226 = vld [vmem:[%s3 + $0x80] sm:$0xf]
  %v5227 = vld [vmem:[%s3 + $0x84] sm:$0xf]
  %v5228 = vld [vmem:[%s3 + $0x88] sm:$0xf]
  %v5229 = vld [vmem:[%s3 + $0x8c] sm:$0xf]
  %v5230 = vld [vmem:[%s3 + $0x90] sm:$0xf]
  %v5231 = vld [vmem:[%s3 + $0x94] sm:$0xf]
  %v5232 = vld [vmem:[%s3 + $0x98] sm:$0xf]
  %v5233 = vld [vmem:[%s3 + $0x9c] sm:$0xf]
  %v5234 = vld [vmem:[%s3 + $0xa0] sm:$0xf]
  %v5235 = vld [vmem:[%s3 + $0xa4] sm:$0xf]
  %v5236 = vld [vmem:[%s3 + $0xa8] sm:$0xf]
  %v5237 = vld [vmem:[%s3 + $0xac] sm:$0xf]
  %v5238 = vld [vmem:[%s3 + $0xb0] sm:$0xf]
  %v5239 = vld [vmem:[%s3 + $0xb4] sm:$0xf]
  %v5240 = vld [vmem:[%s3 + $0xb8] sm:$0xf]
  %v5241 = vld [vmem:[%s3 + $0xbc] sm:$0xf]
  %v5242 = vld [vmem:[%s3 + $0xc0] sm:$0xf]
  %v5243 = vld [vmem:[%s3 + $0xc4] sm:$0xf]
  %v5244 = vld [vmem:[%s3 + $0xc8] sm:$0xf]
  %v5245 = vld [vmem:[%s3 + $0xcc] sm:$0xf]
  %v5246 = vld [vmem:[%s3 + $0xd0] sm:$0xf]
  %v5247 = vld [vmem:[%s3 + $0xd4] sm:$0xf]
  %v5248 = vld [vmem:[%s3 + $0xd8] sm:$0xf]
  %v5249 = vld [vmem:[%s3 + $0xdc] sm:$0xf]
  %v5250 = vld [vmem:[%s3 + $0xe0] sm:$0xf]
  %v5251 = vld [vmem:[%s3 + $0xe4] sm:$0xf]
  %v5252 = vld [vmem:[%s3 + $0xe8] sm:$0xf]
  %v5253 = vld [vmem:[%s3 + $0xec] sm:$0xf]
  %v5254 = vld [vmem:[%s3 + $0xf0] sm:$0xf]
  %v5255 = vld [vmem:[%s3 + $0xf4] sm:$0xf]
  %v5256 = vld [vmem:[%s3 + $0xf8] sm:$0xf]
  %v5257 = vld [vmem:[%s3 + $0xfc] sm:$0xf]
  %v5258 = vld [vmem:[%s3 + $0x100] sm:$0xf]
  %v5259 = vld [vmem:[%s3 + $0x104] sm:$0xf]
  %v5260 = vld [vmem:[%s3 + $0x108] sm:$0xf]
  %v5261 = vld [vmem:[%s3 + $0x10c] sm:$0xf]
  %v5262 = vld [vmem:[%s3 + $0x110] sm:$0xf]
  %v5263 = vld [vmem:[%s3 + $0x114] sm:$0xf]
  %v5264 = vld [vmem:[%s3 + $0x118] sm:$0xf]
  %v5265 = vld [vmem:[%s3 + $0x11c] sm:$0xf]
  %v5266 = vld [vmem:[%s3 + $0x120] sm:$0xf]
  %v5267 = vld [vmem:[%s3 + $0x124] sm:$0xf]
  %v5268 = vld [vmem:[%s3 + $0x128] sm:$0xf]
  %v5269 = vld [vmem:[%s3 + $0x12c] sm:$0xf]
  %v5270 = vld [vmem:[%s3 + $0x130] sm:$0xf]
  %v5271 = vld [vmem:[%s3 + $0x134] sm:$0xf]
  %v5272 = vld [vmem:[%s3 + $0x138] sm:$0xf]
  %v5273 = vld [vmem:[%s3 + $0x13c] sm:$0xf]
  %v5274 = vld [vmem:[%s4] sm:$0x1]
  %v5276 = vlaneseq
  %v5277 = vshrl.u32 %v5276, 7
  %v5278 = vsub.s32 0, %v5277
  %v5279 = vrot.slane %v5274, %v5278
  %v5361 = vunpack.c.l.b16 %v5194
  %v5362 = vunpack.c.l.b16 %v5195
  %v5363 = vunpack.c.l.b16 %v5196
  %v5364 = vunpack.c.l.b16 %v5197
  %v5365 = vunpack.c.l.b16 %v5198
  %v5366 = vunpack.c.l.b16 %v5199
  %v5367 = vunpack.c.l.b16 %v5200
  %v5368 = vunpack.c.l.b16 %v5201
  %v5369 = vunpack.c.l.b16 %v5202
  %v5370 = vunpack.c.l.b16 %v5203
  %v5371 = vunpack.c.l.b16 %v5204
  %v5372 = vunpack.c.l.b16 %v5205
  %v5373 = vunpack.c.l.b16 %v5206
  %v5374 = vunpack.c.l.b16 %v5207
  %v5375 = vunpack.c.l.b16 %v5208
  %v5376 = vunpack.c.l.b16 %v5209
  %v5377 = vunpack.c.l.b16 %v5210
  %v5378 = vunpack.c.l.b16 %v5211
  %v5379 = vunpack.c.l.b16 %v5212
  %v5380 = vunpack.c.l.b16 %v5213
  %v5381 = vunpack.c.l.b16 %v5214
  %v5382 = vunpack.c.l.b16 %v5215
  %v5383 = vunpack.c.l.b16 %v5216
  %v5384 = vunpack.c.l.b16 %v5217
  %v5385 = vunpack.c.l.b16 %v5218
  %v5386 = vunpack.c.l.b16 %v5219
  %v5387 = vunpack.c.l.b16 %v5220
  %v5388 = vunpack.c.l.b16 %v5221
  %v5389 = vunpack.c.l.b16 %v5222
  %v5390 = vunpack.c.l.b16 %v5223
  %v5391 = vunpack.c.l.b16 %v5224
  %v5392 = vunpack.c.l.b16 %v5225
  %v5393 = vunpack.c.l.b16 %v5226
  %v5394 = vunpack.c.l.b16 %v5227
  %v5395 = vunpack.c.l.b16 %v5228
  %v5396 = vunpack.c.l.b16 %v5229
  %v5397 = vunpack.c.l.b16 %v5230
  %v5398 = vunpack.c.l.b16 %v5231
  %v5399 = vunpack.c.l.b16 %v5232
  %v5400 = vunpack.c.l.b16 %v5233
  %v5401 = vunpack.c.l.b16 %v5234
  %v5402 = vunpack.c.l.b16 %v5235
  %v5403 = vunpack.c.l.b16 %v5236
  %v5404 = vunpack.c.l.b16 %v5237
  %v5405 = vunpack.c.l.b16 %v5238
  %v5406 = vunpack.c.l.b16 %v5239
  %v5407 = vunpack.c.l.b16 %v5240
  %v5408 = vunpack.c.l.b16 %v5241
  %v5409 = vunpack.c.l.b16 %v5242
  %v5410 = vunpack.c.l.b16 %v5243
  %v5411 = vunpack.c.l.b16 %v5244
  %v5412 = vunpack.c.l.b16 %v5245
  %v5413 = vunpack.c.l.b16 %v5246
  %v5414 = vunpack.c.l.b16 %v5247
  %v5415 = vunpack.c.l.b16 %v5248
  %v5416 = vunpack.c.l.b16 %v5249
  %v5417 = vunpack.c.l.b16 %v5250
  %v5418 = vunpack.c.l.b16 %v5251
  %v5419 = vunpack.c.l.b16 %v5252
  %v5420 = vunpack.c.l.b16 %v5253
  %v5421 = vunpack.c.l.b16 %v5254
  %v5422 = vunpack.c.l.b16 %v5255
  %v5423 = vunpack.c.l.b16 %v5256
  %v5424 = vunpack.c.l.b16 %v5257
  %v5425 = vunpack.c.l.b16 %v5258
  %v5426 = vunpack.c.l.b16 %v5259
  %v5427 = vunpack.c.l.b16 %v5260
  %v5428 = vunpack.c.l.b16 %v5261
  %v5429 = vunpack.c.l.b16 %v5262
  %v5430 = vunpack.c.l.b16 %v5263
  %v5431 = vunpack.c.l.b16 %v5264
  %v5432 = vunpack.c.l.b16 %v5265
  %v5433 = vunpack.c.l.b16 %v5266
  %v5434 = vunpack.c.l.b16 %v5267
  %v5435 = vunpack.c.l.b16 %v5268
  %v5436 = vunpack.c.l.b16 %v5269
  %v5437 = vunpack.c.l.b16 %v5270
  %v5438 = vunpack.c.l.b16 %v5271
  %v5439 = vunpack.c.l.b16 %v5272
  %v5440 = vunpack.c.l.b16 %v5273
  %v5441 = vpack.c.b16 %v5362, %v5361
  %v5442 = vpack.c.b16 %v5364, %v5363
  %v5443 = vpack.c.b16 %v5366, %v5365
  %v5444 = vpack.c.b16 %v5368, %v5367
  %v5445 = vpack.c.b16 %v5370, %v5369
  %v5446 = vpack.c.b16 %v5372, %v5371
  %v5447 = vpack.c.b16 %v5374, %v5373
  %v5448 = vpack.c.b16 %v5376, %v5375
  %v5449 = vpack.c.b16 %v5378, %v5377
  %v5450 = vpack.c.b16 %v5380, %v5379
  %v5451 = vpack.c.b16 %v5382, %v5381
  %v5452 = vpack.c.b16 %v5384, %v5383
  %v5453 = vpack.c.b16 %v5386, %v5385
  %v5454 = vpack.c.b16 %v5388, %v5387
  %v5455 = vpack.c.b16 %v5390, %v5389
  %v5456 = vpack.c.b16 %v5392, %v5391
  %v5457 = vpack.c.b16 %v5394, %v5393
  %v5458 = vpack.c.b16 %v5396, %v5395
  %v5459 = vpack.c.b16 %v5398, %v5397
  %v5460 = vpack.c.b16 %v5400, %v5399
  %v5461 = vpack.c.b16 %v5402, %v5401
  %v5462 = vpack.c.b16 %v5404, %v5403
  %v5463 = vpack.c.b16 %v5406, %v5405
  %v5464 = vpack.c.b16 %v5408, %v5407
  %v5465 = vpack.c.b16 %v5410, %v5409
  %v5466 = vpack.c.b16 %v5412, %v5411
  %v5467 = vpack.c.b16 %v5414, %v5413
  %v5468 = vpack.c.b16 %v5416, %v5415
  %v5469 = vpack.c.b16 %v5418, %v5417
  %v5470 = vpack.c.b16 %v5420, %v5419
  %v5471 = vpack.c.b16 %v5422, %v5421
  %v5472 = vpack.c.b16 %v5424, %v5423
  %v5473 = vpack.c.b16 %v5426, %v5425
  %v5474 = vpack.c.b16 %v5428, %v5427
  %v5475 = vpack.c.b16 %v5430, %v5429
  %v5476 = vpack.c.b16 %v5432, %v5431
  %v5477 = vpack.c.b16 %v5434, %v5433
  %v5478 = vpack.c.b16 %v5436, %v5435
  %v5479 = vpack.c.b16 %v5438, %v5437
  %v5480 = vpack.c.b16 %v5440, %v5439
  %5521 = vmatprep.subr.bf16.mxu0 0
  %5522 = vmatpush1.bf16.msra.mxu0 %v5441
  %5523 = vmatprep.subr.bf16.mxu0 0
  %5524 = vmatpush1.bf16.msra.mxu0 %v5442
  %5525 = vmatprep.subr.bf16.mxu0 0
  %5526 = vmatpush1.bf16.msra.mxu0 %v5443
  %5527 = vmatprep.subr.bf16.mxu0 0
  %5528 = vmatpush1.bf16.msra.mxu0 %v5444
  %5529 = vmatprep.subr.bf16.mxu0 0
  %5530 = vmatpush1.bf16.msra.mxu0 %v5445
  %5531 = vmatprep.subr.bf16.mxu0 0
  %5532 = vmatpush1.bf16.msra.mxu0 %v5446
  %5533 = vmatprep.subr.bf16.mxu0 0
  %5534 = vmatpush1.bf16.msra.mxu0 %v5447
  %5535 = vmatprep.subr.bf16.mxu0 0
  %5536 = vmatpush1.bf16.msra.mxu0 %v5448
  %5537 = vmatprep.subr.bf16.mxu0 0
  %5538 = vmatpush1.bf16.msra.mxu0 %v5449
  %5539 = vmatprep.subr.bf16.mxu0 0
  %5540 = vmatpush1.bf16.msra.mxu0 %v5450
  %5541 = vmatprep.subr.bf16.mxu0 0
  %5542 = vmatpush1.bf16.msra.mxu0 %v5451
  %5543 = vmatprep.subr.bf16.mxu0 0
  %5544 = vmatpush1.bf16.msra.mxu0 %v5452
  %5545 = vmatprep.subr.bf16.mxu0 0
  %5546 = vmatpush1.bf16.msra.mxu0 %v5453
  %5547 = vmatprep.subr.bf16.mxu0 0
  %5548 = vmatpush1.bf16.msra.mxu0 %v5454
  %5549 = vmatprep.subr.bf16.mxu0 0
  %5550 = vmatpush1.bf16.msra.mxu0 %v5455
  %5551 = vmatprep.subr.bf16.mxu0 0
  %5552 = vmatpush1.bf16.msra.mxu0 %v5456
  %5553 = vmatprep.mubr.bf16.mxu0 %v5190
  %5554 = vmatmul.mubr.bf16.gmra.mrb[0].mxu0 %v5189
  %v5555 = vpop.f32.mrb[0].mxu0
  %v5556 = vadd.f32 %v5279, %v5555
  %v5557 = vpop.f32.mrb[0].mxu0
  %v5558 = vpop.f32.mrb[0].mxu0
  %v5559 = vpop.f32.mrb[0].mxu0
  %5560 = vdwg.mxu0
  %5561 = vmatprep.subr.bf16.mxu0 0
  %5562 = vmatpush1.bf16.msra.mxu0 %v5457
  %5563 = vmatprep.subr.bf16.mxu0 0
  %5564 = vmatpush1.bf16.msra.mxu0 %v5458
  %5565 = vmatprep.subr.bf16.mxu0 0
  %5566 = vmatpush1.bf16.msra.mxu0 %v5459
  %5567 = vmatprep.subr.bf16.mxu0 0
  %5568 = vmatpush1.bf16.msra.mxu0 %v5460
  %5569 = vmatprep.subr.bf16.mxu0 0
  %5570 = vmatpush1.bf16.msra.mxu0 %v5461
  %5571 = vmatprep.subr.bf16.mxu0 0
  %5572 = vmatpush1.bf16.msra.mxu0 %v5462
  %5573 = vmatprep.subr.bf16.mxu0 0
  %5574 = vmatpush1.bf16.msra.mxu0 %v5463
  %5575 = vmatprep.subr.bf16.mxu0 0
  %5576 = vmatpush1.bf16.msra.mxu0 %v5464
  %5577 = vmatprep.subr.bf16.mxu0 0
  %5578 = vmatpush1.bf16.msra.mxu0 %v5465
  %5579 = vmatprep.subr.bf16.mxu0 0
  %5580 = vmatpush1.bf16.msra.mxu0 %v5466
  %5581 = vmatprep.subr.bf16.mxu0 0
  %5582 = vmatpush1.bf16.msra.mxu0 %v5467
  %5583 = vmatprep.subr.bf16.mxu0 0
  %5584 = vmatpush1.bf16.msra.mxu0 %v5468
  %5585 = vmatprep.subr.bf16.mxu0 0
  %5586 = vmatpush1.bf16.msra.mxu0 %v5469
  %5587 = vmatprep.subr.bf16.mxu0 0
  %5588 = vmatpush1.bf16.msra.mxu0 %v5470
  %5589 = vmatprep.subr.bf16.mxu0 0
  %5590 = vmatpush1.bf16.msra.mxu0 %v5471
  %5591 = vmatprep.subr.bf16.mxu0 0
  %5592 = vmatpush1.bf16.msra.mxu0 %v5472
  %5593 = vmatprep.mubr.bf16.mxu0 %v5192
  %5594 = vmatmul.mubr.bf16.gmra.mrb[0].mxu0 %v5191
  %v5595 = vpop.f32.mrb[0].mxu0
  %v5596 = vadd.f32 %v5556, %v5595
  %v5597 = vpop.f32.mrb[0].mxu0
  %v5598 = vpop.f32.mrb[0].mxu0
  %v5599 = vpop.f32.mrb[0].mxu0
  %5600 = vdwg.mxu0
  %5601 = vmatprep.subr.bf16.mxu0 0
  %5602 = vmatpush1.bf16.msra.mxu0 %v5473
  %5603 = vmatprep.subr.bf16.mxu0 0
  %5604 = vmatpush1.bf16.msra.mxu0 %v5474
  %5605 = vmatprep.subr.bf16.mxu0 0
  %5606 = vmatpush1.bf16.msra.mxu0 %v5475
  %5607 = vmatprep.subr.bf16.mxu0 0
  %5608 = vmatpush1.bf16.msra.mxu0 %v5476
  %5609 = vmatprep.subr.bf16.mxu0 0
  %5610 = vmatpush1.bf16.msra.mxu0 %v5477
  %5611 = vmatprep.subr.bf16.mxu0 0
  %5612 = vmatpush1.bf16.msra.mxu0 %v5478
  %5613 = vmatprep.subr.bf16.mxu0 0
  %5614 = vmatpush1.bf16.msra.mxu0 %v5479
  %5615 = vmatprep.subr.bf16.mxu0 0
  %5616 = vmatpush1.bf16.msra.mxu0 %v5480
  %5617 = vmatprep.subr.bf16.mxu0 0
  %5618 = vmatpush1.bf16.msra.mxu0 0
  %5619 = vmatprep.subr.bf16.mxu0 0
  %5620 = vmatpush1.bf16.msra.mxu0 0
  %5621 = vmatprep.subr.bf16.mxu0 0
  %5622 = vmatpush1.bf16.msra.mxu0 0
  %5623 = vmatprep.subr.bf16.mxu0 0
  %5624 = vmatpush1.bf16.msra.mxu0 0
  %5625 = vmatprep.subr.bf16.mxu0 0
  %5626 = vmatpush1.bf16.msra.mxu0 0
  %5627 = vmatprep.subr.bf16.mxu0 0
  %5628 = vmatpush1.bf16.msra.mxu0 0
  %5629 = vmatprep.subr.bf16.mxu0 0
  %5630 = vmatpush1.bf16.msra.mxu0 0
  %5631 = vmatprep.subr.bf16.mxu0 0
  %5632 = vmatpush1.bf16.msra.mxu0 0
  %5633 = vmatprep.mubr.bf16.mxu0 0
  %5634 = vmatmul.mubr.bf16.gmra.mrb[0].mxu0 %v5193
  %v5635 = vpop.f32.mrb[0].mxu0
  %v5636 = vadd.f32 %v5596, %v5635
  %v5637 = vpop.f32.mrb[0].mxu0
  %v5638 = vpop.f32.mrb[0].mxu0
  %v5639 = vpop.f32.mrb[0].mxu0
  %5640 = vdwg.mxu0
  %5641 = vst [vmem:[%s5] sm:$0xff] %v5636
  // Predicated region
  $region22: #{cnn_forward.3} parent=0 // pred_check
    _
  $region23: #{cnn_forward.3} parent=0 // pred_check_branch
    %5643 = sbr.rel (0) target = $region25
  $region24: #{cnn_forward.3} parent=0 // pred_region
    _
  $region25: #{cnn_forward.3} parent=0 // pred_fallthru
    _
  // Predicated region
  $region26: #{cnn_forward.3} parent=0 // pred_check
    _
  $region27: #{cnn_forward.3} parent=0 // pred_check_branch
    %5645 = sbr.rel (0) target = $region29
  $region28: #{cnn_forward.3} parent=0 // pred_region
    _
  $region29: #{cnn_forward.3} parent=0 // pred_fallthru
    _

// kernel: cnn_forward.2
$region0: #{cnn_forward.2}
  #allocation0 [shape = 'u32[]', space=smem, size = 0x4, offset = 0x4, fixed_abs, tag = 'smem constant byte address 0x4 - core index']
  #allocation1 [shape = 'u32[144,128]{1,0:T(1,128)}', space=vmem, size = 0x12000, scoped, tag = 'internal scratch']
  #allocation2 [shape = 'bf16[1,14,14,32]{3,2,1,0:T(8,128)(2,1)}', space=vmem, size = 0xe000, scoped, tag = 'scratch operand']
  #allocation3 [shape = 'bf16[1,7,7,64]{3,2,1,0:T(8,128)(2,1)}', space=vmem, size = 0x3800, scoped, tag = 'scratch operand']
  #allocation4 [shape = 'bf16[1,16,18,32]{3,2,1,0:T(8,128)(2,1)}', space=vmem, size = 0x18000, scoped, tag = 'scratch operand']
  #allocation5 [shape = 'bf16[1,9,10,64]{3,2,1,0:T(8,128)(2,1)}', space=vmem, size = 0x9000, scoped, tag = 'scratch operand']
  %s0 = inlined_call_operand.vmem [shape: bf16[2,28,32,9], index: 0, kind: input, shape index: {}]
  %s1 = inlined_call_operand.vmem [shape: bf16[9,32], index: 1, kind: input, shape index: {}]
  %s2 = inlined_call_operand.vmem [shape: f32[1,32], index: 2, kind: input, shape index: {}]
  %s3 = inlined_call_operand.vmem [shape: bf16[288,64], index: 3, kind: input, shape index: {}]
  %s4 = inlined_call_operand.vmem [shape: f32[1,64], index: 4, kind: input, shape index: {}]
  %s5 = inlined_call_operand.vmem [shape: bf16[576,128], index: 5, kind: input, shape index: {}]
  %s6 = inlined_call_operand.vmem [shape: f32[1,128], index: 6, kind: input, shape index: {}]
  %s7 = inlined_call_operand.vmem [shape: bf16[2,4,4,128], index: 7, kind: output, shape index: {}]
  %s8 = sld [smem:[#allocation0]]
  $region61: #{cnn_forward.2} parent=0
    _
  %s10 = ssub.s32 1, %s8
  %s11 = scalar_select 0, %s10, %s8
  loop: start=0, step=1, limit=4
  $region2: #{cnn_forward.2} parent=0 // loop_pre_header
    _
  $region3: #{cnn_forward.2} parent=0 // loop_header
    %s13 = sphi 0, %s17
    %p14 = scmp.ge.s32.totalorder %s13, 4
    %s23 = sphi 0, %s25
    %s26 = sphi 0, %s23
    %s27 = sphi 0, %s26
    %s43 = sphi 0, %s27
    %s47 = sphi 0, %s47
    %s49 = sphi 0, %s47
    %s50 = sphi 0, %s49
    %s64 = sphi 0, %s50
    %s68 = sphi 0, %s68
    %s70 = sphi 0, %s68
    %s71 = sphi 0, %s70
    %s85 = sphi 0, %s71
    %s89 = sphi 0, %s89
    %s91 = sphi 0, %s89
    %s92 = sphi 0, %s91
    %s106 = sphi 0, %s92
    %s110 = sphi 0, %s110
    %s112 = sphi 0, %s110
    %s113 = sphi 0, %s112
    %s127 = sphi 0, %s113
    %s131 = sphi 0, %s131
    %s133 = sphi 0, %s131
    %s134 = sphi 0, %s133
    %s148 = sphi 0, %s134
    %s152 = sphi 0, %s152
    %s154 = sphi 0, %s152
    %s155 = sphi 0, %s154
    %s169 = sphi 0, %s155
    %s175 = sphi 0, %s177
    %s178 = sphi 0, %s175
    %s179 = sphi 0, %s178
    %s195 = sphi 0, %s179
  $region4: #{cnn_forward.2} parent=0 // loop_header_branch
    %16 = sbr.rel (%p14) target = $region8
  $region5: #{cnn_forward.2} parent=0 // loop_body
    %s18 = ssub.s32 %s13, 1
    %s19 = ssub.s32 %s13, 2
    %s20 = sadd.s32 %s13, 1
    %s21 = ssub.s32 %s13, %s20
    %p22 = scmp.eq.s32.totalorder %s21, 0
    %s24 = sadd.s32 %s23, 1
    %s25 = scalar_select %p22, %s23, %s24
    %p28 = pneg %p22
    %p29 = scmp.eq.s32.totalorder %s13, 1
    %p30 = por %p28, %p29
    %p31 = scmp.ne.s32.totalorder %s23, %s26
    %p32 = scmp.eq.s32.totalorder %s13, 0
    %p33 = por %p31, %p32
    %p34 = scmp.ne.s32.totalorder %s23, %s26
    %p35 = scmp.eq.s32.totalorder %s18, 1
    %p36 = por %p34, %p35
    %p37 = scmp.ne.s32.totalorder %s26, %s27
    %p38 = scmp.eq.s32.totalorder %s18, 0
    %p39 = por %p37, %p38
    %p40 = scmp.ne.s32.totalorder %s26, %s27
    %p41 = scmp.eq.s32.totalorder %s19, 1
    %p42 = por %p40, %p41
    %p44 = scmp.ne.s32.totalorder %s27, %s43
    %p45 = scmp.eq.s32.totalorder %s19, 0
    %p46 = por %p44, %p45
    %s48 = sadd.s32 %s47, 1
    %p51 = scmp.eq.s32.totalorder %s13, 1
    %p52 = scmp.ne.s32.totalorder %s47, %s49
    %p53 = scmp.eq.s32.totalorder %s13, 0
    %p54 = por %p52, %p53
    %p55 = scmp.ne.s32.totalorder %s47, %s49
    %p56 = scmp.eq.s32.totalorder %s18, 1
    %p57 = por %p55, %p56
    %p58 = scmp.ne.s32.totalorder %s49, %s50
    %p59 = scmp.eq.s32.totalorder %s18, 0
    %p60 = por %p58, %p59
    %p61 = scmp.ne.s32.totalorder %s49, %s50
    %p62 = scmp.eq.s32.totalorder %s19, 1
    %p63 = por %p61, %p62
    %p65 = scmp.ne.s32.totalorder %s50, %s64
    %p66 = scmp.eq.s32.totalorder %s19, 0
    %p67 = por %p65, %p66
    %s69 = sadd.s32 %s68, 1
    %p72 = scmp.eq.s32.totalorder %s13, 1
    %p73 = scmp.ne.s32.totalorder %s68, %s70
    %p74 = scmp.eq.s32.totalorder %s13, 0
    %p75 = por %p73, %p74
    %p76 = scmp.ne.s32.totalorder %s68, %s70
    %p77 = scmp.eq.s32.totalorder %s18, 1
    %p78 = por %p76, %p77
    %p79 = scmp.ne.s32.totalorder %s70, %s71
    %p80 = scmp.eq.s32.totalorder %s18, 0
    %p81 = por %p79, %p80
    %p82 = scmp.ne.s32.totalorder %s70, %s71
    %p83 = scmp.eq.s32.totalorder %s19, 1
    %p84 = por %p82, %p83
    %p86 = scmp.ne.s32.totalorder %s71, %s85
    %p87 = scmp.eq.s32.totalorder %s19, 0
    %p88 = por %p86, %p87
    %s90 = sadd.s32 %s89, 1
    %p93 = scmp.eq.s32.totalorder %s13, 1
    %p94 = scmp.ne.s32.totalorder %s89, %s91
    %p95 = scmp.eq.s32.totalorder %s13, 0
    %p96 = por %p94, %p95
    %p97 = scmp.ne.s32.totalorder %s89, %s91
    %p98 = scmp.eq.s32.totalorder %s18, 1
    %p99 = por %p97, %p98
    %p100 = scmp.ne.s32.totalorder %s91, %s92
    %p101 = scmp.eq.s32.totalorder %s18, 0
    %p102 = por %p100, %p101
    %p103 = scmp.ne.s32.totalorder %s91, %s92
    %p104 = scmp.eq.s32.totalorder %s19, 1
    %p105 = por %p103, %p104
    %p107 = scmp.ne.s32.totalorder %s92, %s106
    %p108 = scmp.eq.s32.totalorder %s19, 0
    %p109 = por %p107, %p108
    %s111 = sadd.s32 %s110, 1
    %p114 = scmp.eq.s32.totalorder %s13, 1
    %p115 = scmp.ne.s32.totalorder %s110, %s112
    %p116 = scmp.eq.s32.totalorder %s13, 0
    %p117 = por %p115, %p116
    %p118 = scmp.ne.s32.totalorder %s110, %s112
    %p119 = scmp.eq.s32.totalorder %s18, 1
    %p120 = por %p118, %p119
    %p121 = scmp.ne.s32.totalorder %s112, %s113
    %p122 = scmp.eq.s32.totalorder %s18, 0
    %p123 = por %p121, %p122
    %p124 = scmp.ne.s32.totalorder %s112, %s113
    %p125 = scmp.eq.s32.totalorder %s19, 1
    %p126 = por %p124, %p125
    %p128 = scmp.ne.s32.totalorder %s113, %s127
    %p129 = scmp.eq.s32.totalorder %s19, 0
    %p130 = por %p128, %p129
    %s132 = sadd.s32 %s131, 1
    %p135 = scmp.eq.s32.totalorder %s13, 1
    %p136 = scmp.ne.s32.totalorder %s131, %s133
    %p137 = scmp.eq.s32.totalorder %s13, 0
    %p138 = por %p136, %p137
    %p139 = scmp.ne.s32.totalorder %s131, %s133
    %p140 = scmp.eq.s32.totalorder %s18, 1
    %p141 = por %p139, %p140
    %p142 = scmp.ne.s32.totalorder %s133, %s134
    %p143 = scmp.eq.s32.totalorder %s18, 0
    %p144 = por %p142, %p143
    %p145 = scmp.ne.s32.totalorder %s133, %s134
    %p146 = scmp.eq.s32.totalorder %s19, 1
    %p147 = por %p145, %p146
    %p149 = scmp.ne.s32.totalorder %s134, %s148
    %p150 = scmp.eq.s32.totalorder %s19, 0
    %p151 = por %p149, %p150
    %s153 = sadd.s32 %s152, 1
    %p156 = scmp.eq.s32.totalorder %s13, 1
    %p157 = scmp.ne.s32.totalorder %s152, %s154
    %p158 = scmp.eq.s32.totalorder %s13, 0
    %p159 = por %p157, %p158
    %p160 = scmp.ne.s32.totalorder %s152, %s154
    %p161 = scmp.eq.s32.totalorder %s18, 1
    %p162 = por %p160, %p161
    %p163 = scmp.ne.s32.totalorder %s154, %s155
    %p164 = scmp.eq.s32.totalorder %s18, 0
    %p165 = por %p163, %p164
    %p166 = scmp.ne.s32.totalorder %s154, %s155
    %p167 = scmp.eq.s32.totalorder %s19, 1
    %p168 = por %p166, %p167
    %p170 = scmp.ne.s32.totalorder %s155, %s169
    %p171 = scmp.eq.s32.totalorder %s19, 0
    %p172 = por %p170, %p171
    %s173 = ssub.s32 %s13, %s20
    %p174 = scmp.eq.s32.totalorder %s173, 0
    %s176 = sadd.s32 %s175, 1
    %s177 = scalar_select %p174, %s175, %s176
    %p180 = pneg %p174
    %p181 = scmp.eq.s32.totalorder %s13, 1
    %p182 = por %p180, %p181
    %p183 = scmp.ne.s32.totalorder %s175, %s178
    %p184 = scmp.eq.s32.totalorder %s13, 0
    %p185 = por %p183, %p184
    %p186 = scmp.ne.s32.totalorder %s175, %s178
    %p187 = scmp.eq.s32.totalorder %s18, 1
    %p188 = por %p186, %p187
    %p189 = scmp.ne.s32.totalorder %s178, %s179
    %p190 = scmp.eq.s32.totalorder %s18, 0
    %p191 = por %p189, %p190
    %p192 = scmp.ne.s32.totalorder %s178, %s179
    %p193 = scmp.eq.s32.totalorder %s19, 1
    %p194 = por %p192, %p193
    %p196 = scmp.ne.s32.totalorder %s179, %s195
    %p197 = scmp.eq.s32.totalorder %s19, 0
    %p198 = por %p196, %p197
    %p199 = scmp.le.s32.totalorder 1, %s13
    %p200 = scmp.lt.s32.totalorder %s13, 3
    %p201 = pnand %p199, %p200
    %p202 = pneg %p201
    // Predicated region
    $region9: #{cnn_forward.2} parent=5 // pred_check
      _
    $region10: #{cnn_forward.2} parent=5 // pred_check_branch
      %204 = sbr.rel (%p201) target = $region12
    $region11: #{cnn_forward.2} parent=5 // pred_region
      %s205 = ssub.s32 %s13, 1
      // Predicated region
      $region13: #{cnn_forward.2} parent=11 // pred_check
        %p206 = pneg %p60
      $region14: #{cnn_forward.2} parent=11 // pred_check_branch
        %208 = sbr.rel (%p206) target = $region16
      $region15: #{cnn_forward.2} parent=11 // pred_region
        _
      $region16: #{cnn_forward.2} parent=11 // pred_fallthru
        _
      // Predicated region
      $region17: #{cnn_forward.2} parent=11 // pred_check
        %p209 = pneg %p81
      $region18: #{cnn_forward.2} parent=11 // pred_check_branch
        %211 = sbr.rel (%p209) target = $region20
      $region19: #{cnn_forward.2} parent=11 // pred_region
        _
      $region20: #{cnn_forward.2} parent=11 // pred_fallthru
        _
      // Predicated region
      $region21: #{cnn_forward.2} parent=11 // pred_check
        %p212 = pneg %p102
      $region22: #{cnn_forward.2} parent=11 // pred_check_branch
        %214 = sbr.rel (%p212) target = $region24
      $region23: #{cnn_forward.2} parent=11 // pred_region
        _
      $region24: #{cnn_forward.2} parent=11 // pred_fallthru
        _
      // Predicated region
      $region25: #{cnn_forward.2} parent=11 // pred_check
        %p215 = pneg %p123
      $region26: #{cnn_forward.2} parent=11 // pred_check_branch
        %217 = sbr.rel (%p215) target = $region28
      $region27: #{cnn_forward.2} parent=11 // pred_region
        _
      $region28: #{cnn_forward.2} parent=11 // pred_fallthru
        _
      // Predicated region
      $region29: #{cnn_forward.2} parent=11 // pred_check
        %p218 = pneg %p144
      $region30: #{cnn_forward.2} parent=11 // pred_check_branch
        %220 = sbr.rel (%p218) target = $region32
      $region31: #{cnn_forward.2} parent=11 // pred_region
        _
      $region32: #{cnn_forward.2} parent=11 // pred_fallthru
        _
      // Predicated region
      $region33: #{cnn_forward.2} parent=11 // pred_check
        %p221 = pneg %p165
      $region34: #{cnn_forward.2} parent=11 // pred_check_branch
        %223 = sbr.rel (%p221) target = $region36
      $region35: #{cnn_forward.2} parent=11 // pred_region
        _
      $region36: #{cnn_forward.2} parent=11 // pred_fallthru
        _
    $region12: #{cnn_forward.2} parent=5 // pred_fallthru
      _
    %p224 = scmp.lt.s32.totalorder %s13, 2
    // Predicated region
    $region37: #{cnn_forward.2} parent=5 // pred_check
      %p225 = pneg %p224
    $region38: #{cnn_forward.2} parent=5 // pred_check_branch
      %227 = sbr.rel (%p225) target = $region40
    $region39: #{cnn_forward.2} parent=5 // pred_region
      // Predicated region
      $region41: #{cnn_forward.2} parent=39 // pred_check
        %p228 = pneg %p33
      $region42: #{cnn_forward.2} parent=39 // pred_check_branch
        %230 = sbr.rel (%p228) target = $region44
      $region43: #{cnn_forward.2} parent=39 // pred_region
        %p231 = scmp.lt.s32.totalorder %s13, 1
        %s232 = scalar_select %p231, %s13, 1
        %s233 = smul.addr %s232, 112
        %s234 = smul.addr %s233, 4
        %s235 = scalar_lea.vmem %s0, %s234
      $region44: #{cnn_forward.2} parent=39 // pred_fallthru
        _
    $region40: #{cnn_forward.2} parent=5 // pred_fallthru
      _
    %p236 = scmp.le.s32.totalorder 1, %s13
    %p237 = scmp.lt.s32.totalorder %s13, 3
    %p238 = pnand %p236, %p237
    %p239 = pneg %p238
    // Predicated region
    $region45: #{cnn_forward.2} parent=5 // pred_check
      _
    $region46: #{cnn_forward.2} parent=5 // pred_check_branch
      %241 = sbr.rel (%p238) target = $region48
    $region47: #{cnn_forward.2} parent=5 // pred_region
      %s242 = ssub.s32 %s13, 1
      %p243 = scmp.lt.s32.totalorder %s18, 1
      %s244 = scalar_select %p243, %s18, 1
      %s245 = smul.addr %s244, 112
      %s246 = smul.addr %s245, 4
      %s247 = scalar_lea.vmem %s0, %s246
      %p248 = pneg %p39
      %p249 = pneg %p36
      %p250 = pneg %p60
      %p251 = pneg %p57
      %p252 = pneg %p81
      %p253 = pneg %p78
      %p254 = pneg %p102
      %p255 = pneg %p99
      %p256 = pneg %p123
      %p257 = pneg %p120
      %p258 = pneg %p144
      %p259 = pneg %p141
      %p260 = pneg %p165
      %p261 = pneg %p162
      %p262 = pneg %p191
      %p263 = pneg %p188
      %p264 = scmp.lt.s32.totalorder %s18, 1
      %s265 = scalar_select %p264, %s18, 1
      %s266 = smul.addr %s265, 4
      %s267 = smul.addr %s266, 2
      %s268 = scalar_lea.vmem %s7, %s267
      %p269 = scmp.lt.s32.totalorder %s18, 1
      %s270 = scalar_select %p269, %s18, 1
      %s271 = smul.addr %s270, 112
      %s272 = smul.addr %s271, 4
      %s273 = scalar_lea.vmem %s0, %s272
      %p274 = scmp.lt.s32.totalorder %s18, 1
      %s275 = scalar_select %p274, %s18, 1
      %s276 = smul.addr %s275, 4
      %s277 = smul.addr %s276, 2
      %s278 = scalar_lea.vmem %s7, %s277
      %v280 = vld [vmem:[%s273] sm:$0xf]
      %v281 = vld [vmem:[%s273 + $0x4] sm:$0xf]
      %v282 = vld [vmem:[%s273 + $0x8] sm:$0xf]
      %v283 = vld [vmem:[%s273 + $0xc] sm:$0xf]
      %v284 = vld [vmem:[%s273 + $0x10] sm:$0xf]
      %v285 = vld [vmem:[%s273 + $0x14] sm:$0xf]
      %v286 = vld [vmem:[%s273 + $0x18] sm:$0xf]
      %v287 = vld [vmem:[%s273 + $0x1c] sm:$0xf]
      %v288 = vld [vmem:[%s273 + $0x20] sm:$0xf]
      %v289 = vld [vmem:[%s273 + $0x24] sm:$0xf]
      %v290 = vld [vmem:[%s273 + $0x28] sm:$0xf]
      %v291 = vld [vmem:[%s273 + $0x2c] sm:$0xf]
      %v292 = vld [vmem:[%s273 + $0x30] sm:$0xf]
      %v293 = vld [vmem:[%s273 + $0x34] sm:$0xf]
      %v294 = vld [vmem:[%s273 + $0x38] sm:$0xf]
      %v295 = vld [vmem:[%s273 + $0x3c] sm:$0xf]
      %v296 = vld [vmem:[%s273 + $0x40] sm:$0xf]
      %v297 = vld [vmem:[%s273 + $0x44] sm:$0xf]
      %v298 = vld [vmem:[%s273 + $0x48] sm:$0xf]
      %v299 = vld [vmem:[%s273 + $0x4c] sm:$0xf]
      %v300 = vld [vmem:[%s273 + $0x50] sm:$0xf]
      %v301 = vld [vmem:[%s273 + $0x54] sm:$0xf]
      %v302 = vld [vmem:[%s273 + $0x58] sm:$0xf]
      %v303 = vld [vmem:[%s273 + $0x5c] sm:$0xf]
      %v304 = vld [vmem:[%s273 + $0x60] sm:$0xf]
      %v305 = vld [vmem:[%s273 + $0x64] sm:$0xf]
      %v306 = vld [vmem:[%s273 + $0x68] sm:$0xf]
      %v307 = vld [vmem:[%s273 + $0x6c] sm:$0xf]
      %v308 = vld [vmem:[%s273 + $0x70] sm:$0xf]
      %v309 = vld [vmem:[%s273 + $0x74] sm:$0xf]
      %v310 = vld [vmem:[%s273 + $0x78] sm:$0xf]
      %v311 = vld [vmem:[%s273 + $0x7c] sm:$0xf]
      %v312 = vld [vmem:[%s273 + $0x80] sm:$0xf]
      %v313 = vld [vmem:[%s273 + $0x84] sm:$0xf]
      %v314 = vld [vmem:[%s273 + $0x88] sm:$0xf]
      %v315 = vld [vmem:[%s273 + $0x8c] sm:$0xf]
      %v316 = vld [vmem:[%s273 + $0x90] sm:$0xf]
      %v317 = vld [vmem:[%s273 + $0x94] sm:$0xf]
      %v318 = vld [vmem:[%s273 + $0x98] sm:$0xf]
      %v319 = vld [vmem:[%s273 + $0x9c] sm:$0xf]
      %v320 = vld [vmem:[%s273 + $0xa0] sm:$0xf]
      %v321 = vld [vmem:[%s273 + $0xa4] sm:$0xf]
      %v322 = vld [vmem:[%s273 + $0xa8] sm:$0xf]
      %v323 = vld [vmem:[%s273 + $0xac] sm:$0xf]
      %v324 = vld [vmem:[%s273 + $0xb0] sm:$0xf]
      %v325 = vld [vmem:[%s273 + $0xb4] sm:$0xf]
      %v326 = vld [vmem:[%s273 + $0xb8] sm:$0xf]
      %v327 = vld [vmem:[%s273 + $0xbc] sm:$0xf]
      %v328 = vld [vmem:[%s273 + $0xc0] sm:$0xf]
      %v329 = vld [vmem:[%s273 + $0xc4] sm:$0xf]
      %v330 = vld [vmem:[%s273 + $0xc8] sm:$0xf]
      %v331 = vld [vmem:[%s273 + $0xcc] sm:$0xf]
      %v332 = vld [vmem:[%s273 + $0xd0] sm:$0xf]
      %v333 = vld [vmem:[%s273 + $0xd4] sm:$0xf]
      %v334 = vld [vmem:[%s273 + $0xd8] sm:$0xf]
      %v335 = vld [vmem:[%s273 + $0xdc] sm:$0xf]
      %v336 = vld [vmem:[%s273 + $0xe0] sm:$0xf]
      %v337 = vld [vmem:[%s273 + $0xe4] sm:$0xf]
      %v338 = vld [vmem:[%s273 + $0xe8] sm:$0xf]
      %v339 = vld [vmem:[%s273 + $0xec] sm:$0xf]
      %v340 = vld [vmem:[%s273 + $0xf0] sm:$0xf]
      %v341 = vld [vmem:[%s273 + $0xf4] sm:$0xf]
      %v342 = vld [vmem:[%s273 + $0xf8] sm:$0xf]
      %v343 = vld [vmem:[%s273 + $0xfc] sm:$0xf]
      %v344 = vld [vmem:[%s273 + $0x100] sm:$0xf]
      %v345 = vld [vmem:[%s273 + $0x104] sm:$0xf]
      %v346 = vld [vmem:[%s273 + $0x108] sm:$0xf]
      %v347 = vld [vmem:[%s273 + $0x10c] sm:$0xf]
      %v348 = vld [vmem:[%s273 + $0x110] sm:$0xf]
      %v349 = vld [vmem:[%s273 + $0x114] sm:$0xf]
      %v350 = vld [vmem:[%s273 + $0x118] sm:$0xf]
      %v351 = vld [vmem:[%s273 + $0x11c] sm:$0xf]
      %v352 = vld [vmem:[%s273 + $0x120] sm:$0xf]
      %v353 = vld [vmem:[%s273 + $0x124] sm:$0xf]
      %v354 = vld [vmem:[%s273 + $0x128] sm:$0xf]
      %v355 = vld [vmem:[%s273 + $0x12c] sm:$0xf]
      %v356 = vld [vmem:[%s273 + $0x130] sm:$0xf]
      %v357 = vld [vmem:[%s273 + $0x134] sm:$0xf]
      %v358 = vld [vmem:[%s273 + $0x138] sm:$0xf]
      %v359 = vld [vmem:[%s273 + $0x13c] sm:$0xf]
      %v360 = vld [vmem:[%s273 + $0x140] sm:$0xf]
      %v361 = vld [vmem:[%s273 + $0x144] sm:$0xf]
      %v362 = vld [vmem:[%s273 + $0x148] sm:$0xf]
      %v363 = vld [vmem:[%s273 + $0x14c] sm:$0xf]
      %v364 = vld [vmem:[%s273 + $0x150] sm:$0xf]
      %v365 = vld [vmem:[%s273 + $0x154] sm:$0xf]
      %v366 = vld [vmem:[%s273 + $0x158] sm:$0xf]
      %v367 = vld [vmem:[%s273 + $0x15c] sm:$0xf]
      %v368 = vld [vmem:[%s273 + $0x160] sm:$0xf]
      %v369 = vld [vmem:[%s273 + $0x164] sm:$0xf]
      %v370 = vld [vmem:[%s273 + $0x168] sm:$0xf]
      %v371 = vld [vmem:[%s273 + $0x16c] sm:$0xf]
      %v372 = vld [vmem:[%s273 + $0x170] sm:$0xf]
      %v373 = vld [vmem:[%s273 + $0x174] sm:$0xf]
      %v374 = vld [vmem:[%s273 + $0x178] sm:$0xf]
      %v375 = vld [vmem:[%s273 + $0x17c] sm:$0xf]
      %v376 = vld [vmem:[%s273 + $0x180] sm:$0xf]
      %v377 = vld [vmem:[%s273 + $0x184] sm:$0xf]
      %v378 = vld [vmem:[%s273 + $0x188] sm:$0xf]
      %v379 = vld [vmem:[%s273 + $0x18c] sm:$0xf]
      %v380 = vld [vmem:[%s273 + $0x190] sm:$0xf]
      %v381 = vld [vmem:[%s273 + $0x194] sm:$0xf]
      %v382 = vld [vmem:[%s273 + $0x198] sm:$0xf]
      %v383 = vld [vmem:[%s273 + $0x19c] sm:$0xf]
      %v384 = vld [vmem:[%s273 + $0x1a0] sm:$0xf]
      %v385 = vld [vmem:[%s273 + $0x1a4] sm:$0xf]
      %v386 = vld [vmem:[%s273 + $0x1a8] sm:$0xf]
      %v387 = vld [vmem:[%s273 + $0x1ac] sm:$0xf]
      %v388 = vld [vmem:[%s273 + $0x1b0] sm:$0xf]
      %v389 = vld [vmem:[%s273 + $0x1b4] sm:$0xf]
      %v390 = vld [vmem:[%s273 + $0x1b8] sm:$0xf]
      %v391 = vld [vmem:[%s273 + $0x1bc] sm:$0xf]
      %v392 = vld [vmem:[%s1] sm:$0xf]
      %v393 = vld [vmem:[%s1 + $0x4] sm:$0x1]
      %v394 = vld [vmem:[%s2] sm:$0x1]
      %v396 = vlaneseq
      %v397 = vshrl.u32 %v396, 7
      %v398 = vsub.s32 0, %v397
      %v399 = vrot.slane %v394, %v398
      %v513 = vunpack.c.l.b16 %v280
      %v514 = vunpack.c.l.b16 %v281
      %v515 = vunpack.c.l.b16 %v282
      %v516 = vunpack.c.l.b16 %v283
      %v517 = vunpack.c.l.b16 %v284
      %v518 = vunpack.c.l.b16 %v285
      %v519 = vunpack.c.l.b16 %v286
      %v520 = vunpack.c.l.b16 %v287
      %v521 = vunpack.c.l.b16 %v288
      %v522 = vunpack.c.l.b16 %v289
      %v523 = vunpack.c.l.b16 %v290
      %v524 = vunpack.c.l.b16 %v291
      %v525 = vunpack.c.l.b16 %v292
      %v526 = vunpack.c.l.b16 %v293
      %v527 = vunpack.c.l.b16 %v294
      %v528 = vunpack.c.l.b16 %v295
      %v529 = vunpack.c.l.b16 %v296
      %v530 = vunpack.c.l.b16 %v297
      %v531 = vunpack.c.l.b16 %v298
      %v532 = vunpack.c.l.b16 %v299
      %v533 = vunpack.c.l.b16 %v300
      %v534 = vunpack.c.l.b16 %v301
      %v535 = vunpack.c.l.b16 %v302
      %v536 = vunpack.c.l.b16 %v303
      %v537 = vunpack.c.l.b16 %v304
      %v538 = vunpack.c.l.b16 %v305
      %v539 = vunpack.c.l.b16 %v306
      %v540 = vunpack.c.l.b16 %v307
      %v541 = vunpack.c.l.b16 %v308
      %v542 = vunpack.c.l.b16 %v309
      %v543 = vunpack.c.l.b16 %v310
      %v544 = vunpack.c.l.b16 %v311
      %v545 = vunpack.c.l.b16 %v312
      %v546 = vunpack.c.l.b16 %v313
      %v547 = vunpack.c.l.b16 %v314
      %v548 = vunpack.c.l.b16 %v315
      %v549 = vunpack.c.l.b16 %v316
      %v550 = vunpack.c.l.b16 %v317
      %v551 = vunpack.c.l.b16 %v318
      %v552 = vunpack.c.l.b16 %v319
      %v553 = vunpack.c.l.b16 %v320
      %v554 = vunpack.c.l.b16 %v321
      %v555 = vunpack.c.l.b16 %v322
      %v556 = vunpack.c.l.b16 %v323
      %v557 = vunpack.c.l.b16 %v324
      %v558 = vunpack.c.l.b16 %v325
      %v559 = vunpack.c.l.b16 %v326
      %v560 = vunpack.c.l.b16 %v327
      %v561 = vunpack.c.l.b16 %v328
      %v562 = vunpack.c.l.b16 %v329
      %v563 = vunpack.c.l.b16 %v330
      %v564 = vunpack.c.l.b16 %v331
      %v565 = vunpack.c.l.b16 %v332
      %v566 = vunpack.c.l.b16 %v333
      %v567 = vunpack.c.l.b16 %v334
      %v568 = vunpack.c.l.b16 %v335
      %v569 = vunpack.c.l.b16 %v336
      %v570 = vunpack.c.l.b16 %v337
      %v571 = vunpack.c.l.b16 %v338
      %v572 = vunpack.c.l.b16 %v339
      %v573 = vunpack.c.l.b16 %v340
      %v574 = vunpack.c.l.b16 %v341
      %v575 = vunpack.c.l.b16 %v342
      %v576 = vunpack.c.l.b16 %v343
      %v577 = vunpack.c.l.b16 %v344
      %v578 = vunpack.c.l.b16 %v345
      %v579 = vunpack.c.l.b16 %v346
      %v580 = vunpack.c.l.b16 %v347
      %v581 = vunpack.c.l.b16 %v348
      %v582 = vunpack.c.l.b16 %v349
      %v583 = vunpack.c.l.b16 %v350
      %v584 = vunpack.c.l.b16 %v351
      %v585 = vunpack.c.l.b16 %v352
      %v586 = vunpack.c.l.b16 %v353
      %v587 = vunpack.c.l.b16 %v354
      %v588 = vunpack.c.l.b16 %v355
      %v589 = vunpack.c.l.b16 %v356
      %v590 = vunpack.c.l.b16 %v357
      %v591 = vunpack.c.l.b16 %v358
      %v592 = vunpack.c.l.b16 %v359
      %v593 = vunpack.c.l.b16 %v360
      %v594 = vunpack.c.l.b16 %v361
      %v595 = vunpack.c.l.b16 %v362
      %v596 = vunpack.c.l.b16 %v363
      %v597 = vunpack.c.l.b16 %v364
      %v598 = vunpack.c.l.b16 %v365
      %v599 = vunpack.c.l.b16 %v366
      %v600 = vunpack.c.l.b16 %v367
      %v601 = vunpack.c.l.b16 %v368
      %v602 = vunpack.c.l.b16 %v369
      %v603 = vunpack.c.l.b16 %v370
      %v604 = vunpack.c.l.b16 %v371
      %v605 = vunpack.c.l.b16 %v372
      %v606 = vunpack.c.l.b16 %v373
      %v607 = vunpack.c.l.b16 %v374
      %v608 = vunpack.c.l.b16 %v375
      %v609 = vunpack.c.l.b16 %v376
      %v610 = vunpack.c.l.b16 %v377
      %v611 = vunpack.c.l.b16 %v378
      %v612 = vunpack.c.l.b16 %v379
      %v613 = vunpack.c.l.b16 %v380
      %v614 = vunpack.c.l.b16 %v381
      %v615 = vunpack.c.l.b16 %v382
      %v616 = vunpack.c.l.b16 %v383
      %v617 = vunpack.c.l.b16 %v384
      %v618 = vunpack.c.l.b16 %v385
      %v619 = vunpack.c.l.b16 %v386
      %v620 = vunpack.c.l.b16 %v387
      %v621 = vunpack.c.l.b16 %v388
      %v622 = vunpack.c.l.b16 %v389
      %v623 = vunpack.c.l.b16 %v390
      %v624 = vunpack.c.l.b16 %v391
      %v625 = vpack.c.b16 %v514, %v513
      %v626 = vpack.c.b16 %v516, %v515
      %v627 = vpack.c.b16 %v518, %v517
      %v628 = vpack.c.b16 %v520, %v519
      %v629 = vpack.c.b16 %v522, %v521
      %v630 = vpack.c.b16 %v524, %v523
      %v631 = vpack.c.b16 %v526, %v525
      %v632 = vpack.c.b16 %v528, %v527
      %v633 = vpack.c.b16 %v530, %v529
      %v634 = vpack.c.b16 %v532, %v531
      %v635 = vpack.c.b16 %v534, %v533
      %v636 = vpack.c.b16 %v536, %v535
      %v637 = vpack.c.b16 %v538, %v537
      %v638 = vpack.c.b16 %v540, %v539
      %v639 = vpack.c.b16 %v542, %v541
      %v640 = vpack.c.b16 %v544, %v543
      %v641 = vpack.c.b16 %v546, %v545
      %v642 = vpack.c.b16 %v548, %v547
      %v643 = vpack.c.b16 %v550, %v549
      %v644 = vpack.c.b16 %v552, %v551
      %v645 = vpack.c.b16 %v554, %v553
      %v646 = vpack.c.b16 %v556, %v555
      %v647 = vpack.c.b16 %v558, %v557
      %v648 = vpack.c.b16 %v560, %v559
      %v649 = vpack.c.b16 %v562, %v561
      %v650 = vpack.c.b16 %v564, %v563
      %v651 = vpack.c.b16 %v566, %v565
      %v652 = vpack.c.b16 %v568, %v567
      %v653 = vpack.c.b16 %v570, %v569
      %v654 = vpack.c.b16 %v572, %v571
      %v655 = vpack.c.b16 %v574, %v573
      %v656 = vpack.c.b16 %v576, %v575
      %v657 = vpack.c.b16 %v578, %v577
      %v658 = vpack.c.b16 %v580, %v579
      %v659 = vpack.c.b16 %v582, %v581
      %v660 = vpack.c.b16 %v584, %v583
      %v661 = vpack.c.b16 %v586, %v585
      %v662 = vpack.c.b16 %v588, %v587
      %v663 = vpack.c.b16 %v590, %v589
      %v664 = vpack.c.b16 %v592, %v591
      %v665 = vpack.c.b16 %v594, %v593
      %v666 = vpack.c.b16 %v596, %v595
      %v667 = vpack.c.b16 %v598, %v597
      %v668 = vpack.c.b16 %v600, %v599
      %v669 = vpack.c.b16 %v602, %v601
      %v670 = vpack.c.b16 %v604, %v603
      %v671 = vpack.c.b16 %v606, %v605
      %v672 = vpack.c.b16 %v608, %v607
      %v673 = vpack.c.b16 %v610, %v609
      %v674 = vpack.c.b16 %v612, %v611
      %v675 = vpack.c.b16 %v614, %v613
      %v676 = vpack.c.b16 %v616, %v615
      %v677 = vpack.c.b16 %v618, %v617
      %v678 = vpack.c.b16 %v620, %v619
      %v679 = vpack.c.b16 %v622, %v621
      %v680 = vpack.c.b16 %v624, %v623
      %v683 = vunpack.c.l.b16 %v392
      %v684 = vunpack.c.l.b16 %v393
      %v685 = vpack.c.b16 %v684, %v683
      %vm686 = vcmask 72704
      %v688 = vsel %vm686, %v625, 0
      %v691 = vsel %vm686, %v626, 0
      %v694 = vsel %vm686, %v627, 0
      %v697 = vsel %vm686, %v628, 0
      %v700 = vsel %vm686, %v629, 0
      %v703 = vsel %vm686, %v630, 0
      %v706 = vsel %vm686, %v631, 0
      %v709 = vsel %vm686, %v632, 0
      %v712 = vsel %vm686, %v633, 0
      %v715 = vsel %vm686, %v634, 0
      %v718 = vsel %vm686, %v635, 0
      %v721 = vsel %vm686, %v636, 0
      %v724 = vsel %vm686, %v637, 0
      %v727 = vsel %vm686, %v638, 0
      %v730 = vsel %vm686, %v639, 0
      %v733 = vsel %vm686, %v640, 0
      %v736 = vsel %vm686, %v641, 0
      %v739 = vsel %vm686, %v642, 0
      %v742 = vsel %vm686, %v643, 0
      %v745 = vsel %vm686, %v644, 0
      %v748 = vsel %vm686, %v645, 0
      %v751 = vsel %vm686, %v646, 0
      %v754 = vsel %vm686, %v647, 0
      %v757 = vsel %vm686, %v648, 0
      %v760 = vsel %vm686, %v649, 0
      %v763 = vsel %vm686, %v650, 0
      %v766 = vsel %vm686, %v651, 0
      %v769 = vsel %vm686, %v652, 0
      %v772 = vsel %vm686, %v653, 0
      %v775 = vsel %vm686, %v654, 0
      %v778 = vsel %vm686, %v655, 0
      %v781 = vsel %vm686, %v656, 0
      %v784 = vsel %vm686, %v657, 0
      %v787 = vsel %vm686, %v658, 0
      %v790 = vsel %vm686, %v659, 0
      %v793 = vsel %vm686, %v660, 0
      %v796 = vsel %vm686, %v661, 0
      %v799 = vsel %vm686, %v662, 0
      %v802 = vsel %vm686, %v663, 0
      %v805 = vsel %vm686, %v664, 0
      %v808 = vsel %vm686, %v665, 0
      %v811 = vsel %vm686, %v666, 0
      %v814 = vsel %vm686, %v667, 0
      %v817 = vsel %vm686, %v668, 0
      %v820 = vsel %vm686, %v669, 0
      %v823 = vsel %vm686, %v670, 0
      %v826 = vsel %vm686, %v671, 0
      %v829 = vsel %vm686, %v672, 0
      %v832 = vsel %vm686, %v673, 0
      %v835 = vsel %vm686, %v674, 0
      %v838 = vsel %vm686, %v675, 0
      %v841 = vsel %vm686, %v676, 0
      %v844 = vsel %vm686, %v677, 0
      %v847 = vsel %vm686, %v678, 0
      %v850 = vsel %vm686, %v679, 0
      %v853 = vsel %vm686, %v680, 0
      %vm855 = vcmask 1043456
      %vm856 = vcmask 1044480
      %v857 = vsel %vm855, 4294967295, 65535
      %v858 = vsel %vm856, %v857, 0
      %v860 = vand.u32 %v685, %v858
      %862 = vmatprep.subr.bf16.mxu0 0
      %863 = vmatpush1.bf16.msra.mxu0 %v860
      %864 = vmatprep.subr.bf16.mxu0 0
      %865 = vmatpush1.bf16.msra.mxu0 0
      %866 = vmatprep.subr.bf16.mxu0 0
      %867 = vmatpush1.bf16.msra.mxu0 0
      %868 = vmatprep.subr.bf16.mxu0 0
      %869 = vmatpush1.bf16.msra.mxu0 0
      %870 = vmatprep.subr.bf16.mxu0 0
      %871 = vmatpush1.bf16.msra.mxu0 0
      %872 = vmatprep.subr.bf16.mxu0 0
      %873 = vmatpush1.bf16.msra.mxu0 0
      %874 = vmatprep.subr.bf16.mxu0 0
      %875 = vmatpush1.bf16.msra.mxu0 0
      %876 = vmatprep.subr.bf16.mxu0 0
      %877 = vmatpush1.bf16.msra.mxu0 0
      %878 = vmatprep.subr.bf16.mxu0 0
      %879 = vmatpush1.bf16.msra.mxu0 0
      %880 = vmatprep.subr.bf16.mxu0 0
      %881 = vmatpush1.bf16.msra.mxu0 0
      %882 = vmatprep.subr.bf16.mxu0 0
      %883 = vmatpush1.bf16.msra.mxu0 0
      %884 = vmatprep.subr.bf16.mxu0 0
      %885 = vmatpush1.bf16.msra.mxu0 0
      %886 = vmatprep.subr.bf16.mxu0 0
      %887 = vmatpush1.bf16.msra.mxu0 0
      %888 = vmatprep.subr.bf16.mxu0 0
      %889 = vmatpush1.bf16.msra.mxu0 0
      %890 = vmatprep.subr.bf16.mxu0 0
      %891 = vmatpush1.bf16.msra.mxu0 0
      %892 = vmatprep.subr.bf16.mxu0 0
      %893 = vmatpush1.bf16.msra.mxu0 0
      %894 = vmatprep.mubr.bf16.mxu0 0
      %895 = vmatmul.mubr.bf16.gmra.mrb[0].mxu0 %v688
      %v896 = vpop.f32.mrb[0].mxu0
      %v897 = vadd.f32 %v399, %v896
      %v898 = vpop.f32.mrb[0].mxu0
      %v899 = vpop.f32.mrb[0].mxu0
      %v900 = vadd.f32 %v399, %v899
      %v901 = vpop.f32.mrb[0].mxu0
      %902 = vmatprep.mubr.bf16.mxu0 0
      %903 = vmatmul.mubr.bf16.gmra.mrb[0].mxu0 %v691
      %v904 = vpop.f32.mrb[0].mxu0
      %v905 = vadd.f32 %v399, %v904
      %v906 = vpop.f32.mrb[0].mxu0
      %v907 = vpop.f32.mrb[0].mxu0
      %v908 = vadd.f32 %v399, %v907
      %v909 = vpop.f32.mrb[0].mxu0
      %910 = vmatprep.mubr.bf16.mxu0 0
      %911 = vmatmul.mubr.bf16.gmra.mrb[0].mxu0 %v694
      %v912 = vpop.f32.mrb[0].mxu0
      %v913 = vadd.f32 %v399, %v912
      %v914 = vpop.f32.mrb[0].mxu0
      %v915 = vpop.f32.mrb[0].mxu0
      %v916 = vadd.f32 %v399, %v915
      %v917 = vpop.f32.mrb[0].mxu0
      %918 = vmatprep.mubr.bf16.mxu0 0
      %919 = vmatmul.mubr.bf16.gmra.mrb[0].mxu0 %v697
      %v920 = vpop.f32.mrb[0].mxu0
      %v921 = vadd.f32 %v399, %v920
      %v922 = vpop.f32.mrb[0].mxu0
      %v923 = vpop.f32.mrb[0].mxu0
      %v924 = vadd.f32 %v399, %v923
      %v925 = vpop.f32.mrb[0].mxu0
      %926 = vmatprep.mubr.bf16.mxu0 0
      %927 = vmatmul.mubr.bf16.gmra.mrb[0].mxu0 %v700
      %v928 = vpop.f32.mrb[0].mxu0
      %v929 = vadd.f32 %v399, %v928
      %v930 = vpop.f32.mrb[0].mxu0
      %v931 = vpop.f32.mrb[0].mxu0
      %v932 = vadd.f32 %v399, %v931
      %v933 = vpop.f32.mrb[0].mxu0
      %934 = vmatprep.mubr.bf16.mxu0 0
      %935 = vmatmul.mubr.bf16.gmra.mrb[0].mxu0 %v703
      %v936 = vpop.f32.mrb[0].mxu0
      %v937 = vadd.f32 %v399, %v936
      %v938 = vpop.f32.mrb[0].mxu0
      %v939 = vpop.f32.mrb[0].mxu0
      %v940 = vadd.f32 %v399, %v939
      %v941 = vpop.f32.mrb[0].mxu0
      %942 = vmatprep.mubr.bf16.mxu0 0
      %943 = vmatmul.mubr.bf16.gmra.mrb[0].mxu0 %v706
      %v944 = vpop.f32.mrb[0].mxu0
      %v945 = vadd.f32 %v399, %v944
      %v946 = vpop.f32.mrb[0].mxu0
      %v947 = vpop.f32.mrb[0].mxu0
      %v948 = vadd.f32 %v399, %v947
      %v949 = vpop.f32.mrb[0].mxu0
      %950 = vmatprep.mubr.bf16.mxu0 0
      %951 = vmatmul.mubr.bf16.gmra.mrb[0].mxu0 %v709
      %v952 = vpop.f32.mrb[0].mxu0
      %v953 = vadd.f32 %v399, %v952
      %v954 = vpop.f32.mrb[0].mxu0
      %v955 = vpop.f32.mrb[0].mxu0
      %v956 = vadd.f32 %v399, %v955
      %v957 = vpop.f32.mrb[0].mxu0
      %958 = vmatprep.mubr.bf16.mxu0 0
      %959 = vmatmul.mubr.bf16.gmra.mrb[0].mxu0 %v712
      %v960 = vpop.f32.mrb[0].mxu0
      %v961 = vadd.f32 %v399, %v960
      %v962 = vpop.f32.mrb[0].mxu0
      %v963 = vpop.f32.mrb[0].mxu0
      %v964 = vadd.f32 %v399, %v963
      %v965 = vpop.f32.mrb[0].mxu0
      %966 = vmatprep.mubr.bf16.mxu0 0
      %967 = vmatmul.mubr.bf16.gmra.mrb[0].mxu0 %v715
      %v968 = vpop.f32.mrb[0].mxu0
      %v969 = vadd.f32 %v399, %v968
      %v970 = vpop.f32.mrb[0].mxu0
      %v971 = vpop.f32.mrb[0].mxu0
      %v972 = vadd.f32 %v399, %v971
      %v973 = vpop.f32.mrb[0].mxu0
      %974 = vmatprep.mubr.bf16.mxu0 0
      %975 = vmatmul.mubr.bf16.gmra.mrb[0].mxu0 %v718
      %v976 = vpop.f32.mrb[0].mxu0
      %v977 = vadd.f32 %v399, %v976
      %v978 = vpop.f32.mrb[0].mxu0
      %v979 = vpop.f32.mrb[0].mxu0
      %v980 = vadd.f32 %v399, %v979
      %v981 = vpop.f32.mrb[0].mxu0
      %982 = vmatprep.mubr.bf16.mxu0 0
      %983 = vmatmul.mubr.bf16.gmra.mrb[0].mxu0 %v721
      %v984 = vpop.f32.mrb[0].mxu0
      %v985 = vadd.f32 %v399, %v984
      %v986 = vpop.f32.mrb[0].mxu0
      %v987 = vpop.f32.mrb[0].mxu0
      %v988 = vadd.f32 %v399, %v987
      %v989 = vpop.f32.mrb[0].mxu0
      %990 = vmatprep.mubr.bf16.mxu0 0
      %991 = vmatmul.mubr.bf16.gmra.mrb[0].mxu0 %v724
      %v992 = vpop.f32.mrb[0].mxu0
      %v993 = vadd.f32 %v399, %v992
      %v994 = vpop.f32.mrb[0].mxu0
      %v995 = vpop.f32.mrb[0].mxu0
      %v996 = vadd.f32 %v399, %v995
      %v997 = vpop.f32.mrb[0].mxu0
      %998 = vmatprep.mubr.bf16.mxu0 0
      %999 = vmatmul.mubr.bf16.gmra.mrb[0].mxu0 %v727
      %v1000 = vpop.f32.mrb[0].mxu0
      %v1001 = vadd.f32 %v399, %v1000
      %v1002 = vpop.f32.mrb[0].mxu0
      %v1003 = vpop.f32.mrb[0].mxu0
      %v1004 = vadd.f32 %v399, %v1003
      %v1005 = vpop.f32.mrb[0].mxu0
      %1006 = vmatprep.mubr.bf16.mxu0 0
      %1007 = vmatmul.mubr.bf16.gmra.mrb[0].mxu0 %v730
      %v1008 = vpop.f32.mrb[0].mxu0
      %v1009 = vadd.f32 %v399, %v1008
      %v1010 = vpop.f32.mrb[0].mxu0
      %v1011 = vpop.f32.mrb[0].mxu0
      %v1012 = vadd.f32 %v399, %v1011
      %v1013 = vpop.f32.mrb[0].mxu0
      %1014 = vmatprep.mubr.bf16.mxu0 0
      %1015 = vmatmul.mubr.bf16.gmra.mrb[0].mxu0 %v733
      %v1016 = vpop.f32.mrb[0].mxu0
      %v1017 = vadd.f32 %v399, %v1016
      %v1018 = vpop.f32.mrb[0].mxu0
      %v1019 = vpop.f32.mrb[0].mxu0
      %v1020 = vadd.f32 %v399, %v1019
      %v1021 = vpop.f32.mrb[0].mxu0
      %1022 = vmatprep.mubr.bf16.mxu0 0
      %1023 = vmatmul.mubr.bf16.gmra.mrb[0].mxu0 %v736
      %v1024 = vpop.f32.mrb[0].mxu0
      %v1025 = vadd.f32 %v399, %v1024
      %v1026 = vpop.f32.mrb[0].mxu0
      %v1027 = vpop.f32.mrb[0].mxu0
      %v1028 = vadd.f32 %v399, %v1027
      %v1029 = vpop.f32.mrb[0].mxu0
      %1030 = vmatprep.mubr.bf16.mxu0 0
      %1031 = vmatmul.mubr.bf16.gmra.mrb[0].mxu0 %v739
      %v1032 = vpop.f32.mrb[0].mxu0
      %v1033 = vadd.f32 %v399, %v1032
      %v1034 = vpop.f32.mrb[0].mxu0
      %v1035 = vpop.f32.mrb[0].mxu0
      %v1036 = vadd.f32 %v399, %v1035
      %v1037 = vpop.f32.mrb[0].mxu0
      %1038 = vmatprep.mubr.bf16.mxu0 0
      %1039 = vmatmul.mubr.bf16.gmra.mrb[0].mxu0 %v742
      %v1040 = vpop.f32.mrb[0].mxu0
      %v1041 = vadd.f32 %v399, %v1040
      %v1042 = vpop.f32.mrb[0].mxu0
      %v1043 = vpop.f32.mrb[0].mxu0
      %v1044 = vadd.f32 %v399, %v1043
      %v1045 = vpop.f32.mrb[0].mxu0
      %1046 = vmatprep.mubr.bf16.mxu0 0
      %1047 = vmatmul.mubr.bf16.gmra.mrb[0].mxu0 %v745
      %v1048 = vpop.f32.mrb[0].mxu0
      %v1049 = vadd.f32 %v399, %v1048
      %v1050 = vpop.f32.mrb[0].mxu0
      %v1051 = vpop.f32.mrb[0].mxu0
      %v1052 = vadd.f32 %v399, %v1051
      %v1053 = vpop.f32.mrb[0].mxu0
      %1054 = vmatprep.mubr.bf16.mxu0 0
      %1055 = vmatmul.mubr.bf16.gmra.mrb[0].mxu0 %v748
      %v1056 = vpop.f32.mrb[0].mxu0
      %v1057 = vadd.f32 %v399, %v1056
      %v1058 = vpop.f32.mrb[0].mxu0
      %v1059 = vpop.f32.mrb[0].mxu0
      %v1060 = vadd.f32 %v399, %v1059
      %v1061 = vpop.f32.mrb[0].mxu0
      %1062 = vmatprep.mubr.bf16.mxu0 0
      %1063 = vmatmul.mubr.bf16.gmra.mrb[0].mxu0 %v751
      %v1064 = vpop.f32.mrb[0].mxu0
      %v1065 = vadd.f32 %v399, %v1064
      %v1066 = vpop.f32.mrb[0].mxu0
      %v1067 = vpop.f32.mrb[0].mxu0
      %v1068 = vadd.f32 %v399, %v1067
      %v1069 = vpop.f32.mrb[0].mxu0
      %1070 = vmatprep.mubr.bf16.mxu0 0
      %1071 = vmatmul.mubr.bf16.gmra.mrb[0].mxu0 %v754
      %v1072 = vpop.f32.mrb[0].mxu0
      %v1073 = vadd.f32 %v399, %v1072
      %v1074 = vpop.f32.mrb[0].mxu0
      %v1075 = vpop.f32.mrb[0].mxu0
      %v1076 = vadd.f32 %v399, %v1075
      %v1077 = vpop.f32.mrb[0].mxu0
      %1078 = vmatprep.mubr.bf16.mxu0 0
      %1079 = vmatmul.mubr.bf16.gmra.mrb[0].mxu0 %v757
      %v1080 = vpop.f32.mrb[0].mxu0
      %v1081 = vadd.f32 %v399, %v1080
      %v1082 = vpop.f32.mrb[0].mxu0
      %v1083 = vpop.f32.mrb[0].mxu0
      %v1084 = vadd.f32 %v399, %v1083
      %v1085 = vpop.f32.mrb[0].mxu0
      %1086 = vmatprep.mubr.bf16.mxu0 0
      %1087 = vmatmul.mubr.bf16.gmra.mrb[0].mxu0 %v760
      %v1088 = vpop.f32.mrb[0].mxu0
      %v1089 = vadd.f32 %v399, %v1088
      %v1090 = vpop.f32.mrb[0].mxu0
      %v1091 = vpop.f32.mrb[0].mxu0
      %v1092 = vadd.f32 %v399, %v1091
      %v1093 = vpop.f32.mrb[0].mxu0
      %1094 = vmatprep.mubr.bf16.mxu0 0
      %1095 = vmatmul.mubr.bf16.gmra.mrb[0].mxu0 %v763
      %v1096 = vpop.f32.mrb[0].mxu0
      %v1097 = vadd.f32 %v399, %v1096
      %v1098 = vpop.f32.mrb[0].mxu0
      %v1099 = vpop.f32.mrb[0].mxu0
      %v1100 = vadd.f32 %v399, %v1099
      %v1101 = vpop.f32.mrb[0].mxu0
      %1102 = vmatprep.mubr.bf16.mxu0 0
      %1103 = vmatmul.mubr.bf16.gmra.mrb[0].mxu0 %v766
      %v1104 = vpop.f32.mrb[0].mxu0
      %v1105 = vadd.f32 %v399, %v1104
      %v1106 = vpop.f32.mrb[0].mxu0
      %v1107 = vpop.f32.mrb[0].mxu0
      %v1108 = vadd.f32 %v399, %v1107
      %v1109 = vpop.f32.mrb[0].mxu0
      %1110 = vmatprep.mubr.bf16.mxu0 0
      %1111 = vmatmul.mubr.bf16.gmra.mrb[0].mxu0 %v769
      %v1112 = vpop.f32.mrb[0].mxu0
      %v1113 = vadd.f32 %v399, %v1112
      %v1114 = vpop.f32.mrb[0].mxu0
      %v1115 = vpop.f32.mrb[0].mxu0
      %v1116 = vadd.f32 %v399, %v1115
      %v1117 = vpop.f32.mrb[0].mxu0
      %1118 = vmatprep.mubr.bf16.mxu0 0
      %1119 = vmatmul.mubr.bf16.gmra.mrb[0].mxu0 %v772
      %v1120 = vpop.f32.mrb[0].mxu0
      %v1121 = vadd.f32 %v399, %v1120
      %v1122 = vpop.f32.mrb[0].mxu0
      %v1123 = vpop.f32.mrb[0].mxu0
      %v1124 = vadd.f32 %v399, %v1123
      %v1125 = vpop.f32.mrb[0].mxu0
      %1126 = vmatprep.mubr.bf16.mxu0 0
      %1127 = vmatmul.mubr.bf16.gmra.mrb[0].mxu0 %v775
      %v1128 = vpop.f32.mrb[0].mxu0
      %v1129 = vadd.f32 %v399, %v1128
      %v1130 = vpop.f32.mrb[0].mxu0
      %v1131 = vpop.f32.mrb[0].mxu0
      %v1132 = vadd.f32 %v399, %v1131
      %v1133 = vpop.f32.mrb[0].mxu0
      %1134 = vmatprep.mubr.bf16.mxu0 0
      %1135 = vmatmul.mubr.bf16.gmra.mrb[0].mxu0 %v778
      %v1136 = vpop.f32.mrb[0].mxu0
      %v1137 = vadd.f32 %v399, %v1136
      %v1138 = vpop.f32.mrb[0].mxu0
      %v1139 = vpop.f32.mrb[0].mxu0
      %v1140 = vadd.f32 %v399, %v1139
      %v1141 = vpop.f32.mrb[0].mxu0
      %1142 = vmatprep.mubr.bf16.mxu0 0
      %1143 = vmatmul.mubr.bf16.gmra.mrb[0].mxu0 %v781
      %v1144 = vpop.f32.mrb[0].mxu0
      %v1145 = vadd.f32 %v399, %v1144
      %v1146 = vpop.f32.mrb[0].mxu0
      %v1147 = vpop.f32.mrb[0].mxu0
      %v1148 = vadd.f32 %v399, %v1147
      %v1149 = vpop.f32.mrb[0].mxu0
      %1150 = vmatprep.mubr.bf16.mxu0 0
      %1151 = vmatmul.mubr.bf16.gmra.mrb[0].mxu0 %v784
      %v1152 = vpop.f32.mrb[0].mxu0
      %v1153 = vadd.f32 %v399, %v1152
      %v1154 = vpop.f32.mrb[0].mxu0
      %v1155 = vpop.f32.mrb[0].mxu0
      %v1156 = vadd.f32 %v399, %v1155
      %v1157 = vpop.f32.mrb[0].mxu0
      %1158 = vmatprep.mubr.bf16.mxu0 0
      %1159 = vmatmul.mubr.bf16.gmra.mrb[0].mxu0 %v787
      %v1160 = vpop.f32.mrb[0].mxu0
      %v1161 = vadd.f32 %v399, %v1160
      %v1162 = vpop.f32.mrb[0].mxu0
      %v1163 = vpop.f32.mrb[0].mxu0
      %v1164 = vadd.f32 %v399, %v1163
      %v1165 = vpop.f32.mrb[0].mxu0
      %1166 = vmatprep.mubr.bf16.mxu0 0
      %1167 = vmatmul.mubr.bf16.gmra.mrb[0].mxu0 %v790
      %v1168 = vpop.f32.mrb[0].mxu0
      %v1169 = vadd.f32 %v399, %v1168
      %v1170 = vpop.f32.mrb[0].mxu0
      %v1171 = vpop.f32.mrb[0].mxu0
      %v1172 = vadd.f32 %v399, %v1171
      %v1173 = vpop.f32.mrb[0].mxu0
      %1174 = vmatprep.mubr.bf16.mxu0 0
      %1175 = vmatmul.mubr.bf16.gmra.mrb[0].mxu0 %v793
      %v1176 = vpop.f32.mrb[0].mxu0
      %v1177 = vadd.f32 %v399, %v1176
      %v1178 = vpop.f32.mrb[0].mxu0
      %v1179 = vpop.f32.mrb[0].mxu0
      %v1180 = vadd.f32 %v399, %v1179
      %v1181 = vpop.f32.mrb[0].mxu0
      %1182 = vmatprep.mubr.bf16.mxu0 0
      %1183 = vmatmul.mubr.bf16.gmra.mrb[0].mxu0 %v796
      %v1184 = vpop.f32.mrb[0].mxu0
      %v1185 = vadd.f32 %v399, %v1184
      %v1186 = vpop.f32.mrb[0].mxu0
      %v1187 = vpop.f32.mrb[0].mxu0
      %v1188 = vadd.f32 %v399, %v1187
      %v1189 = vpop.f32.mrb[0].mxu0
      %1190 = vmatprep.mubr.bf16.mxu0 0
      %1191 = vmatmul.mubr.bf16.gmra.mrb[0].mxu0 %v799
      %v1192 = vpop.f32.mrb[0].mxu0
      %v1193 = vadd.f32 %v399, %v1192
      %v1194 = vpop.f32.mrb[0].mxu0
      %v1195 = vpop.f32.mrb[0].mxu0
      %v1196 = vadd.f32 %v399, %v1195
      %v1197 = vpop.f32.mrb[0].mxu0
      %1198 = vmatprep.mubr.bf16.mxu0 0
      %1199 = vmatmul.mubr.bf16.gmra.mrb[0].mxu0 %v802
      %v1200 = vpop.f32.mrb[0].mxu0
      %v1201 = vadd.f32 %v399, %v1200
      %v1202 = vpop.f32.mrb[0].mxu0
      %v1203 = vpop.f32.mrb[0].mxu0
      %v1204 = vadd.f32 %v399, %v1203
      %v1205 = vpop.f32.mrb[0].mxu0
      %1206 = vmatprep.mubr.bf16.mxu0 0
      %1207 = vmatmul.mubr.bf16.gmra.mrb[0].mxu0 %v805
      %v1208 = vpop.f32.mrb[0].mxu0
      %v1209 = vadd.f32 %v399, %v1208
      %v1210 = vpop.f32.mrb[0].mxu0
      %v1211 = vpop.f32.mrb[0].mxu0
      %v1212 = vadd.f32 %v399, %v1211
      %v1213 = vpop.f32.mrb[0].mxu0
      %1214 = vmatprep.mubr.bf16.mxu0 0
      %1215 = vmatmul.mubr.bf16.gmra.mrb[0].mxu0 %v808
      %v1216 = vpop.f32.mrb[0].mxu0
      %v1217 = vadd.f32 %v399, %v1216
      %v1218 = vpop.f32.mrb[0].mxu0
      %v1219 = vpop.f32.mrb[0].mxu0
      %v1220 = vadd.f32 %v399, %v1219
      %v1221 = vpop.f32.mrb[0].mxu0
      %1222 = vmatprep.mubr.bf16.mxu0 0
      %1223 = vmatmul.mubr.bf16.gmra.mrb[0].mxu0 %v811
      %v1224 = vpop.f32.mrb[0].mxu0
      %v1225 = vadd.f32 %v399, %v1224
      %v1226 = vpop.f32.mrb[0].mxu0
      %v1227 = vpop.f32.mrb[0].mxu0
      %v1228 = vadd.f32 %v399, %v1227
      %v1229 = vpop.f32.mrb[0].mxu0
      %1230 = vmatprep.mubr.bf16.mxu0 0
      %1231 = vmatmul.mubr.bf16.gmra.mrb[0].mxu0 %v814
      %v1232 = vpop.f32.mrb[0].mxu0
      %v1233 = vadd.f32 %v399, %v1232
      %v1234 = vpop.f32.mrb[0].mxu0
      %v1235 = vpop.f32.mrb[0].mxu0
      %v1236 = vadd.f32 %v399, %v1235
      %v1237 = vpop.f32.mrb[0].mxu0
      %1238 = vmatprep.mubr.bf16.mxu0 0
      %1239 = vmatmul.mubr.bf16.gmra.mrb[0].mxu0 %v817
      %v1240 = vpop.f32.mrb[0].mxu0
      %v1241 = vadd.f32 %v399, %v1240
      %v1242 = vpop.f32.mrb[0].mxu0
      %v1243 = vpop.f32.mrb[0].mxu0
      %v1244 = vadd.f32 %v399, %v1243
      %v1245 = vpop.f32.mrb[0].mxu0
      %1246 = vmatprep.mubr.bf16.mxu0 0
      %1247 = vmatmul.mubr.bf16.gmra.mrb[0].mxu0 %v820
      %v1248 = vpop.f32.mrb[0].mxu0
      %v1249 = vadd.f32 %v399, %v1248
      %v1250 = vpop.f32.mrb[0].mxu0
      %v1251 = vpop.f32.mrb[0].mxu0
      %v1252 = vadd.f32 %v399, %v1251
      %v1253 = vpop.f32.mrb[0].mxu0
      %1254 = vmatprep.mubr.bf16.mxu0 0
      %1255 = vmatmul.mubr.bf16.gmra.mrb[0].mxu0 %v823
      %v1256 = vpop.f32.mrb[0].mxu0
      %v1257 = vadd.f32 %v399, %v1256
      %v1258 = vpop.f32.mrb[0].mxu0
      %v1259 = vpop.f32.mrb[0].mxu0
      %v1260 = vadd.f32 %v399, %v1259
      %v1261 = vpop.f32.mrb[0].mxu0
      %1262 = vmatprep.mubr.bf16.mxu0 0
      %1263 = vmatmul.mubr.bf16.gmra.mrb[0].mxu0 %v826
      %v1264 = vpop.f32.mrb[0].mxu0
      %v1265 = vadd.f32 %v399, %v1264
      %v1266 = vpop.f32.mrb[0].mxu0
      %v1267 = vpop.f32.mrb[0].mxu0
      %v1268 = vadd.f32 %v399, %v1267
      %v1269 = vpop.f32.mrb[0].mxu0
      %1270 = vmatprep.mubr.bf16.mxu0 0
      %1271 = vmatmul.mubr.bf16.gmra.mrb[0].mxu0 %v829
      %v1272 = vpop.f32.mrb[0].mxu0
      %v1273 = vadd.f32 %v399, %v1272
      %v1274 = vpop.f32.mrb[0].mxu0
      %v1275 = vpop.f32.mrb[0].mxu0
      %v1276 = vadd.f32 %v399, %v1275
      %v1277 = vpop.f32.mrb[0].mxu0
      %1278 = vmatprep.mubr.bf16.mxu0 0
      %1279 = vmatmul.mubr.bf16.gmra.mrb[0].mxu0 %v832
      %v1280 = vpop.f32.mrb[0].mxu0
      %v1281 = vadd.f32 %v399, %v1280
      %v1282 = vpop.f32.mrb[0].mxu0
      %v1283 = vpop.f32.mrb[0].mxu0
      %v1284 = vadd.f32 %v399, %v1283
      %v1285 = vpop.f32.mrb[0].mxu0
      %1286 = vmatprep.mubr.bf16.mxu0 0
      %1287 = vmatmul.mubr.bf16.gmra.mrb[0].mxu0 %v835
      %v1288 = vpop.f32.mrb[0].mxu0
      %v1289 = vadd.f32 %v399, %v1288
      %v1290 = vpop.f32.mrb[0].mxu0
      %v1291 = vpop.f32.mrb[0].mxu0
      %v1292 = vadd.f32 %v399, %v1291
      %v1293 = vpop.f32.mrb[0].mxu0
      %1294 = vmatprep.mubr.bf16.mxu0 0
      %1295 = vmatmul.mubr.bf16.gmra.mrb[0].mxu0 %v838
      %v1296 = vpop.f32.mrb[0].mxu0
      %v1297 = vadd.f32 %v399, %v1296
      %v1298 = vpop.f32.mrb[0].mxu0
      %v1299 = vpop.f32.mrb[0].mxu0
      %v1300 = vadd.f32 %v399, %v1299
      %v1301 = vpop.f32.mrb[0].mxu0
      %1302 = vmatprep.mubr.bf16.mxu0 0
      %1303 = vmatmul.mubr.bf16.gmra.mrb[0].mxu0 %v841
      %v1304 = vpop.f32.mrb[0].mxu0
      %v1305 = vadd.f32 %v399, %v1304
      %v1306 = vpop.f32.mrb[0].mxu0
      %v1307 = vpop.f32.mrb[0].mxu0
      %v1308 = vadd.f32 %v399, %v1307
      %v1309 = vpop.f32.mrb[0].mxu0
      %1310 = vmatprep.mubr.bf16.mxu0 0
      %1311 = vmatmul.mubr.bf16.gmra.mrb[0].mxu0 %v844
      %v1312 = vpop.f32.mrb[0].mxu0
      %v1313 = vadd.f32 %v399, %v1312
      %v1314 = vpop.f32.mrb[0].mxu0
      %v1315 = vpop.f32.mrb[0].mxu0
      %v1316 = vadd.f32 %v399, %v1315
      %v1317 = vpop.f32.mrb[0].mxu0
      %1318 = vmatprep.mubr.bf16.mxu0 0
      %1319 = vmatmul.mubr.bf16.gmra.mrb[0].mxu0 %v847
      %v1320 = vpop.f32.mrb[0].mxu0
      %v1321 = vadd.f32 %v399, %v1320
      %v1322 = vpop.f32.mrb[0].mxu0
      %v1323 = vpop.f32.mrb[0].mxu0
      %v1324 = vadd.f32 %v399, %v1323
      %v1325 = vpop.f32.mrb[0].mxu0
      %1326 = vmatprep.mubr.bf16.mxu0 0
      %1327 = vmatmul.mubr.bf16.gmra.mrb[0].mxu0 %v850
      %v1328 = vpop.f32.mrb[0].mxu0
      %v1329 = vadd.f32 %v399, %v1328
      %v1330 = vpop.f32.mrb[0].mxu0
      %v1331 = vpop.f32.mrb[0].mxu0
      %v1332 = vadd.f32 %v399, %v1331
      %v1333 = vpop.f32.mrb[0].mxu0
      %1334 = vmatprep.mubr.bf16.mxu0 0
      %1335 = vmatmul.mubr.bf16.gmra.mrb[0].mxu0 %v853
      %v1336 = vpop.f32.mrb[0].mxu0
      %v1337 = vadd.f32 %v399, %v1336
      %v1338 = vpop.f32.mrb[0].mxu0
      %v1339 = vpop.f32.mrb[0].mxu0
      %v1340 = vadd.f32 %v399, %v1339
      %v1341 = vpop.f32.mrb[0].mxu0
      %1342 = vdwg.mxu0
      %v1343 = vmax.f32 %v897, 0.0
      %v1344 = vmax.f32 %v900, 0.0
      %v1345 = vmax.f32 %v905, 0.0
      %v1346 = vmax.f32 %v908, 0.0
      %v1347 = vmax.f32 %v913, 0.0
      %v1348 = vmax.f32 %v916, 0.0
      %v1349 = vmax.f32 %v921, 0.0
      %v1350 = vmax.f32 %v924, 0.0
      %v1351 = vmax.f32 %v929, 0.0
      %v1352 = vmax.f32 %v932, 0.0
      %v1353 = vmax.f32 %v937, 0.0
      %v1354 = vmax.f32 %v940, 0.0
      %v1355 = vmax.f32 %v945, 0.0
      %v1356 = vmax.f32 %v948, 0.0
      %v1357 = vmax.f32 %v953, 0.0
      %v1358 = vmax.f32 %v956, 0.0
      %v1359 = vmax.f32 %v961, 0.0
      %v1360 = vmax.f32 %v964, 0.0
      %v1361 = vmax.f32 %v969, 0.0
      %v1362 = vmax.f32 %v972, 0.0
      %v1363 = vmax.f32 %v977, 0.0
      %v1364 = vmax.f32 %v980, 0.0
      %v1365 = vmax.f32 %v985, 0.0
      %v1366 = vmax.f32 %v988, 0.0
      %v1367 = vmax.f32 %v993, 0.0
      %v1368 = vmax.f32 %v996, 0.0
      %v1369 = vmax.f32 %v1001, 0.0
      %v1370 = vmax.f32 %v1004, 0.0
      %v1371 = vmax.f32 %v1009, 0.0
      %v1372 = vmax.f32 %v1012, 0.0
      %v1373 = vmax.f32 %v1017, 0.0
      %v1374 = vmax.f32 %v1020, 0.0
      %v1375 = vmax.f32 %v1025, 0.0
      %v1376 = vmax.f32 %v1028, 0.0
      %v1377 = vmax.f32 %v1033, 0.0
      %v1378 = vmax.f32 %v1036, 0.0
      %v1379 = vmax.f32 %v1041, 0.0
      %v1380 = vmax.f32 %v1044, 0.0
      %v1381 = vmax.f32 %v1049, 0.0
      %v1382 = vmax.f32 %v1052, 0.0
      %v1383 = vmax.f32 %v1057, 0.0
      %v1384 = vmax.f32 %v1060, 0.0
      %v1385 = vmax.f32 %v1065, 0.0
      %v1386 = vmax.f32 %v1068, 0.0
      %v1387 = vmax.f32 %v1073, 0.0
      %v1388 = vmax.f32 %v1076, 0.0
      %v1389 = vmax.f32 %v1081, 0.0
      %v1390 = vmax.f32 %v1084, 0.0
      %v1391 = vmax.f32 %v1089, 0.0
      %v1392 = vmax.f32 %v1092, 0.0
      %v1393 = vmax.f32 %v1097, 0.0
      %v1394 = vmax.f32 %v1100, 0.0
      %v1395 = vmax.f32 %v1105, 0.0
      %v1396 = vmax.f32 %v1108, 0.0
      %v1397 = vmax.f32 %v1113, 0.0
      %v1398 = vmax.f32 %v1116, 0.0
      %v1399 = vmax.f32 %v1121, 0.0
      %v1400 = vmax.f32 %v1124, 0.0
      %v1401 = vmax.f32 %v1129, 0.0
      %v1402 = vmax.f32 %v1132, 0.0
      %v1403 = vmax.f32 %v1137, 0.0
      %v1404 = vmax.f32 %v1140, 0.0
      %v1405 = vmax.f32 %v1145, 0.0
      %v1406 = vmax.f32 %v1148, 0.0
      %v1407 = vmax.f32 %v1153, 0.0
      %v1408 = vmax.f32 %v1156, 0.0
      %v1409 = vmax.f32 %v1161, 0.0
      %v1410 = vmax.f32 %v1164, 0.0
      %v1411 = vmax.f32 %v1169, 0.0
      %v1412 = vmax.f32 %v1172, 0.0
      %v1413 = vmax.f32 %v1177, 0.0
      %v1414 = vmax.f32 %v1180, 0.0
      %v1415 = vmax.f32 %v1185, 0.0
      %v1416 = vmax.f32 %v1188, 0.0
      %v1417 = vmax.f32 %v1193, 0.0
      %v1418 = vmax.f32 %v1196, 0.0
      %v1419 = vmax.f32 %v1201, 0.0
      %v1420 = vmax.f32 %v1204, 0.0
      %v1421 = vmax.f32 %v1209, 0.0
      %v1422 = vmax.f32 %v1212, 0.0
      %v1423 = vmax.f32 %v1217, 0.0
      %v1424 = vmax.f32 %v1220, 0.0
      %v1425 = vmax.f32 %v1225, 0.0
      %v1426 = vmax.f32 %v1228, 0.0
      %v1427 = vmax.f32 %v1233, 0.0
      %v1428 = vmax.f32 %v1236, 0.0
      %v1429 = vmax.f32 %v1241, 0.0
      %v1430 = vmax.f32 %v1244, 0.0
      %v1431 = vmax.f32 %v1249, 0.0
      %v1432 = vmax.f32 %v1252, 0.0
      %v1433 = vmax.f32 %v1257, 0.0
      %v1434 = vmax.f32 %v1260, 0.0
      %v1435 = vmax.f32 %v1265, 0.0
      %v1436 = vmax.f32 %v1268, 0.0
      %v1437 = vmax.f32 %v1273, 0.0
      %v1438 = vmax.f32 %v1276, 0.0
      %v1439 = vmax.f32 %v1281, 0.0
      %v1440 = vmax.f32 %v1284, 0.0
      %v1441 = vmax.f32 %v1289, 0.0
      %v1442 = vmax.f32 %v1292, 0.0
      %v1443 = vmax.f32 %v1297, 0.0
      %v1444 = vmax.f32 %v1300, 0.0
      %v1445 = vmax.f32 %v1305, 0.0
      %v1446 = vmax.f32 %v1308, 0.0
      %v1447 = vmax.f32 %v1313, 0.0
      %v1448 = vmax.f32 %v1316, 0.0
      %v1449 = vmax.f32 %v1321, 0.0
      %v1450 = vmax.f32 %v1324, 0.0
      %v1451 = vmax.f32 %v1329, 0.0
      %v1452 = vmax.f32 %v1332, 0.0
      %v1453 = vmax.f32 %v1337, 0.0
      %v1454 = vmax.f32 %v1340, 0.0
      %v1455 = vpack.c.bf16 %v1344, %v1343
      %v1456 = vpack.c.bf16 %v1346, %v1345
      %v1457 = vpack.c.bf16 %v1348, %v1347
      %v1458 = vpack.c.bf16 %v1350, %v1349
      %v1459 = vpack.c.bf16 %v1352, %v1351
      %v1460 = vpack.c.bf16 %v1354, %v1353
      %v1461 = vpack.c.bf16 %v1356, %v1355
      %v1462 = vpack.c.bf16 %v1358, %v1357
      %v1463 = vpack.c.bf16 %v1360, %v1359
      %v1464 = vpack.c.bf16 %v1362, %v1361
      %v1465 = vpack.c.bf16 %v1364, %v1363
      %v1466 = vpack.c.bf16 %v1366, %v1365
      %v1467 = vpack.c.bf16 %v1368, %v1367
      %v1468 = vpack.c.bf16 %v1370, %v1369
      %v1469 = vpack.c.bf16 %v1372, %v1371
      %v1470 = vpack.c.bf16 %v1374, %v1373
      %v1471 = vpack.c.bf16 %v1376, %v1375
      %v1472 = vpack.c.bf16 %v1378, %v1377
      %v1473 = vpack.c.bf16 %v1380, %v1379
      %v1474 = vpack.c.bf16 %v1382, %v1381
      %v1475 = vpack.c.bf16 %v1384, %v1383
      %v1476 = vpack.c.bf16 %v1386, %v1385
      %v1477 = vpack.c.bf16 %v1388, %v1387
      %v1478 = vpack.c.bf16 %v1390, %v1389
      %v1479 = vpack.c.bf16 %v1392, %v1391
      %v1480 = vpack.c.bf16 %v1394, %v1393
      %v1481 = vpack.c.bf16 %v1396, %v1395
      %v1482 = vpack.c.bf16 %v1398, %v1397
      %v1483 = vpack.c.bf16 %v1400, %v1399
      %v1484 = vpack.c.bf16 %v1402, %v1401
      %v1485 = vpack.c.bf16 %v1404, %v1403
      %v1486 = vpack.c.bf16 %v1406, %v1405
      %v1487 = vpack.c.bf16 %v1408, %v1407
      %v1488 = vpack.c.bf16 %v1410, %v1409
      %v1489 = vpack.c.bf16 %v1412, %v1411
      %v1490 = vpack.c.bf16 %v1414, %v1413
      %v1491 = vpack.c.bf16 %v1416, %v1415
      %v1492 = vpack.c.bf16 %v1418, %v1417
      %v1493 = vpack.c.bf16 %v1420, %v1419
      %v1494 = vpack.c.bf16 %v1422, %v1421
      %v1495 = vpack.c.bf16 %v1424, %v1423
      %v1496 = vpack.c.bf16 %v1426, %v1425
      %v1497 = vpack.c.bf16 %v1428, %v1427
      %v1498 = vpack.c.bf16 %v1430, %v1429
      %v1499 = vpack.c.bf16 %v1432, %v1431
      %v1500 = vpack.c.bf16 %v1434, %v1433
      %v1501 = vpack.c.bf16 %v1436, %v1435
      %v1502 = vpack.c.bf16 %v1438, %v1437
      %v1503 = vpack.c.bf16 %v1440, %v1439
      %v1504 = vpack.c.bf16 %v1442, %v1441
      %v1505 = vpack.c.bf16 %v1444, %v1443
      %v1506 = vpack.c.bf16 %v1446, %v1445
      %v1507 = vpack.c.bf16 %v1448, %v1447
      %v1508 = vpack.c.bf16 %v1450, %v1449
      %v1509 = vpack.c.bf16 %v1452, %v1451
      %v1510 = vpack.c.bf16 %v1454, %v1453
      %v1511 = vmax.bf16 %v1455, %v1457
      %v1512 = vmax.bf16 %v1456, %v1458
      %v1513 = vmax.bf16 %v1459, %v1461
      %v1514 = vmax.bf16 %v1460, %v1462
      %v1515 = vmax.bf16 %v1463, %v1465
      %v1516 = vmax.bf16 %v1464, %v1466
      %v1517 = vmax.bf16 %v1467, %v1469
      %v1518 = vmax.bf16 %v1468, %v1470
      %v1519 = vmax.bf16 %v1471, %v1473
      %v1520 = vmax.bf16 %v1472, %v1474
      %v1521 = vmax.bf16 %v1475, %v1477
      %v1522 = vmax.bf16 %v1476, %v1478
      %v1523 = vmax.bf16 %v1479, %v1481
      %v1524 = vmax.bf16 %v1480, %v1482
      %v1525 = vmax.bf16 %v1483, %v1485
      %v1526 = vmax.bf16 %v1484, %v1486
      %v1527 = vmax.bf16 %v1487, %v1489
      %v1528 = vmax.bf16 %v1488, %v1490
      %v1529 = vmax.bf16 %v1491, %v1493
      %v1530 = vmax.bf16 %v1492, %v1494
      %v1531 = vmax.bf16 %v1495, %v1497
      %v1532 = vmax.bf16 %v1496, %v1498
      %v1533 = vmax.bf16 %v1499, %v1501
      %v1534 = vmax.bf16 %v1500, %v1502
      %v1535 = vmax.bf16 %v1503, %v1505
      %v1536 = vmax.bf16 %v1504, %v1506
      %v1537 = vmax.bf16 %v1507, %v1509
      %v1538 = vmax.bf16 %v1508, %v1510
      %v1540 = vshrl.u32 %v1511, 16
      %v1543 = vshrl.u32 %v1513, 16
      %v1546 = vshrl.u32 %v1515, 16
      %v1549 = vshrl.u32 %v1517, 16
      %v1552 = vshrl.u32 %v1519, 16
      %v1555 = vshrl.u32 %v1521, 16
      %v1558 = vshrl.u32 %v1523, 16
      %v1561 = vshrl.u32 %v1525, 16
      %v1564 = vshrl.u32 %v1527, 16
      %v1567 = vshrl.u32 %v1529, 16
      %v1570 = vshrl.u32 %v1531, 16
      %v1573 = vshrl.u32 %v1533, 16
      %v1576 = vshrl.u32 %v1535, 16
      %v1579 = vshrl.u32 %v1537, 16
      %v1595 = vmax.bf16 %v1511, %v1540
      %v1596 = vmax.bf16 %v1513, %v1543
      %v1597 = vmax.bf16 %v1515, %v1546
      %v1598 = vmax.bf16 %v1517, %v1549
      %v1599 = vmax.bf16 %v1519, %v1552
      %v1600 = vmax.bf16 %v1521, %v1555
      %v1601 = vmax.bf16 %v1523, %v1558
      %v1602 = vmax.bf16 %v1525, %v1561
      %v1603 = vmax.bf16 %v1527, %v1564
      %v1604 = vmax.bf16 %v1529, %v1567
      %v1605 = vmax.bf16 %v1531, %v1570
      %v1606 = vmax.bf16 %v1533, %v1573
      %v1607 = vmax.bf16 %v1535, %v1576
      %v1608 = vmax.bf16 %v1537, %v1579
      %vm1609 = vcmask 253952
      %vm1610 = vsmask.f32 256
      %vm1611 = vmand %vm1609, %vm1610
      %v1612 = vld [vmem:[#allocation2] sm:$0x1]
      %v1613 = vsel %vm1611, %v1595, %v1612
      %1614 = vst [vmem:[#allocation2] sm:$0x1] %v1613
      %v1615 = vld [vmem:[#allocation2 + $0x8] sm:$0x1]
      %v1616 = vsel %vm1611, %v1596, %v1615
      %1617 = vst [vmem:[#allocation2 + $0x8] sm:$0x1] %v1616
      %v1618 = vld [vmem:[#allocation2 + $0x10] sm:$0x1]
      %v1619 = vsel %vm1611, %v1597, %v1618
      %1620 = vst [vmem:[#allocation2 + $0x10] sm:$0x1] %v1619
      %v1621 = vld [vmem:[#allocation2 + $0x18] sm:$0x1]
      %v1622 = vsel %vm1611, %v1598, %v1621
      %1623 = vst [vmem:[#allocation2 + $0x18] sm:$0x1] %v1622
      %v1624 = vld [vmem:[#allocation2 + $0x20] sm:$0x1]
      %v1625 = vsel %vm1611, %v1599, %v1624
      %1626 = vst [vmem:[#allocation2 + $0x20] sm:$0x1] %v1625
      %v1627 = vld [vmem:[#allocation2 + $0x28] sm:$0x1]
      %v1628 = vsel %vm1611, %v1600, %v1627
      %1629 = vst [vmem:[#allocation2 + $0x28] sm:$0x1] %v1628
      %v1630 = vld [vmem:[#allocation2 + $0x30] sm:$0x1]
      %v1631 = vsel %vm1611, %v1601, %v1630
      %1632 = vst [vmem:[#allocation2 + $0x30] sm:$0x1] %v1631
      %v1633 = vld [vmem:[#allocation2 + $0x38] sm:$0x1]
      %v1634 = vsel %vm1611, %v1602, %v1633
      %1635 = vst [vmem:[#allocation2 + $0x38] sm:$0x1] %v1634
      %v1636 = vld [vmem:[#allocation2 + $0x40] sm:$0x1]
      %v1637 = vsel %vm1611, %v1603, %v1636
      %1638 = vst [vmem:[#allocation2 + $0x40] sm:$0x1] %v1637
      %v1639 = vld [vmem:[#allocation2 + $0x48] sm:$0x1]
      %v1640 = vsel %vm1611, %v1604, %v1639
      %1641 = vst [vmem:[#allocation2 + $0x48] sm:$0x1] %v1640
      %v1642 = vld [vmem:[#allocation2 + $0x50] sm:$0x1]
      %v1643 = vsel %vm1611, %v1605, %v1642
      %1644 = vst [vmem:[#allocation2 + $0x50] sm:$0x1] %v1643
      %v1645 = vld [vmem:[#allocation2 + $0x58] sm:$0x1]
      %v1646 = vsel %vm1611, %v1606, %v1645
      %1647 = vst [vmem:[#allocation2 + $0x58] sm:$0x1] %v1646
      %v1648 = vld [vmem:[#allocation2 + $0x60] sm:$0x1]
      %v1649 = vsel %vm1611, %v1607, %v1648
      %1650 = vst [vmem:[#allocation2 + $0x60] sm:$0x1] %v1649
      %v1651 = vld [vmem:[#allocation2 + $0x68] sm:$0x1]
      %v1652 = vsel %vm1611, %v1608, %v1651
      %1653 = vst [vmem:[#allocation2 + $0x68] sm:$0x1] %v1652
      %v1668 = vunpack.c.l.b16 %v1595
      %v1669 = vunpack.c.l.b16 %v1596
      %v1670 = vunpack.c.l.b16 %v1597
      %v1671 = vunpack.c.l.b16 %v1598
      %v1672 = vunpack.c.l.b16 %v1599
      %v1673 = vunpack.c.l.b16 %v1600
      %v1674 = vunpack.c.l.b16 %v1601
      %v1675 = vunpack.c.l.b16 %v1602
      %v1676 = vunpack.c.l.b16 %v1603
      %v1677 = vunpack.c.l.b16 %v1604
      %v1678 = vunpack.c.l.b16 %v1605
      %v1679 = vunpack.c.l.b16 %v1606
      %v1680 = vunpack.c.l.b16 %v1607
      %v1681 = vunpack.c.l.b16 %v1608
      %v1682 = vpack.c.b16 %v1668, %v1668
      %v1683 = vpack.c.b16 %v1669, %v1669
      %v1684 = vpack.c.b16 %v1670, %v1670
      %v1685 = vpack.c.b16 %v1671, %v1671
      %v1686 = vpack.c.b16 %v1672, %v1672
      %v1687 = vpack.c.b16 %v1673, %v1673
      %v1688 = vpack.c.b16 %v1674, %v1674
      %v1689 = vpack.c.b16 %v1675, %v1675
      %v1690 = vpack.c.b16 %v1676, %v1676
      %v1691 = vpack.c.b16 %v1677, %v1677
      %v1692 = vpack.c.b16 %v1678, %v1678
      %v1693 = vpack.c.b16 %v1679, %v1679
      %v1694 = vpack.c.b16 %v1680, %v1680
      %v1695 = vpack.c.b16 %v1681, %v1681
      %v1697 = vshll.u32 %v1682, 16
      %v1699 = vrot.slane %v1697, 5
      %v1700 = vrot.slane %v1699, 4
      %v1702 = vshll.u32 %v1683, 16
      %v1704 = vrot.slane %v1702, 5
      %v1705 = vrot.slane %v1704, 4
      %v1707 = vshll.u32 %v1684, 16
      %v1709 = vrot.slane %v1707, 5
      %v1710 = vrot.slane %v1709, 4
      %v1712 = vshll.u32 %v1685, 16
      %v1714 = vrot.slane %v1712, 5
      %v1715 = vrot.slane %v1714, 4
      %v1717 = vshll.u32 %v1686, 16
      %v1719 = vrot.slane %v1717, 5
      %v1720 = vrot.slane %v1719, 4
      %v1722 = vshll.u32 %v1687, 16
      %v1724 = vrot.slane %v1722, 5
      %v1725 = vrot.slane %v1724, 4
      %v1727 = vshll.u32 %v1688, 16
      %v1729 = vrot.slane %v1727, 5
      %v1730 = vrot.slane %v1729, 4
      %v1732 = vshll.u32 %v1689, 16
      %v1734 = vrot.slane %v1732, 5
      %v1735 = vrot.slane %v1734, 4
      %v1737 = vshll.u32 %v1690, 16
      %v1739 = vrot.slane %v1737, 5
      %v1740 = vrot.slane %v1739, 4
      %v1742 = vshll.u32 %v1691, 16
      %v1744 = vrot.slane %v1742, 5
      %v1745 = vrot.slane %v1744, 4
      %v1747 = vshll.u32 %v1692, 16
      %v1749 = vrot.slane %v1747, 5
      %v1750 = vrot.slane %v1749, 4
      %v1752 = vshll.u32 %v1693, 16
      %v1754 = vrot.slane %v1752, 5
      %v1755 = vrot.slane %v1754, 4
      %v1757 = vshll.u32 %v1694, 16
      %v1759 = vrot.slane %v1757, 5
      %v1760 = vrot.slane %v1759, 4
      %v1762 = vshll.u32 %v1695, 16
      %v1764 = vrot.slane %v1762, 5
      %v1765 = vrot.slane %v1764, 4
      %vm1780 = vsmask.f32 7938
      %vm1781 = vmand %vm1609, %vm1780
      %v1782 = vld [vmem:[#allocation2] sm:$0x1]
      %v1783 = vsel %vm1781, %v1700, %v1782
      %1784 = vst [vmem:[#allocation2] sm:$0x1] %v1783
      %v1785 = vld [vmem:[#allocation2 + $0x8] sm:$0x1]
      %v1786 = vsel %vm1781, %v1705, %v1785
      %1787 = vst [vmem:[#allocation2 + $0x8] sm:$0x1] %v1786
      %v1788 = vld [vmem:[#allocation2 + $0x10] sm:$0x1]
      %v1789 = vsel %vm1781, %v1710, %v1788
      %1790 = vst [vmem:[#allocation2 + $0x10] sm:$0x1] %v1789
      %v1791 = vld [vmem:[#allocation2 + $0x18] sm:$0x1]
      %v1792 = vsel %vm1781, %v1715, %v1791
      %1793 = vst [vmem:[#allocation2 + $0x18] sm:$0x1] %v1792
      %v1794 = vld [vmem:[#allocation2 + $0x20] sm:$0x1]
      %v1795 = vsel %vm1781, %v1720, %v1794
      %1796 = vst [vmem:[#allocation2 + $0x20] sm:$0x1] %v1795
      %v1797 = vld [vmem:[#allocation2 + $0x28] sm:$0x1]
      %v1798 = vsel %vm1781, %v1725, %v1797
      %1799 = vst [vmem:[#allocation2 + $0x28] sm:$0x1] %v1798
      %v1800 = vld [vmem:[#allocation2 + $0x30] sm:$0x1]
      %v1801 = vsel %vm1781, %v1730, %v1800
      %1802 = vst [vmem:[#allocation2 + $0x30] sm:$0x1] %v1801
      %v1803 = vld [vmem:[#allocation2 + $0x38] sm:$0x1]
      %v1804 = vsel %vm1781, %v1735, %v1803
      %1805 = vst [vmem:[#allocation2 + $0x38] sm:$0x1] %v1804
      %v1806 = vld [vmem:[#allocation2 + $0x40] sm:$0x1]
      %v1807 = vsel %vm1781, %v1740, %v1806
      %1808 = vst [vmem:[#allocation2 + $0x40] sm:$0x1] %v1807
      %v1809 = vld [vmem:[#allocation2 + $0x48] sm:$0x1]
      %v1810 = vsel %vm1781, %v1745, %v1809
      %1811 = vst [vmem:[#allocation2 + $0x48] sm:$0x1] %v1810
      %v1812 = vld [vmem:[#allocation2 + $0x50] sm:$0x1]
      %v1813 = vsel %vm1781, %v1750, %v1812
      %1814 = vst [vmem:[#allocation2 + $0x50] sm:$0x1] %v1813
      %v1815 = vld [vmem:[#allocation2 + $0x58] sm:$0x1]
      %v1816 = vsel %vm1781, %v1755, %v1815
      %1817 = vst [vmem:[#allocation2 + $0x58] sm:$0x1] %v1816
      %v1818 = vld [vmem:[#allocation2 + $0x60] sm:$0x1]
      %v1819 = vsel %vm1781, %v1760, %v1818
      %1820 = vst [vmem:[#allocation2 + $0x60] sm:$0x1] %v1819
      %v1821 = vld [vmem:[#allocation2 + $0x68] sm:$0x1]
      %v1822 = vsel %vm1781, %v1765, %v1821
      %1823 = vst [vmem:[#allocation2 + $0x68] sm:$0x1] %v1822
      %v1824 = vrot.slane %v1682, 5
      %v1825 = vrot.slane %v1824, 4
      %v1826 = vrot.slane %v1683, 5
      %v1827 = vrot.slane %v1826, 4
      %v1828 = vrot.slane %v1684, 5
      %v1829 = vrot.slane %v1828, 4
      %v1830 = vrot.slane %v1685, 5
      %v1831 = vrot.slane %v1830, 4
      %v1832 = vrot.slane %v1686, 5
      %v1833 = vrot.slane %v1832, 4
      %v1834 = vrot.slane %v1687, 5
      %v1835 = vrot.slane %v1834, 4
      %v1836 = vrot.slane %v1688, 5
      %v1837 = vrot.slane %v1836, 4
      %v1838 = vrot.slane %v1689, 5
      %v1839 = vrot.slane %v1838, 4
      %v1840 = vrot.slane %v1690, 5
      %v1841 = vrot.slane %v1840, 4
      %v1842 = vrot.slane %v1691, 5
      %v1843 = vrot.slane %v1842, 4
      %v1844 = vrot.slane %v1692, 5
      %v1845 = vrot.slane %v1844, 4
      %v1846 = vrot.slane %v1693, 5
      %v1847 = vrot.slane %v1846, 4
      %v1848 = vrot.slane %v1694, 5
      %v1849 = vrot.slane %v1848, 4
      %v1850 = vrot.slane %v1695, 5
      %v1851 = vrot.slane %v1850, 4
      %vm1866 = vcmask 254977
      %vm1867 = vsmask.f32 1280
      %vm1868 = vmand %vm1866, %vm1867
      %v1869 = vld [vmem:[#allocation2] sm:$0x2]
      %v1870 = vsel %vm1868, %v1825, %v1869
      %1871 = vst [vmem:[#allocation2] sm:$0x2] %v1870
      %v1872 = vld [vmem:[#allocation2 + $0x8] sm:$0x2]
      %v1873 = vsel %vm1868, %v1827, %v1872
      %1874 = vst [vmem:[#allocation2 + $0x8] sm:$0x2] %v1873
      %v1875 = vld [vmem:[#allocation2 + $0x10] sm:$0x2]
      %v1876 = vsel %vm1868, %v1829, %v1875
      %1877 = vst [vmem:[#allocation2 + $0x10] sm:$0x2] %v1876
      %v1878 = vld [vmem:[#allocation2 + $0x18] sm:$0x2]
      %v1879 = vsel %vm1868, %v1831, %v1878
      %1880 = vst [vmem:[#allocation2 + $0x18] sm:$0x2] %v1879
      %v1881 = vld [vmem:[#allocation2 + $0x20] sm:$0x2]
      %v1882 = vsel %vm1868, %v1833, %v1881
      %1883 = vst [vmem:[#allocation2 + $0x20] sm:$0x2] %v1882
      %v1884 = vld [vmem:[#allocation2 + $0x28] sm:$0x2]
      %v1885 = vsel %vm1868, %v1835, %v1884
      %1886 = vst [vmem:[#allocation2 + $0x28] sm:$0x2] %v1885
      %v1887 = vld [vmem:[#allocation2 + $0x30] sm:$0x2]
      %v1888 = vsel %vm1868, %v1837, %v1887
      %1889 = vst [vmem:[#allocation2 + $0x30] sm:$0x2] %v1888
      %v1890 = vld [vmem:[#allocation2 + $0x38] sm:$0x2]
      %v1891 = vsel %vm1868, %v1839, %v1890
      %1892 = vst [vmem:[#allocation2 + $0x38] sm:$0x2] %v1891
      %v1893 = vld [vmem:[#allocation2 + $0x40] sm:$0x2]
      %v1894 = vsel %vm1868, %v1841, %v1893
      %1895 = vst [vmem:[#allocation2 + $0x40] sm:$0x2] %v1894
      %v1896 = vld [vmem:[#allocation2 + $0x48] sm:$0x2]
      %v1897 = vsel %vm1868, %v1843, %v1896
      %1898 = vst [vmem:[#allocation2 + $0x48] sm:$0x2] %v1897
      %v1899 = vld [vmem:[#allocation2 + $0x50] sm:$0x2]
      %v1900 = vsel %vm1868, %v1845, %v1899
      %1901 = vst [vmem:[#allocation2 + $0x50] sm:$0x2] %v1900
      %v1902 = vld [vmem:[#allocation2 + $0x58] sm:$0x2]
      %v1903 = vsel %vm1868, %v1847, %v1902
      %1904 = vst [vmem:[#allocation2 + $0x58] sm:$0x2] %v1903
      %v1905 = vld [vmem:[#allocation2 + $0x60] sm:$0x2]
      %v1906 = vsel %vm1868, %v1849, %v1905
      %1907 = vst [vmem:[#allocation2 + $0x60] sm:$0x2] %v1906
      %v1908 = vld [vmem:[#allocation2 + $0x68] sm:$0x2]
      %v1909 = vsel %vm1868, %v1851, %v1908
      %1910 = vst [vmem:[#allocation2 + $0x68] sm:$0x2] %v1909
      %v1911 = vrot.slane %v1697, 6
      %v1912 = vrot.slane %v1911, 4
      %v1913 = vrot.slane %v1702, 6
      %v1914 = vrot.slane %v1913, 4
      %v1915 = vrot.slane %v1707, 6
      %v1916 = vrot.slane %v1915, 4
      %v1917 = vrot.slane %v1712, 6
      %v1918 = vrot.slane %v1917, 4
      %v1919 = vrot.slane %v1717, 6
      %v1920 = vrot.slane %v1919, 4
      %v1921 = vrot.slane %v1722, 6
      %v1922 = vrot.slane %v1921, 4
      %v1923 = vrot.slane %v1727, 6
      %v1924 = vrot.slane %v1923, 4
      %v1925 = vrot.slane %v1732, 6
      %v1926 = vrot.slane %v1925, 4
      %v1927 = vrot.slane %v1737, 6
      %v1928 = vrot.slane %v1927, 4
      %v1929 = vrot.slane %v1742, 6
      %v1930 = vrot.slane %v1929, 4
      %v1931 = vrot.slane %v1747, 6
      %v1932 = vrot.slane %v1931, 4
      %v1933 = vrot.slane %v1752, 6
      %v1934 = vrot.slane %v1933, 4
      %v1935 = vrot.slane %v1757, 6
      %v1936 = vrot.slane %v1935, 4
      %v1937 = vrot.slane %v1762, 6
      %v1938 = vrot.slane %v1937, 4
      %vm1953 = vsmask.f32 7942
      %vm1954 = vmand %vm1866, %vm1953
      %v1955 = vld [vmem:[#allocation2] sm:$0x2]
      %v1956 = vsel %vm1954, %v1912, %v1955
      %1957 = vst [vmem:[#allocation2] sm:$0x2] %v1956
      %v1958 = vld [vmem:[#allocation2 + $0x8] sm:$0x2]
      %v1959 = vsel %vm1954, %v1914, %v1958
      %1960 = vst [vmem:[#allocation2 + $0x8] sm:$0x2] %v1959
      %v1961 = vld [vmem:[#allocation2 + $0x10] sm:$0x2]
      %v1962 = vsel %vm1954, %v1916, %v1961
      %1963 = vst [vmem:[#allocation2 + $0x10] sm:$0x2] %v1962
      %v1964 = vld [vmem:[#allocation2 + $0x18] sm:$0x2]
      %v1965 = vsel %vm1954, %v1918, %v1964
      %1966 = vst [vmem:[#allocation2 + $0x18] sm:$0x2] %v1965
      %v1967 = vld [vmem:[#allocation2 + $0x20] sm:$0x2]
      %v1968 = vsel %vm1954, %v1920, %v1967
      %1969 = vst [vmem:[#allocation2 + $0x20] sm:$0x2] %v1968
      %v1970 = vld [vmem:[#allocation2 + $0x28] sm:$0x2]
      %v1971 = vsel %vm1954, %v1922, %v1970
      %1972 = vst [vmem:[#allocation2 + $0x28] sm:$0x2] %v1971
      %v1973 = vld [vmem:[#allocation2 + $0x30] sm:$0x2]
      %v1974 = vsel %vm1954, %v1924, %v1973
      %1975 = vst [vmem:[#allocation2 + $0x30] sm:$0x2] %v1974
      %v1976 = vld [vmem:[#allocation2 + $0x38] sm:$0x2]
      %v1977 = vsel %vm1954, %v1926, %v1976
      %1978 = vst [vmem:[#allocation2 + $0x38] sm:$0x2] %v1977
      %v1979 = vld [vmem:[#allocation2 + $0x40] sm:$0x2]
      %v1980 = vsel %vm1954, %v1928, %v1979
      %1981 = vst [vmem:[#allocation2 + $0x40] sm:$0x2] %v1980
      %v1982 = vld [vmem:[#allocation2 + $0x48] sm:$0x2]
      %v1983 = vsel %vm1954, %v1930, %v1982
      %1984 = vst [vmem:[#allocation2 + $0x48] sm:$0x2] %v1983
      %v1985 = vld [vmem:[#allocation2 + $0x50] sm:$0x2]
      %v1986 = vsel %vm1954, %v1932, %v1985
      %1987 = vst [vmem:[#allocation2 + $0x50] sm:$0x2] %v1986
      %v1988 = vld [vmem:[#allocation2 + $0x58] sm:$0x2]
      %v1989 = vsel %vm1954, %v1934, %v1988
      %1990 = vst [vmem:[#allocation2 + $0x58] sm:$0x2] %v1989
      %v1991 = vld [vmem:[#allocation2 + $0x60] sm:$0x2]
      %v1992 = vsel %vm1954, %v1936, %v1991
      %1993 = vst [vmem:[#allocation2 + $0x60] sm:$0x2] %v1992
      %v1994 = vld [vmem:[#allocation2 + $0x68] sm:$0x2]
      %v1995 = vsel %vm1954, %v1938, %v1994
      %1996 = vst [vmem:[#allocation2 + $0x68] sm:$0x2] %v1995
      %v1997 = vunpack.c.h.b16 %v1595
      %v1998 = vunpack.c.h.b16 %v1596
      %v1999 = vunpack.c.h.b16 %v1597
      %v2000 = vunpack.c.h.b16 %v1598
      %v2001 = vunpack.c.h.b16 %v1599
      %v2002 = vunpack.c.h.b16 %v1600
      %v2003 = vunpack.c.h.b16 %v1601
      %v2004 = vunpack.c.h.b16 %v1602
      %v2005 = vunpack.c.h.b16 %v1603
      %v2006 = vunpack.c.h.b16 %v1604
      %v2007 = vunpack.c.h.b16 %v1605
      %v2008 = vunpack.c.h.b16 %v1606
      %v2009 = vunpack.c.h.b16 %v1607
      %v2010 = vunpack.c.h.b16 %v1608
      %v2011 = vpack.c.b16 %v1997, %v1997
      %v2012 = vpack.c.b16 %v1998, %v1998
      %v2013 = vpack.c.b16 %v1999, %v1999
      %v2014 = vpack.c.b16 %v2000, %v2000
      %v2015 = vpack.c.b16 %v2001, %v2001
      %v2016 = vpack.c.b16 %v2002, %v2002
      %v2017 = vpack.c.b16 %v2003, %v2003
      %v2018 = vpack.c.b16 %v2004, %v2004
      %v2019 = vpack.c.b16 %v2005, %v2005
      %v2020 = vpack.c.b16 %v2006, %v2006
      %v2021 = vpack.c.b16 %v2007, %v2007
      %v2022 = vpack.c.b16 %v2008, %v2008
      %v2023 = vpack.c.b16 %v2009, %v2009
      %v2024 = vpack.c.b16 %v2010, %v2010
      %v2025 = vrot.slane %v2011, 6
      %v2026 = vrot.slane %v2012, 6
      %v2027 = vrot.slane %v2013, 6
      %v2028 = vrot.slane %v2014, 6
      %v2029 = vrot.slane %v2015, 6
      %v2030 = vrot.slane %v2016, 6
      %v2031 = vrot.slane %v2017, 6
      %v2032 = vrot.slane %v2018, 6
      %v2033 = vrot.slane %v2019, 6
      %v2034 = vrot.slane %v2020, 6
      %v2035 = vrot.slane %v2021, 6
      %v2036 = vrot.slane %v2022, 6
      %v2037 = vrot.slane %v2023, 6
      %v2038 = vrot.slane %v2024, 6
      %vm2053 = vcmask 256002
      %vm2054 = vsmask.f32 2304
      %vm2055 = vmand %vm2053, %vm2054
      %v2056 = vld [vmem:[#allocation2] sm:$0x4]
      %v2057 = vsel %vm2055, %v2025, %v2056
      %2058 = vst [vmem:[#allocation2] sm:$0x4] %v2057
      %v2059 = vld [vmem:[#allocation2 + $0x8] sm:$0x4]
      %v2060 = vsel %vm2055, %v2026, %v2059
      %2061 = vst [vmem:[#allocation2 + $0x8] sm:$0x4] %v2060
      %v2062 = vld [vmem:[#allocation2 + $0x10] sm:$0x4]
      %v2063 = vsel %vm2055, %v2027, %v2062
      %2064 = vst [vmem:[#allocation2 + $0x10] sm:$0x4] %v2063
      %v2065 = vld [vmem:[#allocation2 + $0x18] sm:$0x4]
      %v2066 = vsel %vm2055, %v2028, %v2065
      %2067 = vst [vmem:[#allocation2 + $0x18] sm:$0x4] %v2066
      %v2068 = vld [vmem:[#allocation2 + $0x20] sm:$0x4]
      %v2069 = vsel %vm2055, %v2029, %v2068
      %2070 = vst [vmem:[#allocation2 + $0x20] sm:$0x4] %v2069
      %v2071 = vld [vmem:[#allocation2 + $0x28] sm:$0x4]
      %v2072 = vsel %vm2055, %v2030, %v2071
      %2073 = vst [vmem:[#allocation2 + $0x28] sm:$0x4] %v2072
      %v2074 = vld [vmem:[#allocation2 + $0x30] sm:$0x4]
      %v2075 = vsel %vm2055, %v2031, %v2074
      %2076 = vst [vmem:[#allocation2 + $0x30] sm:$0x4] %v2075
      %v2077 = vld [vmem:[#allocation2 + $0x38] sm:$0x4]
      %v2078 = vsel %vm2055, %v2032, %v2077
      %2079 = vst [vmem:[#allocation2 + $0x38] sm:$0x4] %v2078
      %v2080 = vld [vmem:[#allocation2 + $0x40] sm:$0x4]
      %v2081 = vsel %vm2055, %v2033, %v2080
      %2082 = vst [vmem:[#allocation2 + $0x40] sm:$0x4] %v2081
      %v2083 = vld [vmem:[#allocation2 + $0x48] sm:$0x4]
      %v2084 = vsel %vm2055, %v2034, %v2083
      %2085 = vst [vmem:[#allocation2 + $0x48] sm:$0x4] %v2084
      %v2086 = vld [vmem:[#allocation2 + $0x50] sm:$0x4]
      %v2087 = vsel %vm2055, %v2035, %v2086
      %2088 = vst [vmem:[#allocation2 + $0x50] sm:$0x4] %v2087
      %v2089 = vld [vmem:[#allocation2 + $0x58] sm:$0x4]
      %v2090 = vsel %vm2055, %v2036, %v2089
      %2091 = vst [vmem:[#allocation2 + $0x58] sm:$0x4] %v2090
      %v2092 = vld [vmem:[#allocation2 + $0x60] sm:$0x4]
      %v2093 = vsel %vm2055, %v2037, %v2092
      %2094 = vst [vmem:[#allocation2 + $0x60] sm:$0x4] %v2093
      %v2095 = vld [vmem:[#allocation2 + $0x68] sm:$0x4]
      %v2096 = vsel %vm2055, %v2038, %v2095
      %2097 = vst [vmem:[#allocation2 + $0x68] sm:$0x4] %v2096
      %v2099 = vshll.u32 %v2011, 16
      %v2101 = vrot.slane %v2099, 7
      %v2103 = vshll.u32 %v2012, 16
      %v2105 = vrot.slane %v2103, 7
      %v2107 = vshll.u32 %v2013, 16
      %v2109 = vrot.slane %v2107, 7
      %v2111 = vshll.u32 %v2014, 16
      %v2113 = vrot.slane %v2111, 7
      %v2115 = vshll.u32 %v2015, 16
      %v2117 = vrot.slane %v2115, 7
      %v2119 = vshll.u32 %v2016, 16
      %v2121 = vrot.slane %v2119, 7
      %v2123 = vshll.u32 %v2017, 16
      %v2125 = vrot.slane %v2123, 7
      %v2127 = vshll.u32 %v2018, 16
      %v2129 = vrot.slane %v2127, 7
      %v2131 = vshll.u32 %v2019, 16
      %v2133 = vrot.slane %v2131, 7
      %v2135 = vshll.u32 %v2020, 16
      %v2137 = vrot.slane %v2135, 7
      %v2139 = vshll.u32 %v2021, 16
      %v2141 = vrot.slane %v2139, 7
      %v2143 = vshll.u32 %v2022, 16
      %v2145 = vrot.slane %v2143, 7
      %v2147 = vshll.u32 %v2023, 16
      %v2149 = vrot.slane %v2147, 7
      %v2151 = vshll.u32 %v2024, 16
      %v2153 = vrot.slane %v2151, 7
      %vm2168 = vsmask.f32 7946
      %vm2169 = vmand %vm2053, %vm2168
      %v2170 = vld [vmem:[#allocation2] sm:$0x4]
      %v2171 = vsel %vm2169, %v2101, %v2170
      %2172 = vst [vmem:[#allocation2] sm:$0x4] %v2171
      %v2173 = vld [vmem:[#allocation2 + $0x8] sm:$0x4]
      %v2174 = vsel %vm2169, %v2105, %v2173
      %2175 = vst [vmem:[#allocation2 + $0x8] sm:$0x4] %v2174
      %v2176 = vld [vmem:[#allocation2 + $0x10] sm:$0x4]
      %v2177 = vsel %vm2169, %v2109, %v2176
      %2178 = vst [vmem:[#allocation2 + $0x10] sm:$0x4] %v2177
      %v2179 = vld [vmem:[#allocation2 + $0x18] sm:$0x4]
      %v2180 = vsel %vm2169, %v2113, %v2179
      %2181 = vst [vmem:[#allocation2 + $0x18] sm:$0x4] %v2180
      %v2182 = vld [vmem:[#allocation2 + $0x20] sm:$0x4]
      %v2183 = vsel %vm2169, %v2117, %v2182
      %2184 = vst [vmem:[#allocation2 + $0x20] sm:$0x4] %v2183
      %v2185 = vld [vmem:[#allocation2 + $0x28] sm:$0x4]
      %v2186 = vsel %vm2169, %v2121, %v2185
      %2187 = vst [vmem:[#allocation2 + $0x28] sm:$0x4] %v2186
      %v2188 = vld [vmem:[#allocation2 + $0x30] sm:$0x4]
      %v2189 = vsel %vm2169, %v2125, %v2188
      %2190 = vst [vmem:[#allocation2 + $0x30] sm:$0x4] %v2189
      %v2191 = vld [vmem:[#allocation2 + $0x38] sm:$0x4]
      %v2192 = vsel %vm2169, %v2129, %v2191
      %2193 = vst [vmem:[#allocation2 + $0x38] sm:$0x4] %v2192
      %v2194 = vld [vmem:[#allocation2 + $0x40] sm:$0x4]
      %v2195 = vsel %vm2169, %v2133, %v2194
      %2196 = vst [vmem:[#allocation2 + $0x40] sm:$0x4] %v2195
      %v2197 = vld [vmem:[#allocation2 + $0x48] sm:$0x4]
      %v2198 = vsel %vm2169, %v2137, %v2197
      %2199 = vst [vmem:[#allocation2 + $0x48] sm:$0x4] %v2198
      %v2200 = vld [vmem:[#allocation2 + $0x50] sm:$0x4]
      %v2201 = vsel %vm2169, %v2141, %v2200
      %2202 = vst [vmem:[#allocation2 + $0x50] sm:$0x4] %v2201
      %v2203 = vld [vmem:[#allocation2 + $0x58] sm:$0x4]
      %v2204 = vsel %vm2169, %v2145, %v2203
      %2205 = vst [vmem:[#allocation2 + $0x58] sm:$0x4] %v2204
      %v2206 = vld [vmem:[#allocation2 + $0x60] sm:$0x4]
      %v2207 = vsel %vm2169, %v2149, %v2206
      %2208 = vst [vmem:[#allocation2 + $0x60] sm:$0x4] %v2207
      %v2209 = vld [vmem:[#allocation2 + $0x68] sm:$0x4]
      %v2210 = vsel %vm2169, %v2153, %v2209
      %2211 = vst [vmem:[#allocation2 + $0x68] sm:$0x4] %v2210
      %v2212 = vrot.slane %v2011, 7
      %v2213 = vrot.slane %v2012, 7
      %v2214 = vrot.slane %v2013, 7
      %v2215 = vrot.slane %v2014, 7
      %v2216 = vrot.slane %v2015, 7
      %v2217 = vrot.slane %v2016, 7
      %v2218 = vrot.slane %v2017, 7
      %v2219 = vrot.slane %v2018, 7
      %v2220 = vrot.slane %v2019, 7
      %v2221 = vrot.slane %v2020, 7
      %v2222 = vrot.slane %v2021, 7
      %v2223 = vrot.slane %v2022, 7
      %v2224 = vrot.slane %v2023, 7
      %v2225 = vrot.slane %v2024, 7
      %vm2240 = vcmask 257027
      %vm2241 = vsmask.f32 3328
      %vm2242 = vmand %vm2240, %vm2241
      %v2243 = vld [vmem:[#allocation2] sm:$0x8]
      %v2244 = vsel %vm2242, %v2212, %v2243
      %2245 = vst [vmem:[#allocation2] sm:$0x8] %v2244
      %v2246 = vld [vmem:[#allocation2 + $0x8] sm:$0x8]
      %v2247 = vsel %vm2242, %v2213, %v2246
      %2248 = vst [vmem:[#allocation2 + $0x8] sm:$0x8] %v2247
      %v2249 = vld [vmem:[#allocation2 + $0x10] sm:$0x8]
      %v2250 = vsel %vm2242, %v2214, %v2249
      %2251 = vst [vmem:[#allocation2 + $0x10] sm:$0x8] %v2250
      %v2252 = vld [vmem:[#allocation2 + $0x18] sm:$0x8]
      %v2253 = vsel %vm2242, %v2215, %v2252
      %2254 = vst [vmem:[#allocation2 + $0x18] sm:$0x8] %v2253
      %v2255 = vld [vmem:[#allocation2 + $0x20] sm:$0x8]
      %v2256 = vsel %vm2242, %v2216, %v2255
      %2257 = vst [vmem:[#allocation2 + $0x20] sm:$0x8] %v2256
      %v2258 = vld [vmem:[#allocation2 + $0x28] sm:$0x8]
      %v2259 = vsel %vm2242, %v2217, %v2258
      %2260 = vst [vmem:[#allocation2 + $0x28] sm:$0x8] %v2259
      %v2261 = vld [vmem:[#allocation2 + $0x30] sm:$0x8]
      %v2262 = vsel %vm2242, %v2218, %v2261
      %2263 = vst [vmem:[#allocation2 + $0x30] sm:$0x8] %v2262
      %v2264 = vld [vmem:[#allocation2 + $0x38] sm:$0x8]
      %v2265 = vsel %vm2242, %v2219, %v2264
      %2266 = vst [vmem:[#allocation2 + $0x38] sm:$0x8] %v2265
      %v2267 = vld [vmem:[#allocation2 + $0x40] sm:$0x8]
      %v2268 = vsel %vm2242, %v2220, %v2267
      %2269 = vst [vmem:[#allocation2 + $0x40] sm:$0x8] %v2268
      %v2270 = vld [vmem:[#allocation2 + $0x48] sm:$0x8]
      %v2271 = vsel %vm2242, %v2221, %v2270
      %2272 = vst [vmem:[#allocation2 + $0x48] sm:$0x8] %v2271
      %v2273 = vld [vmem:[#allocation2 + $0x50] sm:$0x8]
      %v2274 = vsel %vm2242, %v2222, %v2273
      %2275 = vst [vmem:[#allocation2 + $0x50] sm:$0x8] %v2274
      %v2276 = vld [vmem:[#allocation2 + $0x58] sm:$0x8]
      %v2277 = vsel %vm2242, %v2223, %v2276
      %2278 = vst [vmem:[#allocation2 + $0x58] sm:$0x8] %v2277
      %v2279 = vld [vmem:[#allocation2 + $0x60] sm:$0x8]
      %v2280 = vsel %vm2242, %v2224, %v2279
      %2281 = vst [vmem:[#allocation2 + $0x60] sm:$0x8] %v2280
      %v2282 = vld [vmem:[#allocation2 + $0x68] sm:$0x8]
      %v2283 = vsel %vm2242, %v2225, %v2282
      %2284 = vst [vmem:[#allocation2 + $0x68] sm:$0x8] %v2283
      %vm2299 = vsmask.f32 7950
      %vm2300 = vmand %vm2240, %vm2299
      %v2301 = vld [vmem:[#allocation2] sm:$0x8]
      %v2302 = vsel %vm2300, %v2099, %v2301
      %2303 = vst [vmem:[#allocation2] sm:$0x8] %v2302
      %v2304 = vld [vmem:[#allocation2 + $0x8] sm:$0x8]
      %v2305 = vsel %vm2300, %v2103, %v2304
      %2306 = vst [vmem:[#allocation2 + $0x8] sm:$0x8] %v2305
      %v2307 = vld [vmem:[#allocation2 + $0x10] sm:$0x8]
      %v2308 = vsel %vm2300, %v2107, %v2307
      %2309 = vst [vmem:[#allocation2 + $0x10] sm:$0x8] %v2308
      %v2310 = vld [vmem:[#allocation2 + $0x18] sm:$0x8]
      %v2311 = vsel %vm2300, %v2111, %v2310
      %2312 = vst [vmem:[#allocation2 + $0x18] sm:$0x8] %v2311
      %v2313 = vld [vmem:[#allocation2 + $0x20] sm:$0x8]
      %v2314 = vsel %vm2300, %v2115, %v2313
      %2315 = vst [vmem:[#allocation2 + $0x20] sm:$0x8] %v2314
      %v2316 = vld [vmem:[#allocation2 + $0x28] sm:$0x8]
      %v2317 = vsel %vm2300, %v2119, %v2316
      %2318 = vst [vmem:[#allocation2 + $0x28] sm:$0x8] %v2317
      %v2319 = vld [vmem:[#allocation2 + $0x30] sm:$0x8]
      %v2320 = vsel %vm2300, %v2123, %v2319
      %2321 = vst [vmem:[#allocation2 + $0x30] sm:$0x8] %v2320
      %v2322 = vld [vmem:[#allocation2 + $0x38] sm:$0x8]
      %v2323 = vsel %vm2300, %v2127, %v2322
      %2324 = vst [vmem:[#allocation2 + $0x38] sm:$0x8] %v2323
      %v2325 = vld [vmem:[#allocation2 + $0x40] sm:$0x8]
      %v2326 = vsel %vm2300, %v2131, %v2325
      %2327 = vst [vmem:[#allocation2 + $0x40] sm:$0x8] %v2326
      %v2328 = vld [vmem:[#allocation2 + $0x48] sm:$0x8]
      %v2329 = vsel %vm2300, %v2135, %v2328
      %2330 = vst [vmem:[#allocation2 + $0x48] sm:$0x8] %v2329
      %v2331 = vld [vmem:[#allocation2 + $0x50] sm:$0x8]
      %v2332 = vsel %vm2300, %v2139, %v2331
      %2333 = vst [vmem:[#allocation2 + $0x50] sm:$0x8] %v2332
      %v2334 = vld [vmem:[#allocation2 + $0x58] sm:$0x8]
      %v2335 = vsel %vm2300, %v2143, %v2334
      %2336 = vst [vmem:[#allocation2 + $0x58] sm:$0x8] %v2335
      %v2337 = vld [vmem:[#allocation2 + $0x60] sm:$0x8]
      %v2338 = vsel %vm2300, %v2147, %v2337
      %2339 = vst [vmem:[#allocation2 + $0x60] sm:$0x8] %v2338
      %v2340 = vld [vmem:[#allocation2 + $0x68] sm:$0x8]
      %v2341 = vsel %vm2300, %v2151, %v2340
      %2342 = vst [vmem:[#allocation2 + $0x68] sm:$0x8] %v2341
      %v2344 = vshrl.u32 %v1512, 16
      %v2347 = vshrl.u32 %v1514, 16
      %v2350 = vshrl.u32 %v1516, 16
      %v2353 = vshrl.u32 %v1518, 16
      %v2356 = vshrl.u32 %v1520, 16
      %v2359 = vshrl.u32 %v1522, 16
      %v2362 = vshrl.u32 %v1524, 16
      %v2365 = vshrl.u32 %v1526, 16
      %v2368 = vshrl.u32 %v1528, 16
      %v2371 = vshrl.u32 %v1530, 16
      %v2374 = vshrl.u32 %v1532, 16
      %v2377 = vshrl.u32 %v1534, 16
      %v2380 = vshrl.u32 %v1536, 16
      %v2383 = vshrl.u32 %v1538, 16
      %v2399 = vmax.bf16 %v1512, %v2344
      %v2400 = vmax.bf16 %v1514, %v2347
      %v2401 = vmax.bf16 %v1516, %v2350
      %v2402 = vmax.bf16 %v1518, %v2353
      %v2403 = vmax.bf16 %v1520, %v2356
      %v2404 = vmax.bf16 %v1522, %v2359
      %v2405 = vmax.bf16 %v1524, %v2362
      %v2406 = vmax.bf16 %v1526, %v2365
      %v2407 = vmax.bf16 %v1528, %v2368
      %v2408 = vmax.bf16 %v1530, %v2371
      %v2409 = vmax.bf16 %v1532, %v2374
      %v2410 = vmax.bf16 %v1534, %v2377
      %v2411 = vmax.bf16 %v1536, %v2380
      %v2412 = vmax.bf16 %v1538, %v2383
      %v2413 = vld [vmem:[#allocation2 + $0x4] sm:$0x1]
      %v2414 = vsel %vm1611, %v2399, %v2413
      %2415 = vst [vmem:[#allocation2 + $0x4] sm:$0x1] %v2414
      %v2416 = vld [vmem:[#allocation2 + $0xc] sm:$0x1]
      %v2417 = vsel %vm1611, %v2400, %v2416
      %2418 = vst [vmem:[#allocation2 + $0xc] sm:$0x1] %v2417
      %v2419 = vld [vmem:[#allocation2 + $0x14] sm:$0x1]
      %v2420 = vsel %vm1611, %v2401, %v2419
      %2421 = vst [vmem:[#allocation2 + $0x14] sm:$0x1] %v2420
      %v2422 = vld [vmem:[#allocation2 + $0x1c] sm:$0x1]
      %v2423 = vsel %vm1611, %v2402, %v2422
      %2424 = vst [vmem:[#allocation2 + $0x1c] sm:$0x1] %v2423
      %v2425 = vld [vmem:[#allocation2 + $0x24] sm:$0x1]
      %v2426 = vsel %vm1611, %v2403, %v2425
      %2427 = vst [vmem:[#allocation2 + $0x24] sm:$0x1] %v2426
      %v2428 = vld [vmem:[#allocation2 + $0x2c] sm:$0x1]
      %v2429 = vsel %vm1611, %v2404, %v2428
      %2430 = vst [vmem:[#allocation2 + $0x2c] sm:$0x1] %v2429
      %v2431 = vld [vmem:[#allocation2 + $0x34] sm:$0x1]
      %v2432 = vsel %vm1611, %v2405, %v2431
      %2433 = vst [vmem:[#allocation2 + $0x34] sm:$0x1] %v2432
      %v2434 = vld [vmem:[#allocation2 + $0x3c] sm:$0x1]
      %v2435 = vsel %vm1611, %v2406, %v2434
      %2436 = vst [vmem:[#allocation2 + $0x3c] sm:$0x1] %v2435
      %v2437 = vld [vmem:[#allocation2 + $0x44] sm:$0x1]
      %v2438 = vsel %vm1611, %v2407, %v2437
      %2439 = vst [vmem:[#allocation2 + $0x44] sm:$0x1] %v2438
      %v2440 = vld [vmem:[#allocation2 + $0x4c] sm:$0x1]
      %v2441 = vsel %vm1611, %v2408, %v2440
      %2442 = vst [vmem:[#allocation2 + $0x4c] sm:$0x1] %v2441
      %v2443 = vld [vmem:[#allocation2 + $0x54] sm:$0x1]
      %v2444 = vsel %vm1611, %v2409, %v2443
      %2445 = vst [vmem:[#allocation2 + $0x54] sm:$0x1] %v2444
      %v2446 = vld [vmem:[#allocation2 + $0x5c] sm:$0x1]
      %v2447 = vsel %vm1611, %v2410, %v2446
      %2448 = vst [vmem:[#allocation2 + $0x5c] sm:$0x1] %v2447
      %v2449 = vld [vmem:[#allocation2 + $0x64] sm:$0x1]
      %v2450 = vsel %vm1611, %v2411, %v2449
      %2451 = vst [vmem:[#allocation2 + $0x64] sm:$0x1] %v2450
      %v2452 = vld [vmem:[#allocation2 + $0x6c] sm:$0x1]
      %v2453 = vsel %vm1611, %v2412, %v2452
      %2454 = vst [vmem:[#allocation2 + $0x6c] sm:$0x1] %v2453
      %v2469 = vunpack.c.l.b16 %v2399
      %v2470 = vunpack.c.l.b16 %v2400
      %v2471 = vunpack.c.l.b16 %v2401
      %v2472 = vunpack.c.l.b16 %v2402
      %v2473 = vunpack.c.l.b16 %v2403
      %v2474 = vunpack.c.l.b16 %v2404
      %v2475 = vunpack.c.l.b16 %v2405
      %v2476 = vunpack.c.l.b16 %v2406
      %v2477 = vunpack.c.l.b16 %v2407
      %v2478 = vunpack.c.l.b16 %v2408
      %v2479 = vunpack.c.l.b16 %v2409
      %v2480 = vunpack.c.l.b16 %v2410
      %v2481 = vunpack.c.l.b16 %v2411
      %v2482 = vunpack.c.l.b16 %v2412
      %v2483 = vpack.c.b16 %v2469, %v2469
      %v2484 = vpack.c.b16 %v2470, %v2470
      %v2485 = vpack.c.b16 %v2471, %v2471
      %v2486 = vpack.c.b16 %v2472, %v2472
      %v2487 = vpack.c.b16 %v2473, %v2473
      %v2488 = vpack.c.b16 %v2474, %v2474
      %v2489 = vpack.c.b16 %v2475, %v2475
      %v2490 = vpack.c.b16 %v2476, %v2476
      %v2491 = vpack.c.b16 %v2477, %v2477
      %v2492 = vpack.c.b16 %v2478, %v2478
      %v2493 = vpack.c.b16 %v2479, %v2479
      %v2494 = vpack.c.b16 %v2480, %v2480
      %v2495 = vpack.c.b16 %v2481, %v2481
      %v2496 = vpack.c.b16 %v2482, %v2482
      %v2498 = vshll.u32 %v2483, 16
      %v2500 = vrot.slane %v2498, 5
      %v2501 = vrot.slane %v2500, 4
      %v2503 = vshll.u32 %v2484, 16
      %v2505 = vrot.slane %v2503, 5
      %v2506 = vrot.slane %v2505, 4
      %v2508 = vshll.u32 %v2485, 16
      %v2510 = vrot.slane %v2508, 5
      %v2511 = vrot.slane %v2510, 4
      %v2513 = vshll.u32 %v2486, 16
      %v2515 = vrot.slane %v2513, 5
      %v2516 = vrot.slane %v2515, 4
      %v2518 = vshll.u32 %v2487, 16
      %v2520 = vrot.slane %v2518, 5
      %v2521 = vrot.slane %v2520, 4
      %v2523 = vshll.u32 %v2488, 16
      %v2525 = vrot.slane %v2523, 5
      %v2526 = vrot.slane %v2525, 4
      %v2528 = vshll.u32 %v2489, 16
      %v2530 = vrot.slane %v2528, 5
      %v2531 = vrot.slane %v2530, 4
      %v2533 = vshll.u32 %v2490, 16
      %v2535 = vrot.slane %v2533, 5
      %v2536 = vrot.slane %v2535, 4
      %v2538 = vshll.u32 %v2491, 16
      %v2540 = vrot.slane %v2538, 5
      %v2541 = vrot.slane %v2540, 4
      %v2543 = vshll.u32 %v2492, 16
      %v2545 = vrot.slane %v2543, 5
      %v2546 = vrot.slane %v2545, 4
      %v2548 = vshll.u32 %v2493, 16
      %v2550 = vrot.slane %v2548, 5
      %v2551 = vrot.slane %v2550, 4
      %v2553 = vshll.u32 %v2494, 16
      %v2555 = vrot.slane %v2553, 5
      %v2556 = vrot.slane %v2555, 4
      %v2558 = vshll.u32 %v2495, 16
      %v2560 = vrot.slane %v2558, 5
      %v2561 = vrot.slane %v2560, 4
      %v2563 = vshll.u32 %v2496, 16
      %v2565 = vrot.slane %v2563, 5
      %v2566 = vrot.slane %v2565, 4
      %v2581 = vld [vmem:[#allocation2 + $0x4] sm:$0x1]
      %v2582 = vsel %vm1781, %v2501, %v2581
      %2583 = vst [vmem:[#allocation2 + $0x4] sm:$0x1] %v2582
      %v2584 = vld [vmem:[#allocation2 + $0xc] sm:$0x1]
      %v2585 = vsel %vm1781, %v2506, %v2584
      %2586 = vst [vmem:[#allocation2 + $0xc] sm:$0x1] %v2585
      %v2587 = vld [vmem:[#allocation2 + $0x14] sm:$0x1]
      %v2588 = vsel %vm1781, %v2511, %v2587
      %2589 = vst [vmem:[#allocation2 + $0x14] sm:$0x1] %v2588
      %v2590 = vld [vmem:[#allocation2 + $0x1c] sm:$0x1]
      %v2591 = vsel %vm1781, %v2516, %v2590
      %2592 = vst [vmem:[#allocation2 + $0x1c] sm:$0x1] %v2591
      %v2593 = vld [vmem:[#allocation2 + $0x24] sm:$0x1]
      %v2594 = vsel %vm1781, %v2521, %v2593
      %2595 = vst [vmem:[#allocation2 + $0x24] sm:$0x1] %v2594
      %v2596 = vld [vmem:[#allocation2 + $0x2c] sm:$0x1]
      %v2597 = vsel %vm1781, %v2526, %v2596
      %2598 = vst [vmem:[#allocation2 + $0x2c] sm:$0x1] %v2597
      %v2599 = vld [vmem:[#allocation2 + $0x34] sm:$0x1]
      %v2600 = vsel %vm1781, %v2531, %v2599
      %2601 = vst [vmem:[#allocation2 + $0x34] sm:$0x1] %v2600
      %v2602 = vld [vmem:[#allocation2 + $0x3c] sm:$0x1]
      %v2603 = vsel %vm1781, %v2536, %v2602
      %2604 = vst [vmem:[#allocation2 + $0x3c] sm:$0x1] %v2603
      %v2605 = vld [vmem:[#allocation2 + $0x44] sm:$0x1]
      %v2606 = vsel %vm1781, %v2541, %v2605
      %2607 = vst [vmem:[#allocation2 + $0x44] sm:$0x1] %v2606
      %v2608 = vld [vmem:[#allocation2 + $0x4c] sm:$0x1]
      %v2609 = vsel %vm1781, %v2546, %v2608
      %2610 = vst [vmem:[#allocation2 + $0x4c] sm:$0x1] %v2609
      %v2611 = vld [vmem:[#allocation2 + $0x54] sm:$0x1]
      %v2612 = vsel %vm1781, %v2551, %v2611
      %2613 = vst [vmem:[#allocation2 + $0x54] sm:$0x1] %v2612
      %v2614 = vld [vmem:[#allocation2 + $0x5c] sm:$0x1]
      %v2615 = vsel %vm1781, %v2556, %v2614
      %2616 = vst [vmem:[#allocation2 + $0x5c] sm:$0x1] %v2615
      %v2617 = vld [vmem:[#allocation2 + $0x64] sm:$0x1]
      %v2618 = vsel %vm1781, %v2561, %v2617
      %2619 = vst [vmem:[#allocation2 + $0x64] sm:$0x1] %v2618
      %v2620 = vld [vmem:[#allocation2 + $0x6c] sm:$0x1]
      %v2621 = vsel %vm1781, %v2566, %v2620
      %2622 = vst [vmem:[#allocation2 + $0x6c] sm:$0x1] %v2621
      %v2623 = vrot.slane %v2483, 5
      %v2624 = vrot.slane %v2623, 4
      %v2625 = vrot.slane %v2484, 5
      %v2626 = vrot.slane %v2625, 4
      %v2627 = vrot.slane %v2485, 5
      %v2628 = vrot.slane %v2627, 4
      %v2629 = vrot.slane %v2486, 5
      %v2630 = vrot.slane %v2629, 4
      %v2631 = vrot.slane %v2487, 5
      %v2632 = vrot.slane %v2631, 4
      %v2633 = vrot.slane %v2488, 5
      %v2634 = vrot.slane %v2633, 4
      %v2635 = vrot.slane %v2489, 5
      %v2636 = vrot.slane %v2635, 4
      %v2637 = vrot.slane %v2490, 5
      %v2638 = vrot.slane %v2637, 4
      %v2639 = vrot.slane %v2491, 5
      %v2640 = vrot.slane %v2639, 4
      %v2641 = vrot.slane %v2492, 5
      %v2642 = vrot.slane %v2641, 4
      %v2643 = vrot.slane %v2493, 5
      %v2644 = vrot.slane %v2643, 4
      %v2645 = vrot.slane %v2494, 5
      %v2646 = vrot.slane %v2645, 4
      %v2647 = vrot.slane %v2495, 5
      %v2648 = vrot.slane %v2647, 4
      %v2649 = vrot.slane %v2496, 5
      %v2650 = vrot.slane %v2649, 4
      %v2665 = vld [vmem:[#allocation2 + $0x4] sm:$0x2]
      %v2666 = vsel %vm1868, %v2624, %v2665
      %2667 = vst [vmem:[#allocation2 + $0x4] sm:$0x2] %v2666
      %v2668 = vld [vmem:[#allocation2 + $0xc] sm:$0x2]
      %v2669 = vsel %vm1868, %v2626, %v2668
      %2670 = vst [vmem:[#allocation2 + $0xc] sm:$0x2] %v2669
      %v2671 = vld [vmem:[#allocation2 + $0x14] sm:$0x2]
      %v2672 = vsel %vm1868, %v2628, %v2671
      %2673 = vst [vmem:[#allocation2 + $0x14] sm:$0x2] %v2672
      %v2674 = vld [vmem:[#allocation2 + $0x1c] sm:$0x2]
      %v2675 = vsel %vm1868, %v2630, %v2674
      %2676 = vst [vmem:[#allocation2 + $0x1c] sm:$0x2] %v2675
      %v2677 = vld [vmem:[#allocation2 + $0x24] sm:$0x2]
      %v2678 = vsel %vm1868, %v2632, %v2677
      %2679 = vst [vmem:[#allocation2 + $0x24] sm:$0x2] %v2678
      %v2680 = vld [vmem:[#allocation2 + $0x2c] sm:$0x2]
      %v2681 = vsel %vm1868, %v2634, %v2680
      %2682 = vst [vmem:[#allocation2 + $0x2c] sm:$0x2] %v2681
      %v2683 = vld [vmem:[#allocation2 + $0x34] sm:$0x2]
      %v2684 = vsel %vm1868, %v2636, %v2683
      %2685 = vst [vmem:[#allocation2 + $0x34] sm:$0x2] %v2684
      %v2686 = vld [vmem:[#allocation2 + $0x3c] sm:$0x2]
      %v2687 = vsel %vm1868, %v2638, %v2686
      %2688 = vst [vmem:[#allocation2 + $0x3c] sm:$0x2] %v2687
      %v2689 = vld [vmem:[#allocation2 + $0x44] sm:$0x2]
      %v2690 = vsel %vm1868, %v2640, %v2689
      %2691 = vst [vmem:[#allocation2 + $0x44] sm:$0x2] %v2690
      %v2692 = vld [vmem:[#allocation2 + $0x4c] sm:$0x2]
      %v2693 = vsel %vm1868, %v2642, %v2692
      %2694 = vst [vmem:[#allocation2 + $0x4c] sm:$0x2] %v2693
      %v2695 = vld [vmem:[#allocation2 + $0x54] sm:$0x2]
      %v2696 = vsel %vm1868, %v2644, %v2695
      %2697 = vst [vmem:[#allocation2 + $0x54] sm:$0x2] %v2696
      %v2698 = vld [vmem:[#allocation2 + $0x5c] sm:$0x2]
      %v2699 = vsel %vm1868, %v2646, %v2698
      %2700 = vst [vmem:[#allocation2 + $0x5c] sm:$0x2] %v2699
      %v2701 = vld [vmem:[#allocation2 + $0x64] sm:$0x2]
      %v2702 = vsel %vm1868, %v2648, %v2701
      %2703 = vst [vmem:[#allocation2 + $0x64] sm:$0x2] %v2702
      %v2704 = vld [vmem:[#allocation2 + $0x6c] sm:$0x2]
      %v2705 = vsel %vm1868, %v2650, %v2704
      %2706 = vst [vmem:[#allocation2 + $0x6c] sm:$0x2] %v2705
      %v2707 = vrot.slane %v2498, 6
      %v2708 = vrot.slane %v2707, 4
      %v2709 = vrot.slane %v2503, 6
      %v2710 = vrot.slane %v2709, 4
      %v2711 = vrot.slane %v2508, 6
      %v2712 = vrot.slane %v2711, 4
      %v2713 = vrot.slane %v2513, 6
      %v2714 = vrot.slane %v2713, 4
      %v2715 = vrot.slane %v2518, 6
      %v2716 = vrot.slane %v2715, 4
      %v2717 = vrot.slane %v2523, 6
      %v2718 = vrot.slane %v2717, 4
      %v2719 = vrot.slane %v2528, 6
      %v2720 = vrot.slane %v2719, 4
      %v2721 = vrot.slane %v2533, 6
      %v2722 = vrot.slane %v2721, 4
      %v2723 = vrot.slane %v2538, 6
      %v2724 = vrot.slane %v2723, 4
      %v2725 = vrot.slane %v2543, 6
      %v2726 = vrot.slane %v2725, 4
      %v2727 = vrot.slane %v2548, 6
      %v2728 = vrot.slane %v2727, 4
      %v2729 = vrot.slane %v2553, 6
      %v2730 = vrot.slane %v2729, 4
      %v2731 = vrot.slane %v2558, 6
      %v2732 = vrot.slane %v2731, 4
      %v2733 = vrot.slane %v2563, 6
      %v2734 = vrot.slane %v2733, 4
      %v2749 = vld [vmem:[#allocation2 + $0x4] sm:$0x2]
      %v2750 = vsel %vm1954, %v2708, %v2749
      %2751 = vst [vmem:[#allocation2 + $0x4] sm:$0x2] %v2750
      %v2752 = vld [vmem:[#allocation2 + $0xc] sm:$0x2]
      %v2753 = vsel %vm1954, %v2710, %v2752
      %2754 = vst [vmem:[#allocation2 + $0xc] sm:$0x2] %v2753
      %v2755 = vld [vmem:[#allocation2 + $0x14] sm:$0x2]
      %v2756 = vsel %vm1954, %v2712, %v2755
      %2757 = vst [vmem:[#allocation2 + $0x14] sm:$0x2] %v2756
      %v2758 = vld [vmem:[#allocation2 + $0x1c] sm:$0x2]
      %v2759 = vsel %vm1954, %v2714, %v2758
      %2760 = vst [vmem:[#allocation2 + $0x1c] sm:$0x2] %v2759
      %v2761 = vld [vmem:[#allocation2 + $0x24] sm:$0x2]
      %v2762 = vsel %vm1954, %v2716, %v2761
      %2763 = vst [vmem:[#allocation2 + $0x24] sm:$0x2] %v2762
      %v2764 = vld [vmem:[#allocation2 + $0x2c] sm:$0x2]
      %v2765 = vsel %vm1954, %v2718, %v2764
      %2766 = vst [vmem:[#allocation2 + $0x2c] sm:$0x2] %v2765
      %v2767 = vld [vmem:[#allocation2 + $0x34] sm:$0x2]
      %v2768 = vsel %vm1954, %v2720, %v2767
      %2769 = vst [vmem:[#allocation2 + $0x34] sm:$0x2] %v2768
      %v2770 = vld [vmem:[#allocation2 + $0x3c] sm:$0x2]
      %v2771 = vsel %vm1954, %v2722, %v2770
      %2772 = vst [vmem:[#allocation2 + $0x3c] sm:$0x2] %v2771
      %v2773 = vld [vmem:[#allocation2 + $0x44] sm:$0x2]
      %v2774 = vsel %vm1954, %v2724, %v2773
      %2775 = vst [vmem:[#allocation2 + $0x44] sm:$0x2] %v2774
      %v2776 = vld [vmem:[#allocation2 + $0x4c] sm:$0x2]
      %v2777 = vsel %vm1954, %v2726, %v2776
      %2778 = vst [vmem:[#allocation2 + $0x4c] sm:$0x2] %v2777
      %v2779 = vld [vmem:[#allocation2 + $0x54] sm:$0x2]
      %v2780 = vsel %vm1954, %v2728, %v2779
      %2781 = vst [vmem:[#allocation2 + $0x54] sm:$0x2] %v2780
      %v2782 = vld [vmem:[#allocation2 + $0x5c] sm:$0x2]
      %v2783 = vsel %vm1954, %v2730, %v2782
      %2784 = vst [vmem:[#allocation2 + $0x5c] sm:$0x2] %v2783
      %v2785 = vld [vmem:[#allocation2 + $0x64] sm:$0x2]
      %v2786 = vsel %vm1954, %v2732, %v2785
      %2787 = vst [vmem:[#allocation2 + $0x64] sm:$0x2] %v2786
      %v2788 = vld [vmem:[#allocation2 + $0x6c] sm:$0x2]
      %v2789 = vsel %vm1954, %v2734, %v2788
      %2790 = vst [vmem:[#allocation2 + $0x6c] sm:$0x2] %v2789
      %v2791 = vunpack.c.h.b16 %v2399
      %v2792 = vunpack.c.h.b16 %v2400
      %v2793 = vunpack.c.h.b16 %v2401
      %v2794 = vunpack.c.h.b16 %v2402
      %v2795 = vunpack.c.h.b16 %v2403
      %v2796 = vunpack.c.h.b16 %v2404
      %v2797 = vunpack.c.h.b16 %v2405
      %v2798 = vunpack.c.h.b16 %v2406
      %v2799 = vunpack.c.h.b16 %v2407
      %v2800 = vunpack.c.h.b16 %v2408
      %v2801 = vunpack.c.h.b16 %v2409
      %v2802 = vunpack.c.h.b16 %v2410
      %v2803 = vunpack.c.h.b16 %v2411
      %v2804 = vunpack.c.h.b16 %v2412
      %v2805 = vpack.c.b16 %v2791, %v2791
      %v2806 = vpack.c.b16 %v2792, %v2792
      %v2807 = vpack.c.b16 %v2793, %v2793
      %v2808 = vpack.c.b16 %v2794, %v2794
      %v2809 = vpack.c.b16 %v2795, %v2795
      %v2810 = vpack.c.b16 %v2796, %v2796
      %v2811 = vpack.c.b16 %v2797, %v2797
      %v2812 = vpack.c.b16 %v2798, %v2798
      %v2813 = vpack.c.b16 %v2799, %v2799
      %v2814 = vpack.c.b16 %v2800, %v2800
      %v2815 = vpack.c.b16 %v2801, %v2801
      %v2816 = vpack.c.b16 %v2802, %v2802
      %v2817 = vpack.c.b16 %v2803, %v2803
      %v2818 = vpack.c.b16 %v2804, %v2804
      %v2819 = vrot.slane %v2805, 6
      %v2820 = vrot.slane %v2806, 6
      %v2821 = vrot.slane %v2807, 6
      %v2822 = vrot.slane %v2808, 6
      %v2823 = vrot.slane %v2809, 6
      %v2824 = vrot.slane %v2810, 6
      %v2825 = vrot.slane %v2811, 6
      %v2826 = vrot.slane %v2812, 6
      %v2827 = vrot.slane %v2813, 6
      %v2828 = vrot.slane %v2814, 6
      %v2829 = vrot.slane %v2815, 6
      %v2830 = vrot.slane %v2816, 6
      %v2831 = vrot.slane %v2817, 6
      %v2832 = vrot.slane %v2818, 6
      %v2847 = vld [vmem:[#allocation2 + $0x4] sm:$0x4]
      %v2848 = vsel %vm2055, %v2819, %v2847
      %2849 = vst [vmem:[#allocation2 + $0x4] sm:$0x4] %v2848
      %v2850 = vld [vmem:[#allocation2 + $0xc] sm:$0x4]
      %v2851 = vsel %vm2055, %v2820, %v2850
      %2852 = vst [vmem:[#allocation2 + $0xc] sm:$0x4] %v2851
      %v2853 = vld [vmem:[#allocation2 + $0x14] sm:$0x4]
      %v2854 = vsel %vm2055, %v2821, %v2853
      %2855 = vst [vmem:[#allocation2 + $0x14] sm:$0x4] %v2854
      %v2856 = vld [vmem:[#allocation2 + $0x1c] sm:$0x4]
      %v2857 = vsel %vm2055, %v2822, %v2856
      %2858 = vst [vmem:[#allocation2 + $0x1c] sm:$0x4] %v2857
      %v2859 = vld [vmem:[#allocation2 + $0x24] sm:$0x4]
      %v2860 = vsel %vm2055, %v2823, %v2859
      %2861 = vst [vmem:[#allocation2 + $0x24] sm:$0x4] %v2860
      %v2862 = vld [vmem:[#allocation2 + $0x2c] sm:$0x4]
      %v2863 = vsel %vm2055, %v2824, %v2862
      %2864 = vst [vmem:[#allocation2 + $0x2c] sm:$0x4] %v2863
      %v2865 = vld [vmem:[#allocation2 + $0x34] sm:$0x4]
      %v2866 = vsel %vm2055, %v2825, %v2865
      %2867 = vst [vmem:[#allocation2 + $0x34] sm:$0x4] %v2866
      %v2868 = vld [vmem:[#allocation2 + $0x3c] sm:$0x4]
      %v2869 = vsel %vm2055, %v2826, %v2868
      %2870 = vst [vmem:[#allocation2 + $0x3c] sm:$0x4] %v2869
      %v2871 = vld [vmem:[#allocation2 + $0x44] sm:$0x4]
      %v2872 = vsel %vm2055, %v2827, %v2871
      %2873 = vst [vmem:[#allocation2 + $0x44] sm:$0x4] %v2872
      %v2874 = vld [vmem:[#allocation2 + $0x4c] sm:$0x4]
      %v2875 = vsel %vm2055, %v2828, %v2874
      %2876 = vst [vmem:[#allocation2 + $0x4c] sm:$0x4] %v2875
      %v2877 = vld [vmem:[#allocation2 + $0x54] sm:$0x4]
      %v2878 = vsel %vm2055, %v2829, %v2877
      %2879 = vst [vmem:[#allocation2 + $0x54] sm:$0x4] %v2878
      %v2880 = vld [vmem:[#allocation2 + $0x5c] sm:$0x4]
      %v2881 = vsel %vm2055, %v2830, %v2880
      %2882 = vst [vmem:[#allocation2 + $0x5c] sm:$0x4] %v2881
      %v2883 = vld [vmem:[#allocation2 + $0x64] sm:$0x4]
      %v2884 = vsel %vm2055, %v2831, %v2883
      %2885 = vst [vmem:[#allocation2 + $0x64] sm:$0x4] %v2884
      %v2886 = vld [vmem:[#allocation2 + $0x6c] sm:$0x4]
      %v2887 = vsel %vm2055, %v2832, %v2886
      %2888 = vst [vmem:[#allocation2 + $0x6c] sm:$0x4] %v2887
      %v2890 = vshll.u32 %v2805, 16
      %v2892 = vrot.slane %v2890, 7
      %v2894 = vshll.u32 %v2806, 16
      %v2896 = vrot.slane %v2894, 7
      %v2898 = vshll.u32 %v2807, 16
      %v2900 = vrot.slane %v2898, 7
      %v2902 = vshll.u32 %v2808, 16
      %v2904 = vrot.slane %v2902, 7
      %v2906 = vshll.u32 %v2809, 16
      %v2908 = vrot.slane %v2906, 7
      %v2910 = vshll.u32 %v2810, 16
      %v2912 = vrot.slane %v2910, 7
      %v2914 = vshll.u32 %v2811, 16
      %v2916 = vrot.slane %v2914, 7
      %v2918 = vshll.u32 %v2812, 16
      %v2920 = vrot.slane %v2918, 7
      %v2922 = vshll.u32 %v2813, 16
      %v2924 = vrot.slane %v2922, 7
      %v2926 = vshll.u32 %v2814, 16
      %v2928 = vrot.slane %v2926, 7
      %v2930 = vshll.u32 %v2815, 16
      %v2932 = vrot.slane %v2930, 7
      %v2934 = vshll.u32 %v2816, 16
      %v2936 = vrot.slane %v2934, 7
      %v2938 = vshll.u32 %v2817, 16
      %v2940 = vrot.slane %v2938, 7
      %v2942 = vshll.u32 %v2818, 16
      %v2944 = vrot.slane %v2942, 7
      %v2959 = vld [vmem:[#allocation2 + $0x4] sm:$0x4]
      %v2960 = vsel %vm2169, %v2892, %v2959
      %2961 = vst [vmem:[#allocation2 + $0x4] sm:$0x4] %v2960
      %v2962 = vld [vmem:[#allocation2 + $0xc] sm:$0x4]
      %v2963 = vsel %vm2169, %v2896, %v2962
      %2964 = vst [vmem:[#allocation2 + $0xc] sm:$0x4] %v2963
      %v2965 = vld [vmem:[#allocation2 + $0x14] sm:$0x4]
      %v2966 = vsel %vm2169, %v2900, %v2965
      %2967 = vst [vmem:[#allocation2 + $0x14] sm:$0x4] %v2966
      %v2968 = vld [vmem:[#allocation2 + $0x1c] sm:$0x4]
      %v2969 = vsel %vm2169, %v2904, %v2968
      %2970 = vst [vmem:[#allocation2 + $0x1c] sm:$0x4] %v2969
      %v2971 = vld [vmem:[#allocation2 + $0x24] sm:$0x4]
      %v2972 = vsel %vm2169, %v2908, %v2971
      %2973 = vst [vmem:[#allocation2 + $0x24] sm:$0x4] %v2972
      %v2974 = vld [vmem:[#allocation2 + $0x2c] sm:$0x4]
      %v2975 = vsel %vm2169, %v2912, %v2974
      %2976 = vst [vmem:[#allocation2 + $0x2c] sm:$0x4] %v2975
      %v2977 = vld [vmem:[#allocation2 + $0x34] sm:$0x4]
      %v2978 = vsel %vm2169, %v2916, %v2977
      %2979 = vst [vmem:[#allocation2 + $0x34] sm:$0x4] %v2978
      %v2980 = vld [vmem:[#allocation2 + $0x3c] sm:$0x4]
      %v2981 = vsel %vm2169, %v2920, %v2980
      %2982 = vst [vmem:[#allocation2 + $0x3c] sm:$0x4] %v2981
      %v2983 = vld [vmem:[#allocation2 + $0x44] sm:$0x4]
      %v2984 = vsel %vm2169, %v2924, %v2983
      %2985 = vst [vmem:[#allocation2 + $0x44] sm:$0x4] %v2984
      %v2986 = vld [vmem:[#allocation2 + $0x4c] sm:$0x4]
      %v2987 = vsel %vm2169, %v2928, %v2986
      %2988 = vst [vmem:[#allocation2 + $0x4c] sm:$0x4] %v2987
      %v2989 = vld [vmem:[#allocation2 + $0x54] sm:$0x4]
      %v2990 = vsel %vm2169, %v2932, %v2989
      %2991 = vst [vmem:[#allocation2 + $0x54] sm:$0x4] %v2990
      %v2992 = vld [vmem:[#allocation2 + $0x5c] sm:$0x4]
      %v2993 = vsel %vm2169, %v2936, %v2992
      %2994 = vst [vmem:[#allocation2 + $0x5c] sm:$0x4] %v2993
      %v2995 = vld [vmem:[#allocation2 + $0x64] sm:$0x4]
      %v2996 = vsel %vm2169, %v2940, %v2995
      %2997 = vst [vmem:[#allocation2 + $0x64] sm:$0x4] %v2996
      %v2998 = vld [vmem:[#allocation2 + $0x6c] sm:$0x4]
      %v2999 = vsel %vm2169, %v2944, %v2998
      %3000 = vst [vmem:[#allocation2 + $0x6c] sm:$0x4] %v2999
      %vm3001 = vcmask 257024
      %3002 = vst.msk [vmem:[#allocation4] sm:$0xf] %vm3001, 0
      %3003 = vst.msk [vmem:[#allocation4 + $0x4] sm:$0xf] %vm3001, 0
      %vm3004 = vcmask 253952
      %3005 = vst.msk [vmem:[#allocation4 + $0x8] sm:$0x1] %vm3004, 0
      %s3006 = scalar_lea.vmem [#allocation4], 180
      %3007 = vst.msk [vmem:[%s3006] sm:$0xf] %vm3001, 0
      %3008 = vst.msk [vmem:[%s3006 + $0x4] sm:$0xf] %vm3001, 0
      %3009 = vst.msk [vmem:[%s3006 + $0x8] sm:$0x1] %vm3004, 0
      %v3010 = vld [vmem:[#allocation4] sm:$0x1]
      %v3011 = vsel %vm1611, 0, %v3010
      %3012 = vst [vmem:[#allocation4] sm:$0x1] %v3011
      %v3013 = vld [vmem:[#allocation4 + $0xc] sm:$0x1]
      %v3014 = vsel %vm1611, 0, %v3013
      %3015 = vst [vmem:[#allocation4 + $0xc] sm:$0x1] %v3014
      %v3016 = vld [vmem:[#allocation4 + $0x18] sm:$0x1]
      %v3017 = vsel %vm1611, 0, %v3016
      %3018 = vst [vmem:[#allocation4 + $0x18] sm:$0x1] %v3017
      %v3019 = vld [vmem:[#allocation4 + $0x24] sm:$0x1]
      %v3020 = vsel %vm1611, 0, %v3019
      %3021 = vst [vmem:[#allocation4 + $0x24] sm:$0x1] %v3020
      %v3022 = vld [vmem:[#allocation4 + $0x30] sm:$0x1]
      %v3023 = vsel %vm1611, 0, %v3022
      %3024 = vst [vmem:[#allocation4 + $0x30] sm:$0x1] %v3023
      %v3025 = vld [vmem:[#allocation4 + $0x3c] sm:$0x1]
      %v3026 = vsel %vm1611, 0, %v3025
      %3027 = vst [vmem:[#allocation4 + $0x3c] sm:$0x1] %v3026
      %v3028 = vld [vmem:[#allocation4 + $0x48] sm:$0x1]
      %v3029 = vsel %vm1611, 0, %v3028
      %3030 = vst [vmem:[#allocation4 + $0x48] sm:$0x1] %v3029
      %v3031 = vld [vmem:[#allocation4 + $0x54] sm:$0x1]
      %v3032 = vsel %vm1611, 0, %v3031
      %3033 = vst [vmem:[#allocation4 + $0x54] sm:$0x1] %v3032
      %v3034 = vld [vmem:[#allocation4 + $0x60] sm:$0x1]
      %v3035 = vsel %vm1611, 0, %v3034
      %3036 = vst [vmem:[#allocation4 + $0x60] sm:$0x1] %v3035
      %v3037 = vld [vmem:[#allocation4 + $0x6c] sm:$0x1]
      %v3038 = vsel %vm1611, 0, %v3037
      %3039 = vst [vmem:[#allocation4 + $0x6c] sm:$0x1] %v3038
      %v3040 = vld [vmem:[#allocation4 + $0x78] sm:$0x1]
      %v3041 = vsel %vm1611, 0, %v3040
      %3042 = vst [vmem:[#allocation4 + $0x78] sm:$0x1] %v3041
      %v3043 = vld [vmem:[#allocation4 + $0x84] sm:$0x1]
      %v3044 = vsel %vm1611, 0, %v3043
      %3045 = vst [vmem:[#allocation4 + $0x84] sm:$0x1] %v3044
      %v3046 = vld [vmem:[#allocation4 + $0x90] sm:$0x1]
      %v3047 = vsel %vm1611, 0, %v3046
      %3048 = vst [vmem:[#allocation4 + $0x90] sm:$0x1] %v3047
      %v3049 = vld [vmem:[#allocation4 + $0x9c] sm:$0x1]
      %v3050 = vsel %vm1611, 0, %v3049
      %3051 = vst [vmem:[#allocation4 + $0x9c] sm:$0x1] %v3050
      %v3052 = vld [vmem:[#allocation4 + $0xa8] sm:$0x1]
      %v3053 = vsel %vm1611, 0, %v3052
      %3054 = vst [vmem:[#allocation4 + $0xa8] sm:$0x1] %v3053
      %v3055 = vld [vmem:[#allocation4 + $0xb4] sm:$0x1]
      %v3056 = vsel %vm1611, 0, %v3055
      %3057 = vst [vmem:[#allocation4 + $0xb4] sm:$0x1] %v3056
      %v3058 = vld [vmem:[#allocation4 + $0x4] sm:$0x8]
      %v3059 = vsel %vm2300, 0, %v3058
      %3060 = vst [vmem:[#allocation4 + $0x4] sm:$0x8] %v3059
      %3061 = vst.msk [vmem:[#allocation4 + $0x8] sm:$0x1] %vm3004, 0
      %v3062 = vld [vmem:[#allocation4 + $0x10] sm:$0x8]
      %v3063 = vsel %vm2300, 0, %v3062
      %3064 = vst [vmem:[#allocation4 + $0x10] sm:$0x8] %v3063
      %3065 = vst.msk [vmem:[#allocation4 + $0x14] sm:$0x1] %vm3004, 0
      %v3066 = vld [vmem:[#allocation4 + $0x1c] sm:$0x8]
      %v3067 = vsel %vm2300, 0, %v3066
      %3068 = vst [vmem:[#allocation4 + $0x1c] sm:$0x8] %v3067
      %3069 = vst.msk [vmem:[#allocation4 + $0x20] sm:$0x1] %vm3004, 0
      %v3070 = vld [vmem:[#allocation4 + $0x28] sm:$0x8]
      %v3071 = vsel %vm2300, 0, %v3070
      %3072 = vst [vmem:[#allocation4 + $0x28] sm:$0x8] %v3071
      %3073 = vst.msk [vmem:[#allocation4 + $0x2c] sm:$0x1] %vm3004, 0
      %v3074 = vld [vmem:[#allocation4 + $0x34] sm:$0x8]
      %v3075 = vsel %vm2300, 0, %v3074
      %3076 = vst [vmem:[#allocation4 + $0x34] sm:$0x8] %v3075
      %3077 = vst.msk [vmem:[#allocation4 + $0x38] sm:$0x1] %vm3004, 0
      %v3078 = vld [vmem:[#allocation4 + $0x40] sm:$0x8]
      %v3079 = vsel %vm2300, 0, %v3078
      %3080 = vst [vmem:[#allocation4 + $0x40] sm:$0x8] %v3079
      %3081 = vst.msk [vmem:[#allocation4 + $0x44] sm:$0x1] %vm3004, 0
      %v3082 = vld [vmem:[#allocation4 + $0x4c] sm:$0x8]
      %v3083 = vsel %vm2300, 0, %v3082
      %3084 = vst [vmem:[#allocation4 + $0x4c] sm:$0x8] %v3083
      %3085 = vst.msk [vmem:[#allocation4 + $0x50] sm:$0x1] %vm3004, 0
      %v3086 = vld [vmem:[#allocation4 + $0x58] sm:$0x8]
      %v3087 = vsel %vm2300, 0, %v3086
      %3088 = vst [vmem:[#allocation4 + $0x58] sm:$0x8] %v3087
      %3089 = vst.msk [vmem:[#allocation4 + $0x5c] sm:$0x1] %vm3004, 0
      %v3090 = vld [vmem:[#allocation4 + $0x64] sm:$0x8]
      %v3091 = vsel %vm2300, 0, %v3090
      %3092 = vst [vmem:[#allocation4 + $0x64] sm:$0x8] %v3091
      %3093 = vst.msk [vmem:[#allocation4 + $0x68] sm:$0x1] %vm3004, 0
      %v3094 = vld [vmem:[#allocation4 + $0x70] sm:$0x8]
      %v3095 = vsel %vm2300, 0, %v3094
      %3096 = vst [vmem:[#allocation4 + $0x70] sm:$0x8] %v3095
      %3097 = vst.msk [vmem:[#allocation4 + $0x74] sm:$0x1] %vm3004, 0
      %v3098 = vld [vmem:[#allocation4 + $0x7c] sm:$0x8]
      %v3099 = vsel %vm2300, 0, %v3098
      %3100 = vst [vmem:[#allocation4 + $0x7c] sm:$0x8] %v3099
      %3101 = vst.msk [vmem:[#allocation4 + $0x80] sm:$0x1] %vm3004, 0
      %v3102 = vld [vmem:[#allocation4 + $0x88] sm:$0x8]
      %v3103 = vsel %vm2300, 0, %v3102
      %3104 = vst [vmem:[#allocation4 + $0x88] sm:$0x8] %v3103
      %3105 = vst.msk [vmem:[#allocation4 + $0x8c] sm:$0x1] %vm3004, 0
      %v3106 = vld [vmem:[#allocation4 + $0x94] sm:$0x8]
      %v3107 = vsel %vm2300, 0, %v3106
      %3108 = vst [vmem:[#allocation4 + $0x94] sm:$0x8] %v3107
      %3109 = vst.msk [vmem:[#allocation4 + $0x98] sm:$0x1] %vm3004, 0
      %v3110 = vld [vmem:[#allocation4 + $0xa0] sm:$0x8]
      %v3111 = vsel %vm2300, 0, %v3110
      %3112 = vst [vmem:[#allocation4 + $0xa0] sm:$0x8] %v3111
      %3113 = vst.msk [vmem:[#allocation4 + $0xa4] sm:$0x1] %vm3004, 0
      %v3114 = vld [vmem:[#allocation4 + $0xac] sm:$0x8]
      %v3115 = vsel %vm2300, 0, %v3114
      %3116 = vst [vmem:[#allocation4 + $0xac] sm:$0x8] %v3115
      %3117 = vst.msk [vmem:[#allocation4 + $0xb0] sm:$0x1] %vm3004, 0
      %v3118 = vld [vmem:[#allocation4 + $0xb8] sm:$0x8]
      %v3119 = vsel %vm2300, 0, %v3118
      %3120 = vst [vmem:[#allocation4 + $0xb8] sm:$0x8] %v3119
      %3121 = vst.msk [vmem:[#allocation4 + $0xbc] sm:$0x1] %vm3004, 0
      %v3122 = vld [vmem:[#allocation2] sm:$0xf]
      %v3123 = vld [vmem:[#allocation2 + $0x4] sm:$0x7]
      %v3124 = vld [vmem:[#allocation2 + $0x8] sm:$0xf]
      %v3125 = vld [vmem:[#allocation2 + $0xc] sm:$0x7]
      %v3126 = vld [vmem:[#allocation2 + $0x10] sm:$0xf]
      %v3127 = vld [vmem:[#allocation2 + $0x14] sm:$0x7]
      %v3128 = vld [vmem:[#allocation2 + $0x18] sm:$0xf]
      %v3129 = vld [vmem:[#allocation2 + $0x1c] sm:$0x7]
      %v3130 = vld [vmem:[#allocation2 + $0x20] sm:$0xf]
      %v3131 = vld [vmem:[#allocation2 + $0x24] sm:$0x7]
      %v3132 = vld [vmem:[#allocation2 + $0x28] sm:$0xf]
      %v3133 = vld [vmem:[#allocation2 + $0x2c] sm:$0x7]
      %v3134 = vld [vmem:[#allocation2 + $0x30] sm:$0xf]
      %v3135 = vld [vmem:[#allocation2 + $0x34] sm:$0x7]
      %v3136 = vld [vmem:[#allocation2 + $0x38] sm:$0xf]
      %v3137 = vld [vmem:[#allocation2 + $0x3c] sm:$0x7]
      %v3138 = vld [vmem:[#allocation2 + $0x40] sm:$0xf]
      %v3139 = vld [vmem:[#allocation2 + $0x44] sm:$0x7]
      %v3140 = vld [vmem:[#allocation2 + $0x48] sm:$0xf]
      %v3141 = vld [vmem:[#allocation2 + $0x4c] sm:$0x7]
      %v3142 = vld [vmem:[#allocation2 + $0x50] sm:$0xf]
      %v3143 = vld [vmem:[#allocation2 + $0x54] sm:$0x7]
      %v3144 = vld [vmem:[#allocation2 + $0x58] sm:$0xf]
      %v3145 = vld [vmem:[#allocation2 + $0x5c] sm:$0x7]
      %v3146 = vld [vmem:[#allocation2 + $0x60] sm:$0xf]
      %v3147 = vld [vmem:[#allocation2 + $0x64] sm:$0x7]
      %v3148 = vld [vmem:[#allocation2 + $0x68] sm:$0xf]
      %v3149 = vld [vmem:[#allocation2 + $0x6c] sm:$0x7]
      %vm3150 = vsmask.f32 4368
      %vm3151 = vmor %vm1610, %vm3150
      %v3153 = vshrl.u32 %v3122, 16
      %v3155 = vrot.slane %v3153, 7
      %v3156 = vshll.u32 %v3122, 16
      %v3158 = vor.u32 %v3155, %v3156
      %v3159 = vrot.slane %v3155, 4
      %v3161 = vshrl.u32 %v3123, 16
      %v3163 = vrot.slane %v3161, 7
      %v3164 = vshll.u32 %v3123, 16
      %v3166 = vor.u32 %v3163, %v3164
      %v3167 = vsel %vm3151, %v3159, %v3166
      %v3169 = vshrl.u32 %v3124, 16
      %v3171 = vrot.slane %v3169, 7
      %v3172 = vshll.u32 %v3124, 16
      %v3174 = vor.u32 %v3171, %v3172
      %v3175 = vrot.slane %v3171, 4
      %v3177 = vshrl.u32 %v3125, 16
      %v3179 = vrot.slane %v3177, 7
      %v3180 = vshll.u32 %v3125, 16
      %v3182 = vor.u32 %v3179, %v3180
      %v3183 = vsel %vm3151, %v3175, %v3182
      %v3185 = vshrl.u32 %v3126, 16
      %v3187 = vrot.slane %v3185, 7
      %v3188 = vshll.u32 %v3126, 16
      %v3190 = vor.u32 %v3187, %v3188
      %v3191 = vrot.slane %v3187, 4
      %v3193 = vshrl.u32 %v3127, 16
      %v3195 = vrot.slane %v3193, 7
      %v3196 = vshll.u32 %v3127, 16
      %v3198 = vor.u32 %v3195, %v3196
      %v3199 = vsel %vm3151, %v3191, %v3198
      %v3201 = vshrl.u32 %v3128, 16
      %v3203 = vrot.slane %v3201, 7
      %v3204 = vshll.u32 %v3128, 16
      %v3206 = vor.u32 %v3203, %v3204
      %v3207 = vrot.slane %v3203, 4
      %v3209 = vshrl.u32 %v3129, 16
      %v3211 = vrot.slane %v3209, 7
      %v3212 = vshll.u32 %v3129, 16
      %v3214 = vor.u32 %v3211, %v3212
      %v3215 = vsel %vm3151, %v3207, %v3214
      %v3217 = vshrl.u32 %v3130, 16
      %v3219 = vrot.slane %v3217, 7
      %v3220 = vshll.u32 %v3130, 16
      %v3222 = vor.u32 %v3219, %v3220
      %v3223 = vrot.slane %v3219, 4
      %v3225 = vshrl.u32 %v3131, 16
      %v3227 = vrot.slane %v3225, 7
      %v3228 = vshll.u32 %v3131, 16
      %v3230 = vor.u32 %v3227, %v3228
      %v3231 = vsel %vm3151, %v3223, %v3230
      %v3233 = vshrl.u32 %v3132, 16
      %v3235 = vrot.slane %v3233, 7
      %v3236 = vshll.u32 %v3132, 16
      %v3238 = vor.u32 %v3235, %v3236
      %v3239 = vrot.slane %v3235, 4
      %v3241 = vshrl.u32 %v3133, 16
      %v3243 = vrot.slane %v3241, 7
      %v3244 = vshll.u32 %v3133, 16
      %v3246 = vor.u32 %v3243, %v3244
      %v3247 = vsel %vm3151, %v3239, %v3246
      %v3249 = vshrl.u32 %v3134, 16
      %v3251 = vrot.slane %v3249, 7
      %v3252 = vshll.u32 %v3134, 16
      %v3254 = vor.u32 %v3251, %v3252
      %v3255 = vrot.slane %v3251, 4
      %v3257 = vshrl.u32 %v3135, 16
      %v3259 = vrot.slane %v3257, 7
      %v3260 = vshll.u32 %v3135, 16
      %v3262 = vor.u32 %v3259, %v3260
      %v3263 = vsel %vm3151, %v3255, %v3262
      %v3265 = vshrl.u32 %v3136, 16
      %v3267 = vrot.slane %v3265, 7
      %v3268 = vshll.u32 %v3136, 16
      %v3270 = vor.u32 %v3267, %v3268
      %v3271 = vrot.slane %v3267, 4
      %v3273 = vshrl.u32 %v3137, 16
      %v3275 = vrot.slane %v3273, 7
      %v3276 = vshll.u32 %v3137, 16
      %v3278 = vor.u32 %v3275, %v3276
      %v3279 = vsel %vm3151, %v3271, %v3278
      %v3281 = vshrl.u32 %v3138, 16
      %v3283 = vrot.slane %v3281, 7
      %v3284 = vshll.u32 %v3138, 16
      %v3286 = vor.u32 %v3283, %v3284
      %v3287 = vrot.slane %v3283, 4
      %v3289 = vshrl.u32 %v3139, 16
      %v3291 = vrot.slane %v3289, 7
      %v3292 = vshll.u32 %v3139, 16
      %v3294 = vor.u32 %v3291, %v3292
      %v3295 = vsel %vm3151, %v3287, %v3294
      %v3297 = vshrl.u32 %v3140, 16
      %v3299 = vrot.slane %v3297, 7
      %v3300 = vshll.u32 %v3140, 16
      %v3302 = vor.u32 %v3299, %v3300
      %v3303 = vrot.slane %v3299, 4
      %v3305 = vshrl.u32 %v3141, 16
      %v3307 = vrot.slane %v3305, 7
      %v3308 = vshll.u32 %v3141, 16
      %v3310 = vor.u32 %v3307, %v3308
      %v3311 = vsel %vm3151, %v3303, %v3310
      %v3313 = vshrl.u32 %v3142, 16
      %v3315 = vrot.slane %v3313, 7
      %v3316 = vshll.u32 %v3142, 16
      %v3318 = vor.u32 %v3315, %v3316
      %v3319 = vrot.slane %v3315, 4
      %v3321 = vshrl.u32 %v3143, 16
      %v3323 = vrot.slane %v3321, 7
      %v3324 = vshll.u32 %v3143, 16
      %v3326 = vor.u32 %v3323, %v3324
      %v3327 = vsel %vm3151, %v3319, %v3326
      %v3329 = vshrl.u32 %v3144, 16
      %v3331 = vrot.slane %v3329, 7
      %v3332 = vshll.u32 %v3144, 16
      %v3334 = vor.u32 %v3331, %v3332
      %v3335 = vrot.slane %v3331, 4
      %v3337 = vshrl.u32 %v3145, 16
      %v3339 = vrot.slane %v3337, 7
      %v3340 = vshll.u32 %v3145, 16
      %v3342 = vor.u32 %v3339, %v3340
      %v3343 = vsel %vm3151, %v3335, %v3342
      %v3345 = vshrl.u32 %v3146, 16
      %v3347 = vrot.slane %v3345, 7
      %v3348 = vshll.u32 %v3146, 16
      %v3350 = vor.u32 %v3347, %v3348
      %v3351 = vrot.slane %v3347, 4
      %v3353 = vshrl.u32 %v3147, 16
      %v3355 = vrot.slane %v3353, 7
      %v3356 = vshll.u32 %v3147, 16
      %v3358 = vor.u32 %v3355, %v3356
      %v3359 = vsel %vm3151, %v3351, %v3358
      %v3361 = vshrl.u32 %v3148, 16
      %v3363 = vrot.slane %v3361, 7
      %v3364 = vshll.u32 %v3148, 16
      %v3366 = vor.u32 %v3363, %v3364
      %v3367 = vrot.slane %v3363, 4
      %v3369 = vshrl.u32 %v3149, 16
      %v3371 = vrot.slane %v3369, 7
      %v3372 = vshll.u32 %v3149, 16
      %v3374 = vor.u32 %v3371, %v3372
      %v3375 = vsel %vm3151, %v3367, %v3374
      %s3404 = scalar_lea.vmem [#allocation4], 12
      %vm3405 = vcmask 257024
      %vm3406 = vmand %vm3405, %vm1780
      %v3407 = vld [vmem:[%s3404] sm:$0xf]
      %v3408 = vsel %vm3406, %v3158, %v3407
      %3409 = vst [vmem:[%s3404] sm:$0xf] %v3408
      %vm3410 = vmand %vm3405, %vm2241
      %v3411 = vld [vmem:[%s3404 + $0x4] sm:$0xf]
      %v3412 = vsel %vm3410, %v3167, %v3411
      %3413 = vst [vmem:[%s3404 + $0x4] sm:$0xf] %v3412
      %v3414 = vld [vmem:[%s3404 + $0xc] sm:$0xf]
      %v3415 = vsel %vm3406, %v3174, %v3414
      %3416 = vst [vmem:[%s3404 + $0xc] sm:$0xf] %v3415
      %v3417 = vld [vmem:[%s3404 + $0x10] sm:$0xf]
      %v3418 = vsel %vm3410, %v3183, %v3417
      %3419 = vst [vmem:[%s3404 + $0x10] sm:$0xf] %v3418
      %v3420 = vld [vmem:[%s3404 + $0x18] sm:$0xf]
      %v3421 = vsel %vm3406, %v3190, %v3420
      %3422 = vst [vmem:[%s3404 + $0x18] sm:$0xf] %v3421
      %v3423 = vld [vmem:[%s3404 + $0x1c] sm:$0xf]
      %v3424 = vsel %vm3410, %v3199, %v3423
      %3425 = vst [vmem:[%s3404 + $0x1c] sm:$0xf] %v3424
      %v3426 = vld [vmem:[%s3404 + $0x24] sm:$0xf]
      %v3427 = vsel %vm3406, %v3206, %v3426
      %3428 = vst [vmem:[%s3404 + $0x24] sm:$0xf] %v3427
      %v3429 = vld [vmem:[%s3404 + $0x28] sm:$0xf]
      %v3430 = vsel %vm3410, %v3215, %v3429
      %3431 = vst [vmem:[%s3404 + $0x28] sm:$0xf] %v3430
      %v3432 = vld [vmem:[%s3404 + $0x30] sm:$0xf]
      %v3433 = vsel %vm3406, %v3222, %v3432
      %3434 = vst [vmem:[%s3404 + $0x30] sm:$0xf] %v3433
      %v3435 = vld [vmem:[%s3404 + $0x34] sm:$0xf]
      %v3436 = vsel %vm3410, %v3231, %v3435
      %3437 = vst [vmem:[%s3404 + $0x34] sm:$0xf] %v3436
      %v3438 = vld [vmem:[%s3404 + $0x3c] sm:$0xf]
      %v3439 = vsel %vm3406, %v3238, %v3438
      %3440 = vst [vmem:[%s3404 + $0x3c] sm:$0xf] %v3439
      %v3441 = vld [vmem:[%s3404 + $0x40] sm:$0xf]
      %v3442 = vsel %vm3410, %v3247, %v3441
      %3443 = vst [vmem:[%s3404 + $0x40] sm:$0xf] %v3442
      %v3444 = vld [vmem:[%s3404 + $0x48] sm:$0xf]
      %v3445 = vsel %vm3406, %v3254, %v3444
      %3446 = vst [vmem:[%s3404 + $0x48] sm:$0xf] %v3445
      %v3447 = vld [vmem:[%s3404 + $0x4c] sm:$0xf]
      %v3448 = vsel %vm3410, %v3263, %v3447
      %3449 = vst [vmem:[%s3404 + $0x4c] sm:$0xf] %v3448
      %v3450 = vld [vmem:[%s3404 + $0x54] sm:$0xf]
      %v3451 = vsel %vm3406, %v3270, %v3450
      %3452 = vst [vmem:[%s3404 + $0x54] sm:$0xf] %v3451
      %v3453 = vld [vmem:[%s3404 + $0x58] sm:$0xf]
      %v3454 = vsel %vm3410, %v3279, %v3453
      %3455 = vst [vmem:[%s3404 + $0x58] sm:$0xf] %v3454
      %v3456 = vld [vmem:[%s3404 + $0x60] sm:$0xf]
      %v3457 = vsel %vm3406, %v3286, %v3456
      %3458 = vst [vmem:[%s3404 + $0x60] sm:$0xf] %v3457
      %v3459 = vld [vmem:[%s3404 + $0x64] sm:$0xf]
      %v3460 = vsel %vm3410, %v3295, %v3459
      %3461 = vst [vmem:[%s3404 + $0x64] sm:$0xf] %v3460
      %v3462 = vld [vmem:[%s3404 + $0x6c] sm:$0xf]
      %v3463 = vsel %vm3406, %v3302, %v3462
      %3464 = vst [vmem:[%s3404 + $0x6c] sm:$0xf] %v3463
      %v3465 = vld [vmem:[%s3404 + $0x70] sm:$0xf]
      %v3466 = vsel %vm3410, %v3311, %v3465
      %3467 = vst [vmem:[%s3404 + $0x70] sm:$0xf] %v3466
      %v3468 = vld [vmem:[%s3404 + $0x78] sm:$0xf]
      %v3469 = vsel %vm3406, %v3318, %v3468
      %3470 = vst [vmem:[%s3404 + $0x78] sm:$0xf] %v3469
      %v3471 = vld [vmem:[%s3404 + $0x7c] sm:$0xf]
      %v3472 = vsel %vm3410, %v3327, %v3471
      %3473 = vst [vmem:[%s3404 + $0x7c] sm:$0xf] %v3472
      %v3474 = vld [vmem:[%s3404 + $0x84] sm:$0xf]
      %v3475 = vsel %vm3406, %v3334, %v3474
      %3476 = vst [vmem:[%s3404 + $0x84] sm:$0xf] %v3475
      %v3477 = vld [vmem:[%s3404 + $0x88] sm:$0xf]
      %v3478 = vsel %vm3410, %v3343, %v3477
      %3479 = vst [vmem:[%s3404 + $0x88] sm:$0xf] %v3478
      %v3480 = vld [vmem:[%s3404 + $0x90] sm:$0xf]
      %v3481 = vsel %vm3406, %v3350, %v3480
      %3482 = vst [vmem:[%s3404 + $0x90] sm:$0xf] %v3481
      %v3483 = vld [vmem:[%s3404 + $0x94] sm:$0xf]
      %v3484 = vsel %vm3410, %v3359, %v3483
      %3485 = vst [vmem:[%s3404 + $0x94] sm:$0xf] %v3484
      %v3486 = vld [vmem:[%s3404 + $0x9c] sm:$0xf]
      %v3487 = vsel %vm3406, %v3366, %v3486
      %3488 = vst [vmem:[%s3404 + $0x9c] sm:$0xf] %v3487
      %v3489 = vld [vmem:[%s3404 + $0xa0] sm:$0xf]
      %v3490 = vsel %vm3410, %v3375, %v3489
      %3491 = vst [vmem:[%s3404 + $0xa0] sm:$0xf] %v3490
      %v3492 = vld [vmem:[#allocation4] sm:$0xf]
      %v3493 = vld [vmem:[#allocation4 + $0x4] sm:$0xf]
      %v3494 = vld [vmem:[#allocation4 + $0xc] sm:$0xf]
      %v3495 = vld [vmem:[#allocation4 + $0x10] sm:$0xf]
      %v3496 = vld [vmem:[#allocation4 + $0x18] sm:$0xf]
      %v3497 = vld [vmem:[#allocation4 + $0x1c] sm:$0xf]
      %v3498 = vld [vmem:[#allocation4 + $0x24] sm:$0xf]
      %v3499 = vld [vmem:[#allocation4 + $0x28] sm:$0xf]
      %v3500 = vld [vmem:[#allocation4 + $0x30] sm:$0xf]
      %v3501 = vld [vmem:[#allocation4 + $0x34] sm:$0xf]
      %v3502 = vld [vmem:[#allocation4 + $0x3c] sm:$0xf]
      %v3503 = vld [vmem:[#allocation4 + $0x40] sm:$0xf]
      %v3504 = vld [vmem:[#allocation4 + $0x48] sm:$0xf]
      %v3505 = vld [vmem:[#allocation4 + $0x4c] sm:$0xf]
      %v3506 = vld [vmem:[#allocation4 + $0x54] sm:$0xf]
      %v3507 = vld [vmem:[#allocation4 + $0x58] sm:$0xf]
      %v3508 = vld [vmem:[#allocation4 + $0x60] sm:$0xf]
      %v3509 = vld [vmem:[#allocation4 + $0x64] sm:$0xf]
      %v3510 = vld [vmem:[#allocation4 + $0x6c] sm:$0xf]
      %v3511 = vld [vmem:[#allocation4 + $0x70] sm:$0xf]
      %v3512 = vld [vmem:[#allocation4 + $0x78] sm:$0xf]
      %v3513 = vld [vmem:[#allocation4 + $0x7c] sm:$0xf]
      %v3514 = vld [vmem:[#allocation4 + $0x84] sm:$0xf]
      %v3515 = vld [vmem:[#allocation4 + $0x88] sm:$0xf]
      %v3516 = vld [vmem:[#allocation4 + $0x90] sm:$0xf]
      %v3517 = vld [vmem:[#allocation4 + $0x94] sm:$0xf]
      %v3518 = vld [vmem:[#allocation4 + $0x9c] sm:$0xf]
      %v3519 = vld [vmem:[#allocation4 + $0xa0] sm:$0xf]
      %v3520 = vld [vmem:[#allocation4 + $0x8] sm:$0x1]
      %v3521 = vld [vmem:[#allocation4 + $0x14] sm:$0x1]
      %v3522 = vld [vmem:[#allocation4 + $0x20] sm:$0x1]
      %v3523 = vld [vmem:[#allocation4 + $0x2c] sm:$0x1]
      %v3524 = vld [vmem:[#allocation4 + $0x38] sm:$0x1]
      %v3525 = vld [vmem:[#allocation4 + $0x44] sm:$0x1]
      %v3526 = vld [vmem:[#allocation4 + $0x50] sm:$0x1]
      %v3527 = vld [vmem:[#allocation4 + $0x5c] sm:$0x1]
      %v3528 = vld [vmem:[#allocation4 + $0x68] sm:$0x1]
      %v3529 = vld [vmem:[#allocation4 + $0x74] sm:$0x1]
      %v3530 = vld [vmem:[#allocation4 + $0x80] sm:$0x1]
      %v3531 = vld [vmem:[#allocation4 + $0x8c] sm:$0x1]
      %v3532 = vld [vmem:[#allocation4 + $0x98] sm:$0x1]
      %v3533 = vld [vmem:[#allocation4 + $0xa4] sm:$0x1]
      %v3534 = vld [vmem:[#allocation4] sm:$0xe]
      %v3535 = vld [vmem:[#allocation4 + $0xc] sm:$0xe]
      %v3536 = vld [vmem:[#allocation4 + $0x18] sm:$0xe]
      %v3537 = vld [vmem:[#allocation4 + $0x24] sm:$0xe]
      %v3538 = vld [vmem:[#allocation4 + $0x30] sm:$0xe]
      %v3539 = vld [vmem:[#allocation4 + $0x3c] sm:$0xe]
      %v3540 = vld [vmem:[#allocation4 + $0x48] sm:$0xe]
      %v3541 = vld [vmem:[#allocation4 + $0x54] sm:$0xe]
      %v3542 = vld [vmem:[#allocation4 + $0x60] sm:$0xe]
      %v3543 = vld [vmem:[#allocation4 + $0x6c] sm:$0xe]
      %v3544 = vld [vmem:[#allocation4 + $0x78] sm:$0xe]
      %v3545 = vld [vmem:[#allocation4 + $0x84] sm:$0xe]
      %v3546 = vld [vmem:[#allocation4 + $0x90] sm:$0xe]
      %v3547 = vld [vmem:[#allocation4 + $0x9c] sm:$0xe]
      %v3548 = vld [vmem:[%s3404] sm:$0xf]
      %v3549 = vld [vmem:[%s3404 + $0x4] sm:$0xf]
      %v3550 = vld [vmem:[%s3404 + $0xc] sm:$0xf]
      %v3551 = vld [vmem:[%s3404 + $0x10] sm:$0xf]
      %v3552 = vld [vmem:[%s3404 + $0x18] sm:$0xf]
      %v3553 = vld [vmem:[%s3404 + $0x1c] sm:$0xf]
      %v3554 = vld [vmem:[%s3404 + $0x24] sm:$0xf]
      %v3555 = vld [vmem:[%s3404 + $0x28] sm:$0xf]
      %v3556 = vld [vmem:[%s3404 + $0x30] sm:$0xf]
      %v3557 = vld [vmem:[%s3404 + $0x34] sm:$0xf]
      %v3558 = vld [vmem:[%s3404 + $0x3c] sm:$0xf]
      %v3559 = vld [vmem:[%s3404 + $0x40] sm:$0xf]
      %v3560 = vld [vmem:[%s3404 + $0x48] sm:$0xf]
      %v3561 = vld [vmem:[%s3404 + $0x4c] sm:$0xf]
      %v3562 = vld [vmem:[%s3404 + $0x54] sm:$0xf]
      %v3563 = vld [vmem:[%s3404 + $0x58] sm:$0xf]
      %v3564 = vld [vmem:[%s3404 + $0x60] sm:$0xf]
      %v3565 = vld [vmem:[%s3404 + $0x64] sm:$0xf]
      %v3566 = vld [vmem:[%s3404 + $0x6c] sm:$0xf]
      %v3567 = vld [vmem:[%s3404 + $0x70] sm:$0xf]
      %v3568 = vld [vmem:[%s3404 + $0x78] sm:$0xf]
      %v3569 = vld [vmem:[%s3404 + $0x7c] sm:$0xf]
      %v3570 = vld [vmem:[%s3404 + $0x84] sm:$0xf]
      %v3571 = vld [vmem:[%s3404 + $0x88] sm:$0xf]
      %v3572 = vld [vmem:[%s3404 + $0x90] sm:$0xf]
      %v3573 = vld [vmem:[%s3404 + $0x94] sm:$0xf]
      %v3574 = vld [vmem:[%s3404 + $0x9c] sm:$0xf]
      %v3575 = vld [vmem:[%s3404 + $0xa0] sm:$0xf]
      %v3576 = vld [vmem:[%s3404 + $0x8] sm:$0x1]
      %v3577 = vld [vmem:[%s3404 + $0x14] sm:$0x1]
      %v3578 = vld [vmem:[%s3404 + $0x20] sm:$0x1]
      %v3579 = vld [vmem:[%s3404 + $0x2c] sm:$0x1]
      %v3580 = vld [vmem:[%s3404 + $0x38] sm:$0x1]
      %v3581 = vld [vmem:[%s3404 + $0x44] sm:$0x1]
      %v3582 = vld [vmem:[%s3404 + $0x50] sm:$0x1]
      %v3583 = vld [vmem:[%s3404 + $0x5c] sm:$0x1]
      %v3584 = vld [vmem:[%s3404 + $0x68] sm:$0x1]
      %v3585 = vld [vmem:[%s3404 + $0x74] sm:$0x1]
      %v3586 = vld [vmem:[%s3404 + $0x80] sm:$0x1]
      %v3587 = vld [vmem:[%s3404 + $0x8c] sm:$0x1]
      %v3588 = vld [vmem:[%s3404 + $0x98] sm:$0x1]
      %v3589 = vld [vmem:[%s3404 + $0xa4] sm:$0x1]
      %v3590 = vld [vmem:[%s3404] sm:$0xe]
      %v3591 = vld [vmem:[%s3404 + $0xc] sm:$0xe]
      %v3592 = vld [vmem:[%s3404 + $0x18] sm:$0xe]
      %v3593 = vld [vmem:[%s3404 + $0x24] sm:$0xe]
      %v3594 = vld [vmem:[%s3404 + $0x30] sm:$0xe]
      %v3595 = vld [vmem:[%s3404 + $0x3c] sm:$0xe]
      %v3596 = vld [vmem:[%s3404 + $0x48] sm:$0xe]
      %v3597 = vld [vmem:[%s3404 + $0x54] sm:$0xe]
      %v3598 = vld [vmem:[%s3404 + $0x60] sm:$0xe]
      %v3599 = vld [vmem:[%s3404 + $0x6c] sm:$0xe]
      %v3600 = vld [vmem:[%s3404 + $0x78] sm:$0xe]
      %v3601 = vld [vmem:[%s3404 + $0x84] sm:$0xe]
      %v3602 = vld [vmem:[%s3404 + $0x90] sm:$0xe]
      %v3603 = vld [vmem:[%s3404 + $0x9c] sm:$0xe]
      %s3604 = scalar_lea.vmem [#allocation4], 24
      %v3605 = vld [vmem:[%s3604] sm:$0xf]
      %v3606 = vld [vmem:[%s3604 + $0x4] sm:$0xf]
      %v3607 = vld [vmem:[%s3604 + $0xc] sm:$0xf]
      %v3608 = vld [vmem:[%s3604 + $0x10] sm:$0xf]
      %v3609 = vld [vmem:[%s3604 + $0x18] sm:$0xf]
      %v3610 = vld [vmem:[%s3604 + $0x1c] sm:$0xf]
      %v3611 = vld [vmem:[%s3604 + $0x24] sm:$0xf]
      %v3612 = vld [vmem:[%s3604 + $0x28] sm:$0xf]
      %v3613 = vld [vmem:[%s3604 + $0x30] sm:$0xf]
      %v3614 = vld [vmem:[%s3604 + $0x34] sm:$0xf]
      %v3615 = vld [vmem:[%s3604 + $0x3c] sm:$0xf]
      %v3616 = vld [vmem:[%s3604 + $0x40] sm:$0xf]
      %v3617 = vld [vmem:[%s3604 + $0x48] sm:$0xf]
      %v3618 = vld [vmem:[%s3604 + $0x4c] sm:$0xf]
      %v3619 = vld [vmem:[%s3604 + $0x54] sm:$0xf]
      %v3620 = vld [vmem:[%s3604 + $0x58] sm:$0xf]
      %v3621 = vld [vmem:[%s3604 + $0x60] sm:$0xf]
      %v3622 = vld [vmem:[%s3604 + $0x64] sm:$0xf]
      %v3623 = vld [vmem:[%s3604 + $0x6c] sm:$0xf]
      %v3624 = vld [vmem:[%s3604 + $0x70] sm:$0xf]
      %v3625 = vld [vmem:[%s3604 + $0x78] sm:$0xf]
      %v3626 = vld [vmem:[%s3604 + $0x7c] sm:$0xf]
      %v3627 = vld [vmem:[%s3604 + $0x84] sm:$0xf]
      %v3628 = vld [vmem:[%s3604 + $0x88] sm:$0xf]
      %v3629 = vld [vmem:[%s3604 + $0x90] sm:$0xf]
      %v3630 = vld [vmem:[%s3604 + $0x94] sm:$0xf]
      %v3631 = vld [vmem:[%s3604 + $0x9c] sm:$0xf]
      %v3632 = vld [vmem:[%s3604 + $0xa0] sm:$0xf]
      %v3633 = vld [vmem:[%s3604 + $0x8] sm:$0x1]
      %v3634 = vld [vmem:[%s3604 + $0x14] sm:$0x1]
      %v3635 = vld [vmem:[%s3604 + $0x20] sm:$0x1]
      %v3636 = vld [vmem:[%s3604 + $0x2c] sm:$0x1]
      %v3637 = vld [vmem:[%s3604 + $0x38] sm:$0x1]
      %v3638 = vld [vmem:[%s3604 + $0x44] sm:$0x1]
      %v3639 = vld [vmem:[%s3604 + $0x50] sm:$0x1]
      %v3640 = vld [vmem:[%s3604 + $0x5c] sm:$0x1]
      %v3641 = vld [vmem:[%s3604 + $0x68] sm:$0x1]
      %v3642 = vld [vmem:[%s3604 + $0x74] sm:$0x1]
      %v3643 = vld [vmem:[%s3604 + $0x80] sm:$0x1]
      %v3644 = vld [vmem:[%s3604 + $0x8c] sm:$0x1]
      %v3645 = vld [vmem:[%s3604 + $0x98] sm:$0x1]
      %v3646 = vld [vmem:[%s3604 + $0xa4] sm:$0x1]
      %v3647 = vld [vmem:[%s3604] sm:$0xe]
      %v3648 = vld [vmem:[%s3604 + $0xc] sm:$0xe]
      %v3649 = vld [vmem:[%s3604 + $0x18] sm:$0xe]
      %v3650 = vld [vmem:[%s3604 + $0x24] sm:$0xe]
      %v3651 = vld [vmem:[%s3604 + $0x30] sm:$0xe]
      %v3652 = vld [vmem:[%s3604 + $0x3c] sm:$0xe]
      %v3653 = vld [vmem:[%s3604 + $0x48] sm:$0xe]
      %v3654 = vld [vmem:[%s3604 + $0x54] sm:$0xe]
      %v3655 = vld [vmem:[%s3604 + $0x60] sm:$0xe]
      %v3656 = vld [vmem:[%s3604 + $0x6c] sm:$0xe]
      %v3657 = vld [vmem:[%s3604 + $0x78] sm:$0xe]
      %v3658 = vld [vmem:[%s3604 + $0x84] sm:$0xe]
      %v3659 = vld [vmem:[%s3604 + $0x90] sm:$0xe]
      %v3660 = vld [vmem:[%s3604 + $0x9c] sm:$0xe]
      %v3689 = vunpack.c.l.b16 %v3492
      %v3690 = vunpack.c.l.b16 %v3493
      %v3691 = vunpack.c.l.b16 %v3494
      %v3692 = vunpack.c.l.b16 %v3495
      %v3693 = vunpack.c.l.b16 %v3496
      %v3694 = vunpack.c.l.b16 %v3497
      %v3695 = vunpack.c.l.b16 %v3498
      %v3696 = vunpack.c.l.b16 %v3499
      %v3697 = vunpack.c.l.b16 %v3500
      %v3698 = vunpack.c.l.b16 %v3501
      %v3699 = vunpack.c.l.b16 %v3502
      %v3700 = vunpack.c.l.b16 %v3503
      %v3701 = vunpack.c.l.b16 %v3504
      %v3702 = vunpack.c.l.b16 %v3505
      %v3703 = vunpack.c.l.b16 %v3506
      %v3704 = vunpack.c.l.b16 %v3507
      %v3705 = vunpack.c.l.b16 %v3508
      %v3706 = vunpack.c.l.b16 %v3509
      %v3707 = vunpack.c.l.b16 %v3510
      %v3708 = vunpack.c.l.b16 %v3511
      %v3709 = vunpack.c.l.b16 %v3512
      %v3710 = vunpack.c.l.b16 %v3513
      %v3711 = vunpack.c.l.b16 %v3514
      %v3712 = vunpack.c.l.b16 %v3515
      %v3713 = vunpack.c.l.b16 %v3516
      %v3714 = vunpack.c.l.b16 %v3517
      %v3715 = vunpack.c.l.b16 %v3518
      %v3716 = vunpack.c.l.b16 %v3519
      %v3717 = vpack.c.b16 %v3690, %v3689
      %v3718 = vpack.c.b16 %v3692, %v3691
      %v3719 = vpack.c.b16 %v3694, %v3693
      %v3720 = vpack.c.b16 %v3696, %v3695
      %v3721 = vpack.c.b16 %v3698, %v3697
      %v3722 = vpack.c.b16 %v3700, %v3699
      %v3723 = vpack.c.b16 %v3702, %v3701
      %v3724 = vpack.c.b16 %v3704, %v3703
      %v3725 = vpack.c.b16 %v3706, %v3705
      %v3726 = vpack.c.b16 %v3708, %v3707
      %v3727 = vpack.c.b16 %v3710, %v3709
      %v3728 = vpack.c.b16 %v3712, %v3711
      %v3729 = vpack.c.b16 %v3714, %v3713
      %v3730 = vpack.c.b16 %v3716, %v3715
      %v3745 = vunpack.c.l.b16 %v3520
      %v3746 = vunpack.c.l.b16 %v3521
      %v3747 = vunpack.c.l.b16 %v3522
      %v3748 = vunpack.c.l.b16 %v3523
      %v3749 = vunpack.c.l.b16 %v3524
      %v3750 = vunpack.c.l.b16 %v3525
      %v3751 = vunpack.c.l.b16 %v3526
      %v3752 = vunpack.c.l.b16 %v3527
      %v3753 = vunpack.c.l.b16 %v3528
      %v3754 = vunpack.c.l.b16 %v3529
      %v3755 = vunpack.c.l.b16 %v3530
      %v3756 = vunpack.c.l.b16 %v3531
      %v3757 = vunpack.c.l.b16 %v3532
      %v3758 = vunpack.c.l.b16 %v3533
      %v3759 = vpack.c.b16 %v3745, %v3745
      %v3760 = vpack.c.b16 %v3746, %v3746
      %v3761 = vpack.c.b16 %v3747, %v3747
      %v3762 = vpack.c.b16 %v3748, %v3748
      %v3763 = vpack.c.b16 %v3749, %v3749
      %v3764 = vpack.c.b16 %v3750, %v3750
      %v3765 = vpack.c.b16 %v3751, %v3751
      %v3766 = vpack.c.b16 %v3752, %v3752
      %v3767 = vpack.c.b16 %v3753, %v3753
      %v3768 = vpack.c.b16 %v3754, %v3754
      %v3769 = vpack.c.b16 %v3755, %v3755
      %v3770 = vpack.c.b16 %v3756, %v3756
      %v3771 = vpack.c.b16 %v3757, %v3757
      %v3772 = vpack.c.b16 %v3758, %v3758
      %vm3773 = vsmask.f32 7424
      %v3775 = vshrl.u32 %v3717, 16
      %v3777 = vshll.u32 %v3717, 16
      %v3779 = vrot.slane %v3777, 1
      %v3780 = vor.u32 %v3775, %v3779
      %v3782 = vshll.u32 %v3759, 16
      %v3784 = vrot.slane %v3782, 1
      %v3785 = vsel %vm3773, %v3780, %v3784
      %v3787 = vshrl.u32 %v3718, 16
      %v3789 = vshll.u32 %v3718, 16
      %v3791 = vrot.slane %v3789, 1
      %v3792 = vor.u32 %v3787, %v3791
      %v3794 = vshll.u32 %v3760, 16
      %v3796 = vrot.slane %v3794, 1
      %v3797 = vsel %vm3773, %v3792, %v3796
      %v3799 = vshrl.u32 %v3719, 16
      %v3801 = vshll.u32 %v3719, 16
      %v3803 = vrot.slane %v3801, 1
      %v3804 = vor.u32 %v3799, %v3803
      %v3806 = vshll.u32 %v3761, 16
      %v3808 = vrot.slane %v3806, 1
      %v3809 = vsel %vm3773, %v3804, %v3808
      %v3811 = vshrl.u32 %v3720, 16
      %v3813 = vshll.u32 %v3720, 16
      %v3815 = vrot.slane %v3813, 1
      %v3816 = vor.u32 %v3811, %v3815
      %v3818 = vshll.u32 %v3762, 16
      %v3820 = vrot.slane %v3818, 1
      %v3821 = vsel %vm3773, %v3816, %v3820
      %v3823 = vshrl.u32 %v3721, 16
      %v3825 = vshll.u32 %v3721, 16
      %v3827 = vrot.slane %v3825, 1
      %v3828 = vor.u32 %v3823, %v3827
      %v3830 = vshll.u32 %v3763, 16
      %v3832 = vrot.slane %v3830, 1
      %v3833 = vsel %vm3773, %v3828, %v3832
      %v3835 = vshrl.u32 %v3722, 16
      %v3837 = vshll.u32 %v3722, 16
      %v3839 = vrot.slane %v3837, 1
      %v3840 = vor.u32 %v3835, %v3839
      %v3842 = vshll.u32 %v3764, 16
      %v3844 = vrot.slane %v3842, 1
      %v3845 = vsel %vm3773, %v3840, %v3844
      %v3847 = vshrl.u32 %v3723, 16
      %v3849 = vshll.u32 %v3723, 16
      %v3851 = vrot.slane %v3849, 1
      %v3852 = vor.u32 %v3847, %v3851
      %v3854 = vshll.u32 %v3765, 16
      %v3856 = vrot.slane %v3854, 1
      %v3857 = vsel %vm3773, %v3852, %v3856
      %v3859 = vshrl.u32 %v3724, 16
      %v3861 = vshll.u32 %v3724, 16
      %v3863 = vrot.slane %v3861, 1
      %v3864 = vor.u32 %v3859, %v3863
      %v3866 = vshll.u32 %v3766, 16
      %v3868 = vrot.slane %v3866, 1
      %v3869 = vsel %vm3773, %v3864, %v3868
      %v3871 = vshrl.u32 %v3725, 16
      %v3873 = vshll.u32 %v3725, 16
      %v3875 = vrot.slane %v3873, 1
      %v3876 = vor.u32 %v3871, %v3875
      %v3878 = vshll.u32 %v3767, 16
      %v3880 = vrot.slane %v3878, 1
      %v3881 = vsel %vm3773, %v3876, %v3880
      %v3883 = vshrl.u32 %v3726, 16
      %v3885 = vshll.u32 %v3726, 16
      %v3887 = vrot.slane %v3885, 1
      %v3888 = vor.u32 %v3883, %v3887
      %v3890 = vshll.u32 %v3768, 16
      %v3892 = vrot.slane %v3890, 1
      %v3893 = vsel %vm3773, %v3888, %v3892
      %v3895 = vshrl.u32 %v3727, 16
      %v3897 = vshll.u32 %v3727, 16
      %v3899 = vrot.slane %v3897, 1
      %v3900 = vor.u32 %v3895, %v3899
      %v3902 = vshll.u32 %v3769, 16
      %v3904 = vrot.slane %v3902, 1
      %v3905 = vsel %vm3773, %v3900, %v3904
      %v3907 = vshrl.u32 %v3728, 16
      %v3909 = vshll.u32 %v3728, 16
      %v3911 = vrot.slane %v3909, 1
      %v3912 = vor.u32 %v3907, %v3911
      %v3914 = vshll.u32 %v3770, 16
      %v3916 = vrot.slane %v3914, 1
      %v3917 = vsel %vm3773, %v3912, %v3916
      %v3919 = vshrl.u32 %v3729, 16
      %v3921 = vshll.u32 %v3729, 16
      %v3923 = vrot.slane %v3921, 1
      %v3924 = vor.u32 %v3919, %v3923
      %v3926 = vshll.u32 %v3771, 16
      %v3928 = vrot.slane %v3926, 1
      %v3929 = vsel %vm3773, %v3924, %v3928
      %v3931 = vshrl.u32 %v3730, 16
      %v3933 = vshll.u32 %v3730, 16
      %v3935 = vrot.slane %v3933, 1
      %v3936 = vor.u32 %v3931, %v3935
      %v3938 = vshll.u32 %v3772, 16
      %v3940 = vrot.slane %v3938, 1
      %v3941 = vsel %vm3773, %v3936, %v3940
      %3942 = vrot.lane.b32.xlu0 %v3785, 32
      %v3943 = vpop.permute.xlu0 %3942
      %3944 = vrot.lane.b32.xlu0 %v3797, 32
      %v3945 = vpop.permute.xlu0 %3944
      %3946 = vrot.lane.b32.xlu0 %v3809, 32
      %v3947 = vpop.permute.xlu0 %3946
      %3948 = vrot.lane.b32.xlu0 %v3821, 32
      %v3949 = vpop.permute.xlu0 %3948
      %3950 = vrot.lane.b32.xlu0 %v3833, 32
      %v3951 = vpop.permute.xlu0 %3950
      %3952 = vrot.lane.b32.xlu0 %v3845, 32
      %v3953 = vpop.permute.xlu0 %3952
      %3954 = vrot.lane.b32.xlu0 %v3857, 32
      %v3955 = vpop.permute.xlu0 %3954
      %3956 = vrot.lane.b32.xlu0 %v3869, 32
      %v3957 = vpop.permute.xlu0 %3956
      %3958 = vrot.lane.b32.xlu0 %v3881, 32
      %v3959 = vpop.permute.xlu0 %3958
      %3960 = vrot.lane.b32.xlu0 %v3893, 32
      %v3961 = vpop.permute.xlu0 %3960
      %3962 = vrot.lane.b32.xlu0 %v3905, 32
      %v3963 = vpop.permute.xlu0 %3962
      %3964 = vrot.lane.b32.xlu0 %v3917, 32
      %v3965 = vpop.permute.xlu0 %3964
      %3966 = vrot.lane.b32.xlu0 %v3929, 32
      %v3967 = vpop.permute.xlu0 %3966
      %3968 = vrot.lane.b32.xlu0 %v3941, 32
      %v3969 = vpop.permute.xlu0 %3968
      %v3984 = vunpack.c.l.b16 %v3534
      %v3985 = vunpack.c.l.b16 %v3535
      %v3986 = vunpack.c.l.b16 %v3536
      %v3987 = vunpack.c.l.b16 %v3537
      %v3988 = vunpack.c.l.b16 %v3538
      %v3989 = vunpack.c.l.b16 %v3539
      %v3990 = vunpack.c.l.b16 %v3540
      %v3991 = vunpack.c.l.b16 %v3541
      %v3992 = vunpack.c.l.b16 %v3542
      %v3993 = vunpack.c.l.b16 %v3543
      %v3994 = vunpack.c.l.b16 %v3544
      %v3995 = vunpack.c.l.b16 %v3545
      %v3996 = vunpack.c.l.b16 %v3546
      %v3997 = vunpack.c.l.b16 %v3547
      %v3998 = vpack.c.b16 %v3690, %v3984
      %v3999 = vpack.c.b16 %v3692, %v3985
      %v4000 = vpack.c.b16 %v3694, %v3986
      %v4001 = vpack.c.b16 %v3696, %v3987
      %v4002 = vpack.c.b16 %v3698, %v3988
      %v4003 = vpack.c.b16 %v3700, %v3989
      %v4004 = vpack.c.b16 %v3702, %v3990
      %v4005 = vpack.c.b16 %v3704, %v3991
      %v4006 = vpack.c.b16 %v3706, %v3992
      %v4007 = vpack.c.b16 %v3708, %v3993
      %v4008 = vpack.c.b16 %v3710, %v3994
      %v4009 = vpack.c.b16 %v3712, %v3995
      %v4010 = vpack.c.b16 %v3714, %v3996
      %v4011 = vpack.c.b16 %v3716, %v3997
      %vm4012 = vcmask 1046528
      %v4013 = vrot.slane %v3998, 1
      %v4014 = vrot.slane %v3759, 1
      %v4015 = vsel %vm4012, %v4013, %v4014
      %v4016 = vrot.slane %v3999, 1
      %v4017 = vrot.slane %v3760, 1
      %v4018 = vsel %vm4012, %v4016, %v4017
      %v4019 = vrot.slane %v4000, 1
      %v4020 = vrot.slane %v3761, 1
      %v4021 = vsel %vm4012, %v4019, %v4020
      %v4022 = vrot.slane %v4001, 1
      %v4023 = vrot.slane %v3762, 1
      %v4024 = vsel %vm4012, %v4022, %v4023
      %v4025 = vrot.slane %v4002, 1
      %v4026 = vrot.slane %v3763, 1
      %v4027 = vsel %vm4012, %v4025, %v4026
      %v4028 = vrot.slane %v4003, 1
      %v4029 = vrot.slane %v3764, 1
      %v4030 = vsel %vm4012, %v4028, %v4029
      %v4031 = vrot.slane %v4004, 1
      %v4032 = vrot.slane %v3765, 1
      %v4033 = vsel %vm4012, %v4031, %v4032
      %v4034 = vrot.slane %v4005, 1
      %v4035 = vrot.slane %v3766, 1
      %v4036 = vsel %vm4012, %v4034, %v4035
      %v4037 = vrot.slane %v4006, 1
      %v4038 = vrot.slane %v3767, 1
      %v4039 = vsel %vm4012, %v4037, %v4038
      %v4040 = vrot.slane %v4007, 1
      %v4041 = vrot.slane %v3768, 1
      %v4042 = vsel %vm4012, %v4040, %v4041
      %v4043 = vrot.slane %v4008, 1
      %v4044 = vrot.slane %v3769, 1
      %v4045 = vsel %vm4012, %v4043, %v4044
      %v4046 = vrot.slane %v4009, 1
      %v4047 = vrot.slane %v3770, 1
      %v4048 = vsel %vm4012, %v4046, %v4047
      %v4049 = vrot.slane %v4010, 1
      %v4050 = vrot.slane %v3771, 1
      %v4051 = vsel %vm4012, %v4049, %v4050
      %v4052 = vrot.slane %v4011, 1
      %v4053 = vrot.slane %v3772, 1
      %v4054 = vsel %vm4012, %v4052, %v4053
      %4055 = vrot.lane.b32.xlu0 %v4015, 64
      %v4056 = vpop.permute.xlu0 %4055
      %4057 = vrot.lane.b32.xlu0 %v4018, 64
      %v4058 = vpop.permute.xlu0 %4057
      %4059 = vrot.lane.b32.xlu0 %v4021, 64
      %v4060 = vpop.permute.xlu0 %4059
      %4061 = vrot.lane.b32.xlu0 %v4024, 64
      %v4062 = vpop.permute.xlu0 %4061
      %4063 = vrot.lane.b32.xlu0 %v4027, 64
      %v4064 = vpop.permute.xlu0 %4063
      %4065 = vrot.lane.b32.xlu0 %v4030, 64
      %v4066 = vpop.permute.xlu0 %4065
      %4067 = vrot.lane.b32.xlu0 %v4033, 64
      %v4068 = vpop.permute.xlu0 %4067
      %4069 = vrot.lane.b32.xlu0 %v4036, 64
      %v4070 = vpop.permute.xlu0 %4069
      %4071 = vrot.lane.b32.xlu0 %v4039, 64
      %v4072 = vpop.permute.xlu0 %4071
      %4073 = vrot.lane.b32.xlu0 %v4042, 64
      %v4074 = vpop.permute.xlu0 %4073
      %4075 = vrot.lane.b32.xlu0 %v4045, 64
      %v4076 = vpop.permute.xlu0 %4075
      %4077 = vrot.lane.b32.xlu0 %v4048, 64
      %v4078 = vpop.permute.xlu0 %4077
      %4079 = vrot.lane.b32.xlu0 %v4051, 64
      %v4080 = vpop.permute.xlu0 %4079
      %4081 = vrot.lane.b32.xlu0 %v4054, 64
      %v4082 = vpop.permute.xlu0 %4081
      %v4111 = vunpack.c.l.b16 %v3548
      %v4112 = vunpack.c.l.b16 %v3549
      %v4113 = vunpack.c.l.b16 %v3550
      %v4114 = vunpack.c.l.b16 %v3551
      %v4115 = vunpack.c.l.b16 %v3552
      %v4116 = vunpack.c.l.b16 %v3553
      %v4117 = vunpack.c.l.b16 %v3554
      %v4118 = vunpack.c.l.b16 %v3555
      %v4119 = vunpack.c.l.b16 %v3556
      %v4120 = vunpack.c.l.b16 %v3557
      %v4121 = vunpack.c.l.b16 %v3558
      %v4122 = vunpack.c.l.b16 %v3559
      %v4123 = vunpack.c.l.b16 %v3560
      %v4124 = vunpack.c.l.b16 %v3561
      %v4125 = vunpack.c.l.b16 %v3562
      %v4126 = vunpack.c.l.b16 %v3563
      %v4127 = vunpack.c.l.b16 %v3564
      %v4128 = vunpack.c.l.b16 %v3565
      %v4129 = vunpack.c.l.b16 %v3566
      %v4130 = vunpack.c.l.b16 %v3567
      %v4131 = vunpack.c.l.b16 %v3568
      %v4132 = vunpack.c.l.b16 %v3569
      %v4133 = vunpack.c.l.b16 %v3570
      %v4134 = vunpack.c.l.b16 %v3571
      %v4135 = vunpack.c.l.b16 %v3572
      %v4136 = vunpack.c.l.b16 %v3573
      %v4137 = vunpack.c.l.b16 %v3574
      %v4138 = vunpack.c.l.b16 %v3575
      %v4139 = vpack.c.b16 %v4112, %v4111
      %v4140 = vpack.c.b16 %v4114, %v4113
      %v4141 = vpack.c.b16 %v4116, %v4115
      %v4142 = vpack.c.b16 %v4118, %v4117
      %v4143 = vpack.c.b16 %v4120, %v4119
      %v4144 = vpack.c.b16 %v4122, %v4121
      %v4145 = vpack.c.b16 %v4124, %v4123
      %v4146 = vpack.c.b16 %v4126, %v4125
      %v4147 = vpack.c.b16 %v4128, %v4127
      %v4148 = vpack.c.b16 %v4130, %v4129
      %v4149 = vpack.c.b16 %v4132, %v4131
      %v4150 = vpack.c.b16 %v4134, %v4133
      %v4151 = vpack.c.b16 %v4136, %v4135
      %v4152 = vpack.c.b16 %v4138, %v4137
      %4153 = vrot.lane.b32.xlu0 %v4139, 96
      %v4154 = vpop.permute.xlu0 %4153
      %4155 = vrot.lane.b32.xlu0 %v4140, 96
      %v4156 = vpop.permute.xlu0 %4155
      %4157 = vrot.lane.b32.xlu0 %v4141, 96
      %v4158 = vpop.permute.xlu0 %4157
      %4159 = vrot.lane.b32.xlu0 %v4142, 96
      %v4160 = vpop.permute.xlu0 %4159
      %4161 = vrot.lane.b32.xlu0 %v4143, 96
      %v4162 = vpop.permute.xlu0 %4161
      %4163 = vrot.lane.b32.xlu0 %v4144, 96
      %v4164 = vpop.permute.xlu0 %4163
      %4165 = vrot.lane.b32.xlu0 %v4145, 96
      %v4166 = vpop.permute.xlu0 %4165
      %4167 = vrot.lane.b32.xlu0 %v4146, 96
      %v4168 = vpop.permute.xlu0 %4167
      %4169 = vrot.lane.b32.xlu0 %v4147, 96
      %v4170 = vpop.permute.xlu0 %4169
      %4171 = vrot.lane.b32.xlu0 %v4148, 96
      %v4172 = vpop.permute.xlu0 %4171
      %4173 = vrot.lane.b32.xlu0 %v4149, 96
      %v4174 = vpop.permute.xlu0 %4173
      %4175 = vrot.lane.b32.xlu0 %v4150, 96
      %v4176 = vpop.permute.xlu0 %4175
      %4177 = vrot.lane.b32.xlu0 %v4151, 96
      %v4178 = vpop.permute.xlu0 %4177
      %4179 = vrot.lane.b32.xlu0 %v4152, 96
      %v4180 = vpop.permute.xlu0 %4179
      %v4195 = vunpack.c.l.b16 %v3576
      %v4196 = vunpack.c.l.b16 %v3577
      %v4197 = vunpack.c.l.b16 %v3578
      %v4198 = vunpack.c.l.b16 %v3579
      %v4199 = vunpack.c.l.b16 %v3580
      %v4200 = vunpack.c.l.b16 %v3581
      %v4201 = vunpack.c.l.b16 %v3582
      %v4202 = vunpack.c.l.b16 %v3583
      %v4203 = vunpack.c.l.b16 %v3584
      %v4204 = vunpack.c.l.b16 %v3585
      %v4205 = vunpack.c.l.b16 %v3586
      %v4206 = vunpack.c.l.b16 %v3587
      %v4207 = vunpack.c.l.b16 %v3588
      %v4208 = vunpack.c.l.b16 %v3589
      %v4209 = vpack.c.b16 %v4195, %v4195
      %v4210 = vpack.c.b16 %v4196, %v4196
      %v4211 = vpack.c.b16 %v4197, %v4197
      %v4212 = vpack.c.b16 %v4198, %v4198
      %v4213 = vpack.c.b16 %v4199, %v4199
      %v4214 = vpack.c.b16 %v4200, %v4200
      %v4215 = vpack.c.b16 %v4201, %v4201
      %v4216 = vpack.c.b16 %v4202, %v4202
      %v4217 = vpack.c.b16 %v4203, %v4203
      %v4218 = vpack.c.b16 %v4204, %v4204
      %v4219 = vpack.c.b16 %v4205, %v4205
      %v4220 = vpack.c.b16 %v4206, %v4206
      %v4221 = vpack.c.b16 %v4207, %v4207
      %v4222 = vpack.c.b16 %v4208, %v4208
      %v4224 = vshrl.u32 %v4139, 16
      %v4226 = vshll.u32 %v4139, 16
      %v4228 = vrot.slane %v4226, 1
      %v4229 = vor.u32 %v4224, %v4228
      %v4231 = vshll.u32 %v4209, 16
      %v4233 = vrot.slane %v4231, 1
      %v4234 = vsel %vm3773, %v4229, %v4233
      %v4236 = vshrl.u32 %v4140, 16
      %v4238 = vshll.u32 %v4140, 16
      %v4240 = vrot.slane %v4238, 1
      %v4241 = vor.u32 %v4236, %v4240
      %v4243 = vshll.u32 %v4210, 16
      %v4245 = vrot.slane %v4243, 1
      %v4246 = vsel %vm3773, %v4241, %v4245
      %v4248 = vshrl.u32 %v4141, 16
      %v4250 = vshll.u32 %v4141, 16
      %v4252 = vrot.slane %v4250, 1
      %v4253 = vor.u32 %v4248, %v4252
      %v4255 = vshll.u32 %v4211, 16
      %v4257 = vrot.slane %v4255, 1
      %v4258 = vsel %vm3773, %v4253, %v4257
      %v4260 = vshrl.u32 %v4142, 16
      %v4262 = vshll.u32 %v4142, 16
      %v4264 = vrot.slane %v4262, 1
      %v4265 = vor.u32 %v4260, %v4264
      %v4267 = vshll.u32 %v4212, 16
      %v4269 = vrot.slane %v4267, 1
      %v4270 = vsel %vm3773, %v4265, %v4269
      %v4272 = vshrl.u32 %v4143, 16
      %v4274 = vshll.u32 %v4143, 16
      %v4276 = vrot.slane %v4274, 1
      %v4277 = vor.u32 %v4272, %v4276
      %v4279 = vshll.u32 %v4213, 16
      %v4281 = vrot.slane %v4279, 1
      %v4282 = vsel %vm3773, %v4277, %v4281
      %v4284 = vshrl.u32 %v4144, 16
      %v4286 = vshll.u32 %v4144, 16
      %v4288 = vrot.slane %v4286, 1
      %v4289 = vor.u32 %v4284, %v4288
      %v4291 = vshll.u32 %v4214, 16
      %v4293 = vrot.slane %v4291, 1
      %v4294 = vsel %vm3773, %v4289, %v4293
      %v4296 = vshrl.u32 %v4145, 16
      %v4298 = vshll.u32 %v4145, 16
      %v4300 = vrot.slane %v4298, 1
      %v4301 = vor.u32 %v4296, %v4300
      %v4303 = vshll.u32 %v4215, 16
      %v4305 = vrot.slane %v4303, 1
      %v4306 = vsel %vm3773, %v4301, %v4305
      %v4308 = vshrl.u32 %v4146, 16
      %v4310 = vshll.u32 %v4146, 16
      %v4312 = vrot.slane %v4310, 1
      %v4313 = vor.u32 %v4308, %v4312
      %v4315 = vshll.u32 %v4216, 16
      %v4317 = vrot.slane %v4315, 1
      %v4318 = vsel %vm3773, %v4313, %v4317
      %v4320 = vshrl.u32 %v4147, 16
      %v4322 = vshll.u32 %v4147, 16
      %v4324 = vrot.slane %v4322, 1
      %v4325 = vor.u32 %v4320, %v4324
      %v4327 = vshll.u32 %v4217, 16
      %v4329 = vrot.slane %v4327, 1
      %v4330 = vsel %vm3773, %v4325, %v4329
      %v4332 = vshrl.u32 %v4148, 16
      %v4334 = vshll.u32 %v4148, 16
      %v4336 = vrot.slane %v4334, 1
      %v4337 = vor.u32 %v4332, %v4336
      %v4339 = vshll.u32 %v4218, 16
      %v4341 = vrot.slane %v4339, 1
      %v4342 = vsel %vm3773, %v4337, %v4341
      %v4344 = vshrl.u32 %v4149, 16
      %v4346 = vshll.u32 %v4149, 16
      %v4348 = vrot.slane %v4346, 1
      %v4349 = vor.u32 %v4344, %v4348
      %v4351 = vshll.u32 %v4219, 16
      %v4353 = vrot.slane %v4351, 1
      %v4354 = vsel %vm3773, %v4349, %v4353
      %v4356 = vshrl.u32 %v4150, 16
      %v4358 = vshll.u32 %v4150, 16
      %v4360 = vrot.slane %v4358, 1
      %v4361 = vor.u32 %v4356, %v4360
      %v4363 = vshll.u32 %v4220, 16
      %v4365 = vrot.slane %v4363, 1
      %v4366 = vsel %vm3773, %v4361, %v4365
      %v4368 = vshrl.u32 %v4151, 16
      %v4370 = vshll.u32 %v4151, 16
      %v4372 = vrot.slane %v4370, 1
      %v4373 = vor.u32 %v4368, %v4372
      %v4375 = vshll.u32 %v4221, 16
      %v4377 = vrot.slane %v4375, 1
      %v4378 = vsel %vm3773, %v4373, %v4377
      %v4380 = vshrl.u32 %v4152, 16
      %v4382 = vshll.u32 %v4152, 16
      %v4384 = vrot.slane %v4382, 1
      %v4385 = vor.u32 %v4380, %v4384
      %v4387 = vshll.u32 %v4222, 16
      %v4389 = vrot.slane %v4387, 1
      %v4390 = vsel %vm3773, %v4385, %v4389
      %v4405 = vunpack.c.l.b16 %v3590
      %v4406 = vunpack.c.l.b16 %v3591
      %v4407 = vunpack.c.l.b16 %v3592
      %v4408 = vunpack.c.l.b16 %v3593
      %v4409 = vunpack.c.l.b16 %v3594
      %v4410 = vunpack.c.l.b16 %v3595
      %v4411 = vunpack.c.l.b16 %v3596
      %v4412 = vunpack.c.l.b16 %v3597
      %v4413 = vunpack.c.l.b16 %v3598
      %v4414 = vunpack.c.l.b16 %v3599
      %v4415 = vunpack.c.l.b16 %v3600
      %v4416 = vunpack.c.l.b16 %v3601
      %v4417 = vunpack.c.l.b16 %v3602
      %v4418 = vunpack.c.l.b16 %v3603
      %v4419 = vpack.c.b16 %v4112, %v4405
      %v4420 = vpack.c.b16 %v4114, %v4406
      %v4421 = vpack.c.b16 %v4116, %v4407
      %v4422 = vpack.c.b16 %v4118, %v4408
      %v4423 = vpack.c.b16 %v4120, %v4409
      %v4424 = vpack.c.b16 %v4122, %v4410
      %v4425 = vpack.c.b16 %v4124, %v4411
      %v4426 = vpack.c.b16 %v4126, %v4412
      %v4427 = vpack.c.b16 %v4128, %v4413
      %v4428 = vpack.c.b16 %v4130, %v4414
      %v4429 = vpack.c.b16 %v4132, %v4415
      %v4430 = vpack.c.b16 %v4134, %v4416
      %v4431 = vpack.c.b16 %v4136, %v4417
      %v4432 = vpack.c.b16 %v4138, %v4418
      %v4433 = vrot.slane %v4419, 1
      %v4434 = vrot.slane %v4209, 1
      %v4435 = vsel %vm4012, %v4433, %v4434
      %v4436 = vrot.slane %v4420, 1
      %v4437 = vrot.slane %v4210, 1
      %v4438 = vsel %vm4012, %v4436, %v4437
      %v4439 = vrot.slane %v4421, 1
      %v4440 = vrot.slane %v4211, 1
      %v4441 = vsel %vm4012, %v4439, %v4440
      %v4442 = vrot.slane %v4422, 1
      %v4443 = vrot.slane %v4212, 1
      %v4444 = vsel %vm4012, %v4442, %v4443
      %v4445 = vrot.slane %v4423, 1
      %v4446 = vrot.slane %v4213, 1
      %v4447 = vsel %vm4012, %v4445, %v4446
      %v4448 = vrot.slane %v4424, 1
      %v4449 = vrot.slane %v4214, 1
      %v4450 = vsel %vm4012, %v4448, %v4449
      %v4451 = vrot.slane %v4425, 1
      %v4452 = vrot.slane %v4215, 1
      %v4453 = vsel %vm4012, %v4451, %v4452
      %v4454 = vrot.slane %v4426, 1
      %v4455 = vrot.slane %v4216, 1
      %v4456 = vsel %vm4012, %v4454, %v4455
      %v4457 = vrot.slane %v4427, 1
      %v4458 = vrot.slane %v4217, 1
      %v4459 = vsel %vm4012, %v4457, %v4458
      %v4460 = vrot.slane %v4428, 1
      %v4461 = vrot.slane %v4218, 1
      %v4462 = vsel %vm4012, %v4460, %v4461
      %v4463 = vrot.slane %v4429, 1
      %v4464 = vrot.slane %v4219, 1
      %v4465 = vsel %vm4012, %v4463, %v4464
      %v4466 = vrot.slane %v4430, 1
      %v4467 = vrot.slane %v4220, 1
      %v4468 = vsel %vm4012, %v4466, %v4467
      %v4469 = vrot.slane %v4431, 1
      %v4470 = vrot.slane %v4221, 1
      %v4471 = vsel %vm4012, %v4469, %v4470
      %v4472 = vrot.slane %v4432, 1
      %v4473 = vrot.slane %v4222, 1
      %v4474 = vsel %vm4012, %v4472, %v4473
      %4475 = vrot.lane.b32.xlu0 %v4435, 32
      %v4476 = vpop.permute.xlu0 %4475
      %4477 = vrot.lane.b32.xlu0 %v4438, 32
      %v4478 = vpop.permute.xlu0 %4477
      %4479 = vrot.lane.b32.xlu0 %v4441, 32
      %v4480 = vpop.permute.xlu0 %4479
      %4481 = vrot.lane.b32.xlu0 %v4444, 32
      %v4482 = vpop.permute.xlu0 %4481
      %4483 = vrot.lane.b32.xlu0 %v4447, 32
      %v4484 = vpop.permute.xlu0 %4483
      %4485 = vrot.lane.b32.xlu0 %v4450, 32
      %v4486 = vpop.permute.xlu0 %4485
      %4487 = vrot.lane.b32.xlu0 %v4453, 32
      %v4488 = vpop.permute.xlu0 %4487
      %4489 = vrot.lane.b32.xlu0 %v4456, 32
      %v4490 = vpop.permute.xlu0 %4489
      %4491 = vrot.lane.b32.xlu0 %v4459, 32
      %v4492 = vpop.permute.xlu0 %4491
      %4493 = vrot.lane.b32.xlu0 %v4462, 32
      %v4494 = vpop.permute.xlu0 %4493
      %4495 = vrot.lane.b32.xlu0 %v4465, 32
      %v4496 = vpop.permute.xlu0 %4495
      %4497 = vrot.lane.b32.xlu0 %v4468, 32
      %v4498 = vpop.permute.xlu0 %4497
      %4499 = vrot.lane.b32.xlu0 %v4471, 32
      %v4500 = vpop.permute.xlu0 %4499
      %4501 = vrot.lane.b32.xlu0 %v4474, 32
      %v4502 = vpop.permute.xlu0 %4501
      %v4531 = vunpack.c.l.b16 %v3605
      %v4532 = vunpack.c.l.b16 %v3606
      %v4533 = vunpack.c.l.b16 %v3607
      %v4534 = vunpack.c.l.b16 %v3608
      %v4535 = vunpack.c.l.b16 %v3609
      %v4536 = vunpack.c.l.b16 %v3610
      %v4537 = vunpack.c.l.b16 %v3611
      %v4538 = vunpack.c.l.b16 %v3612
      %v4539 = vunpack.c.l.b16 %v3613
      %v4540 = vunpack.c.l.b16 %v3614
      %v4541 = vunpack.c.l.b16 %v3615
      %v4542 = vunpack.c.l.b16 %v3616
      %v4543 = vunpack.c.l.b16 %v3617
      %v4544 = vunpack.c.l.b16 %v3618
      %v4545 = vunpack.c.l.b16 %v3619
      %v4546 = vunpack.c.l.b16 %v3620
      %v4547 = vunpack.c.l.b16 %v3621
      %v4548 = vunpack.c.l.b16 %v3622
      %v4549 = vunpack.c.l.b16 %v3623
      %v4550 = vunpack.c.l.b16 %v3624
      %v4551 = vunpack.c.l.b16 %v3625
      %v4552 = vunpack.c.l.b16 %v3626
      %v4553 = vunpack.c.l.b16 %v3627
      %v4554 = vunpack.c.l.b16 %v3628
      %v4555 = vunpack.c.l.b16 %v3629
      %v4556 = vunpack.c.l.b16 %v3630
      %v4557 = vunpack.c.l.b16 %v3631
      %v4558 = vunpack.c.l.b16 %v3632
      %v4559 = vpack.c.b16 %v4532, %v4531
      %v4560 = vpack.c.b16 %v4534, %v4533
      %v4561 = vpack.c.b16 %v4536, %v4535
      %v4562 = vpack.c.b16 %v4538, %v4537
      %v4563 = vpack.c.b16 %v4540, %v4539
      %v4564 = vpack.c.b16 %v4542, %v4541
      %v4565 = vpack.c.b16 %v4544, %v4543
      %v4566 = vpack.c.b16 %v4546, %v4545
      %v4567 = vpack.c.b16 %v4548, %v4547
      %v4568 = vpack.c.b16 %v4550, %v4549
      %v4569 = vpack.c.b16 %v4552, %v4551
      %v4570 = vpack.c.b16 %v4554, %v4553
      %v4571 = vpack.c.b16 %v4556, %v4555
      %v4572 = vpack.c.b16 %v4558, %v4557
      %4573 = vrot.lane.b32.xlu0 %v4559, 64
      %v4574 = vpop.permute.xlu0 %4573
      %4575 = vrot.lane.b32.xlu0 %v4560, 64
      %v4576 = vpop.permute.xlu0 %4575
      %4577 = vrot.lane.b32.xlu0 %v4561, 64
      %v4578 = vpop.permute.xlu0 %4577
      %4579 = vrot.lane.b32.xlu0 %v4562, 64
      %v4580 = vpop.permute.xlu0 %4579
      %4581 = vrot.lane.b32.xlu0 %v4563, 64
      %v4582 = vpop.permute.xlu0 %4581
      %4583 = vrot.lane.b32.xlu0 %v4564, 64
      %v4584 = vpop.permute.xlu0 %4583
      %4585 = vrot.lane.b32.xlu0 %v4565, 64
      %v4586 = vpop.permute.xlu0 %4585
      %4587 = vrot.lane.b32.xlu0 %v4566, 64
      %v4588 = vpop.permute.xlu0 %4587
      %4589 = vrot.lane.b32.xlu0 %v4567, 64
      %v4590 = vpop.permute.xlu0 %4589
      %4591 = vrot.lane.b32.xlu0 %v4568, 64
      %v4592 = vpop.permute.xlu0 %4591
      %4593 = vrot.lane.b32.xlu0 %v4569, 64
      %v4594 = vpop.permute.xlu0 %4593
      %4595 = vrot.lane.b32.xlu0 %v4570, 64
      %v4596 = vpop.permute.xlu0 %4595
      %4597 = vrot.lane.b32.xlu0 %v4571, 64
      %v4598 = vpop.permute.xlu0 %4597
      %4599 = vrot.lane.b32.xlu0 %v4572, 64
      %v4600 = vpop.permute.xlu0 %4599
      %v4615 = vunpack.c.l.b16 %v3633
      %v4616 = vunpack.c.l.b16 %v3634
      %v4617 = vunpack.c.l.b16 %v3635
      %v4618 = vunpack.c.l.b16 %v3636
      %v4619 = vunpack.c.l.b16 %v3637
      %v4620 = vunpack.c.l.b16 %v3638
      %v4621 = vunpack.c.l.b16 %v3639
      %v4622 = vunpack.c.l.b16 %v3640
      %v4623 = vunpack.c.l.b16 %v3641
      %v4624 = vunpack.c.l.b16 %v3642
      %v4625 = vunpack.c.l.b16 %v3643
      %v4626 = vunpack.c.l.b16 %v3644
      %v4627 = vunpack.c.l.b16 %v3645
      %v4628 = vunpack.c.l.b16 %v3646
      %v4629 = vpack.c.b16 %v4615, %v4615
      %v4630 = vpack.c.b16 %v4616, %v4616
      %v4631 = vpack.c.b16 %v4617, %v4617
      %v4632 = vpack.c.b16 %v4618, %v4618
      %v4633 = vpack.c.b16 %v4619, %v4619
      %v4634 = vpack.c.b16 %v4620, %v4620
      %v4635 = vpack.c.b16 %v4621, %v4621
      %v4636 = vpack.c.b16 %v4622, %v4622
      %v4637 = vpack.c.b16 %v4623, %v4623
      %v4638 = vpack.c.b16 %v4624, %v4624
      %v4639 = vpack.c.b16 %v4625, %v4625
      %v4640 = vpack.c.b16 %v4626, %v4626
      %v4641 = vpack.c.b16 %v4627, %v4627
      %v4642 = vpack.c.b16 %v4628, %v4628
      %v4644 = vshrl.u32 %v4559, 16
      %v4646 = vshll.u32 %v4559, 16
      %v4648 = vrot.slane %v4646, 1
      %v4649 = vor.u32 %v4644, %v4648
      %v4651 = vshll.u32 %v4629, 16
      %v4653 = vrot.slane %v4651, 1
      %v4654 = vsel %vm3773, %v4649, %v4653
      %v4656 = vshrl.u32 %v4560, 16
      %v4658 = vshll.u32 %v4560, 16
      %v4660 = vrot.slane %v4658, 1
      %v4661 = vor.u32 %v4656, %v4660
      %v4663 = vshll.u32 %v4630, 16
      %v4665 = vrot.slane %v4663, 1
      %v4666 = vsel %vm3773, %v4661, %v4665
      %v4668 = vshrl.u32 %v4561, 16
      %v4670 = vshll.u32 %v4561, 16
      %v4672 = vrot.slane %v4670, 1
      %v4673 = vor.u32 %v4668, %v4672
      %v4675 = vshll.u32 %v4631, 16
      %v4677 = vrot.slane %v4675, 1
      %v4678 = vsel %vm3773, %v4673, %v4677
      %v4680 = vshrl.u32 %v4562, 16
      %v4682 = vshll.u32 %v4562, 16
      %v4684 = vrot.slane %v4682, 1
      %v4685 = vor.u32 %v4680, %v4684
      %v4687 = vshll.u32 %v4632, 16
      %v4689 = vrot.slane %v4687, 1
      %v4690 = vsel %vm3773, %v4685, %v4689
      %v4692 = vshrl.u32 %v4563, 16
      %v4694 = vshll.u32 %v4563, 16
      %v4696 = vrot.slane %v4694, 1
      %v4697 = vor.u32 %v4692, %v4696
      %v4699 = vshll.u32 %v4633, 16
      %v4701 = vrot.slane %v4699, 1
      %v4702 = vsel %vm3773, %v4697, %v4701
      %v4704 = vshrl.u32 %v4564, 16
      %v4706 = vshll.u32 %v4564, 16
      %v4708 = vrot.slane %v4706, 1
      %v4709 = vor.u32 %v4704, %v4708
      %v4711 = vshll.u32 %v4634, 16
      %v4713 = vrot.slane %v4711, 1
      %v4714 = vsel %vm3773, %v4709, %v4713
      %v4716 = vshrl.u32 %v4565, 16
      %v4718 = vshll.u32 %v4565, 16
      %v4720 = vrot.slane %v4718, 1
      %v4721 = vor.u32 %v4716, %v4720
      %v4723 = vshll.u32 %v4635, 16
      %v4725 = vrot.slane %v4723, 1
      %v4726 = vsel %vm3773, %v4721, %v4725
      %v4728 = vshrl.u32 %v4566, 16
      %v4730 = vshll.u32 %v4566, 16
      %v4732 = vrot.slane %v4730, 1
      %v4733 = vor.u32 %v4728, %v4732
      %v4735 = vshll.u32 %v4636, 16
      %v4737 = vrot.slane %v4735, 1
      %v4738 = vsel %vm3773, %v4733, %v4737
      %v4740 = vshrl.u32 %v4567, 16
      %v4742 = vshll.u32 %v4567, 16
      %v4744 = vrot.slane %v4742, 1
      %v4745 = vor.u32 %v4740, %v4744
      %v4747 = vshll.u32 %v4637, 16
      %v4749 = vrot.slane %v4747, 1
      %v4750 = vsel %vm3773, %v4745, %v4749
      %v4752 = vshrl.u32 %v4568, 16
      %v4754 = vshll.u32 %v4568, 16
      %v4756 = vrot.slane %v4754, 1
      %v4757 = vor.u32 %v4752, %v4756
      %v4759 = vshll.u32 %v4638, 16
      %v4761 = vrot.slane %v4759, 1
      %v4762 = vsel %vm3773, %v4757, %v4761
      %v4764 = vshrl.u32 %v4569, 16
      %v4766 = vshll.u32 %v4569, 16
      %v4768 = vrot.slane %v4766, 1
      %v4769 = vor.u32 %v4764, %v4768
      %v4771 = vshll.u32 %v4639, 16
      %v4773 = vrot.slane %v4771, 1
      %v4774 = vsel %vm3773, %v4769, %v4773
      %v4776 = vshrl.u32 %v4570, 16
      %v4778 = vshll.u32 %v4570, 16
      %v4780 = vrot.slane %v4778, 1
      %v4781 = vor.u32 %v4776, %v4780
      %v4783 = vshll.u32 %v4640, 16
      %v4785 = vrot.slane %v4783, 1
      %v4786 = vsel %vm3773, %v4781, %v4785
      %v4788 = vshrl.u32 %v4571, 16
      %v4790 = vshll.u32 %v4571, 16
      %v4792 = vrot.slane %v4790, 1
      %v4793 = vor.u32 %v4788, %v4792
      %v4795 = vshll.u32 %v4641, 16
      %v4797 = vrot.slane %v4795, 1
      %v4798 = vsel %vm3773, %v4793, %v4797
      %v4800 = vshrl.u32 %v4572, 16
      %v4802 = vshll.u32 %v4572, 16
      %v4804 = vrot.slane %v4802, 1
      %v4805 = vor.u32 %v4800, %v4804
      %v4807 = vshll.u32 %v4642, 16
      %v4809 = vrot.slane %v4807, 1
      %v4810 = vsel %vm3773, %v4805, %v4809
      %4811 = vrot.lane.b32.xlu0 %v4654, 96
      %v4812 = vpop.permute.xlu0 %4811
      %4813 = vrot.lane.b32.xlu0 %v4666, 96
      %v4814 = vpop.permute.xlu0 %4813
      %4815 = vrot.lane.b32.xlu0 %v4678, 96
      %v4816 = vpop.permute.xlu0 %4815
      %4817 = vrot.lane.b32.xlu0 %v4690, 96
      %v4818 = vpop.permute.xlu0 %4817
      %4819 = vrot.lane.b32.xlu0 %v4702, 96
      %v4820 = vpop.permute.xlu0 %4819
      %4821 = vrot.lane.b32.xlu0 %v4714, 96
      %v4822 = vpop.permute.xlu0 %4821
      %4823 = vrot.lane.b32.xlu0 %v4726, 96
      %v4824 = vpop.permute.xlu0 %4823
      %4825 = vrot.lane.b32.xlu0 %v4738, 96
      %v4826 = vpop.permute.xlu0 %4825
      %4827 = vrot.lane.b32.xlu0 %v4750, 96
      %v4828 = vpop.permute.xlu0 %4827
      %4829 = vrot.lane.b32.xlu0 %v4762, 96
      %v4830 = vpop.permute.xlu0 %4829
      %4831 = vrot.lane.b32.xlu0 %v4774, 96
      %v4832 = vpop.permute.xlu0 %4831
      %4833 = vrot.lane.b32.xlu0 %v4786, 96
      %v4834 = vpop.permute.xlu0 %4833
      %4835 = vrot.lane.b32.xlu0 %v4798, 96
      %v4836 = vpop.permute.xlu0 %4835
      %4837 = vrot.lane.b32.xlu0 %v4810, 96
      %v4838 = vpop.permute.xlu0 %4837
      %v4853 = vunpack.c.l.b16 %v3647
      %v4854 = vunpack.c.l.b16 %v3648
      %v4855 = vunpack.c.l.b16 %v3649
      %v4856 = vunpack.c.l.b16 %v3650
      %v4857 = vunpack.c.l.b16 %v3651
      %v4858 = vunpack.c.l.b16 %v3652
      %v4859 = vunpack.c.l.b16 %v3653
      %v4860 = vunpack.c.l.b16 %v3654
      %v4861 = vunpack.c.l.b16 %v3655
      %v4862 = vunpack.c.l.b16 %v3656
      %v4863 = vunpack.c.l.b16 %v3657
      %v4864 = vunpack.c.l.b16 %v3658
      %v4865 = vunpack.c.l.b16 %v3659
      %v4866 = vunpack.c.l.b16 %v3660
      %v4867 = vpack.c.b16 %v4532, %v4853
      %v4868 = vpack.c.b16 %v4534, %v4854
      %v4869 = vpack.c.b16 %v4536, %v4855
      %v4870 = vpack.c.b16 %v4538, %v4856
      %v4871 = vpack.c.b16 %v4540, %v4857
      %v4872 = vpack.c.b16 %v4542, %v4858
      %v4873 = vpack.c.b16 %v4544, %v4859
      %v4874 = vpack.c.b16 %v4546, %v4860
      %v4875 = vpack.c.b16 %v4548, %v4861
      %v4876 = vpack.c.b16 %v4550, %v4862
      %v4877 = vpack.c.b16 %v4552, %v4863
      %v4878 = vpack.c.b16 %v4554, %v4864
      %v4879 = vpack.c.b16 %v4556, %v4865
      %v4880 = vpack.c.b16 %v4558, %v4866
      %v4881 = vrot.slane %v4867, 1
      %v4882 = vrot.slane %v4629, 1
      %v4883 = vsel %vm4012, %v4881, %v4882
      %v4884 = vrot.slane %v4868, 1
      %v4885 = vrot.slane %v4630, 1
      %v4886 = vsel %vm4012, %v4884, %v4885
      %v4887 = vrot.slane %v4869, 1
      %v4888 = vrot.slane %v4631, 1
      %v4889 = vsel %vm4012, %v4887, %v4888
      %v4890 = vrot.slane %v4870, 1
      %v4891 = vrot.slane %v4632, 1
      %v4892 = vsel %vm4012, %v4890, %v4891
      %v4893 = vrot.slane %v4871, 1
      %v4894 = vrot.slane %v4633, 1
      %v4895 = vsel %vm4012, %v4893, %v4894
      %v4896 = vrot.slane %v4872, 1
      %v4897 = vrot.slane %v4634, 1
      %v4898 = vsel %vm4012, %v4896, %v4897
      %v4899 = vrot.slane %v4873, 1
      %v4900 = vrot.slane %v4635, 1
      %v4901 = vsel %vm4012, %v4899, %v4900
      %v4902 = vrot.slane %v4874, 1
      %v4903 = vrot.slane %v4636, 1
      %v4904 = vsel %vm4012, %v4902, %v4903
      %v4905 = vrot.slane %v4875, 1
      %v4906 = vrot.slane %v4637, 1
      %v4907 = vsel %vm4012, %v4905, %v4906
      %v4908 = vrot.slane %v4876, 1
      %v4909 = vrot.slane %v4638, 1
      %v4910 = vsel %vm4012, %v4908, %v4909
      %v4911 = vrot.slane %v4877, 1
      %v4912 = vrot.slane %v4639, 1
      %v4913 = vsel %vm4012, %v4911, %v4912
      %v4914 = vrot.slane %v4878, 1
      %v4915 = vrot.slane %v4640, 1
      %v4916 = vsel %vm4012, %v4914, %v4915
      %v4917 = vrot.slane %v4879, 1
      %v4918 = vrot.slane %v4641, 1
      %v4919 = vsel %vm4012, %v4917, %v4918
      %v4920 = vrot.slane %v4880, 1
      %v4921 = vrot.slane %v4642, 1
      %v4922 = vsel %vm4012, %v4920, %v4921
      %vm4923 = vcmask 261120
      %v4925 = vsel %vm4923, %v3717, %v3943
      %v4927 = vsel %vm4923, %v3718, %v3945
      %v4929 = vsel %vm4923, %v3719, %v3947
      %v4931 = vsel %vm4923, %v3720, %v3949
      %v4933 = vsel %vm4923, %v3721, %v3951
      %v4935 = vsel %vm4923, %v3722, %v3953
      %v4937 = vsel %vm4923, %v3723, %v3955
      %v4939 = vsel %vm4923, %v3724, %v3957
      %v4941 = vsel %vm4923, %v3725, %v3959
      %v4943 = vsel %vm4923, %v3726, %v3961
      %v4945 = vsel %vm4923, %v3727, %v3963
      %v4947 = vsel %vm4923, %v3728, %v3965
      %v4949 = vsel %vm4923, %v3729, %v3967
      %v4951 = vsel %vm4923, %v3730, %v3969
      %vm4952 = vcmask 523264
      %v4954 = vsel %vm4952, %v4925, %v4056
      %v4956 = vsel %vm4952, %v4927, %v4058
      %v4958 = vsel %vm4952, %v4929, %v4060
      %v4960 = vsel %vm4952, %v4931, %v4062
      %v4962 = vsel %vm4952, %v4933, %v4064
      %v4964 = vsel %vm4952, %v4935, %v4066
      %v4966 = vsel %vm4952, %v4937, %v4068
      %v4968 = vsel %vm4952, %v4939, %v4070
      %v4970 = vsel %vm4952, %v4941, %v4072
      %v4972 = vsel %vm4952, %v4943, %v4074
      %v4974 = vsel %vm4952, %v4945, %v4076
      %v4976 = vsel %vm4952, %v4947, %v4078
      %v4978 = vsel %vm4952, %v4949, %v4080
      %v4980 = vsel %vm4952, %v4951, %v4082
      %vm4981 = vcmask 785408
      %v4983 = vsel %vm4981, %v4954, %v4154
      %v4986 = vsel %vm4981, %v4956, %v4156
      %v4989 = vsel %vm4981, %v4958, %v4158
      %v4992 = vsel %vm4981, %v4960, %v4160
      %v4995 = vsel %vm4981, %v4962, %v4162
      %v4998 = vsel %vm4981, %v4964, %v4164
      %v5001 = vsel %vm4981, %v4966, %v4166
      %v5004 = vsel %vm4981, %v4968, %v4168
      %v5007 = vsel %vm4981, %v4970, %v4170
      %v5010 = vsel %vm4981, %v4972, %v4172
      %v5013 = vsel %vm4981, %v4974, %v4174
      %v5016 = vsel %vm4981, %v4976, %v4176
      %v5019 = vsel %vm4981, %v4978, %v4178
      %v5022 = vsel %vm4981, %v4980, %v4180
      %v5026 = vsel %vm4923, %v4234, %v4476
      %v5029 = vsel %vm4923, %v4246, %v4478
      %v5032 = vsel %vm4923, %v4258, %v4480
      %v5035 = vsel %vm4923, %v4270, %v4482
      %v5038 = vsel %vm4923, %v4282, %v4484
      %v5041 = vsel %vm4923, %v4294, %v4486
      %v5044 = vsel %vm4923, %v4306, %v4488
      %v5047 = vsel %vm4923, %v4318, %v4490
      %v5050 = vsel %vm4923, %v4330, %v4492
      %v5053 = vsel %vm4923, %v4342, %v4494
      %v5056 = vsel %vm4923, %v4354, %v4496
      %v5059 = vsel %vm4923, %v4366, %v4498
      %v5062 = vsel %vm4923, %v4378, %v4500
      %v5065 = vsel %vm4923, %v4390, %v4502
      %v5067 = vsel %vm4952, %v5026, %v4574
      %v5069 = vsel %vm4952, %v5029, %v4576
      %v5071 = vsel %vm4952, %v5032, %v4578
      %v5073 = vsel %vm4952, %v5035, %v4580
      %v5075 = vsel %vm4952, %v5038, %v4582
      %v5077 = vsel %vm4952, %v5041, %v4584
      %v5079 = vsel %vm4952, %v5044, %v4586
      %v5081 = vsel %vm4952, %v5047, %v4588
      %v5083 = vsel %vm4952, %v5050, %v4590
      %v5085 = vsel %vm4952, %v5053, %v4592
      %v5087 = vsel %vm4952, %v5056, %v4594
      %v5089 = vsel %vm4952, %v5059, %v4596
      %v5091 = vsel %vm4952, %v5062, %v4598
      %v5093 = vsel %vm4952, %v5065, %v4600
      %v5095 = vsel %vm4981, %v5067, %v4812
      %v5098 = vsel %vm4981, %v5069, %v4814
      %v5101 = vsel %vm4981, %v5071, %v4816
      %v5104 = vsel %vm4981, %v5073, %v4818
      %v5107 = vsel %vm4981, %v5075, %v4820
      %v5110 = vsel %vm4981, %v5077, %v4822
      %v5113 = vsel %vm4981, %v5079, %v4824
      %v5116 = vsel %vm4981, %v5081, %v4826
      %v5119 = vsel %vm4981, %v5083, %v4828
      %v5122 = vsel %vm4981, %v5085, %v4830
      %v5125 = vsel %vm4981, %v5087, %v4832
      %v5128 = vsel %vm4981, %v5089, %v4834
      %v5131 = vsel %vm4981, %v5091, %v4836
      %v5134 = vsel %vm4981, %v5093, %v4838
      %v5136 = vld [vmem:[%s3] sm:$0xf]
      %v5137 = vld [vmem:[%s3 + $0x4] sm:$0xf]
      %v5138 = vld [vmem:[%s3 + $0x8] sm:$0xf]
      %v5139 = vld [vmem:[%s3 + $0xc] sm:$0xf]
      %v5140 = vld [vmem:[%s3 + $0x10] sm:$0xf]
      %v5141 = vld [vmem:[%s3 + $0x14] sm:$0xf]
      %v5142 = vld [vmem:[%s3 + $0x18] sm:$0xf]
      %v5143 = vld [vmem:[%s3 + $0x1c] sm:$0xf]
      %v5144 = vld [vmem:[%s3 + $0x20] sm:$0xf]
      %v5145 = vld [vmem:[%s3 + $0x24] sm:$0xf]
      %v5146 = vld [vmem:[%s3 + $0x28] sm:$0xf]
      %v5147 = vld [vmem:[%s3 + $0x2c] sm:$0xf]
      %v5148 = vld [vmem:[%s3 + $0x30] sm:$0xf]
      %v5149 = vld [vmem:[%s3 + $0x34] sm:$0xf]
      %v5150 = vld [vmem:[%s3 + $0x38] sm:$0xf]
      %v5151 = vld [vmem:[%s3 + $0x3c] sm:$0xf]
      %v5152 = vld [vmem:[%s3 + $0x40] sm:$0xf]
      %v5153 = vld [vmem:[%s3 + $0x44] sm:$0xf]
      %v5154 = vld [vmem:[%s3 + $0x48] sm:$0xf]
      %v5155 = vld [vmem:[%s3 + $0x4c] sm:$0xf]
      %v5156 = vld [vmem:[%s3 + $0x50] sm:$0xf]
      %v5157 = vld [vmem:[%s3 + $0x54] sm:$0xf]
      %v5158 = vld [vmem:[%s3 + $0x58] sm:$0xf]
      %v5159 = vld [vmem:[%s3 + $0x5c] sm:$0xf]
      %v5160 = vld [vmem:[%s3 + $0x60] sm:$0xf]
      %v5161 = vld [vmem:[%s3 + $0x64] sm:$0xf]
      %v5162 = vld [vmem:[%s3 + $0x68] sm:$0xf]
      %v5163 = vld [vmem:[%s3 + $0x6c] sm:$0xf]
      %v5164 = vld [vmem:[%s3 + $0x70] sm:$0xf]
      %v5165 = vld [vmem:[%s3 + $0x74] sm:$0xf]
      %v5166 = vld [vmem:[%s3 + $0x78] sm:$0xf]
      %v5167 = vld [vmem:[%s3 + $0x7c] sm:$0xf]
      %v5168 = vld [vmem:[%s3 + $0x80] sm:$0xf]
      %v5169 = vld [vmem:[%s3 + $0x84] sm:$0xf]
      %v5170 = vld [vmem:[%s3 + $0x88] sm:$0xf]
      %v5171 = vld [vmem:[%s3 + $0x8c] sm:$0xf]
      %v5172 = vld [vmem:[%s4] sm:$0x1]
      %v5174 = vlaneseq
      %v5175 = vshrl.u32 %v5174, 7
      %v5176 = vsub.s32 0, %v5175
      %v5177 = vrot.slane %v5172, %v5176
      %v5215 = vunpack.c.l.b16 %v5136
      %v5216 = vunpack.c.l.b16 %v5137
      %v5217 = vunpack.c.l.b16 %v5138
      %v5218 = vunpack.c.l.b16 %v5139
      %v5219 = vunpack.c.l.b16 %v5140
      %v5220 = vunpack.c.l.b16 %v5141
      %v5221 = vunpack.c.l.b16 %v5142
      %v5222 = vunpack.c.l.b16 %v5143
      %v5223 = vunpack.c.l.b16 %v5144
      %v5224 = vunpack.c.l.b16 %v5145
      %v5225 = vunpack.c.l.b16 %v5146
      %v5226 = vunpack.c.l.b16 %v5147
      %v5227 = vunpack.c.l.b16 %v5148
      %v5228 = vunpack.c.l.b16 %v5149
      %v5229 = vunpack.c.l.b16 %v5150
      %v5230 = vunpack.c.l.b16 %v5151
      %v5231 = vunpack.c.l.b16 %v5152
      %v5232 = vunpack.c.l.b16 %v5153
      %v5233 = vunpack.c.l.b16 %v5154
      %v5234 = vunpack.c.l.b16 %v5155
      %v5235 = vunpack.c.l.b16 %v5156
      %v5236 = vunpack.c.l.b16 %v5157
      %v5237 = vunpack.c.l.b16 %v5158
      %v5238 = vunpack.c.l.b16 %v5159
      %v5239 = vunpack.c.l.b16 %v5160
      %v5240 = vunpack.c.l.b16 %v5161
      %v5241 = vunpack.c.l.b16 %v5162
      %v5242 = vunpack.c.l.b16 %v5163
      %v5243 = vunpack.c.l.b16 %v5164
      %v5244 = vunpack.c.l.b16 %v5165
      %v5245 = vunpack.c.l.b16 %v5166
      %v5246 = vunpack.c.l.b16 %v5167
      %v5247 = vunpack.c.l.b16 %v5168
      %v5248 = vunpack.c.l.b16 %v5169
      %v5249 = vunpack.c.l.b16 %v5170
      %v5250 = vunpack.c.l.b16 %v5171
      %v5251 = vpack.c.b16 %v5216, %v5215
      %v5252 = vpack.c.b16 %v5218, %v5217
      %v5253 = vpack.c.b16 %v5220, %v5219
      %v5254 = vpack.c.b16 %v5222, %v5221
      %v5255 = vpack.c.b16 %v5224, %v5223
      %v5256 = vpack.c.b16 %v5226, %v5225
      %v5257 = vpack.c.b16 %v5228, %v5227
      %v5258 = vpack.c.b16 %v5230, %v5229
      %v5259 = vpack.c.b16 %v5232, %v5231
      %v5260 = vpack.c.b16 %v5234, %v5233
      %v5261 = vpack.c.b16 %v5236, %v5235
      %v5262 = vpack.c.b16 %v5238, %v5237
      %v5263 = vpack.c.b16 %v5240, %v5239
      %v5264 = vpack.c.b16 %v5242, %v5241
      %v5265 = vpack.c.b16 %v5244, %v5243
      %v5266 = vpack.c.b16 %v5246, %v5245
      %v5267 = vpack.c.b16 %v5248, %v5247
      %v5268 = vpack.c.b16 %v5250, %v5249
      %v5288 = vsel %vm4923, %v4883, 0
      %v5291 = vsel %vm4923, %v4886, 0
      %v5294 = vsel %vm4923, %v4889, 0
      %v5297 = vsel %vm4923, %v4892, 0
      %v5300 = vsel %vm4923, %v4895, 0
      %v5303 = vsel %vm4923, %v4898, 0
      %v5306 = vsel %vm4923, %v4901, 0
      %v5309 = vsel %vm4923, %v4904, 0
      %v5312 = vsel %vm4923, %v4907, 0
      %v5315 = vsel %vm4923, %v4910, 0
      %v5318 = vsel %vm4923, %v4913, 0
      %v5321 = vsel %vm4923, %v4916, 0
      %v5324 = vsel %vm4923, %v4919, 0
      %v5327 = vsel %vm4923, %v4922, 0
      %5329 = vmatprep.subr.bf16.mxu0 0
      %5330 = vmatpush1.bf16.msra.mxu0 %v5251
      %5331 = vmatprep.subr.bf16.mxu0 0
      %5332 = vmatpush1.bf16.msra.mxu0 %v5252
      %5333 = vmatprep.subr.bf16.mxu0 0
      %5334 = vmatpush1.bf16.msra.mxu0 %v5253
      %5335 = vmatprep.subr.bf16.mxu0 0
      %5336 = vmatpush1.bf16.msra.mxu0 %v5254
      %5337 = vmatprep.subr.bf16.mxu0 0
      %5338 = vmatpush1.bf16.msra.mxu0 %v5255
      %5339 = vmatprep.subr.bf16.mxu0 0
      %5340 = vmatpush1.bf16.msra.mxu0 %v5256
      %5341 = vmatprep.subr.bf16.mxu0 0
      %5342 = vmatpush1.bf16.msra.mxu0 %v5257
      %5343 = vmatprep.subr.bf16.mxu0 0
      %5344 = vmatpush1.bf16.msra.mxu0 %v5258
      %5345 = vmatprep.subr.bf16.mxu0 0
      %5346 = vmatpush1.bf16.msra.mxu0 %v5259
      %5347 = vmatprep.subr.bf16.mxu0 0
      %5348 = vmatpush1.bf16.msra.mxu0 %v5260
      %5349 = vmatprep.subr.bf16.mxu0 0
      %5350 = vmatpush1.bf16.msra.mxu0 %v5261
      %5351 = vmatprep.subr.bf16.mxu0 0
      %5352 = vmatpush1.bf16.msra.mxu0 %v5262
      %5353 = vmatprep.subr.bf16.mxu0 0
      %5354 = vmatpush1.bf16.msra.mxu0 %v5263
      %5355 = vmatprep.subr.bf16.mxu0 0
      %5356 = vmatpush1.bf16.msra.mxu0 %v5264
      %5357 = vmatprep.subr.bf16.mxu0 0
      %5358 = vmatpush1.bf16.msra.mxu0 %v5265
      %5359 = vmatprep.subr.bf16.mxu0 0
      %5360 = vmatpush1.bf16.msra.mxu0 %v5266
      %5361 = vmatprep.mubr.bf16.mxu0 %v5095
      %5362 = vmatmul.mubr.bf16.gmra.mrb[0].mxu0 %v4983
      %v5363 = vpop.f32.mrb[0].mxu0
      %v5364 = vadd.f32 %v5177, %v5363
      %v5365 = vpop.f32.mrb[0].mxu0
      %v5366 = vpop.f32.mrb[0].mxu0
      %v5367 = vadd.f32 %v5177, %v5366
      %v5368 = vpop.f32.mrb[0].mxu0
      %5369 = vmatprep.mubr.bf16.mxu0 %v5098
      %5370 = vmatmul.mubr.bf16.gmra.mrb[0].mxu0 %v4986
      %v5371 = vpop.f32.mrb[0].mxu0
      %v5372 = vadd.f32 %v5177, %v5371
      %v5373 = vpop.f32.mrb[0].mxu0
      %v5374 = vpop.f32.mrb[0].mxu0
      %v5375 = vadd.f32 %v5177, %v5374
      %v5376 = vpop.f32.mrb[0].mxu0
      %5377 = vmatprep.mubr.bf16.mxu0 %v5101
      %5378 = vmatmul.mubr.bf16.gmra.mrb[0].mxu0 %v4989
      %v5379 = vpop.f32.mrb[0].mxu0
      %v5380 = vadd.f32 %v5177, %v5379
      %v5381 = vpop.f32.mrb[0].mxu0
      %v5382 = vpop.f32.mrb[0].mxu0
      %v5383 = vadd.f32 %v5177, %v5382
      %v5384 = vpop.f32.mrb[0].mxu0
      %5385 = vmatprep.mubr.bf16.mxu0 %v5104
      %5386 = vmatmul.mubr.bf16.gmra.mrb[0].mxu0 %v4992
      %v5387 = vpop.f32.mrb[0].mxu0
      %v5388 = vadd.f32 %v5177, %v5387
      %v5389 = vpop.f32.mrb[0].mxu0
      %v5390 = vpop.f32.mrb[0].mxu0
      %v5391 = vadd.f32 %v5177, %v5390
      %v5392 = vpop.f32.mrb[0].mxu0
      %5393 = vmatprep.mubr.bf16.mxu0 %v5107
      %5394 = vmatmul.mubr.bf16.gmra.mrb[0].mxu0 %v4995
      %v5395 = vpop.f32.mrb[0].mxu0
      %v5396 = vadd.f32 %v5177, %v5395
      %v5397 = vpop.f32.mrb[0].mxu0
      %v5398 = vpop.f32.mrb[0].mxu0
      %v5399 = vadd.f32 %v5177, %v5398
      %v5400 = vpop.f32.mrb[0].mxu0
      %5401 = vmatprep.mubr.bf16.mxu0 %v5110
      %5402 = vmatmul.mubr.bf16.gmra.mrb[0].mxu0 %v4998
      %v5403 = vpop.f32.mrb[0].mxu0
      %v5404 = vadd.f32 %v5177, %v5403
      %v5405 = vpop.f32.mrb[0].mxu0
      %v5406 = vpop.f32.mrb[0].mxu0
      %v5407 = vadd.f32 %v5177, %v5406
      %v5408 = vpop.f32.mrb[0].mxu0
      %5409 = vmatprep.mubr.bf16.mxu0 %v5113
      %5410 = vmatmul.mubr.bf16.gmra.mrb[0].mxu0 %v5001
      %v5411 = vpop.f32.mrb[0].mxu0
      %v5412 = vadd.f32 %v5177, %v5411
      %v5413 = vpop.f32.mrb[0].mxu0
      %v5414 = vpop.f32.mrb[0].mxu0
      %v5415 = vadd.f32 %v5177, %v5414
      %v5416 = vpop.f32.mrb[0].mxu0
      %5417 = vmatprep.mubr.bf16.mxu0 %v5116
      %5418 = vmatmul.mubr.bf16.gmra.mrb[0].mxu0 %v5004
      %v5419 = vpop.f32.mrb[0].mxu0
      %v5420 = vadd.f32 %v5177, %v5419
      %v5421 = vpop.f32.mrb[0].mxu0
      %v5422 = vpop.f32.mrb[0].mxu0
      %v5423 = vadd.f32 %v5177, %v5422
      %v5424 = vpop.f32.mrb[0].mxu0
      %5425 = vmatprep.mubr.bf16.mxu0 %v5119
      %5426 = vmatmul.mubr.bf16.gmra.mrb[0].mxu0 %v5007
      %v5427 = vpop.f32.mrb[0].mxu0
      %v5428 = vadd.f32 %v5177, %v5427
      %v5429 = vpop.f32.mrb[0].mxu0
      %v5430 = vpop.f32.mrb[0].mxu0
      %v5431 = vadd.f32 %v5177, %v5430
      %v5432 = vpop.f32.mrb[0].mxu0
      %5433 = vmatprep.mubr.bf16.mxu0 %v5122
      %5434 = vmatmul.mubr.bf16.gmra.mrb[0].mxu0 %v5010
      %v5435 = vpop.f32.mrb[0].mxu0
      %v5436 = vadd.f32 %v5177, %v5435
      %v5437 = vpop.f32.mrb[0].mxu0
      %v5438 = vpop.f32.mrb[0].mxu0
      %v5439 = vadd.f32 %v5177, %v5438
      %v5440 = vpop.f32.mrb[0].mxu0
      %5441 = vmatprep.mubr.bf16.mxu0 %v5125
      %5442 = vmatmul.mubr.bf16.gmra.mrb[0].mxu0 %v5013
      %v5443 = vpop.f32.mrb[0].mxu0
      %v5444 = vadd.f32 %v5177, %v5443
      %v5445 = vpop.f32.mrb[0].mxu0
      %v5446 = vpop.f32.mrb[0].mxu0
      %v5447 = vadd.f32 %v5177, %v5446
      %v5448 = vpop.f32.mrb[0].mxu0
      %5449 = vmatprep.mubr.bf16.mxu0 %v5128
      %5450 = vmatmul.mubr.bf16.gmra.mrb[0].mxu0 %v5016
      %v5451 = vpop.f32.mrb[0].mxu0
      %v5452 = vadd.f32 %v5177, %v5451
      %v5453 = vpop.f32.mrb[0].mxu0
      %v5454 = vpop.f32.mrb[0].mxu0
      %v5455 = vadd.f32 %v5177, %v5454
      %v5456 = vpop.f32.mrb[0].mxu0
      %5457 = vmatprep.mubr.bf16.mxu0 %v5131
      %5458 = vmatmul.mubr.bf16.gmra.mrb[0].mxu0 %v5019
      %v5459 = vpop.f32.mrb[0].mxu0
      %v5460 = vadd.f32 %v5177, %v5459
      %v5461 = vpop.f32.mrb[0].mxu0
      %v5462 = vpop.f32.mrb[0].mxu0
      %v5463 = vadd.f32 %v5177, %v5462
      %v5464 = vpop.f32.mrb[0].mxu0
      %5465 = vmatprep.mubr.bf16.mxu0 %v5134
      %5466 = vmatmul.mubr.bf16.gmra.mrb[0].mxu0 %v5022
      %v5467 = vpop.f32.mrb[0].mxu0
      %v5468 = vadd.f32 %v5177, %v5467
      %v5469 = vpop.f32.mrb[0].mxu0
      %v5470 = vpop.f32.mrb[0].mxu0
      %v5471 = vadd.f32 %v5177, %v5470
      %v5472 = vpop.f32.mrb[0].mxu0
      %5473 = vdwg.mxu0
      %5474 = vmatprep.subr.bf16.mxu0 0
      %5475 = vmatpush1.bf16.msra.mxu0 %v5267
      %5476 = vmatprep.subr.bf16.mxu0 0
      %5477 = vmatpush1.bf16.msra.mxu0 %v5268
      %5478 = vmatprep.subr.bf16.mxu0 0
      %5479 = vmatpush1.bf16.msra.mxu0 0
      %5480 = vmatprep.subr.bf16.mxu0 0
      %5481 = vmatpush1.bf16.msra.mxu0 0
      %5482 = vmatprep.subr.bf16.mxu0 0
      %5483 = vmatpush1.bf16.msra.mxu0 0
      %5484 = vmatprep.subr.bf16.mxu0 0
      %5485 = vmatpush1.bf16.msra.mxu0 0
      %5486 = vmatprep.subr.bf16.mxu0 0
      %5487 = vmatpush1.bf16.msra.mxu0 0
      %5488 = vmatprep.subr.bf16.mxu0 0
      %5489 = vmatpush1.bf16.msra.mxu0 0
      %5490 = vmatprep.subr.bf16.mxu0 0
      %5491 = vmatpush1.bf16.msra.mxu0 0
      %5492 = vmatprep.subr.bf16.mxu0 0
      %5493 = vmatpush1.bf16.msra.mxu0 0
      %5494 = vmatprep.subr.bf16.mxu0 0
      %5495 = vmatpush1.bf16.msra.mxu0 0
      %5496 = vmatprep.subr.bf16.mxu0 0
      %5497 = vmatpush1.bf16.msra.mxu0 0
      %5498 = vmatprep.subr.bf16.mxu0 0
      %5499 = vmatpush1.bf16.msra.mxu0 0
      %5500 = vmatprep.subr.bf16.mxu0 0
      %5501 = vmatpush1.bf16.msra.mxu0 0
      %5502 = vmatprep.subr.bf16.mxu0 0
      %5503 = vmatpush1.bf16.msra.mxu0 0
      %5504 = vmatprep.subr.bf16.mxu0 0
      %5505 = vmatpush1.bf16.msra.mxu0 0
      %5506 = vmatprep.mubr.bf16.mxu0 0
      %5507 = vmatmul.mubr.bf16.gmra.mrb[0].mxu0 %v5288
      %v5508 = vpop.f32.mrb[0].mxu0
      %v5509 = vadd.f32 %v5364, %v5508
      %v5510 = vpop.f32.mrb[0].mxu0
      %v5511 = vpop.f32.mrb[0].mxu0
      %v5512 = vadd.f32 %v5367, %v5511
      %v5513 = vpop.f32.mrb[0].mxu0
      %5514 = vmatprep.mubr.bf16.mxu0 0
      %5515 = vmatmul.mubr.bf16.gmra.mrb[0].mxu0 %v5291
      %v5516 = vpop.f32.mrb[0].mxu0
      %v5517 = vadd.f32 %v5372, %v5516
      %v5518 = vpop.f32.mrb[0].mxu0
      %v5519 = vpop.f32.mrb[0].mxu0
      %v5520 = vadd.f32 %v5375, %v5519
      %v5521 = vpop.f32.mrb[0].mxu0
      %5522 = vmatprep.mubr.bf16.mxu0 0
      %5523 = vmatmul.mubr.bf16.gmra.mrb[0].mxu0 %v5294
      %v5524 = vpop.f32.mrb[0].mxu0
      %v5525 = vadd.f32 %v5380, %v5524
      %v5526 = vpop.f32.mrb[0].mxu0
      %v5527 = vpop.f32.mrb[0].mxu0
      %v5528 = vadd.f32 %v5383, %v5527
      %v5529 = vpop.f32.mrb[0].mxu0
      %5530 = vmatprep.mubr.bf16.mxu0 0
      %5531 = vmatmul.mubr.bf16.gmra.mrb[0].mxu0 %v5297
      %v5532 = vpop.f32.mrb[0].mxu0
      %v5533 = vadd.f32 %v5388, %v5532
      %v5534 = vpop.f32.mrb[0].mxu0
      %v5535 = vpop.f32.mrb[0].mxu0
      %v5536 = vadd.f32 %v5391, %v5535
      %v5537 = vpop.f32.mrb[0].mxu0
      %5538 = vmatprep.mubr.bf16.mxu0 0
      %5539 = vmatmul.mubr.bf16.gmra.mrb[0].mxu0 %v5300
      %v5540 = vpop.f32.mrb[0].mxu0
      %v5541 = vadd.f32 %v5396, %v5540
      %v5542 = vpop.f32.mrb[0].mxu0
      %v5543 = vpop.f32.mrb[0].mxu0
      %v5544 = vadd.f32 %v5399, %v5543
      %v5545 = vpop.f32.mrb[0].mxu0
      %5546 = vmatprep.mubr.bf16.mxu0 0
      %5547 = vmatmul.mubr.bf16.gmra.mrb[0].mxu0 %v5303
      %v5548 = vpop.f32.mrb[0].mxu0
      %v5549 = vadd.f32 %v5404, %v5548
      %v5550 = vpop.f32.mrb[0].mxu0
      %v5551 = vpop.f32.mrb[0].mxu0
      %v5552 = vadd.f32 %v5407, %v5551
      %v5553 = vpop.f32.mrb[0].mxu0
      %5554 = vmatprep.mubr.bf16.mxu0 0
      %5555 = vmatmul.mubr.bf16.gmra.mrb[0].mxu0 %v5306
      %v5556 = vpop.f32.mrb[0].mxu0
      %v5557 = vadd.f32 %v5412, %v5556
      %v5558 = vpop.f32.mrb[0].mxu0
      %v5559 = vpop.f32.mrb[0].mxu0
      %v5560 = vadd.f32 %v5415, %v5559
      %v5561 = vpop.f32.mrb[0].mxu0
      %5562 = vmatprep.mubr.bf16.mxu0 0
      %5563 = vmatmul.mubr.bf16.gmra.mrb[0].mxu0 %v5309
      %v5564 = vpop.f32.mrb[0].mxu0
      %v5565 = vadd.f32 %v5420, %v5564
      %v5566 = vpop.f32.mrb[0].mxu0
      %v5567 = vpop.f32.mrb[0].mxu0
      %v5568 = vadd.f32 %v5423, %v5567
      %v5569 = vpop.f32.mrb[0].mxu0
      %5570 = vmatprep.mubr.bf16.mxu0 0
      %5571 = vmatmul.mubr.bf16.gmra.mrb[0].mxu0 %v5312
      %v5572 = vpop.f32.mrb[0].mxu0
      %v5573 = vadd.f32 %v5428, %v5572
      %v5574 = vpop.f32.mrb[0].mxu0
      %v5575 = vpop.f32.mrb[0].mxu0
      %v5576 = vadd.f32 %v5431, %v5575
      %v5577 = vpop.f32.mrb[0].mxu0
      %5578 = vmatprep.mubr.bf16.mxu0 0
      %5579 = vmatmul.mubr.bf16.gmra.mrb[0].mxu0 %v5315
      %v5580 = vpop.f32.mrb[0].mxu0
      %v5581 = vadd.f32 %v5436, %v5580
      %v5582 = vpop.f32.mrb[0].mxu0
      %v5583 = vpop.f32.mrb[0].mxu0
      %v5584 = vadd.f32 %v5439, %v5583
      %v5585 = vpop.f32.mrb[0].mxu0
      %5586 = vmatprep.mubr.bf16.mxu0 0
      %5587 = vmatmul.mubr.bf16.gmra.mrb[0].mxu0 %v5318
      %v5588 = vpop.f32.mrb[0].mxu0
      %v5589 = vadd.f32 %v5444, %v5588
      %v5590 = vpop.f32.mrb[0].mxu0
      %v5591 = vpop.f32.mrb[0].mxu0
      %v5592 = vadd.f32 %v5447, %v5591
      %v5593 = vpop.f32.mrb[0].mxu0
      %5594 = vmatprep.mubr.bf16.mxu0 0
      %5595 = vmatmul.mubr.bf16.gmra.mrb[0].mxu0 %v5321
      %v5596 = vpop.f32.mrb[0].mxu0
      %v5597 = vadd.f32 %v5452, %v5596
      %v5598 = vpop.f32.mrb[0].mxu0
      %v5599 = vpop.f32.mrb[0].mxu0
      %v5600 = vadd.f32 %v5455, %v5599
      %v5601 = vpop.f32.mrb[0].mxu0
      %5602 = vmatprep.mubr.bf16.mxu0 0
      %5603 = vmatmul.mubr.bf16.gmra.mrb[0].mxu0 %v5324
      %v5604 = vpop.f32.mrb[0].mxu0
      %v5605 = vadd.f32 %v5460, %v5604
      %v5606 = vpop.f32.mrb[0].mxu0
      %v5607 = vpop.f32.mrb[0].mxu0
      %v5608 = vadd.f32 %v5463, %v5607
      %v5609 = vpop.f32.mrb[0].mxu0
      %5610 = vmatprep.mubr.bf16.mxu0 0
      %5611 = vmatmul.mubr.bf16.gmra.mrb[0].mxu0 %v5327
      %v5612 = vpop.f32.mrb[0].mxu0
      %v5613 = vadd.f32 %v5468, %v5612
      %v5614 = vpop.f32.mrb[0].mxu0
      %v5615 = vpop.f32.mrb[0].mxu0
      %v5616 = vadd.f32 %v5471, %v5615
      %v5617 = vpop.f32.mrb[0].mxu0
      %5618 = vdwg.mxu0
      %v5619 = vmax.f32 %v5509, 0.0
      %v5620 = vmax.f32 %v5512, 0.0
      %v5621 = vmax.f32 %v5517, 0.0
      %v5622 = vmax.f32 %v5520, 0.0
      %v5623 = vmax.f32 %v5525, 0.0
      %v5624 = vmax.f32 %v5528, 0.0
      %v5625 = vmax.f32 %v5533, 0.0
      %v5626 = vmax.f32 %v5536, 0.0
      %v5627 = vmax.f32 %v5541, 0.0
      %v5628 = vmax.f32 %v5544, 0.0
      %v5629 = vmax.f32 %v5549, 0.0
      %v5630 = vmax.f32 %v5552, 0.0
      %v5631 = vmax.f32 %v5557, 0.0
      %v5632 = vmax.f32 %v5560, 0.0
      %v5633 = vmax.f32 %v5565, 0.0
      %v5634 = vmax.f32 %v5568, 0.0
      %v5635 = vmax.f32 %v5573, 0.0
      %v5636 = vmax.f32 %v5576, 0.0
      %v5637 = vmax.f32 %v5581, 0.0
      %v5638 = vmax.f32 %v5584, 0.0
      %v5639 = vmax.f32 %v5589, 0.0
      %v5640 = vmax.f32 %v5592, 0.0
      %v5641 = vmax.f32 %v5597, 0.0
      %v5642 = vmax.f32 %v5600, 0.0
      %v5643 = vmax.f32 %v5605, 0.0
      %v5644 = vmax.f32 %v5608, 0.0
      %v5645 = vmax.f32 %v5613, 0.0
      %v5646 = vmax.f32 %v5616, 0.0
      %v5647 = vpack.c.bf16 %v5620, %v5619
      %v5648 = vpack.c.bf16 %v5622, %v5621
      %v5649 = vpack.c.bf16 %v5624, %v5623
      %v5650 = vpack.c.bf16 %v5626, %v5625
      %v5651 = vpack.c.bf16 %v5628, %v5627
      %v5652 = vpack.c.bf16 %v5630, %v5629
      %v5653 = vpack.c.bf16 %v5632, %v5631
      %v5654 = vpack.c.bf16 %v5634, %v5633
      %v5655 = vpack.c.bf16 %v5636, %v5635
      %v5656 = vpack.c.bf16 %v5638, %v5637
      %v5657 = vpack.c.bf16 %v5640, %v5639
      %v5658 = vpack.c.bf16 %v5642, %v5641
      %v5659 = vpack.c.bf16 %v5644, %v5643
      %v5660 = vpack.c.bf16 %v5646, %v5645
      %v5661 = vmax.bf16 %v5647, %v5648
      %v5662 = vmax.bf16 %v5649, %v5650
      %v5663 = vmax.bf16 %v5651, %v5652
      %v5664 = vmax.bf16 %v5653, %v5654
      %v5665 = vmax.bf16 %v5655, %v5656
      %v5666 = vmax.bf16 %v5657, %v5658
      %v5667 = vmax.bf16 %v5659, %v5660
      %v5669 = vshrl.u32 %v5661, 16
      %v5672 = vshrl.u32 %v5662, 16
      %v5675 = vshrl.u32 %v5663, 16
      %v5678 = vshrl.u32 %v5664, 16
      %v5681 = vshrl.u32 %v5665, 16
      %v5684 = vshrl.u32 %v5666, 16
      %v5687 = vshrl.u32 %v5667, 16
      %v5696 = vmax.bf16 %v5661, %v5669
      %v5697 = vmax.bf16 %v5662, %v5672
      %v5698 = vmax.bf16 %v5663, %v5675
      %v5699 = vmax.bf16 %v5664, %v5678
      %v5700 = vmax.bf16 %v5665, %v5681
      %v5701 = vmax.bf16 %v5666, %v5684
      %v5702 = vmax.bf16 %v5667, %v5687
      %vm5703 = vcmask 516096
      %vm5704 = vmand %vm5703, %vm1610
      %v5705 = vld [vmem:[#allocation3] sm:$0x1]
      %v5706 = vsel %vm5704, %v5696, %v5705
      %5707 = vst [vmem:[#allocation3] sm:$0x1] %v5706
      %v5708 = vld [vmem:[#allocation3 + $0x4] sm:$0x1]
      %v5709 = vsel %vm5704, %v5697, %v5708
      %5710 = vst [vmem:[#allocation3 + $0x4] sm:$0x1] %v5709
      %v5711 = vld [vmem:[#allocation3 + $0x8] sm:$0x1]
      %v5712 = vsel %vm5704, %v5698, %v5711
      %5713 = vst [vmem:[#allocation3 + $0x8] sm:$0x1] %v5712
      %v5714 = vld [vmem:[#allocation3 + $0xc] sm:$0x1]
      %v5715 = vsel %vm5704, %v5699, %v5714
      %5716 = vst [vmem:[#allocation3 + $0xc] sm:$0x1] %v5715
      %v5717 = vld [vmem:[#allocation3 + $0x10] sm:$0x1]
      %v5718 = vsel %vm5704, %v5700, %v5717
      %5719 = vst [vmem:[#allocation3 + $0x10] sm:$0x1] %v5718
      %v5720 = vld [vmem:[#allocation3 + $0x14] sm:$0x1]
      %v5721 = vsel %vm5704, %v5701, %v5720
      %5722 = vst [vmem:[#allocation3 + $0x14] sm:$0x1] %v5721
      %v5723 = vld [vmem:[#allocation3 + $0x18] sm:$0x1]
      %v5724 = vsel %vm5704, %v5702, %v5723
      %5725 = vst [vmem:[#allocation3 + $0x18] sm:$0x1] %v5724
      %v5733 = vunpack.c.l.b16 %v5696
      %v5734 = vunpack.c.l.b16 %v5697
      %v5735 = vunpack.c.l.b16 %v5698
      %v5736 = vunpack.c.l.b16 %v5699
      %v5737 = vunpack.c.l.b16 %v5700
      %v5738 = vunpack.c.l.b16 %v5701
      %v5739 = vunpack.c.l.b16 %v5702
      %v5740 = vpack.c.b16 %v5733, %v5733
      %v5741 = vpack.c.b16 %v5734, %v5734
      %v5742 = vpack.c.b16 %v5735, %v5735
      %v5743 = vpack.c.b16 %v5736, %v5736
      %v5744 = vpack.c.b16 %v5737, %v5737
      %v5745 = vpack.c.b16 %v5738, %v5738
      %v5746 = vpack.c.b16 %v5739, %v5739
      %v5748 = vshll.u32 %v5740, 16
      %v5750 = vrot.slane %v5748, 5
      %v5751 = vrot.slane %v5750, 4
      %v5753 = vshll.u32 %v5741, 16
      %v5755 = vrot.slane %v5753, 5
      %v5756 = vrot.slane %v5755, 4
      %v5758 = vshll.u32 %v5742, 16
      %v5760 = vrot.slane %v5758, 5
      %v5761 = vrot.slane %v5760, 4
      %v5763 = vshll.u32 %v5743, 16
      %v5765 = vrot.slane %v5763, 5
      %v5766 = vrot.slane %v5765, 4
      %v5768 = vshll.u32 %v5744, 16
      %v5770 = vrot.slane %v5768, 5
      %v5771 = vrot.slane %v5770, 4
      %v5773 = vshll.u32 %v5745, 16
      %v5775 = vrot.slane %v5773, 5
      %v5776 = vrot.slane %v5775, 4
      %v5778 = vshll.u32 %v5746, 16
      %v5780 = vrot.slane %v5778, 5
      %v5781 = vrot.slane %v5780, 4
      %vm5789 = vmand %vm5703, %vm1780
      %v5790 = vld [vmem:[#allocation3] sm:$0x1]
      %v5791 = vsel %vm5789, %v5751, %v5790
      %5792 = vst [vmem:[#allocation3] sm:$0x1] %v5791
      %v5793 = vld [vmem:[#allocation3 + $0x4] sm:$0x1]
      %v5794 = vsel %vm5789, %v5756, %v5793
      %5795 = vst [vmem:[#allocation3 + $0x4] sm:$0x1] %v5794
      %v5796 = vld [vmem:[#allocation3 + $0x8] sm:$0x1]
      %v5797 = vsel %vm5789, %v5761, %v5796
      %5798 = vst [vmem:[#allocation3 + $0x8] sm:$0x1] %v5797
      %v5799 = vld [vmem:[#allocation3 + $0xc] sm:$0x1]
      %v5800 = vsel %vm5789, %v5766, %v5799
      %5801 = vst [vmem:[#allocation3 + $0xc] sm:$0x1] %v5800
      %v5802 = vld [vmem:[#allocation3 + $0x10] sm:$0x1]
      %v5803 = vsel %vm5789, %v5771, %v5802
      %5804 = vst [vmem:[#allocation3 + $0x10] sm:$0x1] %v5803
      %v5805 = vld [vmem:[#allocation3 + $0x14] sm:$0x1]
      %v5806 = vsel %vm5789, %v5776, %v5805
      %5807 = vst [vmem:[#allocation3 + $0x14] sm:$0x1] %v5806
      %v5808 = vld [vmem:[#allocation3 + $0x18] sm:$0x1]
      %v5809 = vsel %vm5789, %v5781, %v5808
      %5810 = vst [vmem:[#allocation3 + $0x18] sm:$0x1] %v5809
      %v5811 = vrot.slane %v5740, 5
      %v5812 = vrot.slane %v5811, 4
      %v5813 = vrot.slane %v5741, 5
      %v5814 = vrot.slane %v5813, 4
      %v5815 = vrot.slane %v5742, 5
      %v5816 = vrot.slane %v5815, 4
      %v5817 = vrot.slane %v5743, 5
      %v5818 = vrot.slane %v5817, 4
      %v5819 = vrot.slane %v5744, 5
      %v5820 = vrot.slane %v5819, 4
      %v5821 = vrot.slane %v5745, 5
      %v5822 = vrot.slane %v5821, 4
      %v5823 = vrot.slane %v5746, 5
      %v5824 = vrot.slane %v5823, 4
      %vm5832 = vcmask 517121
      %vm5833 = vmand %vm5832, %vm1867
      %v5834 = vld [vmem:[#allocation3] sm:$0x2]
      %v5835 = vsel %vm5833, %v5812, %v5834
      %5836 = vst [vmem:[#allocation3] sm:$0x2] %v5835
      %v5837 = vld [vmem:[#allocation3 + $0x4] sm:$0x2]
      %v5838 = vsel %vm5833, %v5814, %v5837
      %5839 = vst [vmem:[#allocation3 + $0x4] sm:$0x2] %v5838
      %v5840 = vld [vmem:[#allocation3 + $0x8] sm:$0x2]
      %v5841 = vsel %vm5833, %v5816, %v5840
      %5842 = vst [vmem:[#allocation3 + $0x8] sm:$0x2] %v5841
      %v5843 = vld [vmem:[#allocation3 + $0xc] sm:$0x2]
      %v5844 = vsel %vm5833, %v5818, %v5843
      %5845 = vst [vmem:[#allocation3 + $0xc] sm:$0x2] %v5844
      %v5846 = vld [vmem:[#allocation3 + $0x10] sm:$0x2]
      %v5847 = vsel %vm5833, %v5820, %v5846
      %5848 = vst [vmem:[#allocation3 + $0x10] sm:$0x2] %v5847
      %v5849 = vld [vmem:[#allocation3 + $0x14] sm:$0x2]
      %v5850 = vsel %vm5833, %v5822, %v5849
      %5851 = vst [vmem:[#allocation3 + $0x14] sm:$0x2] %v5850
      %v5852 = vld [vmem:[#allocation3 + $0x18] sm:$0x2]
      %v5853 = vsel %vm5833, %v5824, %v5852
      %5854 = vst [vmem:[#allocation3 + $0x18] sm:$0x2] %v5853
      %v5855 = vrot.slane %v5748, 6
      %v5856 = vrot.slane %v5855, 4
      %v5857 = vrot.slane %v5753, 6
      %v5858 = vrot.slane %v5857, 4
      %v5859 = vrot.slane %v5758, 6
      %v5860 = vrot.slane %v5859, 4
      %v5861 = vrot.slane %v5763, 6
      %v5862 = vrot.slane %v5861, 4
      %v5863 = vrot.slane %v5768, 6
      %v5864 = vrot.slane %v5863, 4
      %v5865 = vrot.slane %v5773, 6
      %v5866 = vrot.slane %v5865, 4
      %v5867 = vrot.slane %v5778, 6
      %v5868 = vrot.slane %v5867, 4
      %vm5876 = vmand %vm5832, %vm1953
      %v5877 = vld [vmem:[#allocation3] sm:$0x2]
      %v5878 = vsel %vm5876, %v5856, %v5877
      %5879 = vst [vmem:[#allocation3] sm:$0x2] %v5878
      %v5880 = vld [vmem:[#allocation3 + $0x4] sm:$0x2]
      %v5881 = vsel %vm5876, %v5858, %v5880
      %5882 = vst [vmem:[#allocation3 + $0x4] sm:$0x2] %v5881
      %v5883 = vld [vmem:[#allocation3 + $0x8] sm:$0x2]
      %v5884 = vsel %vm5876, %v5860, %v5883
      %5885 = vst [vmem:[#allocation3 + $0x8] sm:$0x2] %v5884
      %v5886 = vld [vmem:[#allocation3 + $0xc] sm:$0x2]
      %v5887 = vsel %vm5876, %v5862, %v5886
      %5888 = vst [vmem:[#allocation3 + $0xc] sm:$0x2] %v5887
      %v5889 = vld [vmem:[#allocation3 + $0x10] sm:$0x2]
      %v5890 = vsel %vm5876, %v5864, %v5889
      %5891 = vst [vmem:[#allocation3 + $0x10] sm:$0x2] %v5890
      %v5892 = vld [vmem:[#allocation3 + $0x14] sm:$0x2]
      %v5893 = vsel %vm5876, %v5866, %v5892
      %5894 = vst [vmem:[#allocation3 + $0x14] sm:$0x2] %v5893
      %v5895 = vld [vmem:[#allocation3 + $0x18] sm:$0x2]
      %v5896 = vsel %vm5876, %v5868, %v5895
      %5897 = vst [vmem:[#allocation3 + $0x18] sm:$0x2] %v5896
      %v5898 = vunpack.c.h.b16 %v5696
      %v5899 = vunpack.c.h.b16 %v5697
      %v5900 = vunpack.c.h.b16 %v5698
      %v5901 = vunpack.c.h.b16 %v5699
      %v5902 = vunpack.c.h.b16 %v5700
      %v5903 = vunpack.c.h.b16 %v5701
      %v5904 = vunpack.c.h.b16 %v5702
      %v5905 = vpack.c.b16 %v5898, %v5898
      %v5906 = vpack.c.b16 %v5899, %v5899
      %v5907 = vpack.c.b16 %v5900, %v5900
      %v5908 = vpack.c.b16 %v5901, %v5901
      %v5909 = vpack.c.b16 %v5902, %v5902
      %v5910 = vpack.c.b16 %v5903, %v5903
      %v5911 = vpack.c.b16 %v5904, %v5904
      %v5912 = vrot.slane %v5905, 6
      %v5913 = vrot.slane %v5906, 6
      %v5914 = vrot.slane %v5907, 6
      %v5915 = vrot.slane %v5908, 6
      %v5916 = vrot.slane %v5909, 6
      %v5917 = vrot.slane %v5910, 6
      %v5918 = vrot.slane %v5911, 6
      %vm5926 = vcmask 518146
      %vm5927 = vmand %vm5926, %vm2054
      %v5928 = vld [vmem:[#allocation3] sm:$0x4]
      %v5929 = vsel %vm5927, %v5912, %v5928
      %5930 = vst [vmem:[#allocation3] sm:$0x4] %v5929
      %v5931 = vld [vmem:[#allocation3 + $0x4] sm:$0x4]
      %v5932 = vsel %vm5927, %v5913, %v5931
      %5933 = vst [vmem:[#allocation3 + $0x4] sm:$0x4] %v5932
      %v5934 = vld [vmem:[#allocation3 + $0x8] sm:$0x4]
      %v5935 = vsel %vm5927, %v5914, %v5934
      %5936 = vst [vmem:[#allocation3 + $0x8] sm:$0x4] %v5935
      %v5937 = vld [vmem:[#allocation3 + $0xc] sm:$0x4]
      %v5938 = vsel %vm5927, %v5915, %v5937
      %5939 = vst [vmem:[#allocation3 + $0xc] sm:$0x4] %v5938
      %v5940 = vld [vmem:[#allocation3 + $0x10] sm:$0x4]
      %v5941 = vsel %vm5927, %v5916, %v5940
      %5942 = vst [vmem:[#allocation3 + $0x10] sm:$0x4] %v5941
      %v5943 = vld [vmem:[#allocation3 + $0x14] sm:$0x4]
      %v5944 = vsel %vm5927, %v5917, %v5943
      %5945 = vst [vmem:[#allocation3 + $0x14] sm:$0x4] %v5944
      %v5946 = vld [vmem:[#allocation3 + $0x18] sm:$0x4]
      %v5947 = vsel %vm5927, %v5918, %v5946
      %5948 = vst [vmem:[#allocation3 + $0x18] sm:$0x4] %v5947
      %v5950 = vshll.u32 %v5905, 16
      %v5952 = vrot.slane %v5950, 7
      %v5954 = vshll.u32 %v5906, 16
      %v5956 = vrot.slane %v5954, 7
      %v5958 = vshll.u32 %v5907, 16
      %v5960 = vrot.slane %v5958, 7
      %v5962 = vshll.u32 %v5908, 16
      %v5964 = vrot.slane %v5962, 7
      %v5966 = vshll.u32 %v5909, 16
      %v5968 = vrot.slane %v5966, 7
      %v5970 = vshll.u32 %v5910, 16
      %v5972 = vrot.slane %v5970, 7
      %v5974 = vshll.u32 %v5911, 16
      %v5976 = vrot.slane %v5974, 7
      %vm5984 = vmand %vm5926, %vm2168
      %v5985 = vld [vmem:[#allocation3] sm:$0x4]
      %v5986 = vsel %vm5984, %v5952, %v5985
      %5987 = vst [vmem:[#allocation3] sm:$0x4] %v5986
      %v5988 = vld [vmem:[#allocation3 + $0x4] sm:$0x4]
      %v5989 = vsel %vm5984, %v5956, %v5988
      %5990 = vst [vmem:[#allocation3 + $0x4] sm:$0x4] %v5989
      %v5991 = vld [vmem:[#allocation3 + $0x8] sm:$0x4]
      %v5992 = vsel %vm5984, %v5960, %v5991
      %5993 = vst [vmem:[#allocation3 + $0x8] sm:$0x4] %v5992
      %v5994 = vld [vmem:[#allocation3 + $0xc] sm:$0x4]
      %v5995 = vsel %vm5984, %v5964, %v5994
      %5996 = vst [vmem:[#allocation3 + $0xc] sm:$0x4] %v5995
      %v5997 = vld [vmem:[#allocation3 + $0x10] sm:$0x4]
      %v5998 = vsel %vm5984, %v5968, %v5997
      %5999 = vst [vmem:[#allocation3 + $0x10] sm:$0x4] %v5998
      %v6000 = vld [vmem:[#allocation3 + $0x14] sm:$0x4]
      %v6001 = vsel %vm5984, %v5972, %v6000
      %6002 = vst [vmem:[#allocation3 + $0x14] sm:$0x4] %v6001
      %v6003 = vld [vmem:[#allocation3 + $0x18] sm:$0x4]
      %v6004 = vsel %vm5984, %v5976, %v6003
      %6005 = vst [vmem:[#allocation3 + $0x18] sm:$0x4] %v6004
      %v6006 = vrot.slane %v5905, 7
      %v6007 = vrot.slane %v5906, 7
      %v6008 = vrot.slane %v5907, 7
      %v6009 = vrot.slane %v5908, 7
      %v6010 = vrot.slane %v5909, 7
      %v6011 = vrot.slane %v5910, 7
      %v6012 = vrot.slane %v5911, 7
      %vm6020 = vcmask 519171
      %vm6021 = vmand %vm6020, %vm2241
      %v6022 = vld [vmem:[#allocation3] sm:$0x8]
      %v6023 = vsel %vm6021, %v6006, %v6022
      %6024 = vst [vmem:[#allocation3] sm:$0x8] %v6023
      %v6025 = vld [vmem:[#allocation3 + $0x4] sm:$0x8]
      %v6026 = vsel %vm6021, %v6007, %v6025
      %6027 = vst [vmem:[#allocation3 + $0x4] sm:$0x8] %v6026
      %v6028 = vld [vmem:[#allocation3 + $0x8] sm:$0x8]
      %v6029 = vsel %vm6021, %v6008, %v6028
      %6030 = vst [vmem:[#allocation3 + $0x8] sm:$0x8] %v6029
      %v6031 = vld [vmem:[#allocation3 + $0xc] sm:$0x8]
      %v6032 = vsel %vm6021, %v6009, %v6031
      %6033 = vst [vmem:[#allocation3 + $0xc] sm:$0x8] %v6032
      %v6034 = vld [vmem:[#allocation3 + $0x10] sm:$0x8]
      %v6035 = vsel %vm6021, %v6010, %v6034
      %6036 = vst [vmem:[#allocation3 + $0x10] sm:$0x8] %v6035
      %v6037 = vld [vmem:[#allocation3 + $0x14] sm:$0x8]
      %v6038 = vsel %vm6021, %v6011, %v6037
      %6039 = vst [vmem:[#allocation3 + $0x14] sm:$0x8] %v6038
      %v6040 = vld [vmem:[#allocation3 + $0x18] sm:$0x8]
      %v6041 = vsel %vm6021, %v6012, %v6040
      %6042 = vst [vmem:[#allocation3 + $0x18] sm:$0x8] %v6041
      %vm6043 = vcmask 519168
      %6044 = vst.msk [vmem:[#allocation5] sm:$0xf] %vm6043, 0
      %vm6045 = vcmask 516096
      %6046 = vst.msk [vmem:[#allocation5 + $0x4] sm:$0x1] %vm6045, 0
      %s6047 = scalar_lea.vmem [#allocation5], 64
      %6048 = vst.msk [vmem:[%s6047] sm:$0xf] %vm6043, 0
      %6049 = vst.msk [vmem:[%s6047 + $0x4] sm:$0x1] %vm6045, 0
      %v6050 = vld [vmem:[#allocation5] sm:$0x1]
      %v6051 = vsel %vm5704, 0, %v6050
      %6052 = vst [vmem:[#allocation5] sm:$0x1] %v6051
      %v6053 = vld [vmem:[#allocation5 + $0x8] sm:$0x1]
      %v6054 = vsel %vm5704, 0, %v6053
      %6055 = vst [vmem:[#allocation5 + $0x8] sm:$0x1] %v6054
      %v6056 = vld [vmem:[#allocation5 + $0x10] sm:$0x1]
      %v6057 = vsel %vm5704, 0, %v6056
      %6058 = vst [vmem:[#allocation5 + $0x10] sm:$0x1] %v6057
      %v6059 = vld [vmem:[#allocation5 + $0x18] sm:$0x1]
      %v6060 = vsel %vm5704, 0, %v6059
      %6061 = vst [vmem:[#allocation5 + $0x18] sm:$0x1] %v6060
      %v6062 = vld [vmem:[#allocation5 + $0x20] sm:$0x1]
      %v6063 = vsel %vm5704, 0, %v6062
      %6064 = vst [vmem:[#allocation5 + $0x20] sm:$0x1] %v6063
      %v6065 = vld [vmem:[#allocation5 + $0x28] sm:$0x1]
      %v6066 = vsel %vm5704, 0, %v6065
      %6067 = vst [vmem:[#allocation5 + $0x28] sm:$0x1] %v6066
      %v6068 = vld [vmem:[#allocation5 + $0x30] sm:$0x1]
      %v6069 = vsel %vm5704, 0, %v6068
      %6070 = vst [vmem:[#allocation5 + $0x30] sm:$0x1] %v6069
      %v6071 = vld [vmem:[#allocation5 + $0x38] sm:$0x1]
      %v6072 = vsel %vm5704, 0, %v6071
      %6073 = vst [vmem:[#allocation5 + $0x38] sm:$0x1] %v6072
      %v6074 = vld [vmem:[#allocation5 + $0x40] sm:$0x1]
      %v6075 = vsel %vm5704, 0, %v6074
      %6076 = vst [vmem:[#allocation5 + $0x40] sm:$0x1] %v6075
      %6077 = vst.msk [vmem:[#allocation5 + $0x4] sm:$0x1] %vm6045, 0
      %6078 = vst.msk [vmem:[#allocation5 + $0xc] sm:$0x1] %vm6045, 0
      %6079 = vst.msk [vmem:[#allocation5 + $0x14] sm:$0x1] %vm6045, 0
      %6080 = vst.msk [vmem:[#allocation5 + $0x1c] sm:$0x1] %vm6045, 0
      %6081 = vst.msk [vmem:[#allocation5 + $0x24] sm:$0x1] %vm6045, 0
      %6082 = vst.msk [vmem:[#allocation5 + $0x2c] sm:$0x1] %vm6045, 0
      %6083 = vst.msk [vmem:[#allocation5 + $0x34] sm:$0x1] %vm6045, 0
      %6084 = vst.msk [vmem:[#allocation5 + $0x3c] sm:$0x1] %vm6045, 0
      %6085 = vst.msk [vmem:[#allocation5 + $0x44] sm:$0x1] %vm6045, 0
      %v6086 = vld [vmem:[#allocation3] sm:$0xf]
      %v6087 = vld [vmem:[#allocation3 + $0x4] sm:$0xf]
      %v6088 = vld [vmem:[#allocation3 + $0x8] sm:$0xf]
      %v6089 = vld [vmem:[#allocation3 + $0xc] sm:$0xf]
      %v6090 = vld [vmem:[#allocation3 + $0x10] sm:$0xf]
      %v6091 = vld [vmem:[#allocation3 + $0x14] sm:$0xf]
      %v6092 = vld [vmem:[#allocation3 + $0x18] sm:$0xf]
      %v6094 = vshrl.u32 %v6086, 16
      %v6096 = vrot.slane %v6094, 7
      %v6097 = vshll.u32 %v6086, 16
      %v6099 = vor.u32 %v6096, %v6097
      %v6101 = vshrl.u32 %v6087, 16
      %v6103 = vrot.slane %v6101, 7
      %v6104 = vshll.u32 %v6087, 16
      %v6106 = vor.u32 %v6103, %v6104
      %v6108 = vshrl.u32 %v6088, 16
      %v6110 = vrot.slane %v6108, 7
      %v6111 = vshll.u32 %v6088, 16
      %v6113 = vor.u32 %v6110, %v6111
      %v6115 = vshrl.u32 %v6089, 16
      %v6117 = vrot.slane %v6115, 7
      %v6118 = vshll.u32 %v6089, 16
      %v6120 = vor.u32 %v6117, %v6118
      %v6122 = vshrl.u32 %v6090, 16
      %v6124 = vrot.slane %v6122, 7
      %v6125 = vshll.u32 %v6090, 16
      %v6127 = vor.u32 %v6124, %v6125
      %v6129 = vshrl.u32 %v6091, 16
      %v6131 = vrot.slane %v6129, 7
      %v6132 = vshll.u32 %v6091, 16
      %v6134 = vor.u32 %v6131, %v6132
      %v6136 = vshrl.u32 %v6092, 16
      %v6138 = vrot.slane %v6136, 7
      %v6139 = vshll.u32 %v6092, 16
      %v6141 = vor.u32 %v6138, %v6139
      %s6149 = scalar_lea.vmem [#allocation5], 8
      %vm6150 = vcmask 519168
      %vm6151 = vmand %vm6150, %vm1780
      %v6152 = vld [vmem:[%s6149] sm:$0xf]
      %v6153 = vsel %vm6151, %v6099, %v6152
      %6154 = vst [vmem:[%s6149] sm:$0xf] %v6153
      %v6155 = vld [vmem:[%s6149 + $0x8] sm:$0xf]
      %v6156 = vsel %vm6151, %v6106, %v6155
      %6157 = vst [vmem:[%s6149 + $0x8] sm:$0xf] %v6156
      %v6158 = vld [vmem:[%s6149 + $0x10] sm:$0xf]
      %v6159 = vsel %vm6151, %v6113, %v6158
      %6160 = vst [vmem:[%s6149 + $0x10] sm:$0xf] %v6159
      %v6161 = vld [vmem:[%s6149 + $0x18] sm:$0xf]
      %v6162 = vsel %vm6151, %v6120, %v6161
      %6163 = vst [vmem:[%s6149 + $0x18] sm:$0xf] %v6162
      %v6164 = vld [vmem:[%s6149 + $0x20] sm:$0xf]
      %v6165 = vsel %vm6151, %v6127, %v6164
      %6166 = vst [vmem:[%s6149 + $0x20] sm:$0xf] %v6165
      %v6167 = vld [vmem:[%s6149 + $0x28] sm:$0xf]
      %v6168 = vsel %vm6151, %v6134, %v6167
      %6169 = vst [vmem:[%s6149 + $0x28] sm:$0xf] %v6168
      %v6170 = vld [vmem:[%s6149 + $0x30] sm:$0xf]
      %v6171 = vsel %vm6151, %v6141, %v6170
      %6172 = vst [vmem:[%s6149 + $0x30] sm:$0xf] %v6171
      %v6173 = vld [vmem:[#allocation5] sm:$0xf]
      %v6174 = vld [vmem:[#allocation5 + $0x8] sm:$0xf]
      %v6175 = vld [vmem:[#allocation5 + $0x10] sm:$0xf]
      %v6176 = vld [vmem:[#allocation5 + $0x18] sm:$0xf]
      %v6177 = vld [vmem:[#allocation5 + $0x20] sm:$0xf]
      %v6178 = vld [vmem:[#allocation5 + $0x28] sm:$0xf]
      %v6179 = vld [vmem:[#allocation5 + $0x30] sm:$0xf]
      %v6180 = vld [vmem:[#allocation5 + $0x4] sm:$0x1]
      %v6181 = vld [vmem:[#allocation5 + $0xc] sm:$0x1]
      %v6182 = vld [vmem:[#allocation5 + $0x14] sm:$0x1]
      %v6183 = vld [vmem:[#allocation5 + $0x1c] sm:$0x1]
      %v6184 = vld [vmem:[#allocation5 + $0x24] sm:$0x1]
      %v6185 = vld [vmem:[#allocation5 + $0x2c] sm:$0x1]
      %v6186 = vld [vmem:[#allocation5 + $0x34] sm:$0x1]
      %v6187 = vld [vmem:[#allocation5] sm:$0xe]
      %v6188 = vld [vmem:[#allocation5 + $0x8] sm:$0xe]
      %v6189 = vld [vmem:[#allocation5 + $0x10] sm:$0xe]
      %v6190 = vld [vmem:[#allocation5 + $0x18] sm:$0xe]
      %v6191 = vld [vmem:[#allocation5 + $0x20] sm:$0xe]
      %v6192 = vld [vmem:[#allocation5 + $0x28] sm:$0xe]
      %v6193 = vld [vmem:[#allocation5 + $0x30] sm:$0xe]
      %v6194 = vld [vmem:[%s6149] sm:$0xf]
      %v6195 = vld [vmem:[%s6149 + $0x8] sm:$0xf]
      %v6196 = vld [vmem:[%s6149 + $0x10] sm:$0xf]
      %v6197 = vld [vmem:[%s6149 + $0x18] sm:$0xf]
      %v6198 = vld [vmem:[%s6149 + $0x20] sm:$0xf]
      %v6199 = vld [vmem:[%s6149 + $0x28] sm:$0xf]
      %v6200 = vld [vmem:[%s6149 + $0x30] sm:$0xf]
      %v6201 = vld [vmem:[%s6149 + $0x4] sm:$0x1]
      %v6202 = vld [vmem:[%s6149 + $0xc] sm:$0x1]
      %v6203 = vld [vmem:[%s6149 + $0x14] sm:$0x1]
      %v6204 = vld [vmem:[%s6149 + $0x1c] sm:$0x1]
      %v6205 = vld [vmem:[%s6149 + $0x24] sm:$0x1]
      %v6206 = vld [vmem:[%s6149 + $0x2c] sm:$0x1]
      %v6207 = vld [vmem:[%s6149 + $0x34] sm:$0x1]
      %v6208 = vld [vmem:[%s6149] sm:$0xe]
      %v6209 = vld [vmem:[%s6149 + $0x8] sm:$0xe]
      %v6210 = vld [vmem:[%s6149 + $0x10] sm:$0xe]
      %v6211 = vld [vmem:[%s6149 + $0x18] sm:$0xe]
      %v6212 = vld [vmem:[%s6149 + $0x20] sm:$0xe]
      %v6213 = vld [vmem:[%s6149 + $0x28] sm:$0xe]
      %v6214 = vld [vmem:[%s6149 + $0x30] sm:$0xe]
      %s6215 = scalar_lea.vmem [#allocation5], 16
      %v6216 = vld [vmem:[%s6215] sm:$0xf]
      %v6217 = vld [vmem:[%s6215 + $0x8] sm:$0xf]
      %v6218 = vld [vmem:[%s6215 + $0x10] sm:$0xf]
      %v6219 = vld [vmem:[%s6215 + $0x18] sm:$0xf]
      %v6220 = vld [vmem:[%s6215 + $0x20] sm:$0xf]
      %v6221 = vld [vmem:[%s6215 + $0x28] sm:$0xf]
      %v6222 = vld [vmem:[%s6215 + $0x30] sm:$0xf]
      %v6223 = vld [vmem:[%s6215 + $0x4] sm:$0x1]
      %v6224 = vld [vmem:[%s6215 + $0xc] sm:$0x1]
      %v6225 = vld [vmem:[%s6215 + $0x14] sm:$0x1]
      %v6226 = vld [vmem:[%s6215 + $0x1c] sm:$0x1]
      %v6227 = vld [vmem:[%s6215 + $0x24] sm:$0x1]
      %v6228 = vld [vmem:[%s6215 + $0x2c] sm:$0x1]
      %v6229 = vld [vmem:[%s6215 + $0x34] sm:$0x1]
      %v6230 = vld [vmem:[%s6215] sm:$0xe]
      %v6231 = vld [vmem:[%s6215 + $0x8] sm:$0xe]
      %v6232 = vld [vmem:[%s6215 + $0x10] sm:$0xe]
      %v6233 = vld [vmem:[%s6215 + $0x18] sm:$0xe]
      %v6234 = vld [vmem:[%s6215 + $0x20] sm:$0xe]
      %v6235 = vld [vmem:[%s6215 + $0x28] sm:$0xe]
      %v6236 = vld [vmem:[%s6215 + $0x30] sm:$0xe]
      %v6251 = vunpack.c.l.b16 %v6173
      %v6252 = vunpack.c.l.b16 %v6180
      %v6253 = vunpack.c.l.b16 %v6174
      %v6254 = vunpack.c.l.b16 %v6181
      %v6255 = vunpack.c.l.b16 %v6175
      %v6256 = vunpack.c.l.b16 %v6182
      %v6257 = vunpack.c.l.b16 %v6176
      %v6258 = vunpack.c.l.b16 %v6183
      %v6259 = vunpack.c.l.b16 %v6177
      %v6260 = vunpack.c.l.b16 %v6184
      %v6261 = vunpack.c.l.b16 %v6178
      %v6262 = vunpack.c.l.b16 %v6185
      %v6263 = vunpack.c.l.b16 %v6179
      %v6264 = vunpack.c.l.b16 %v6186
      %v6265 = vpack.c.b16 %v6252, %v6251
      %v6266 = vpack.c.b16 %v6254, %v6253
      %v6267 = vpack.c.b16 %v6256, %v6255
      %v6268 = vpack.c.b16 %v6258, %v6257
      %v6269 = vpack.c.b16 %v6260, %v6259
      %v6270 = vpack.c.b16 %v6262, %v6261
      %v6271 = vpack.c.b16 %v6264, %v6263
      %v6273 = vshrl.u32 %v6265, 16
      %v6275 = vshll.u32 %v6265, 16
      %v6277 = vrot.slane %v6275, 1
      %v6278 = vor.u32 %v6273, %v6277
      %v6280 = vshrl.u32 %v6266, 16
      %v6282 = vshll.u32 %v6266, 16
      %v6284 = vrot.slane %v6282, 1
      %v6285 = vor.u32 %v6280, %v6284
      %v6287 = vshrl.u32 %v6267, 16
      %v6289 = vshll.u32 %v6267, 16
      %v6291 = vrot.slane %v6289, 1
      %v6292 = vor.u32 %v6287, %v6291
      %v6294 = vshrl.u32 %v6268, 16
      %v6296 = vshll.u32 %v6268, 16
      %v6298 = vrot.slane %v6296, 1
      %v6299 = vor.u32 %v6294, %v6298
      %v6301 = vshrl.u32 %v6269, 16
      %v6303 = vshll.u32 %v6269, 16
      %v6305 = vrot.slane %v6303, 1
      %v6306 = vor.u32 %v6301, %v6305
      %v6308 = vshrl.u32 %v6270, 16
      %v6310 = vshll.u32 %v6270, 16
      %v6312 = vrot.slane %v6310, 1
      %v6313 = vor.u32 %v6308, %v6312
      %v6315 = vshrl.u32 %v6271, 16
      %v6317 = vshll.u32 %v6271, 16
      %v6319 = vrot.slane %v6317, 1
      %v6320 = vor.u32 %v6315, %v6319
      %6321 = vrot.lane.b32.xlu0 %v6278, 64
      %v6322 = vpop.permute.xlu0 %6321
      %6323 = vrot.lane.b32.xlu0 %v6285, 64
      %v6324 = vpop.permute.xlu0 %6323
      %6325 = vrot.lane.b32.xlu0 %v6292, 64
      %v6326 = vpop.permute.xlu0 %6325
      %6327 = vrot.lane.b32.xlu0 %v6299, 64
      %v6328 = vpop.permute.xlu0 %6327
      %6329 = vrot.lane.b32.xlu0 %v6306, 64
      %v6330 = vpop.permute.xlu0 %6329
      %6331 = vrot.lane.b32.xlu0 %v6313, 64
      %v6332 = vpop.permute.xlu0 %6331
      %6333 = vrot.lane.b32.xlu0 %v6320, 64
      %v6334 = vpop.permute.xlu0 %6333
      %v6342 = vunpack.c.l.b16 %v6187
      %v6343 = vunpack.c.l.b16 %v6188
      %v6344 = vunpack.c.l.b16 %v6189
      %v6345 = vunpack.c.l.b16 %v6190
      %v6346 = vunpack.c.l.b16 %v6191
      %v6347 = vunpack.c.l.b16 %v6192
      %v6348 = vunpack.c.l.b16 %v6193
      %v6349 = vpack.c.b16 %v6252, %v6342
      %v6350 = vpack.c.b16 %v6254, %v6343
      %v6351 = vpack.c.b16 %v6256, %v6344
      %v6352 = vpack.c.b16 %v6258, %v6345
      %v6353 = vpack.c.b16 %v6260, %v6346
      %v6354 = vpack.c.b16 %v6262, %v6347
      %v6355 = vpack.c.b16 %v6264, %v6348
      %v6356 = vrot.slane %v6349, 1
      %v6357 = vrot.slane %v6350, 1
      %v6358 = vrot.slane %v6351, 1
      %v6359 = vrot.slane %v6352, 1
      %v6360 = vrot.slane %v6353, 1
      %v6361 = vrot.slane %v6354, 1
      %v6362 = vrot.slane %v6355, 1
      %v6370 = vunpack.c.l.b16 %v6194
      %v6371 = vunpack.c.l.b16 %v6195
      %v6372 = vunpack.c.l.b16 %v6196
      %v6373 = vunpack.c.l.b16 %v6197
      %v6374 = vunpack.c.l.b16 %v6198
      %v6375 = vunpack.c.l.b16 %v6199
      %v6376 = vunpack.c.l.b16 %v6200
      %v6377 = vpack.c.b16 %v6370, %v6370
      %v6378 = vpack.c.b16 %v6371, %v6371
      %v6379 = vpack.c.b16 %v6372, %v6372
      %v6380 = vpack.c.b16 %v6373, %v6373
      %v6381 = vpack.c.b16 %v6374, %v6374
      %v6382 = vpack.c.b16 %v6375, %v6375
      %v6383 = vpack.c.b16 %v6376, %v6376
      %6384 = vrot.lane.b32.xlu0 %v6377, 64
      %v6385 = vpop.permute.xlu0 %6384
      %6386 = vrot.lane.b32.xlu0 %v6378, 64
      %v6387 = vpop.permute.xlu0 %6386
      %6388 = vrot.lane.b32.xlu0 %v6379, 64
      %v6389 = vpop.permute.xlu0 %6388
      %6390 = vrot.lane.b32.xlu0 %v6380, 64
      %v6391 = vpop.permute.xlu0 %6390
      %6392 = vrot.lane.b32.xlu0 %v6381, 64
      %v6393 = vpop.permute.xlu0 %6392
      %6394 = vrot.lane.b32.xlu0 %v6382, 64
      %v6395 = vpop.permute.xlu0 %6394
      %6396 = vrot.lane.b32.xlu0 %v6383, 64
      %v6397 = vpop.permute.xlu0 %6396
      %v6405 = vunpack.c.l.b16 %v6201
      %v6406 = vunpack.c.l.b16 %v6202
      %v6407 = vunpack.c.l.b16 %v6203
      %v6408 = vunpack.c.l.b16 %v6204
      %v6409 = vunpack.c.l.b16 %v6205
      %v6410 = vunpack.c.l.b16 %v6206
      %v6411 = vunpack.c.l.b16 %v6207
      %v6412 = vpack.c.b16 %v6405, %v6370
      %v6413 = vpack.c.b16 %v6406, %v6371
      %v6414 = vpack.c.b16 %v6407, %v6372
      %v6415 = vpack.c.b16 %v6408, %v6373
      %v6416 = vpack.c.b16 %v6409, %v6374
      %v6417 = vpack.c.b16 %v6410, %v6375
      %v6418 = vpack.c.b16 %v6411, %v6376
      %v6420 = vshrl.u32 %v6412, 16
      %v6422 = vshll.u32 %v6412, 16
      %v6424 = vrot.slane %v6422, 1
      %v6425 = vor.u32 %v6420, %v6424
      %v6427 = vshrl.u32 %v6413, 16
      %v6429 = vshll.u32 %v6413, 16
      %v6431 = vrot.slane %v6429, 1
      %v6432 = vor.u32 %v6427, %v6431
      %v6434 = vshrl.u32 %v6414, 16
      %v6436 = vshll.u32 %v6414, 16
      %v6438 = vrot.slane %v6436, 1
      %v6439 = vor.u32 %v6434, %v6438
      %v6441 = vshrl.u32 %v6415, 16
      %v6443 = vshll.u32 %v6415, 16
      %v6445 = vrot.slane %v6443, 1
      %v6446 = vor.u32 %v6441, %v6445
      %v6448 = vshrl.u32 %v6416, 16
      %v6450 = vshll.u32 %v6416, 16
      %v6452 = vrot.slane %v6450, 1
      %v6453 = vor.u32 %v6448, %v6452
      %v6455 = vshrl.u32 %v6417, 16
      %v6457 = vshll.u32 %v6417, 16
      %v6459 = vrot.slane %v6457, 1
      %v6460 = vor.u32 %v6455, %v6459
      %v6462 = vshrl.u32 %v6418, 16
      %v6464 = vshll.u32 %v6418, 16
      %v6466 = vrot.slane %v6464, 1
      %v6467 = vor.u32 %v6462, %v6466
      %v6475 = vunpack.c.l.b16 %v6208
      %v6476 = vunpack.c.l.b16 %v6209
      %v6477 = vunpack.c.l.b16 %v6210
      %v6478 = vunpack.c.l.b16 %v6211
      %v6479 = vunpack.c.l.b16 %v6212
      %v6480 = vunpack.c.l.b16 %v6213
      %v6481 = vunpack.c.l.b16 %v6214
      %v6482 = vpack.c.b16 %v6405, %v6475
      %v6483 = vpack.c.b16 %v6406, %v6476
      %v6484 = vpack.c.b16 %v6407, %v6477
      %v6485 = vpack.c.b16 %v6408, %v6478
      %v6486 = vpack.c.b16 %v6409, %v6479
      %v6487 = vpack.c.b16 %v6410, %v6480
      %v6488 = vpack.c.b16 %v6411, %v6481
      %v6489 = vrot.slane %v6482, 1
      %v6490 = vrot.slane %v6483, 1
      %v6491 = vrot.slane %v6484, 1
      %v6492 = vrot.slane %v6485, 1
      %v6493 = vrot.slane %v6486, 1
      %v6494 = vrot.slane %v6487, 1
      %v6495 = vrot.slane %v6488, 1
      %6496 = vrot.lane.b32.xlu0 %v6489, 64
      %v6497 = vpop.permute.xlu0 %6496
      %6498 = vrot.lane.b32.xlu0 %v6490, 64
      %v6499 = vpop.permute.xlu0 %6498
      %6500 = vrot.lane.b32.xlu0 %v6491, 64
      %v6501 = vpop.permute.xlu0 %6500
      %6502 = vrot.lane.b32.xlu0 %v6492, 64
      %v6503 = vpop.permute.xlu0 %6502
      %6504 = vrot.lane.b32.xlu0 %v6493, 64
      %v6505 = vpop.permute.xlu0 %6504
      %6506 = vrot.lane.b32.xlu0 %v6494, 64
      %v6507 = vpop.permute.xlu0 %6506
      %6508 = vrot.lane.b32.xlu0 %v6495, 64
      %v6509 = vpop.permute.xlu0 %6508
      %v6524 = vunpack.c.l.b16 %v6216
      %v6525 = vunpack.c.l.b16 %v6223
      %v6526 = vunpack.c.l.b16 %v6217
      %v6527 = vunpack.c.l.b16 %v6224
      %v6528 = vunpack.c.l.b16 %v6218
      %v6529 = vunpack.c.l.b16 %v6225
      %v6530 = vunpack.c.l.b16 %v6219
      %v6531 = vunpack.c.l.b16 %v6226
      %v6532 = vunpack.c.l.b16 %v6220
      %v6533 = vunpack.c.l.b16 %v6227
      %v6534 = vunpack.c.l.b16 %v6221
      %v6535 = vunpack.c.l.b16 %v6228
      %v6536 = vunpack.c.l.b16 %v6222
      %v6537 = vunpack.c.l.b16 %v6229
      %v6538 = vpack.c.b16 %v6525, %v6524
      %v6539 = vpack.c.b16 %v6527, %v6526
      %v6540 = vpack.c.b16 %v6529, %v6528
      %v6541 = vpack.c.b16 %v6531, %v6530
      %v6542 = vpack.c.b16 %v6533, %v6532
      %v6543 = vpack.c.b16 %v6535, %v6534
      %v6544 = vpack.c.b16 %v6537, %v6536
      %v6546 = vshrl.u32 %v6538, 16
      %v6548 = vshll.u32 %v6538, 16
      %v6550 = vrot.slane %v6548, 1
      %v6551 = vor.u32 %v6546, %v6550
      %v6553 = vshrl.u32 %v6539, 16
      %v6555 = vshll.u32 %v6539, 16
      %v6557 = vrot.slane %v6555, 1
      %v6558 = vor.u32 %v6553, %v6557
      %v6560 = vshrl.u32 %v6540, 16
      %v6562 = vshll.u32 %v6540, 16
      %v6564 = vrot.slane %v6562, 1
      %v6565 = vor.u32 %v6560, %v6564
      %v6567 = vshrl.u32 %v6541, 16
      %v6569 = vshll.u32 %v6541, 16
      %v6571 = vrot.slane %v6569, 1
      %v6572 = vor.u32 %v6567, %v6571
      %v6574 = vshrl.u32 %v6542, 16
      %v6576 = vshll.u32 %v6542, 16
      %v6578 = vrot.slane %v6576, 1
      %v6579 = vor.u32 %v6574, %v6578
      %v6581 = vshrl.u32 %v6543, 16
      %v6583 = vshll.u32 %v6543, 16
      %v6585 = vrot.slane %v6583, 1
      %v6586 = vor.u32 %v6581, %v6585
      %v6588 = vshrl.u32 %v6544, 16
      %v6590 = vshll.u32 %v6544, 16
      %v6592 = vrot.slane %v6590, 1
      %v6593 = vor.u32 %v6588, %v6592
      %6594 = vrot.lane.b32.xlu0 %v6551, 64
      %v6595 = vpop.permute.xlu0 %6594
      %6596 = vrot.lane.b32.xlu0 %v6558, 64
      %v6597 = vpop.permute.xlu0 %6596
      %6598 = vrot.lane.b32.xlu0 %v6565, 64
      %v6599 = vpop.permute.xlu0 %6598
      %6600 = vrot.lane.b32.xlu0 %v6572, 64
      %v6601 = vpop.permute.xlu0 %6600
      %6602 = vrot.lane.b32.xlu0 %v6579, 64
      %v6603 = vpop.permute.xlu0 %6602
      %6604 = vrot.lane.b32.xlu0 %v6586, 64
      %v6605 = vpop.permute.xlu0 %6604
      %6606 = vrot.lane.b32.xlu0 %v6593, 64
      %v6607 = vpop.permute.xlu0 %6606
      %v6615 = vunpack.c.l.b16 %v6230
      %v6616 = vunpack.c.l.b16 %v6231
      %v6617 = vunpack.c.l.b16 %v6232
      %v6618 = vunpack.c.l.b16 %v6233
      %v6619 = vunpack.c.l.b16 %v6234
      %v6620 = vunpack.c.l.b16 %v6235
      %v6621 = vunpack.c.l.b16 %v6236
      %v6622 = vpack.c.b16 %v6525, %v6615
      %v6623 = vpack.c.b16 %v6527, %v6616
      %v6624 = vpack.c.b16 %v6529, %v6617
      %v6625 = vpack.c.b16 %v6531, %v6618
      %v6626 = vpack.c.b16 %v6533, %v6619
      %v6627 = vpack.c.b16 %v6535, %v6620
      %v6628 = vpack.c.b16 %v6537, %v6621
      %v6629 = vrot.slane %v6622, 1
      %v6630 = vrot.slane %v6623, 1
      %v6631 = vrot.slane %v6624, 1
      %v6632 = vrot.slane %v6625, 1
      %v6633 = vrot.slane %v6626, 1
      %v6634 = vrot.slane %v6627, 1
      %v6635 = vrot.slane %v6628, 1
      %v6638 = vsel %vm4952, %v6173, %v6322
      %v6641 = vsel %vm4952, %v6174, %v6324
      %v6644 = vsel %vm4952, %v6175, %v6326
      %v6647 = vsel %vm4952, %v6176, %v6328
      %v6650 = vsel %vm4952, %v6177, %v6330
      %v6653 = vsel %vm4952, %v6178, %v6332
      %v6656 = vsel %vm4952, %v6179, %v6334
      %v6659 = vsel %vm4952, %v6356, %v6385
      %v6662 = vsel %vm4952, %v6357, %v6387
      %v6665 = vsel %vm4952, %v6358, %v6389
      %v6668 = vsel %vm4952, %v6359, %v6391
      %v6671 = vsel %vm4952, %v6360, %v6393
      %v6674 = vsel %vm4952, %v6361, %v6395
      %v6677 = vsel %vm4952, %v6362, %v6397
      %v6680 = vsel %vm4952, %v6425, %v6497
      %v6683 = vsel %vm4952, %v6432, %v6499
      %v6686 = vsel %vm4952, %v6439, %v6501
      %v6689 = vsel %vm4952, %v6446, %v6503
      %v6692 = vsel %vm4952, %v6453, %v6505
      %v6695 = vsel %vm4952, %v6460, %v6507
      %v6698 = vsel %vm4952, %v6467, %v6509
      %v6701 = vsel %vm4952, %v6216, %v6595
      %v6704 = vsel %vm4952, %v6217, %v6597
      %v6707 = vsel %vm4952, %v6218, %v6599
      %v6710 = vsel %vm4952, %v6219, %v6601
      %v6713 = vsel %vm4952, %v6220, %v6603
      %v6716 = vsel %vm4952, %v6221, %v6605
      %v6719 = vsel %vm4952, %v6222, %v6607
      %v6748 = vunpack.c.l.b16 %v6638
      %v6749 = vunpack.c.l.b16 %v6659
      %v6750 = vunpack.c.l.b16 %v6680
      %v6751 = vunpack.c.l.b16 %v6701
      %v6752 = vunpack.c.l.b16 %v6629
      %v6753 = vunpack.c.l.b16 %v6641
      %v6754 = vunpack.c.l.b16 %v6662
      %v6755 = vunpack.c.l.b16 %v6683
      %v6756 = vunpack.c.l.b16 %v6704
      %v6757 = vunpack.c.l.b16 %v6630
      %v6758 = vunpack.c.l.b16 %v6644
      %v6759 = vunpack.c.l.b16 %v6665
      %v6760 = vunpack.c.l.b16 %v6686
      %v6761 = vunpack.c.l.b16 %v6707
      %v6762 = vunpack.c.l.b16 %v6631
      %v6763 = vunpack.c.l.b16 %v6647
      %v6764 = vunpack.c.l.b16 %v6668
      %v6765 = vunpack.c.l.b16 %v6689
      %v6766 = vunpack.c.l.b16 %v6710
      %v6767 = vunpack.c.l.b16 %v6632
      %v6768 = vunpack.c.l.b16 %v6650
      %v6769 = vunpack.c.l.b16 %v6671
      %v6770 = vunpack.c.l.b16 %v6692
      %v6771 = vunpack.c.l.b16 %v6713
      %v6772 = vunpack.c.l.b16 %v6633
      %v6773 = vunpack.c.l.b16 %v6653
      %v6774 = vunpack.c.l.b16 %v6674
      %v6775 = vunpack.c.l.b16 %v6695
      %v6776 = vunpack.c.l.b16 %v6716
      %v6777 = vunpack.c.l.b16 %v6634
      %v6778 = vunpack.c.l.b16 %v6656
      %v6779 = vunpack.c.l.b16 %v6677
      %v6780 = vunpack.c.l.b16 %v6698
      %v6781 = vunpack.c.l.b16 %v6719
      %v6782 = vunpack.c.l.b16 %v6635
      %v6783 = vld [vmem:[%s5] sm:$0xf]
      %v6784 = vld [vmem:[%s5 + $0x4] sm:$0xf]
      %v6785 = vld [vmem:[%s5 + $0x8] sm:$0xf]
      %v6786 = vld [vmem:[%s5 + $0xc] sm:$0xf]
      %v6787 = vld [vmem:[%s5 + $0x10] sm:$0xf]
      %v6788 = vld [vmem:[%s5 + $0x14] sm:$0xf]
      %v6789 = vld [vmem:[%s5 + $0x18] sm:$0xf]
      %v6790 = vld [vmem:[%s5 + $0x1c] sm:$0xf]
      %v6791 = vld [vmem:[%s5 + $0x20] sm:$0xf]
      %v6792 = vld [vmem:[%s5 + $0x24] sm:$0xf]
      %v6793 = vld [vmem:[%s5 + $0x28] sm:$0xf]
      %v6794 = vld [vmem:[%s5 + $0x2c] sm:$0xf]
      %v6795 = vld [vmem:[%s5 + $0x30] sm:$0xf]
      %v6796 = vld [vmem:[%s5 + $0x34] sm:$0xf]
      %v6797 = vld [vmem:[%s5 + $0x38] sm:$0xf]
      %v6798 = vld [vmem:[%s5 + $0x3c] sm:$0xf]
      %v6799 = vld [vmem:[%s5 + $0x40] sm:$0xf]
      %v6800 = vld [vmem:[%s5 + $0x44] sm:$0xf]
      %v6801 = vld [vmem:[%s5 + $0x48] sm:$0xf]
      %v6802 = vld [vmem:[%s5 + $0x4c] sm:$0xf]
      %v6803 = vld [vmem:[%s5 + $0x50] sm:$0xf]
      %v6804 = vld [vmem:[%s5 + $0x54] sm:$0xf]
      %v6805 = vld [vmem:[%s5 + $0x58] sm:$0xf]
      %v6806 = vld [vmem:[%s5 + $0x5c] sm:$0xf]
      %v6807 = vld [vmem:[%s5 + $0x60] sm:$0xf]
      %v6808 = vld [vmem:[%s5 + $0x64] sm:$0xf]
      %v6809 = vld [vmem:[%s5 + $0x68] sm:$0xf]
      %v6810 = vld [vmem:[%s5 + $0x6c] sm:$0xf]
      %v6811 = vld [vmem:[%s5 + $0x70] sm:$0xf]
      %v6812 = vld [vmem:[%s5 + $0x74] sm:$0xf]
      %v6813 = vld [vmem:[%s5 + $0x78] sm:$0xf]
      %v6814 = vld [vmem:[%s5 + $0x7c] sm:$0xf]
      %v6815 = vld [vmem:[%s5 + $0x80] sm:$0xf]
      %v6816 = vld [vmem:[%s5 + $0x84] sm:$0xf]
      %v6817 = vld [vmem:[%s5 + $0x88] sm:$0xf]
      %v6818 = vld [vmem:[%s5 + $0x8c] sm:$0xf]
      %v6819 = vld [vmem:[%s5 + $0x90] sm:$0xf]
      %v6820 = vld [vmem:[%s5 + $0x94] sm:$0xf]
      %v6821 = vld [vmem:[%s5 + $0x98] sm:$0xf]
      %v6822 = vld [vmem:[%s5 + $0x9c] sm:$0xf]
      %v6823 = vld [vmem:[%s5 + $0xa0] sm:$0xf]
      %v6824 = vld [vmem:[%s5 + $0xa4] sm:$0xf]
      %v6825 = vld [vmem:[%s5 + $0xa8] sm:$0xf]
      %v6826 = vld [vmem:[%s5 + $0xac] sm:$0xf]
      %v6827 = vld [vmem:[%s5 + $0xb0] sm:$0xf]
      %v6828 = vld [vmem:[%s5 + $0xb4] sm:$0xf]
      %v6829 = vld [vmem:[%s5 + $0xb8] sm:$0xf]
      %v6830 = vld [vmem:[%s5 + $0xbc] sm:$0xf]
      %v6831 = vld [vmem:[%s5 + $0xc0] sm:$0xf]
      %v6832 = vld [vmem:[%s5 + $0xc4] sm:$0xf]
      %v6833 = vld [vmem:[%s5 + $0xc8] sm:$0xf]
      %v6834 = vld [vmem:[%s5 + $0xcc] sm:$0xf]
      %v6835 = vld [vmem:[%s5 + $0xd0] sm:$0xf]
      %v6836 = vld [vmem:[%s5 + $0xd4] sm:$0xf]
      %v6837 = vld [vmem:[%s5 + $0xd8] sm:$0xf]
      %v6838 = vld [vmem:[%s5 + $0xdc] sm:$0xf]
      %v6839 = vld [vmem:[%s5 + $0xe0] sm:$0xf]
      %v6840 = vld [vmem:[%s5 + $0xe4] sm:$0xf]
      %v6841 = vld [vmem:[%s5 + $0xe8] sm:$0xf]
      %v6842 = vld [vmem:[%s5 + $0xec] sm:$0xf]
      %v6843 = vld [vmem:[%s5 + $0xf0] sm:$0xf]
      %v6844 = vld [vmem:[%s5 + $0xf4] sm:$0xf]
      %v6845 = vld [vmem:[%s5 + $0xf8] sm:$0xf]
      %v6846 = vld [vmem:[%s5 + $0xfc] sm:$0xf]
      %v6847 = vld [vmem:[%s5 + $0x100] sm:$0xf]
      %v6848 = vld [vmem:[%s5 + $0x104] sm:$0xf]
      %v6849 = vld [vmem:[%s5 + $0x108] sm:$0xf]
      %v6850 = vld [vmem:[%s5 + $0x10c] sm:$0xf]
      %v6851 = vld [vmem:[%s5 + $0x110] sm:$0xf]
      %v6852 = vld [vmem:[%s5 + $0x114] sm:$0xf]
      %v6853 = vld [vmem:[%s5 + $0x118] sm:$0xf]
      %v6854 = vld [vmem:[%s5 + $0x11c] sm:$0xf]
      %v6855 = vld [vmem:[%s6] sm:$0x1]
      %v6857 = vlaneseq
      %v6858 = vshrl.u32 %v6857, 7
      %v6859 = vsub.s32 0, %v6858
      %v6860 = vrot.slane %v6855, %v6859
      %v6862 = vpack.c.b16 %v6753, %v6748
      %v6863 = vpack.c.b16 %v6754, %v6749
      %v6864 = vpack.c.b16 %v6755, %v6750
      %v6865 = vpack.c.b16 %v6756, %v6751
      %v6866 = vpack.c.b16 %v6757, %v6752
      %v6867 = vpack.c.b16 %v6763, %v6758
      %v6868 = vpack.c.b16 %v6764, %v6759
      %v6869 = vpack.c.b16 %v6765, %v6760
      %v6870 = vpack.c.b16 %v6766, %v6761
      %v6871 = vpack.c.b16 %v6767, %v6762
      %v6872 = vpack.c.b16 %v6773, %v6768
      %v6873 = vpack.c.b16 %v6774, %v6769
      %v6874 = vpack.c.b16 %v6775, %v6770
      %v6875 = vpack.c.b16 %v6776, %v6771
      %v6876 = vpack.c.b16 %v6777, %v6772
      %v6877 = vpack.c.b16 %v6778, %v6778
      %v6878 = vpack.c.b16 %v6779, %v6779
      %v6879 = vpack.c.b16 %v6780, %v6780
      %v6880 = vpack.c.b16 %v6781, %v6781
      %v6881 = vpack.c.b16 %v6782, %v6782
      %v6970 = vunpack.c.l.b16 %v6783
      %v6971 = vunpack.c.l.b16 %v6784
      %v6972 = vunpack.c.l.b16 %v6785
      %v6973 = vunpack.c.l.b16 %v6786
      %v6974 = vunpack.c.l.b16 %v6787
      %v6975 = vunpack.c.l.b16 %v6788
      %v6976 = vunpack.c.l.b16 %v6789
      %v6977 = vunpack.c.l.b16 %v6790
      %v6978 = vunpack.c.l.b16 %v6791
      %v6979 = vunpack.c.l.b16 %v6792
      %v6980 = vunpack.c.l.b16 %v6793
      %v6981 = vunpack.c.l.b16 %v6794
      %v6982 = vunpack.c.l.b16 %v6795
      %v6983 = vunpack.c.l.b16 %v6796
      %v6984 = vunpack.c.l.b16 %v6797
      %v6985 = vunpack.c.l.b16 %v6798
      %v6986 = vunpack.c.l.b16 %v6799
      %v6987 = vunpack.c.l.b16 %v6800
      %v6988 = vunpack.c.l.b16 %v6801
      %v6989 = vunpack.c.l.b16 %v6802
      %v6990 = vunpack.c.l.b16 %v6803
      %v6991 = vunpack.c.l.b16 %v6804
      %v6992 = vunpack.c.l.b16 %v6805
      %v6993 = vunpack.c.l.b16 %v6806
      %v6994 = vunpack.c.l.b16 %v6807
      %v6995 = vunpack.c.l.b16 %v6808
      %v6996 = vunpack.c.l.b16 %v6809
      %v6997 = vunpack.c.l.b16 %v6810
      %v6998 = vunpack.c.l.b16 %v6811
      %v6999 = vunpack.c.l.b16 %v6812
      %v7000 = vunpack.c.l.b16 %v6813
      %v7001 = vunpack.c.l.b16 %v6814
      %v7002 = vunpack.c.l.b16 %v6815
      %v7003 = vunpack.c.l.b16 %v6816
      %v7004 = vunpack.c.l.b16 %v6817
      %v7005 = vunpack.c.l.b16 %v6818
      %v7006 = vunpack.c.l.b16 %v6819
      %v7007 = vunpack.c.l.b16 %v6820
      %v7008 = vunpack.c.l.b16 %v6821
      %v7009 = vunpack.c.l.b16 %v6822
      %v7010 = vunpack.c.l.b16 %v6823
      %v7011 = vunpack.c.l.b16 %v6824
      %v7012 = vunpack.c.l.b16 %v6825
      %v7013 = vunpack.c.l.b16 %v6826
      %v7014 = vunpack.c.l.b16 %v6827
      %v7015 = vunpack.c.l.b16 %v6828
      %v7016 = vunpack.c.l.b16 %v6829
      %v7017 = vunpack.c.l.b16 %v6830
      %v7018 = vunpack.c.l.b16 %v6831
      %v7019 = vunpack.c.l.b16 %v6832
      %v7020 = vunpack.c.l.b16 %v6833
      %v7021 = vunpack.c.l.b16 %v6834
      %v7022 = vunpack.c.l.b16 %v6835
      %v7023 = vunpack.c.l.b16 %v6836
      %v7024 = vunpack.c.l.b16 %v6837
      %v7025 = vunpack.c.l.b16 %v6838
      %v7026 = vunpack.c.l.b16 %v6839
      %v7027 = vunpack.c.l.b16 %v6840
      %v7028 = vunpack.c.l.b16 %v6841
      %v7029 = vunpack.c.l.b16 %v6842
      %v7030 = vunpack.c.l.b16 %v6843
      %v7031 = vunpack.c.l.b16 %v6844
      %v7032 = vunpack.c.l.b16 %v6845
      %v7033 = vunpack.c.l.b16 %v6846
      %v7034 = vunpack.c.l.b16 %v6847
      %v7035 = vunpack.c.l.b16 %v6848
      %v7036 = vunpack.c.l.b16 %v6849
      %v7037 = vunpack.c.l.b16 %v6850
      %v7038 = vunpack.c.l.b16 %v6851
      %v7039 = vunpack.c.l.b16 %v6852
      %v7040 = vunpack.c.l.b16 %v6853
      %v7041 = vunpack.c.l.b16 %v6854
      %v7042 = vpack.c.b16 %v6971, %v6970
      %v7043 = vpack.c.b16 %v6973, %v6972
      %v7044 = vpack.c.b16 %v6975, %v6974
      %v7045 = vpack.c.b16 %v6977, %v6976
      %v7046 = vpack.c.b16 %v6979, %v6978
      %v7047 = vpack.c.b16 %v6981, %v6980
      %v7048 = vpack.c.b16 %v6983, %v6982
      %v7049 = vpack.c.b16 %v6985, %v6984
      %v7050 = vpack.c.b16 %v6987, %v6986
      %v7051 = vpack.c.b16 %v6989, %v6988
      %v7052 = vpack.c.b16 %v6991, %v6990
      %v7053 = vpack.c.b16 %v6993, %v6992
      %v7054 = vpack.c.b16 %v6995, %v6994
      %v7055 = vpack.c.b16 %v6997, %v6996
      %v7056 = vpack.c.b16 %v6999, %v6998
      %v7057 = vpack.c.b16 %v7001, %v7000
      %v7058 = vpack.c.b16 %v7003, %v7002
      %v7059 = vpack.c.b16 %v7005, %v7004
      %v7060 = vpack.c.b16 %v7007, %v7006
      %v7061 = vpack.c.b16 %v7009, %v7008
      %v7062 = vpack.c.b16 %v7011, %v7010
      %v7063 = vpack.c.b16 %v7013, %v7012
      %v7064 = vpack.c.b16 %v7015, %v7014
      %v7065 = vpack.c.b16 %v7017, %v7016
      %v7066 = vpack.c.b16 %v7019, %v7018
      %v7067 = vpack.c.b16 %v7021, %v7020
      %v7068 = vpack.c.b16 %v7023, %v7022
      %v7069 = vpack.c.b16 %v7025, %v7024
      %v7070 = vpack.c.b16 %v7027, %v7026
      %v7071 = vpack.c.b16 %v7029, %v7028
      %v7072 = vpack.c.b16 %v7031, %v7030
      %v7073 = vpack.c.b16 %v7033, %v7032
      %v7074 = vpack.c.b16 %v7035, %v7034
      %v7075 = vpack.c.b16 %v7037, %v7036
      %v7076 = vpack.c.b16 %v7039, %v7038
      %v7077 = vpack.c.b16 %v7041, %v7040
      %v7115 = vsel %vm4952, %v6866, 0
      %v7118 = vsel %vm4952, %v6871, 0
      %v7121 = vsel %vm4952, %v6876, 0
      %v7124 = vsel %vm4952, %v6881, 0
      %7126 = vmatprep.subr.bf16.mxu0 0
      %7127 = vmatpush1.bf16.msra.mxu0 %v7042
      %7128 = vmatprep.subr.bf16.mxu0 0
      %7129 = vmatpush1.bf16.msra.mxu0 %v7043
      %7130 = vmatprep.subr.bf16.mxu0 0
      %7131 = vmatpush1.bf16.msra.mxu0 %v7044
      %7132 = vmatprep.subr.bf16.mxu0 0
      %7133 = vmatpush1.bf16.msra.mxu0 %v7045
      %7134 = vmatprep.subr.bf16.mxu0 0
      %7135 = vmatpush1.bf16.msra.mxu0 %v7046
      %7136 = vmatprep.subr.bf16.mxu0 0
      %7137 = vmatpush1.bf16.msra.mxu0 %v7047
      %7138 = vmatprep.subr.bf16.mxu0 0
      %7139 = vmatpush1.bf16.msra.mxu0 %v7048
      %7140 = vmatprep.subr.bf16.mxu0 0
      %7141 = vmatpush1.bf16.msra.mxu0 %v7049
      %7142 = vmatprep.subr.bf16.mxu0 0
      %7143 = vmatpush1.bf16.msra.mxu0 %v7050
      %7144 = vmatprep.subr.bf16.mxu0 0
      %7145 = vmatpush1.bf16.msra.mxu0 %v7051
      %7146 = vmatprep.subr.bf16.mxu0 0
      %7147 = vmatpush1.bf16.msra.mxu0 %v7052
      %7148 = vmatprep.subr.bf16.mxu0 0
      %7149 = vmatpush1.bf16.msra.mxu0 %v7053
      %7150 = vmatprep.subr.bf16.mxu0 0
      %7151 = vmatpush1.bf16.msra.mxu0 %v7054
      %7152 = vmatprep.subr.bf16.mxu0 0
      %7153 = vmatpush1.bf16.msra.mxu0 %v7055
      %7154 = vmatprep.subr.bf16.mxu0 0
      %7155 = vmatpush1.bf16.msra.mxu0 %v7056
      %7156 = vmatprep.subr.bf16.mxu0 0
      %7157 = vmatpush1.bf16.msra.mxu0 %v7057
      %7158 = vmatprep.mubr.bf16.mxu0 %v6863
      %7159 = vmatmul.mubr.bf16.gmra.mrb[0].mxu0 %v6862
      %v7160 = vpop.f32.mrb[0].mxu0
      %v7161 = vadd.f32 %v6860, %v7160
      %v7162 = vpop.f32.mrb[0].mxu0
      %v7163 = vpop.f32.mrb[0].mxu0
      %v7164 = vadd.f32 %v6860, %v7163
      %v7165 = vpop.f32.mrb[0].mxu0
      %7166 = vmatprep.mubr.bf16.mxu0 %v6868
      %7167 = vmatmul.mubr.bf16.gmra.mrb[0].mxu0 %v6867
      %v7168 = vpop.f32.mrb[0].mxu0
      %v7169 = vadd.f32 %v6860, %v7168
      %v7170 = vpop.f32.mrb[0].mxu0
      %v7171 = vpop.f32.mrb[0].mxu0
      %v7172 = vadd.f32 %v6860, %v7171
      %v7173 = vpop.f32.mrb[0].mxu0
      %7174 = vmatprep.mubr.bf16.mxu0 %v6873
      %7175 = vmatmul.mubr.bf16.gmra.mrb[0].mxu0 %v6872
      %v7176 = vpop.f32.mrb[0].mxu0
      %v7177 = vadd.f32 %v6860, %v7176
      %v7178 = vpop.f32.mrb[0].mxu0
      %v7179 = vpop.f32.mrb[0].mxu0
      %v7180 = vadd.f32 %v6860, %v7179
      %v7181 = vpop.f32.mrb[0].mxu0
      %7182 = vmatprep.mubr.bf16.mxu0 %v6878
      %7183 = vmatmul.mubr.bf16.gmra.mrb[0].mxu0 %v6877
      %v7184 = vpop.f32.mrb[0].mxu0
      %v7185 = vadd.f32 %v6860, %v7184
      %v7186 = vpop.f32.mrb[0].mxu0
      %v7187 = vpop.f32.mrb[0].mxu0
      %v7188 = vpop.f32.mrb[0].mxu0
      %7189 = vdwg.mxu0
      %7190 = vmatprep.subr.bf16.mxu0 0
      %7191 = vmatpush1.bf16.msra.mxu0 %v7058
      %7192 = vmatprep.subr.bf16.mxu0 0
      %7193 = vmatpush1.bf16.msra.mxu0 %v7059
      %7194 = vmatprep.subr.bf16.mxu0 0
      %7195 = vmatpush1.bf16.msra.mxu0 %v7060
      %7196 = vmatprep.subr.bf16.mxu0 0
      %7197 = vmatpush1.bf16.msra.mxu0 %v7061
      %7198 = vmatprep.subr.bf16.mxu0 0
      %7199 = vmatpush1.bf16.msra.mxu0 %v7062
      %7200 = vmatprep.subr.bf16.mxu0 0
      %7201 = vmatpush1.bf16.msra.mxu0 %v7063
      %7202 = vmatprep.subr.bf16.mxu0 0
      %7203 = vmatpush1.bf16.msra.mxu0 %v7064
      %7204 = vmatprep.subr.bf16.mxu0 0
      %7205 = vmatpush1.bf16.msra.mxu0 %v7065
      %7206 = vmatprep.subr.bf16.mxu0 0
      %7207 = vmatpush1.bf16.msra.mxu0 %v7066
      %7208 = vmatprep.subr.bf16.mxu0 0
      %7209 = vmatpush1.bf16.msra.mxu0 %v7067
      %7210 = vmatprep.subr.bf16.mxu0 0
      %7211 = vmatpush1.bf16.msra.mxu0 %v7068
      %7212 = vmatprep.subr.bf16.mxu0 0
      %7213 = vmatpush1.bf16.msra.mxu0 %v7069
      %7214 = vmatprep.subr.bf16.mxu0 0
      %7215 = vmatpush1.bf16.msra.mxu0 %v7070
      %7216 = vmatprep.subr.bf16.mxu0 0
      %7217 = vmatpush1.bf16.msra.mxu0 %v7071
      %7218 = vmatprep.subr.bf16.mxu0 0
      %7219 = vmatpush1.bf16.msra.mxu0 %v7072
      %7220 = vmatprep.subr.bf16.mxu0 0
      %7221 = vmatpush1.bf16.msra.mxu0 %v7073
      %7222 = vmatprep.mubr.bf16.mxu0 %v6865
      %7223 = vmatmul.mubr.bf16.gmra.mrb[0].mxu0 %v6864
      %v7224 = vpop.f32.mrb[0].mxu0
      %v7225 = vadd.f32 %v7161, %v7224
      %v7226 = vpop.f32.mrb[0].mxu0
      %v7227 = vpop.f32.mrb[0].mxu0
      %v7228 = vadd.f32 %v7164, %v7227
      %v7229 = vpop.f32.mrb[0].mxu0
      %7230 = vmatprep.mubr.bf16.mxu0 %v6870
      %7231 = vmatmul.mubr.bf16.gmra.mrb[0].mxu0 %v6869
      %v7232 = vpop.f32.mrb[0].mxu0
      %v7233 = vadd.f32 %v7169, %v7232
      %v7234 = vpop.f32.mrb[0].mxu0
      %v7235 = vpop.f32.mrb[0].mxu0
      %v7236 = vadd.f32 %v7172, %v7235
      %v7237 = vpop.f32.mrb[0].mxu0
      %7238 = vmatprep.mubr.bf16.mxu0 %v6875
      %7239 = vmatmul.mubr.bf16.gmra.mrb[0].mxu0 %v6874
      %v7240 = vpop.f32.mrb[0].mxu0
      %v7241 = vadd.f32 %v7177, %v7240
      %v7242 = vpop.f32.mrb[0].mxu0
      %v7243 = vpop.f32.mrb[0].mxu0
      %v7244 = vadd.f32 %v7180, %v7243
      %v7245 = vpop.f32.mrb[0].mxu0
      %7246 = vmatprep.mubr.bf16.mxu0 %v6880
      %7247 = vmatmul.mubr.bf16.gmra.mrb[0].mxu0 %v6879
      %v7248 = vpop.f32.mrb[0].mxu0
      %v7249 = vadd.f32 %v7185, %v7248
      %v7250 = vpop.f32.mrb[0].mxu0
      %v7251 = vpop.f32.mrb[0].mxu0
      %v7252 = vpop.f32.mrb[0].mxu0
      %7253 = vdwg.mxu0
      %7254 = vmatprep.subr.bf16.mxu0 0
      %7255 = vmatpush1.bf16.msra.mxu0 %v7074
      %7256 = vmatprep.subr.bf16.mxu0 0
      %7257 = vmatpush1.bf16.msra.mxu0 %v7075
      %7258 = vmatprep.subr.bf16.mxu0 0
      %7259 = vmatpush1.bf16.msra.mxu0 %v7076
      %7260 = vmatprep.subr.bf16.mxu0 0
      %7261 = vmatpush1.bf16.msra.mxu0 %v7077
      %7262 = vmatprep.subr.bf16.mxu0 0
      %7263 = vmatpush1.bf16.msra.mxu0 0
      %7264 = vmatprep.subr.bf16.mxu0 0
      %7265 = vmatpush1.bf16.msra.mxu0 0
      %7266 = vmatprep.subr.bf16.mxu0 0
      %7267 = vmatpush1.bf16.msra.mxu0 0
      %7268 = vmatprep.subr.bf16.mxu0 0
      %7269 = vmatpush1.bf16.msra.mxu0 0
      %7270 = vmatprep.subr.bf16.mxu0 0
      %7271 = vmatpush1.bf16.msra.mxu0 0
      %7272 = vmatprep.subr.bf16.mxu0 0
      %7273 = vmatpush1.bf16.msra.mxu0 0
      %7274 = vmatprep.subr.bf16.mxu0 0
      %7275 = vmatpush1.bf16.msra.mxu0 0
      %7276 = vmatprep.subr.bf16.mxu0 0
      %7277 = vmatpush1.bf16.msra.mxu0 0
      %7278 = vmatprep.subr.bf16.mxu0 0
      %7279 = vmatpush1.bf16.msra.mxu0 0
      %7280 = vmatprep.subr.bf16.mxu0 0
      %7281 = vmatpush1.bf16.msra.mxu0 0
      %7282 = vmatprep.subr.bf16.mxu0 0
      %7283 = vmatpush1.bf16.msra.mxu0 0
      %7284 = vmatprep.subr.bf16.mxu0 0
      %7285 = vmatpush1.bf16.msra.mxu0 0
      %7286 = vmatprep.mubr.bf16.mxu0 0
      %7287 = vmatmul.mubr.bf16.gmra.mrb[0].mxu0 %v7115
      %v7288 = vpop.f32.mrb[0].mxu0
      %v7289 = vadd.f32 %v7225, %v7288
      %v7290 = vpop.f32.mrb[0].mxu0
      %v7291 = vpop.f32.mrb[0].mxu0
      %v7292 = vadd.f32 %v7228, %v7291
      %v7293 = vpop.f32.mrb[0].mxu0
      %7294 = vmatprep.mubr.bf16.mxu0 0
      %7295 = vmatmul.mubr.bf16.gmra.mrb[0].mxu0 %v7118
      %v7296 = vpop.f32.mrb[0].mxu0
      %v7297 = vadd.f32 %v7233, %v7296
      %v7298 = vpop.f32.mrb[0].mxu0
      %v7299 = vpop.f32.mrb[0].mxu0
      %v7300 = vadd.f32 %v7236, %v7299
      %v7301 = vpop.f32.mrb[0].mxu0
      %7302 = vmatprep.mubr.bf16.mxu0 0
      %7303 = vmatmul.mubr.bf16.gmra.mrb[0].mxu0 %v7121
      %v7304 = vpop.f32.mrb[0].mxu0
      %v7305 = vadd.f32 %v7241, %v7304
      %v7306 = vpop.f32.mrb[0].mxu0
      %v7307 = vpop.f32.mrb[0].mxu0
      %v7308 = vadd.f32 %v7244, %v7307
      %v7309 = vpop.f32.mrb[0].mxu0
      %7310 = vmatprep.mubr.bf16.mxu0 0
      %7311 = vmatmul.mubr.bf16.gmra.mrb[0].mxu0 %v7124
      %v7312 = vpop.f32.mrb[0].mxu0
      %v7313 = vadd.f32 %v7249, %v7312
      %v7314 = vpop.f32.mrb[0].mxu0
      %v7315 = vpop.f32.mrb[0].mxu0
      %v7316 = vpop.f32.mrb[0].mxu0
      %7317 = vdwg.mxu0
      %v7318 = vmax.f32 %v7289, 0.0
      %v7319 = vmax.f32 %v7292, 0.0
      %v7320 = vmax.f32 %v7297, 0.0
      %v7321 = vmax.f32 %v7300, 0.0
      %v7322 = vmax.f32 %v7305, 0.0
      %v7323 = vmax.f32 %v7308, 0.0
      %v7324 = vmax.f32 %v7313, 0.0
      %v7325 = vpack.c.bf16 %v7319, %v7318
      %v7326 = vpack.c.bf16 %v7321, %v7320
      %v7327 = vpack.c.bf16 %v7323, %v7322
      %v7328 = vpack.c.bf16 %v7324, %v7324
      %v7333 = vunpack.c.l.b16 %v7325
      %v7334 = vunpack.c.h.b16 %v7325
      %v7335 = vunpack.c.l.b16 %v7326
      %v7336 = vunpack.c.h.b16 %v7326
      %v7337 = vunpack.c.l.b16 %v7327
      %v7338 = vunpack.c.h.b16 %v7327
      %v7339 = vunpack.c.l.b16 %v7328
      %v7340 = vpack.c.b16 %v7333, %v7333
      %v7341 = vpack.c.b16 %v7334, %v7334
      %v7342 = vpack.c.b16 %v7335, %v7335
      %v7343 = vpack.c.b16 %v7336, %v7336
      %v7344 = vpack.c.b16 %v7337, %v7337
      %v7345 = vpack.c.b16 %v7338, %v7338
      %v7346 = vpack.c.b16 %v7339, %v7339
      %v7354 = vmax.bf16 %v7341, %v7342
      %v7355 = vmax.bf16 %v7343, %v7344
      %v7356 = vmax.bf16 %v7345, %v7346
      %vm7357 = vcmask 1040384
      %vm7358 = vmand %vm7357, %vm1610
      %v7359 = vld [vmem:[%s278] sm:$0x1]
      %v7360 = vsel %vm7358, %v7340, %v7359
      %7361 = vst [vmem:[%s278] sm:$0x1] %v7360
      %v7362 = vld [vmem:[%s278 + $0x2] sm:$0x1]
      %v7363 = vsel %vm7358, %v7354, %v7362
      %7364 = vst [vmem:[%s278 + $0x2] sm:$0x1] %v7363
      %v7365 = vld [vmem:[%s278 + $0x4] sm:$0x1]
      %v7366 = vsel %vm7358, %v7355, %v7365
      %7367 = vst [vmem:[%s278 + $0x4] sm:$0x1] %v7366
      %v7368 = vld [vmem:[%s278 + $0x6] sm:$0x1]
      %v7369 = vsel %vm7358, %v7356, %v7368
      %7370 = vst [vmem:[%s278 + $0x6] sm:$0x1] %v7369
      %v7372 = vshll.u32 %v7340, 16
      %v7374 = vrot.slane %v7372, 5
      %v7375 = vrot.slane %v7374, 4
      %v7377 = vshll.u32 %v7354, 16
      %v7379 = vrot.slane %v7377, 5
      %v7380 = vrot.slane %v7379, 4
      %v7382 = vshll.u32 %v7355, 16
      %v7384 = vrot.slane %v7382, 5
      %v7385 = vrot.slane %v7384, 4
      %v7387 = vshll.u32 %v7356, 16
      %v7389 = vrot.slane %v7387, 5
      %v7390 = vrot.slane %v7389, 4
      %v7395 = vmax.bf16 %v7340, %v7375
      %v7396 = vmax.bf16 %v7354, %v7380
      %v7397 = vmax.bf16 %v7355, %v7385
      %v7398 = vmax.bf16 %v7356, %v7390
      %vm7399 = vmand %vm7357, %vm1780
      %v7400 = vld [vmem:[%s278] sm:$0x1]
      %v7401 = vsel %vm7399, %v7395, %v7400
      %7402 = vst [vmem:[%s278] sm:$0x1] %v7401
      %v7403 = vld [vmem:[%s278 + $0x2] sm:$0x1]
      %v7404 = vsel %vm7399, %v7396, %v7403
      %7405 = vst [vmem:[%s278 + $0x2] sm:$0x1] %v7404
      %v7406 = vld [vmem:[%s278 + $0x4] sm:$0x1]
      %v7407 = vsel %vm7399, %v7397, %v7406
      %7408 = vst [vmem:[%s278 + $0x4] sm:$0x1] %v7407
      %v7409 = vld [vmem:[%s278 + $0x6] sm:$0x1]
      %v7410 = vsel %vm7399, %v7398, %v7409
      %7411 = vst [vmem:[%s278 + $0x6] sm:$0x1] %v7410
      %v7417 = vunpack.c.l.s4 1983009808
      %v7418 = vunpack.c.0.s8 %v7417
      %v7419 = vlaneseq
      %v7420 = vshrl.u32 %v7419, 7
      %v7421 = vsub.s32 %v7418, %v7420
      %v7422 = vrot.slane %v7395, %v7421
      %v7424 = vunpack.c.l.s4 1983009808
      %v7425 = vunpack.c.0.s8 %v7424
      %v7426 = vlaneseq
      %v7427 = vshrl.u32 %v7426, 7
      %v7428 = vsub.s32 %v7425, %v7427
      %v7429 = vrot.slane %v7396, %v7428
      %v7431 = vunpack.c.l.s4 1983009808
      %v7432 = vunpack.c.0.s8 %v7431
      %v7433 = vlaneseq
      %v7434 = vshrl.u32 %v7433, 7
      %v7435 = vsub.s32 %v7432, %v7434
      %v7436 = vrot.slane %v7397, %v7435
      %v7438 = vunpack.c.l.s4 1983009808
      %v7439 = vunpack.c.0.s8 %v7438
      %v7440 = vlaneseq
      %v7441 = vshrl.u32 %v7440, 7
      %v7442 = vsub.s32 %v7439, %v7441
      %v7443 = vrot.slane %v7398, %v7442
      %v7445 = vshrl.u32 %v7422, 16
      %v7447 = vrot.slane %v7445, 6
      %v7448 = vrot.slane %v7447, 2
      %v7450 = vshrl.u32 %v7429, 16
      %v7452 = vrot.slane %v7450, 6
      %v7453 = vrot.slane %v7452, 2
      %v7455 = vshrl.u32 %v7436, 16
      %v7457 = vrot.slane %v7455, 6
      %v7458 = vrot.slane %v7457, 2
      %v7460 = vshrl.u32 %v7443, 16
      %v7462 = vrot.slane %v7460, 6
      %v7463 = vrot.slane %v7462, 2
      %vm7468 = vcmask 1041409
      %vm7469 = vmand %vm7468, %vm1867
      %v7470 = vld [vmem:[%s278] sm:$0x2]
      %v7471 = vsel %vm7469, %v7448, %v7470
      %7472 = vst [vmem:[%s278] sm:$0x2] %v7471
      %v7473 = vld [vmem:[%s278 + $0x2] sm:$0x2]
      %v7474 = vsel %vm7469, %v7453, %v7473
      %7475 = vst [vmem:[%s278 + $0x2] sm:$0x2] %v7474
      %v7476 = vld [vmem:[%s278 + $0x4] sm:$0x2]
      %v7477 = vsel %vm7469, %v7458, %v7476
      %7478 = vst [vmem:[%s278 + $0x4] sm:$0x2] %v7477
      %v7479 = vld [vmem:[%s278 + $0x6] sm:$0x2]
      %v7480 = vsel %vm7469, %v7463, %v7479
      %7481 = vst [vmem:[%s278 + $0x6] sm:$0x2] %v7480
      %v7482 = vcombine.high %v7422, %v7422
      %v7483 = vcombine.high %v7429, %v7429
      %v7484 = vcombine.high %v7436, %v7436
      %v7485 = vcombine.high %v7443, %v7443
      %v7486 = vrot.slane %v7482, 7
      %v7487 = vrot.slane %v7483, 7
      %v7488 = vrot.slane %v7484, 7
      %v7489 = vrot.slane %v7485, 7
      %vm7494 = vmand %vm7468, %vm1953
      %v7495 = vld [vmem:[%s278] sm:$0x2]
      %v7496 = vsel %vm7494, %v7486, %v7495
      %7497 = vst [vmem:[%s278] sm:$0x2] %v7496
      %v7498 = vld [vmem:[%s278 + $0x2] sm:$0x2]
      %v7499 = vsel %vm7494, %v7487, %v7498
      %7500 = vst [vmem:[%s278 + $0x2] sm:$0x2] %v7499
      %v7501 = vld [vmem:[%s278 + $0x4] sm:$0x2]
      %v7502 = vsel %vm7494, %v7488, %v7501
      %7503 = vst [vmem:[%s278 + $0x4] sm:$0x2] %v7502
      %v7504 = vld [vmem:[%s278 + $0x6] sm:$0x2]
      %v7505 = vsel %vm7494, %v7489, %v7504
      %7506 = vst [vmem:[%s278 + $0x6] sm:$0x2] %v7505
      %p7507 = scmp.lt.s32.totalorder %s18, 1
      %s7508 = scalar_select %p7507, %s18, 1
      %s7509 = smul.addr %s7508, 4
      %s7510 = smul.addr %s7509, 2
      %s7511 = scalar_lea.vmem %s7, %s7510
      // Predicated region
      $region49: #{cnn_forward.2} parent=47 // pred_check
        %p7512 = pneg %p188
      $region50: #{cnn_forward.2} parent=47 // pred_check_branch
        %7514 = sbr.rel (%p7512) target = $region52
      $region51: #{cnn_forward.2} parent=47 // pred_region
        _
      $region52: #{cnn_forward.2} parent=47 // pred_fallthru
        _
    $region48: #{cnn_forward.2} parent=5 // pred_fallthru
      _
    %p7515 = scmp.le.s32.totalorder 2, %s13
    // Predicated region
    $region53: #{cnn_forward.2} parent=5 // pred_check
      %p7516 = pneg %p7515
    $region54: #{cnn_forward.2} parent=5 // pred_check_branch
      %7518 = sbr.rel (%p7516) target = $region56
    $region55: #{cnn_forward.2} parent=5 // pred_region
      %s7519 = ssub.s32 %s13, 2
      // Predicated region
      $region57: #{cnn_forward.2} parent=55 // pred_check
        %p7520 = pneg %p194
      $region58: #{cnn_forward.2} parent=55 // pred_check_branch
        %7522 = sbr.rel (%p7520) target = $region60
      $region59: #{cnn_forward.2} parent=55 // pred_region
        %p7523 = scmp.lt.s32.totalorder %s19, 1
        %s7524 = scalar_select %p7523, %s19, 1
        %s7525 = smul.addr %s7524, 4
        %s7526 = smul.addr %s7525, 2
        %s7527 = scalar_lea.vmem %s7, %s7526
      $region60: #{cnn_forward.2} parent=55 // pred_fallthru
        _
    $region56: #{cnn_forward.2} parent=5 // pred_fallthru
      _
  $region6: #{cnn_forward.2} parent=0 // loop_footer
    %s17 = sadd.s32 1, %s13
  $region7: #{cnn_forward.2} parent=0 // loop_footer_branch
    %12 = sbr.rel target = $region3
  $region8: #{cnn_forward.2} parent=0 // loop_exit
    _

</llo_original>
